<compile_context>
chip_gen: v6e
topology: v6e:2x2x1
jax: 0.10.0
libtpu: 0.0.40
codegen_flags: <defaults>
</compile_context>

<pallas_src>
import jax
import jax.numpy as jnp
from jax.experimental import pallas as pl
from jax.experimental.pallas import tpu as pltpu

_LANE = 128
_ROW_GRANULE = 32                      # sublane pack safe for 4/2/1-byte dtypes
_GRANULE_1D = _ROW_GRANULE * _LANE     # 4096 elems: layout-safe 1-D block quantum
_LANE_CANDIDATES = (1024, 2048, 4096, 512, 256, 128)  # prefer 8x128 per row-slab


def _round_up(x: int, m: int) -> int:
    return ((x + m - 1) // m) * m


def _sin_kernel(x_ref, o_ref):
    # Cast (bf16 / int -> f32) fused into the kernel: keeps HBM traffic at the
    # single-read / single-write floor and the VPU/EUP on the f32 fast path
    # (v5e has no bf16 VPU/EUP).
    # TODO(synk): on v6e/v7x a bf16 polynomial after f32 range reduction would
    # roughly halve per-element VALU work for bf16 inputs (v7x is VALU-bound).
    o_ref[...] = jnp.sin(x_ref[...].astype(jnp.float32)).astype(o_ref.dtype)


def _vmem_capacity_bytes() -> int:
    try:
        cap = getattr(pltpu.get_tpu_info(), "vmem_capacity_bytes", None)
        if cap:
            return int(cap)
    except Exception:
        pass
    return 64 << 20  # conservative fallback: v7x per-TC VMEM


def sin_pallas(x: jax.Array, *, target_block_bytes: int | None = None) -> jax.Array:
    """Elementwise sin matching torch.sin (same shape; integer inputs -> float32)."""
    if x.dtype == jnp.bool_:
        x = x.astype(jnp.float32)
    is_float = jnp.issubdtype(x.dtype, jnp.floating)
    out_dtype = x.dtype if is_float else jnp.float32

    n = x.size
    in_isz = jnp.dtype(x.dtype).itemsize
    out_isz = jnp.dtype(out_dtype).itemsize
    elem_isz = max(in_isz, out_isz)

    vmem_cap = _vmem_capacity_bytes()
    if target_block_bytes is None:
        # ~8 MiB per block buffer; 2x(in+out) double-buffered stays well inside
        # VMEM on every generation (<= ~36 MiB incl. headroom on v7x).
        target_block_bytes = max(1 << 20, min(8 << 20, vmem_cap // 8))

    # Fast path: below ~a quarter block of data, XLA's fused sin is already at
    # roofline and the Pallas launch / pipeline prologue would dominate.
    min_bytes = max(2 << 20, target_block_bytes // 4)
    if n == 0 or n * elem_isz < min_bytes:
        return jnp.sin(x if is_float else x.astype(jnp.float32))

    flat = x.reshape(-1)  # free for contiguous layouts: no extra HBM pass
    target_elems = max(1, target_block_bytes // elem_isz)
    cost = pl.CostEstimate(
        flops=25 * n,              # sin lowers to a multi-op polynomial on the VPU
        transcendentals=n,
        bytes_accessed=n * (in_isz + out_isz),
    )

    # Prefer a 2-D (rows, C) presentation: C a multiple of 128 and row tiles a
    # multiple of 32 guarantee dense (8,128) vregs and unmasked stores.
    lane_c = next((c for c in _LANE_CANDIDATES if n % c == 0), 0)

    if lane_c:
        rows = n // lane_c
        tile_rows = max(
            _ROW_GRANULE,
            (target_elems // lane_c) // _ROW_GRANULE * _ROW_GRANULE,
        )
        # Grid floor: >= ~8 steps so both v7x TCs reach a pipelined steady
        # state and v5e/v6e hide prologue/epilogue.
        cap = _round_up(pl.cdiv(rows, 8), _ROW_GRANULE)
        tile_rows = max(_ROW_GRANULE, min(tile_rows, cap))
        grid = (pl.cdiv(rows, tile_rows),)  # ragged last row-block is clipped

        blk_in = tile_rows * lane_c * in_isz
        blk_out = tile_rows * lane_c * out_isz
        vmem_limit = min(max(16 << 20, 2 * (blk_in + blk_out) + (4 << 20)),
                         (vmem_cap * 3) // 4)

        out = pl.pallas_call(
            _sin_kernel,
            out_shape=jax.ShapeDtypeStruct((rows, lane_c), out_dtype),
            grid_spec=pltpu.PrefetchScalarGridSpec(
                num_scalar_prefetch=0,
                grid=grid,
                in_specs=[pl.BlockSpec((tile_rows, lane_c), lambda i: (i, 0))],
                out_specs=pl.BlockSpec((tile_rows, lane_c), lambda i: (i, 0)),
            ),
            compiler_params=pltpu.CompilerParams(
                dimension_semantics=("parallel",),
                vmem_limit_bytes=int(vmem_limit),
            ),
            cost_estimate=cost,
        )(flat.reshape(rows, lane_c))
    else:
        # 1-D ragged fallback (flat size not divisible by any lane width).
        blk = max(_GRANULE_1D, (target_elems // _GRANULE_1D) * _GRANULE_1D)
        cap = _round_up(pl.cdiv(n, 8), _GRANULE_1D)
        blk = max(_GRANULE_1D, min(blk, cap))
        grid = (pl.cdiv(n, blk),)  # clipped partial last block handled by Pallas

        vmem_limit = min(max(16 << 20, 2 * blk * (in_isz + out_isz) + (4 << 20)),
                         (vmem_cap * 3) // 4)

        out = pl.pallas_call(
            _sin_kernel,
            out_shape=jax.ShapeDtypeStruct((n,), out_dtype),
            grid_spec=pltpu.PrefetchScalarGridSpec(
                num_scalar_prefetch=0,
                grid=grid,
                in_specs=[pl.BlockSpec((blk,), lambda i: (i,))],
                out_specs=pl.BlockSpec((blk,), lambda i: (i,)),
            ),
            compiler_params=pltpu.CompilerParams(
                dimension_semantics=("parallel",),
                vmem_limit_bytes=int(vmem_limit),
            ),
            cost_estimate=cost,
        )(flat)

    return out.reshape(x.shape)


if __name__ == "__main__":
    key = jax.random.PRNGKey(0)
    k1, k2, k3, k4, k5 = jax.random.split(key, 5)

    # 1) Small NCHW input consistent with typical module usage (fast path).
    x_small = jax.random.normal(k1, (2, 4, 16, 16), dtype=jnp.float32)
    y_small = sin_pallas(x_small)
    jax.block_until_ready(y_small)
    assert y_small.shape == x_small.shape and y_small.dtype == x_small.dtype
    assert jnp.allclose(y_small, jnp.sin(x_small), atol=1e-5, rtol=1e-5)

    # 2) Larger f32 input, divisible by 1024 -> 2-D lane-dense Pallas path
    #    (grid of 7 steps, partial last row-block exercises clipping).
    x_2d = jax.random.normal(k2, (4, 8, 128, 160), dtype=jnp.float32)
    y_2d = sin_pallas(x_2d)
    jax.block_until_ready(y_2d)
    assert y_2d.shape == x_2d.shape and y_2d.dtype == x_2d.dtype
    assert jnp.allclose(y_2d, jnp.sin(x_2d), atol=1e-5, rtol=1e-5)

    # 3) Ragged f32 input (odd element count) -> 1-D fallback path with a
    #    clipped partial last block and an 8-step grid.
    x_1d = jax.random.normal(k3, (3, 419, 431), dtype=jnp.float32)
    y_1d = sin_pallas(x_1d)
    jax.block_until_ready(y_1d)
    assert y_1d.shape == x_1d.shape and y_1d.dtype == x_1d.dtype
    assert jnp.allclose(y_1d, jnp.sin(x_1d), atol=1e-5, rtol=1e-5)

    # 4) bf16 path: f32 compute inside the kernel, bf16 store (2-D path).
    x_bf16 = jax.random.normal(k4, (8, 8, 128, 128), dtype=jnp.bfloat16)
    y_bf16 = sin_pallas(x_bf16)
    jax.block_until_ready(y_bf16)
    assert y_bf16.shape == x_bf16.shape and y_bf16.dtype == x_bf16.dtype
    assert jnp.allclose(y_bf16.astype(jnp.float32),
                        jnp.sin(x_bf16).astype(jnp.float32),
                        atol=2e-2, rtol=2e-2)

    # 5) int32 path: promotion to f32 fused into the kernel (out dtype f32).
    x_int = jax.random.randint(k5, (4, 8, 128, 160), -5, 5, dtype=jnp.int32)
    y_int = sin_pallas(x_int)
    jax.block_until_ready(y_int)
    assert y_int.shape == x_int.shape and y_int.dtype == jnp.float32
    assert jnp.allclose(y_int, jnp.sin(x_int.astype(jnp.float32)),
                        atol=1e-5, rtol=1e-5)

    print("KERNEL_OK")
</pallas_src>

<mosaic_0001>
module attributes {stable_mosaic.version = 11 : i64} {
  func.func @_sin_kernel(%arg0: i32, %arg1: memref<96x1024xf32, #tpu.memory_space<vmem>>, %arg2: memref<96x1024xf32, #tpu.memory_space<vmem>>) attributes {dimension_semantics = [#tpu.dimension_semantics<parallel>], iteration_bounds = array<i64: 7>, scalar_prefetch = 0 : i64, scratch_operands = 0 : i64, tpu.core_type = #tpu.core_type<tc>, window_params = [{transform_indices = @transform_0, window_bounds = array<i64: 96, 1024>}, {transform_indices = @transform_1, window_bounds = array<i64: 96, 1024>}]} {
    %c0 = arith.constant 0 : index
    %c0_0 = arith.constant 0 : index
    %0 = vector.load %arg1[%c0, %c0_0] : memref<96x1024xf32, #tpu.memory_space<vmem>>, vector<96x1024xf32>
    %1 = math.sin %0 : vector<96x1024xf32>
    %c0_1 = arith.constant 0 : index
    %c0_2 = arith.constant 0 : index
    %2 = vector.load %arg2[%c0_1, %c0_2] : memref<96x1024xf32, #tpu.memory_space<vmem>>, vector<96x1024xf32>
    tpu.vector_store %arg2[%c0_1, %c0_2], %1 {strides = array<i32>} : memref<96x1024xf32, #tpu.memory_space<vmem>>, vector<96x1024xf32>,
    return
  }
  func.func @transform_0(%arg0: i32) -> (i32, i32) {
    %c0_i32 = arith.constant 0 : i32
    %c0_i32_0 = arith.constant 0 : i32
    return %arg0, %c0_i32 : i32, i32
  }
  func.func @transform_1(%arg0: i32) -> (i32, i32) {
    %c0_i32 = arith.constant 0 : i32
    %c0_i32_0 = arith.constant 0 : i32
    return %arg0, %c0_i32 : i32, i32
  }
}

</mosaic_0001>

<llo_original>
// kernel: tpu_custom_call.1
$region0: #{tpu_custom_call.1}
  #allocation0 [shape = 'u32[]', space=smem, size = 0x4, offset = 0x4, fixed_abs, tag = 'smem constant byte address 0x4 - core index']
  #allocation1 [shape = 'u32[144,128]{1,0:T(1,128)}', space=vmem, size = 0x12000, scoped, tag = 'internal scratch']
  %s0 = inlined_call_operand.hbm [shape: f32[640,1024], index: 0, kind: input, shape index: {}]
  %s1 = inlined_call_operand.hbm [shape: f32[640,1024], index: 1, kind: output, shape index: {}]
  %s2 = sld [smem:[#allocation0]]
  $region41: #{tpu_custom_call.1} parent=0
    _
  %s4 = ssub.s32 1, %s2
  %s5 = scalar_select 0, %s4, %s2
  $region1: #{tpu_custom_call.1} parent=0
    #allocation2 [shape = 'u8[786432]{0}', space=vmem, size = 0xc0000, scoped, tag = 'input window, operand 0']
    #allocation3 [shape = 's32[2]{0}', space=sflag, size = 0x8, scoped, tag = 'scoped memory for tpu_custom_call.1']
    #allocation4 [shape = 's32[2]{0}', space=sflag, size = 0x8, scoped, tag = 'scoped memory for tpu_custom_call.1']
    #allocation5 [shape = 'u8[786432]{0}', space=vmem, size = 0xc0000, scoped, tag = 'output window, operand 0']
    %6 = vsyncpa [#allocation3], 0
    %s7 = scalar_lea.sflag [#allocation3], 1
    %8 = vsyncpa %s7, 0
    %9 = vsyncpa [#allocation4], 0
    %s10 = scalar_lea.sflag [#allocation4], 1
    %11 = vsyncpa %s10, 0
    loop: start=0, step=1, limit=9
    $region2: #{tpu_custom_call.1} parent=1 // loop_pre_header
      _
    $region3: #{tpu_custom_call.1} parent=1 // loop_header
      %s13 = sphi 0, %s17
      %p14 = scmp.ge.s32.totalorder %s13, 9
      %s23 = sphi 0, %s25
      %s26 = sphi 0, %s23
      %s27 = sphi 0, %s26
      %s43 = sphi 0, %s27
      %s49 = sphi 0, %s51
      %s52 = sphi 0, %s49
      %s53 = sphi 0, %s52
      %s69 = sphi 0, %s53
    $region4: #{tpu_custom_call.1} parent=1 // loop_header_branch
      %16 = sbr.rel (%p14) target = $region8
    $region5: #{tpu_custom_call.1} parent=1 // loop_body
      %s18 = ssub.s32 %s13, 1
      %s19 = ssub.s32 %s13, 2
      %s20 = sadd.s32 %s13, 1
      %s21 = ssub.s32 %s13, %s20
      %p22 = scmp.eq.s32.totalorder %s21, 0
      %s24 = sadd.s32 %s23, 1
      %s25 = scalar_select %p22, %s23, %s24
      %p28 = pneg %p22
      %p29 = scmp.eq.s32.totalorder %s13, 6
      %p30 = por %p28, %p29
      %p31 = scmp.ne.s32.totalorder %s23, %s26
      %p32 = scmp.eq.s32.totalorder %s13, 0
      %p33 = por %p31, %p32
      %p34 = scmp.ne.s32.totalorder %s23, %s26
      %p35 = scmp.eq.s32.totalorder %s18, 6
      %p36 = por %p34, %p35
      %p37 = scmp.ne.s32.totalorder %s26, %s27
      %p38 = scmp.eq.s32.totalorder %s18, 0
      %p39 = por %p37, %p38
      %p40 = scmp.ne.s32.totalorder %s26, %s27
      %p41 = scmp.eq.s32.totalorder %s19, 6
      %p42 = por %p40, %p41
      %p44 = scmp.ne.s32.totalorder %s27, %s43
      %p45 = scmp.eq.s32.totalorder %s19, 0
      %p46 = por %p44, %p45
      %s47 = ssub.s32 %s13, %s20
      %p48 = scmp.eq.s32.totalorder %s47, 0
      %s50 = sadd.s32 %s49, 1
      %s51 = scalar_select %p48, %s49, %s50
      %p54 = pneg %p48
      %p55 = scmp.eq.s32.totalorder %s13, 6
      %p56 = por %p54, %p55
      %p57 = scmp.ne.s32.totalorder %s49, %s52
      %p58 = scmp.eq.s32.totalorder %s13, 0
      %p59 = por %p57, %p58
      %p60 = scmp.ne.s32.totalorder %s49, %s52
      %p61 = scmp.eq.s32.totalorder %s18, 6
      %p62 = por %p60, %p61
      %p63 = scmp.ne.s32.totalorder %s52, %s53
      %p64 = scmp.eq.s32.totalorder %s18, 0
      %p65 = por %p63, %p64
      %p66 = scmp.ne.s32.totalorder %s52, %s53
      %p67 = scmp.eq.s32.totalorder %s19, 6
      %p68 = por %p66, %p67
      %p70 = scmp.ne.s32.totalorder %s53, %s69
      %p71 = scmp.eq.s32.totalorder %s19, 0
      %p72 = por %p70, %p71
      %p73 = scmp.le.s32.totalorder 1, %s13
      %p74 = scmp.lt.s32.totalorder %s13, 8
      %p75 = pnand %p73, %p74
      %p76 = pneg %p75
      // Predicated region
      $region9: #{tpu_custom_call.1} parent=5 // pred_check
        _
      $region10: #{tpu_custom_call.1} parent=5 // pred_check_branch
        %78 = sbr.rel (%p75) target = $region12
      $region11: #{tpu_custom_call.1} parent=5 // pred_region
        %s79 = ssub.s32 %s13, 1
      $region12: #{tpu_custom_call.1} parent=5 // pred_fallthru
        _
      %p80 = scmp.lt.s32.totalorder %s13, 7
      // Predicated region
      $region13: #{tpu_custom_call.1} parent=5 // pred_check
        %p81 = pneg %p80
      $region14: #{tpu_custom_call.1} parent=5 // pred_check_branch
        %83 = sbr.rel (%p81) target = $region16
      $region15: #{tpu_custom_call.1} parent=5 // pred_region
        // Predicated region
        $region17: #{tpu_custom_call.1} parent=15 // pred_check
          %p84 = pneg %p33
        $region18: #{tpu_custom_call.1} parent=15 // pred_check_branch
          %86 = sbr.rel (%p84) target = $region20
        $region19: #{tpu_custom_call.1} parent=15 // pred_region
          %s87 = sand.u32 %s23, 1
          %s88 = scalar_lea.sflag [#allocation3], %s87
          %s89 = sand.u32 %s23, 1
          %s90 = smul.addr %s89, 768
          %s91 = scalar_lea.vmem [#allocation2], %s90
          %s92 = smul.u32 12, %s13
          %s93 = ssub.s32 80, %s92
          %p94 = scmp.lt.s32.totalorder %s93, 12
          %s95 = scalar_select %p94, %s93, 12
          %s96 = smul.u32 128, %s95
          %s97 = smul.u32 %s96, 8
          %s99 = ssub.s32 12288, %s97
          %100 = vsyncadd %s88, %s99
          %p101 = scmp.ne.s32.totalorder 0, %s97
          %s102 = smul.addr %s92, 8
          %s103 = smul.addr %s102, 128
          %s104 = scalar_lea.hbm %s0, %s103
          %s105 = smul.u32 64, %s95
          %s106 = sshll.u32 %s91, 4
          %s107 = int_to_ptr.vmem [resolvable:$true] %s106
          %s108 = sshll.u32 %s105, 4
          %112 = dma.hbm_to_vmem [thread:$0]  (%p101), %s104, %s108, %s107, %s88, 1024, 1024, 64
        $region20: #{tpu_custom_call.1} parent=15 // pred_fallthru
          _
      $region16: #{tpu_custom_call.1} parent=5 // pred_fallthru
        _
      %p113 = scmp.le.s32.totalorder 1, %s13
      %p114 = scmp.lt.s32.totalorder %s13, 8
      %p115 = pnand %p113, %p114
      %p116 = pneg %p115
      // Predicated region
      $region21: #{tpu_custom_call.1} parent=5 // pred_check
        _
      $region22: #{tpu_custom_call.1} parent=5 // pred_check_branch
        %118 = sbr.rel (%p115) target = $region24
      $region23: #{tpu_custom_call.1} parent=5 // pred_region
        %s119 = ssub.s32 %s13, 1
        %s120 = sand.u32 %s26, 1
        %s121 = scalar_lea.sflag [#allocation3], %s120
        %s122 = sand.u32 %s26, 1
        %s123 = smul.addr %s122, 768
        %s124 = scalar_lea.vmem [#allocation2], %s123
        // Predicated region
        $region25: #{tpu_custom_call.1} parent=23 // pred_check
          %p125 = pneg %p39
        $region26: #{tpu_custom_call.1} parent=23 // pred_check_branch
          %127 = sbr.rel (%p125) target = $region28
        $region27: #{tpu_custom_call.1} parent=23 // pred_region
          %128 = dma.done %s121, 12288
        $region28: #{tpu_custom_call.1} parent=23 // pred_fallthru
          _
        %s129 = sand.u32 %s26, 1
        %s130 = scalar_lea.sflag [#allocation3], %s129
        %s131 = sand.u32 %s26, 1
        %s132 = smul.addr %s131, 768
        %s133 = scalar_lea.vmem [#allocation2], %s132
        %p134 = pneg %p39
        %p135 = pneg %p36
        %p136 = pneg %p65
        %p137 = pneg %p62
        %s138 = sand.u32 %s52, 1
        %s139 = scalar_lea.sflag [#allocation4], %s138
        %s140 = sand.u32 %s52, 1
        %s141 = smul.addr %s140, 768
        %s142 = scalar_lea.vmem [#allocation5], %s141
        %s143 = smul.u32 12, %s18
        %s144 = ssub.s32 80, %s143
        %p145 = scmp.lt.s32.totalorder %s144, 12
        %s146 = scalar_select %p145, %s144, 12
        %s147 = smul.u32 128, %s146
        %s148 = smul.u32 %s147, 8
        %s149 = smul.u32 12, %s18
        %s150 = ssub.s32 80, %s149
        %p151 = scmp.lt.s32.totalorder %s150, 12
        %s152 = scalar_select %p151, %s150, 12
        %s153 = smul.u32 128, %s152
        %s154 = smul.u32 %s153, 8
        %v155 = vld [vmem:[%s124] sm:$0xff]
        %v156 = vld [vmem:[%s124 + $0x8] sm:$0xff]
        %v157 = vld [vmem:[%s124 + $0x10] sm:$0xff]
        %v158 = vld [vmem:[%s124 + $0x18] sm:$0xff]
        %v159 = vld [vmem:[%s124 + $0x20] sm:$0xff]
        %v160 = vld [vmem:[%s124 + $0x28] sm:$0xff]
        %v161 = vld [vmem:[%s124 + $0x30] sm:$0xff]
        %v162 = vld [vmem:[%s124 + $0x38] sm:$0xff]
        %v163 = vld [vmem:[%s124 + $0x40] sm:$0xff]
        %v164 = vld [vmem:[%s124 + $0x48] sm:$0xff]
        %v165 = vld [vmem:[%s124 + $0x50] sm:$0xff]
        %v166 = vld [vmem:[%s124 + $0x58] sm:$0xff]
        %v167 = vld [vmem:[%s124 + $0x60] sm:$0xff]
        %v168 = vld [vmem:[%s124 + $0x68] sm:$0xff]
        %v169 = vld [vmem:[%s124 + $0x70] sm:$0xff]
        %v170 = vld [vmem:[%s124 + $0x78] sm:$0xff]
        %v171 = vld [vmem:[%s124 + $0x80] sm:$0xff]
        %v172 = vld [vmem:[%s124 + $0x88] sm:$0xff]
        %v173 = vld [vmem:[%s124 + $0x90] sm:$0xff]
        %v174 = vld [vmem:[%s124 + $0x98] sm:$0xff]
        %v175 = vld [vmem:[%s124 + $0xa0] sm:$0xff]
        %v176 = vld [vmem:[%s124 + $0xa8] sm:$0xff]
        %v177 = vld [vmem:[%s124 + $0xb0] sm:$0xff]
        %v178 = vld [vmem:[%s124 + $0xb8] sm:$0xff]
        %v179 = vld [vmem:[%s124 + $0xc0] sm:$0xff]
        %v180 = vld [vmem:[%s124 + $0xc8] sm:$0xff]
        %v181 = vld [vmem:[%s124 + $0xd0] sm:$0xff]
        %v182 = vld [vmem:[%s124 + $0xd8] sm:$0xff]
        %v183 = vld [vmem:[%s124 + $0xe0] sm:$0xff]
        %v184 = vld [vmem:[%s124 + $0xe8] sm:$0xff]
        %v185 = vld [vmem:[%s124 + $0xf0] sm:$0xff]
        %v186 = vld [vmem:[%s124 + $0xf8] sm:$0xff]
        %v187 = vld [vmem:[%s124 + $0x100] sm:$0xff]
        %v188 = vld [vmem:[%s124 + $0x108] sm:$0xff]
        %v189 = vld [vmem:[%s124 + $0x110] sm:$0xff]
        %v190 = vld [vmem:[%s124 + $0x118] sm:$0xff]
        %v191 = vld [vmem:[%s124 + $0x120] sm:$0xff]
        %v192 = vld [vmem:[%s124 + $0x128] sm:$0xff]
        %v193 = vld [vmem:[%s124 + $0x130] sm:$0xff]
        %v194 = vld [vmem:[%s124 + $0x138] sm:$0xff]
        %v195 = vld [vmem:[%s124 + $0x140] sm:$0xff]
        %v196 = vld [vmem:[%s124 + $0x148] sm:$0xff]
        %v197 = vld [vmem:[%s124 + $0x150] sm:$0xff]
        %v198 = vld [vmem:[%s124 + $0x158] sm:$0xff]
        %v199 = vld [vmem:[%s124 + $0x160] sm:$0xff]
        %v200 = vld [vmem:[%s124 + $0x168] sm:$0xff]
        %v201 = vld [vmem:[%s124 + $0x170] sm:$0xff]
        %v202 = vld [vmem:[%s124 + $0x178] sm:$0xff]
        %v203 = vld [vmem:[%s124 + $0x180] sm:$0xff]
        %v204 = vld [vmem:[%s124 + $0x188] sm:$0xff]
        %v205 = vld [vmem:[%s124 + $0x190] sm:$0xff]
        %v206 = vld [vmem:[%s124 + $0x198] sm:$0xff]
        %v207 = vld [vmem:[%s124 + $0x1a0] sm:$0xff]
        %v208 = vld [vmem:[%s124 + $0x1a8] sm:$0xff]
        %v209 = vld [vmem:[%s124 + $0x1b0] sm:$0xff]
        %v210 = vld [vmem:[%s124 + $0x1b8] sm:$0xff]
        %v211 = vld [vmem:[%s124 + $0x1c0] sm:$0xff]
        %v212 = vld [vmem:[%s124 + $0x1c8] sm:$0xff]
        %v213 = vld [vmem:[%s124 + $0x1d0] sm:$0xff]
        %v214 = vld [vmem:[%s124 + $0x1d8] sm:$0xff]
        %v215 = vld [vmem:[%s124 + $0x1e0] sm:$0xff]
        %v216 = vld [vmem:[%s124 + $0x1e8] sm:$0xff]
        %v217 = vld [vmem:[%s124 + $0x1f0] sm:$0xff]
        %v218 = vld [vmem:[%s124 + $0x1f8] sm:$0xff]
        %v219 = vld [vmem:[%s124 + $0x200] sm:$0xff]
        %v220 = vld [vmem:[%s124 + $0x208] sm:$0xff]
        %v221 = vld [vmem:[%s124 + $0x210] sm:$0xff]
        %v222 = vld [vmem:[%s124 + $0x218] sm:$0xff]
        %v223 = vld [vmem:[%s124 + $0x220] sm:$0xff]
        %v224 = vld [vmem:[%s124 + $0x228] sm:$0xff]
        %v225 = vld [vmem:[%s124 + $0x230] sm:$0xff]
        %v226 = vld [vmem:[%s124 + $0x238] sm:$0xff]
        %v227 = vld [vmem:[%s124 + $0x240] sm:$0xff]
        %v228 = vld [vmem:[%s124 + $0x248] sm:$0xff]
        %v229 = vld [vmem:[%s124 + $0x250] sm:$0xff]
        %v230 = vld [vmem:[%s124 + $0x258] sm:$0xff]
        %v231 = vld [vmem:[%s124 + $0x260] sm:$0xff]
        %v232 = vld [vmem:[%s124 + $0x268] sm:$0xff]
        %v233 = vld [vmem:[%s124 + $0x270] sm:$0xff]
        %v234 = vld [vmem:[%s124 + $0x278] sm:$0xff]
        %v235 = vld [vmem:[%s124 + $0x280] sm:$0xff]
        %v236 = vld [vmem:[%s124 + $0x288] sm:$0xff]
        %v237 = vld [vmem:[%s124 + $0x290] sm:$0xff]
        %v238 = vld [vmem:[%s124 + $0x298] sm:$0xff]
        %v239 = vld [vmem:[%s124 + $0x2a0] sm:$0xff]
        %v240 = vld [vmem:[%s124 + $0x2a8] sm:$0xff]
        %v241 = vld [vmem:[%s124 + $0x2b0] sm:$0xff]
        %v242 = vld [vmem:[%s124 + $0x2b8] sm:$0xff]
        %v243 = vld [vmem:[%s124 + $0x2c0] sm:$0xff]
        %v244 = vld [vmem:[%s124 + $0x2c8] sm:$0xff]
        %v245 = vld [vmem:[%s124 + $0x2d0] sm:$0xff]
        %v246 = vld [vmem:[%s124 + $0x2d8] sm:$0xff]
        %v247 = vld [vmem:[%s124 + $0x2e0] sm:$0xff]
        %v248 = vld [vmem:[%s124 + $0x2e8] sm:$0xff]
        %v249 = vld [vmem:[%s124 + $0x2f0] sm:$0xff]
        %v250 = vld [vmem:[%s124 + $0x2f8] sm:$0xff]
        %v251 = vand.u32 2147483647, %v155
        %vm252 = vcmp.le.f32.partialorder %v251, 0.7853982
        %vm253 = vcmp.lt.s32.totalorder %v155, 0
        %v254 = vand.u32 %v155, 2139095040
        %v255 = vshrl.u32 %v254, 23
        %v256 = vsub.s32 %v255, 127
        %v257 = vand.u32 2147483647, %v155
        %v258 = vand.u32 %v257, 8388607
        %v259 = vor.u32 %v258, 8388608
        %v260 = vsub.s32 0, %v259
        %v261 = vadd.s32 %v256, 1
        %vm262 = vcmp.gt.s32.totalorder %v261, 0
        %v263 = vsel %vm262, %v261, 0
        %v264 = vshrl.u32 %v263, 5
        %v265 = vand.u32 %v263, 31
        %v266 = vsub.s32 32, %v265
        %v267 = vshrl.u32 683565275, %v266
        %v268 = vshll.u32 683565275, %v265
        %v269 = vshrl.u32 2475754826, %v266
        %v270 = vor.u32 %v268, %v269
        %v271 = vshll.u32 2475754826, %v265
        %v272 = vshrl.u32 2131351028, %v266
        %v273 = vor.u32 %v271, %v272
        %v274 = vshll.u32 2131351028, %v265
        %v275 = vshrl.u32 2102212464, %v266
        %v276 = vor.u32 %v274, %v275
        %v277 = vshll.u32 2102212464, %v265
        %v278 = vshrl.u32 920167782, %v266
        %v279 = vor.u32 %v277, %v278
        %v280 = vshll.u32 920167782, %v265
        %v281 = vshrl.u32 1326507024, %v266
        %v282 = vor.u32 %v280, %v281
        %vm283 = vcmp.lt.s32.totalorder %v264, 1
        %vm284 = vcmp.lt.s32.totalorder %v264, 2
        %vm285 = vcmp.lt.s32.totalorder %v264, 3
        %vm286 = vcmp.lt.s32.totalorder %v264, 4
        %v287 = vsel %vm283, %v267, %v270
        %v288 = vsel %vm286, %v276, 2102212464
        %v289 = vsel %vm285, %v273, %v288
        %v290 = vsel %vm284, %v287, %v289
        %v291 = vsel %vm283, %v270, %v273
        %v292 = vsel %vm286, %v279, 920167782
        %v293 = vsel %vm285, %v276, %v292
        %v294 = vsel %vm284, %v291, %v293
        %v295 = vsel %vm283, %v273, %v276
        %v296 = vsel %vm286, %v282, 1326507024
        %v297 = vsel %vm285, %v279, %v296
        %v298 = vsel %vm284, %v295, %v297
        %v299 = vshll.u32 %v259, 8
        %v300 = vmul.u32.u64.compose %v299, %v298
        %v301 = vextract.low.u32 %v300
        %v302 = vextract.high.u32 %v300
        %v303 = vmul.u32.u64.compose %v299, %v294
        %v304 = vextract.low.u32 %v303
        %v305 = vextract.high.u32 %v303
        %v306 = vmul.u32 %v299, %v290
        %v307 = vadd.s32 %v302, %v304
        %vm308 = vc.u32 %v302, %v304
        %v309 = vadd.s32 %v305, 1
        %v310 = vsel %vm308, %v309, %v305
        %v311 = vadd.s32 %v306, %v310
        %v312 = vadd.s32 %v311, 536870912
        %v313 = vshrl.u32 %v312, 30
        %v314 = vshll.u32 %v313, 30
        %v315 = vsub.s32 %v311, %v314
        %vm316 = vcmp.lt.s32.totalorder %v315, 0
        %v317 = vsub.s32 0, %v315
        %v318 = vsel %vm316, %v317, %v315
        %v319 = vclz %v318
        %v320 = vsub.s32 %v319, 2
        %vm321 = vcmp.gt.s32.totalorder 0, %v320
        %v322 = vsel %vm321, 0, %v320
        %v323 = vsub.s32 32, %v322
        %v324 = vshll.u32 %v315, %v322
        %v325 = vshrl.u32 %v307, %v323
        %v326 = vor.u32 %v324, %v325
        %v327 = vsub.s32 4294967266, %v322
        %v328 = vadd.s32 %v327, 127
        %v329 = vshll.u32 %v328, 23
        %v330 = vor.u32 4788187, %v329
        %v331 = vand.u32 2147483647, %v330
        %v333 = vcvt.s32.f32 %v326
        %v334 = vmul.f32 %v333, %v331
        %v335 = vxor.u32 %v334, 2147483648
        %v336 = vsel %vm253, %v335, %v334
        %v337 = vsub.s32 4, %v313
        %v338 = vsel %vm253, %v337, %v313
        %v339 = vsel %vm252, %v155, %v336
        %v340 = vsel %vm252, 0, %v338
        %v341 = vcosq.f32.pop %v339
        %v342 = vsinq.f32.pop %v339
        %vm343 = vweird.f32 %v155
        %v344 = vadd.s32 %v340, 3
        %v345 = vand.u32 %v344, 3
        %vm346 = vcmp.lt.s32.totalorder %v345, 2
        %vm347 = vcmp.eq.s32.totalorder %v345, 0
        %v348 = vxor.u32 %v342, 2147483648
        %v349 = vsel %vm347, %v341, %v348
        %vm350 = vcmp.eq.s32.totalorder %v345, 2
        %v351 = vxor.u32 %v341, 2147483648
        %v352 = vsel %vm350, %v351, %v342
        %v353 = vsel %vm346, %v349, %v352
        %v354 = vsel %vm343, nan, %v353
        %v355 = vand.u32 2147483647, %v156
        %vm356 = vcmp.le.f32.partialorder %v355, 0.7853982
        %vm357 = vcmp.lt.s32.totalorder %v156, 0
        %v358 = vand.u32 %v156, 2139095040
        %v359 = vshrl.u32 %v358, 23
        %v360 = vsub.s32 %v359, 127
        %v361 = vand.u32 2147483647, %v156
        %v362 = vand.u32 %v361, 8388607
        %v363 = vor.u32 %v362, 8388608
        %v364 = vsub.s32 0, %v363
        %v365 = vadd.s32 %v360, 1
        %vm366 = vcmp.gt.s32.totalorder %v365, 0
        %v367 = vsel %vm366, %v365, 0
        %v368 = vshrl.u32 %v367, 5
        %v369 = vand.u32 %v367, 31
        %v370 = vsub.s32 32, %v369
        %v371 = vshrl.u32 683565275, %v370
        %v372 = vshll.u32 683565275, %v369
        %v373 = vshrl.u32 2475754826, %v370
        %v374 = vor.u32 %v372, %v373
        %v375 = vshll.u32 2475754826, %v369
        %v376 = vshrl.u32 2131351028, %v370
        %v377 = vor.u32 %v375, %v376
        %v378 = vshll.u32 2131351028, %v369
        %v379 = vshrl.u32 2102212464, %v370
        %v380 = vor.u32 %v378, %v379
        %v381 = vshll.u32 2102212464, %v369
        %v382 = vshrl.u32 920167782, %v370
        %v383 = vor.u32 %v381, %v382
        %v384 = vshll.u32 920167782, %v369
        %v385 = vshrl.u32 1326507024, %v370
        %v386 = vor.u32 %v384, %v385
        %vm387 = vcmp.lt.s32.totalorder %v368, 1
        %vm388 = vcmp.lt.s32.totalorder %v368, 2
        %vm389 = vcmp.lt.s32.totalorder %v368, 3
        %vm390 = vcmp.lt.s32.totalorder %v368, 4
        %v391 = vsel %vm387, %v371, %v374
        %v392 = vsel %vm390, %v380, 2102212464
        %v393 = vsel %vm389, %v377, %v392
        %v394 = vsel %vm388, %v391, %v393
        %v395 = vsel %vm387, %v374, %v377
        %v396 = vsel %vm390, %v383, 920167782
        %v397 = vsel %vm389, %v380, %v396
        %v398 = vsel %vm388, %v395, %v397
        %v399 = vsel %vm387, %v377, %v380
        %v400 = vsel %vm390, %v386, 1326507024
        %v401 = vsel %vm389, %v383, %v400
        %v402 = vsel %vm388, %v399, %v401
        %v403 = vshll.u32 %v363, 8
        %v404 = vmul.u32.u64.compose %v403, %v402
        %v405 = vextract.low.u32 %v404
        %v406 = vextract.high.u32 %v404
        %v407 = vmul.u32.u64.compose %v403, %v398
        %v408 = vextract.low.u32 %v407
        %v409 = vextract.high.u32 %v407
        %v410 = vmul.u32 %v403, %v394
        %v411 = vadd.s32 %v406, %v408
        %vm412 = vc.u32 %v406, %v408
        %v413 = vadd.s32 %v409, 1
        %v414 = vsel %vm412, %v413, %v409
        %v415 = vadd.s32 %v410, %v414
        %v416 = vadd.s32 %v415, 536870912
        %v417 = vshrl.u32 %v416, 30
        %v418 = vshll.u32 %v417, 30
        %v419 = vsub.s32 %v415, %v418
        %vm420 = vcmp.lt.s32.totalorder %v419, 0
        %v421 = vsub.s32 0, %v419
        %v422 = vsel %vm420, %v421, %v419
        %v423 = vclz %v422
        %v424 = vsub.s32 %v423, 2
        %vm425 = vcmp.gt.s32.totalorder 0, %v424
        %v426 = vsel %vm425, 0, %v424
        %v427 = vsub.s32 32, %v426
        %v428 = vshll.u32 %v419, %v426
        %v429 = vshrl.u32 %v411, %v427
        %v430 = vor.u32 %v428, %v429
        %v431 = vsub.s32 4294967266, %v426
        %v432 = vadd.s32 %v431, 127
        %v433 = vshll.u32 %v432, 23
        %v434 = vor.u32 4788187, %v433
        %v435 = vand.u32 2147483647, %v434
        %v437 = vcvt.s32.f32 %v430
        %v438 = vmul.f32 %v437, %v435
        %v439 = vxor.u32 %v438, 2147483648
        %v440 = vsel %vm357, %v439, %v438
        %v441 = vsub.s32 4, %v417
        %v442 = vsel %vm357, %v441, %v417
        %v443 = vsel %vm356, %v156, %v440
        %v444 = vsel %vm356, 0, %v442
        %v445 = vcosq.f32.pop %v443
        %v446 = vsinq.f32.pop %v443
        %vm447 = vweird.f32 %v156
        %v448 = vadd.s32 %v444, 3
        %v449 = vand.u32 %v448, 3
        %vm450 = vcmp.lt.s32.totalorder %v449, 2
        %vm451 = vcmp.eq.s32.totalorder %v449, 0
        %v452 = vxor.u32 %v446, 2147483648
        %v453 = vsel %vm451, %v445, %v452
        %vm454 = vcmp.eq.s32.totalorder %v449, 2
        %v455 = vxor.u32 %v445, 2147483648
        %v456 = vsel %vm454, %v455, %v446
        %v457 = vsel %vm450, %v453, %v456
        %v458 = vsel %vm447, nan, %v457
        %v459 = vand.u32 2147483647, %v157
        %vm460 = vcmp.le.f32.partialorder %v459, 0.7853982
        %vm461 = vcmp.lt.s32.totalorder %v157, 0
        %v462 = vand.u32 %v157, 2139095040
        %v463 = vshrl.u32 %v462, 23
        %v464 = vsub.s32 %v463, 127
        %v465 = vand.u32 2147483647, %v157
        %v466 = vand.u32 %v465, 8388607
        %v467 = vor.u32 %v466, 8388608
        %v468 = vsub.s32 0, %v467
        %v469 = vadd.s32 %v464, 1
        %vm470 = vcmp.gt.s32.totalorder %v469, 0
        %v471 = vsel %vm470, %v469, 0
        %v472 = vshrl.u32 %v471, 5
        %v473 = vand.u32 %v471, 31
        %v474 = vsub.s32 32, %v473
        %v475 = vshrl.u32 683565275, %v474
        %v476 = vshll.u32 683565275, %v473
        %v477 = vshrl.u32 2475754826, %v474
        %v478 = vor.u32 %v476, %v477
        %v479 = vshll.u32 2475754826, %v473
        %v480 = vshrl.u32 2131351028, %v474
        %v481 = vor.u32 %v479, %v480
        %v482 = vshll.u32 2131351028, %v473
        %v483 = vshrl.u32 2102212464, %v474
        %v484 = vor.u32 %v482, %v483
        %v485 = vshll.u32 2102212464, %v473
        %v486 = vshrl.u32 920167782, %v474
        %v487 = vor.u32 %v485, %v486
        %v488 = vshll.u32 920167782, %v473
        %v489 = vshrl.u32 1326507024, %v474
        %v490 = vor.u32 %v488, %v489
        %vm491 = vcmp.lt.s32.totalorder %v472, 1
        %vm492 = vcmp.lt.s32.totalorder %v472, 2
        %vm493 = vcmp.lt.s32.totalorder %v472, 3
        %vm494 = vcmp.lt.s32.totalorder %v472, 4
        %v495 = vsel %vm491, %v475, %v478
        %v496 = vsel %vm494, %v484, 2102212464
        %v497 = vsel %vm493, %v481, %v496
        %v498 = vsel %vm492, %v495, %v497
        %v499 = vsel %vm491, %v478, %v481
        %v500 = vsel %vm494, %v487, 920167782
        %v501 = vsel %vm493, %v484, %v500
        %v502 = vsel %vm492, %v499, %v501
        %v503 = vsel %vm491, %v481, %v484
        %v504 = vsel %vm494, %v490, 1326507024
        %v505 = vsel %vm493, %v487, %v504
        %v506 = vsel %vm492, %v503, %v505
        %v507 = vshll.u32 %v467, 8
        %v508 = vmul.u32.u64.compose %v507, %v506
        %v509 = vextract.low.u32 %v508
        %v510 = vextract.high.u32 %v508
        %v511 = vmul.u32.u64.compose %v507, %v502
        %v512 = vextract.low.u32 %v511
        %v513 = vextract.high.u32 %v511
        %v514 = vmul.u32 %v507, %v498
        %v515 = vadd.s32 %v510, %v512
        %vm516 = vc.u32 %v510, %v512
        %v517 = vadd.s32 %v513, 1
        %v518 = vsel %vm516, %v517, %v513
        %v519 = vadd.s32 %v514, %v518
        %v520 = vadd.s32 %v519, 536870912
        %v521 = vshrl.u32 %v520, 30
        %v522 = vshll.u32 %v521, 30
        %v523 = vsub.s32 %v519, %v522
        %vm524 = vcmp.lt.s32.totalorder %v523, 0
        %v525 = vsub.s32 0, %v523
        %v526 = vsel %vm524, %v525, %v523
        %v527 = vclz %v526
        %v528 = vsub.s32 %v527, 2
        %vm529 = vcmp.gt.s32.totalorder 0, %v528
        %v530 = vsel %vm529, 0, %v528
        %v531 = vsub.s32 32, %v530
        %v532 = vshll.u32 %v523, %v530
        %v533 = vshrl.u32 %v515, %v531
        %v534 = vor.u32 %v532, %v533
        %v535 = vsub.s32 4294967266, %v530
        %v536 = vadd.s32 %v535, 127
        %v537 = vshll.u32 %v536, 23
        %v538 = vor.u32 4788187, %v537
        %v539 = vand.u32 2147483647, %v538
        %v541 = vcvt.s32.f32 %v534
        %v542 = vmul.f32 %v541, %v539
        %v543 = vxor.u32 %v542, 2147483648
        %v544 = vsel %vm461, %v543, %v542
        %v545 = vsub.s32 4, %v521
        %v546 = vsel %vm461, %v545, %v521
        %v547 = vsel %vm460, %v157, %v544
        %v548 = vsel %vm460, 0, %v546
        %v549 = vcosq.f32.pop %v547
        %v550 = vsinq.f32.pop %v547
        %vm551 = vweird.f32 %v157
        %v552 = vadd.s32 %v548, 3
        %v553 = vand.u32 %v552, 3
        %vm554 = vcmp.lt.s32.totalorder %v553, 2
        %vm555 = vcmp.eq.s32.totalorder %v553, 0
        %v556 = vxor.u32 %v550, 2147483648
        %v557 = vsel %vm555, %v549, %v556
        %vm558 = vcmp.eq.s32.totalorder %v553, 2
        %v559 = vxor.u32 %v549, 2147483648
        %v560 = vsel %vm558, %v559, %v550
        %v561 = vsel %vm554, %v557, %v560
        %v562 = vsel %vm551, nan, %v561
        %v563 = vand.u32 2147483647, %v158
        %vm564 = vcmp.le.f32.partialorder %v563, 0.7853982
        %vm565 = vcmp.lt.s32.totalorder %v158, 0
        %v566 = vand.u32 %v158, 2139095040
        %v567 = vshrl.u32 %v566, 23
        %v568 = vsub.s32 %v567, 127
        %v569 = vand.u32 2147483647, %v158
        %v570 = vand.u32 %v569, 8388607
        %v571 = vor.u32 %v570, 8388608
        %v572 = vsub.s32 0, %v571
        %v573 = vadd.s32 %v568, 1
        %vm574 = vcmp.gt.s32.totalorder %v573, 0
        %v575 = vsel %vm574, %v573, 0
        %v576 = vshrl.u32 %v575, 5
        %v577 = vand.u32 %v575, 31
        %v578 = vsub.s32 32, %v577
        %v579 = vshrl.u32 683565275, %v578
        %v580 = vshll.u32 683565275, %v577
        %v581 = vshrl.u32 2475754826, %v578
        %v582 = vor.u32 %v580, %v581
        %v583 = vshll.u32 2475754826, %v577
        %v584 = vshrl.u32 2131351028, %v578
        %v585 = vor.u32 %v583, %v584
        %v586 = vshll.u32 2131351028, %v577
        %v587 = vshrl.u32 2102212464, %v578
        %v588 = vor.u32 %v586, %v587
        %v589 = vshll.u32 2102212464, %v577
        %v590 = vshrl.u32 920167782, %v578
        %v591 = vor.u32 %v589, %v590
        %v592 = vshll.u32 920167782, %v577
        %v593 = vshrl.u32 1326507024, %v578
        %v594 = vor.u32 %v592, %v593
        %vm595 = vcmp.lt.s32.totalorder %v576, 1
        %vm596 = vcmp.lt.s32.totalorder %v576, 2
        %vm597 = vcmp.lt.s32.totalorder %v576, 3
        %vm598 = vcmp.lt.s32.totalorder %v576, 4
        %v599 = vsel %vm595, %v579, %v582
        %v600 = vsel %vm598, %v588, 2102212464
        %v601 = vsel %vm597, %v585, %v600
        %v602 = vsel %vm596, %v599, %v601
        %v603 = vsel %vm595, %v582, %v585
        %v604 = vsel %vm598, %v591, 920167782
        %v605 = vsel %vm597, %v588, %v604
        %v606 = vsel %vm596, %v603, %v605
        %v607 = vsel %vm595, %v585, %v588
        %v608 = vsel %vm598, %v594, 1326507024
        %v609 = vsel %vm597, %v591, %v608
        %v610 = vsel %vm596, %v607, %v609
        %v611 = vshll.u32 %v571, 8
        %v612 = vmul.u32.u64.compose %v611, %v610
        %v613 = vextract.low.u32 %v612
        %v614 = vextract.high.u32 %v612
        %v615 = vmul.u32.u64.compose %v611, %v606
        %v616 = vextract.low.u32 %v615
        %v617 = vextract.high.u32 %v615
        %v618 = vmul.u32 %v611, %v602
        %v619 = vadd.s32 %v614, %v616
        %vm620 = vc.u32 %v614, %v616
        %v621 = vadd.s32 %v617, 1
        %v622 = vsel %vm620, %v621, %v617
        %v623 = vadd.s32 %v618, %v622
        %v624 = vadd.s32 %v623, 536870912
        %v625 = vshrl.u32 %v624, 30
        %v626 = vshll.u32 %v625, 30
        %v627 = vsub.s32 %v623, %v626
        %vm628 = vcmp.lt.s32.totalorder %v627, 0
        %v629 = vsub.s32 0, %v627
        %v630 = vsel %vm628, %v629, %v627
        %v631 = vclz %v630
        %v632 = vsub.s32 %v631, 2
        %vm633 = vcmp.gt.s32.totalorder 0, %v632
        %v634 = vsel %vm633, 0, %v632
        %v635 = vsub.s32 32, %v634
        %v636 = vshll.u32 %v627, %v634
        %v637 = vshrl.u32 %v619, %v635
        %v638 = vor.u32 %v636, %v637
        %v639 = vsub.s32 4294967266, %v634
        %v640 = vadd.s32 %v639, 127
        %v641 = vshll.u32 %v640, 23
        %v642 = vor.u32 4788187, %v641
        %v643 = vand.u32 2147483647, %v642
        %v645 = vcvt.s32.f32 %v638
        %v646 = vmul.f32 %v645, %v643
        %v647 = vxor.u32 %v646, 2147483648
        %v648 = vsel %vm565, %v647, %v646
        %v649 = vsub.s32 4, %v625
        %v650 = vsel %vm565, %v649, %v625
        %v651 = vsel %vm564, %v158, %v648
        %v652 = vsel %vm564, 0, %v650
        %v653 = vcosq.f32.pop %v651
        %v654 = vsinq.f32.pop %v651
        %vm655 = vweird.f32 %v158
        %v656 = vadd.s32 %v652, 3
        %v657 = vand.u32 %v656, 3
        %vm658 = vcmp.lt.s32.totalorder %v657, 2
        %vm659 = vcmp.eq.s32.totalorder %v657, 0
        %v660 = vxor.u32 %v654, 2147483648
        %v661 = vsel %vm659, %v653, %v660
        %vm662 = vcmp.eq.s32.totalorder %v657, 2
        %v663 = vxor.u32 %v653, 2147483648
        %v664 = vsel %vm662, %v663, %v654
        %v665 = vsel %vm658, %v661, %v664
        %v666 = vsel %vm655, nan, %v665
        %v667 = vand.u32 2147483647, %v159
        %vm668 = vcmp.le.f32.partialorder %v667, 0.7853982
        %vm669 = vcmp.lt.s32.totalorder %v159, 0
        %v670 = vand.u32 %v159, 2139095040
        %v671 = vshrl.u32 %v670, 23
        %v672 = vsub.s32 %v671, 127
        %v673 = vand.u32 2147483647, %v159
        %v674 = vand.u32 %v673, 8388607
        %v675 = vor.u32 %v674, 8388608
        %v676 = vsub.s32 0, %v675
        %v677 = vadd.s32 %v672, 1
        %vm678 = vcmp.gt.s32.totalorder %v677, 0
        %v679 = vsel %vm678, %v677, 0
        %v680 = vshrl.u32 %v679, 5
        %v681 = vand.u32 %v679, 31
        %v682 = vsub.s32 32, %v681
        %v683 = vshrl.u32 683565275, %v682
        %v684 = vshll.u32 683565275, %v681
        %v685 = vshrl.u32 2475754826, %v682
        %v686 = vor.u32 %v684, %v685
        %v687 = vshll.u32 2475754826, %v681
        %v688 = vshrl.u32 2131351028, %v682
        %v689 = vor.u32 %v687, %v688
        %v690 = vshll.u32 2131351028, %v681
        %v691 = vshrl.u32 2102212464, %v682
        %v692 = vor.u32 %v690, %v691
        %v693 = vshll.u32 2102212464, %v681
        %v694 = vshrl.u32 920167782, %v682
        %v695 = vor.u32 %v693, %v694
        %v696 = vshll.u32 920167782, %v681
        %v697 = vshrl.u32 1326507024, %v682
        %v698 = vor.u32 %v696, %v697
        %vm699 = vcmp.lt.s32.totalorder %v680, 1
        %vm700 = vcmp.lt.s32.totalorder %v680, 2
        %vm701 = vcmp.lt.s32.totalorder %v680, 3
        %vm702 = vcmp.lt.s32.totalorder %v680, 4
        %v703 = vsel %vm699, %v683, %v686
        %v704 = vsel %vm702, %v692, 2102212464
        %v705 = vsel %vm701, %v689, %v704
        %v706 = vsel %vm700, %v703, %v705
        %v707 = vsel %vm699, %v686, %v689
        %v708 = vsel %vm702, %v695, 920167782
        %v709 = vsel %vm701, %v692, %v708
        %v710 = vsel %vm700, %v707, %v709
        %v711 = vsel %vm699, %v689, %v692
        %v712 = vsel %vm702, %v698, 1326507024
        %v713 = vsel %vm701, %v695, %v712
        %v714 = vsel %vm700, %v711, %v713
        %v715 = vshll.u32 %v675, 8
        %v716 = vmul.u32.u64.compose %v715, %v714
        %v717 = vextract.low.u32 %v716
        %v718 = vextract.high.u32 %v716
        %v719 = vmul.u32.u64.compose %v715, %v710
        %v720 = vextract.low.u32 %v719
        %v721 = vextract.high.u32 %v719
        %v722 = vmul.u32 %v715, %v706
        %v723 = vadd.s32 %v718, %v720
        %vm724 = vc.u32 %v718, %v720
        %v725 = vadd.s32 %v721, 1
        %v726 = vsel %vm724, %v725, %v721
        %v727 = vadd.s32 %v722, %v726
        %v728 = vadd.s32 %v727, 536870912
        %v729 = vshrl.u32 %v728, 30
        %v730 = vshll.u32 %v729, 30
        %v731 = vsub.s32 %v727, %v730
        %vm732 = vcmp.lt.s32.totalorder %v731, 0
        %v733 = vsub.s32 0, %v731
        %v734 = vsel %vm732, %v733, %v731
        %v735 = vclz %v734
        %v736 = vsub.s32 %v735, 2
        %vm737 = vcmp.gt.s32.totalorder 0, %v736
        %v738 = vsel %vm737, 0, %v736
        %v739 = vsub.s32 32, %v738
        %v740 = vshll.u32 %v731, %v738
        %v741 = vshrl.u32 %v723, %v739
        %v742 = vor.u32 %v740, %v741
        %v743 = vsub.s32 4294967266, %v738
        %v744 = vadd.s32 %v743, 127
        %v745 = vshll.u32 %v744, 23
        %v746 = vor.u32 4788187, %v745
        %v747 = vand.u32 2147483647, %v746
        %v749 = vcvt.s32.f32 %v742
        %v750 = vmul.f32 %v749, %v747
        %v751 = vxor.u32 %v750, 2147483648
        %v752 = vsel %vm669, %v751, %v750
        %v753 = vsub.s32 4, %v729
        %v754 = vsel %vm669, %v753, %v729
        %v755 = vsel %vm668, %v159, %v752
        %v756 = vsel %vm668, 0, %v754
        %v757 = vcosq.f32.pop %v755
        %v758 = vsinq.f32.pop %v755
        %vm759 = vweird.f32 %v159
        %v760 = vadd.s32 %v756, 3
        %v761 = vand.u32 %v760, 3
        %vm762 = vcmp.lt.s32.totalorder %v761, 2
        %vm763 = vcmp.eq.s32.totalorder %v761, 0
        %v764 = vxor.u32 %v758, 2147483648
        %v765 = vsel %vm763, %v757, %v764
        %vm766 = vcmp.eq.s32.totalorder %v761, 2
        %v767 = vxor.u32 %v757, 2147483648
        %v768 = vsel %vm766, %v767, %v758
        %v769 = vsel %vm762, %v765, %v768
        %v770 = vsel %vm759, nan, %v769
        %v771 = vand.u32 2147483647, %v160
        %vm772 = vcmp.le.f32.partialorder %v771, 0.7853982
        %vm773 = vcmp.lt.s32.totalorder %v160, 0
        %v774 = vand.u32 %v160, 2139095040
        %v775 = vshrl.u32 %v774, 23
        %v776 = vsub.s32 %v775, 127
        %v777 = vand.u32 2147483647, %v160
        %v778 = vand.u32 %v777, 8388607
        %v779 = vor.u32 %v778, 8388608
        %v780 = vsub.s32 0, %v779
        %v781 = vadd.s32 %v776, 1
        %vm782 = vcmp.gt.s32.totalorder %v781, 0
        %v783 = vsel %vm782, %v781, 0
        %v784 = vshrl.u32 %v783, 5
        %v785 = vand.u32 %v783, 31
        %v786 = vsub.s32 32, %v785
        %v787 = vshrl.u32 683565275, %v786
        %v788 = vshll.u32 683565275, %v785
        %v789 = vshrl.u32 2475754826, %v786
        %v790 = vor.u32 %v788, %v789
        %v791 = vshll.u32 2475754826, %v785
        %v792 = vshrl.u32 2131351028, %v786
        %v793 = vor.u32 %v791, %v792
        %v794 = vshll.u32 2131351028, %v785
        %v795 = vshrl.u32 2102212464, %v786
        %v796 = vor.u32 %v794, %v795
        %v797 = vshll.u32 2102212464, %v785
        %v798 = vshrl.u32 920167782, %v786
        %v799 = vor.u32 %v797, %v798
        %v800 = vshll.u32 920167782, %v785
        %v801 = vshrl.u32 1326507024, %v786
        %v802 = vor.u32 %v800, %v801
        %vm803 = vcmp.lt.s32.totalorder %v784, 1
        %vm804 = vcmp.lt.s32.totalorder %v784, 2
        %vm805 = vcmp.lt.s32.totalorder %v784, 3
        %vm806 = vcmp.lt.s32.totalorder %v784, 4
        %v807 = vsel %vm803, %v787, %v790
        %v808 = vsel %vm806, %v796, 2102212464
        %v809 = vsel %vm805, %v793, %v808
        %v810 = vsel %vm804, %v807, %v809
        %v811 = vsel %vm803, %v790, %v793
        %v812 = vsel %vm806, %v799, 920167782
        %v813 = vsel %vm805, %v796, %v812
        %v814 = vsel %vm804, %v811, %v813
        %v815 = vsel %vm803, %v793, %v796
        %v816 = vsel %vm806, %v802, 1326507024
        %v817 = vsel %vm805, %v799, %v816
        %v818 = vsel %vm804, %v815, %v817
        %v819 = vshll.u32 %v779, 8
        %v820 = vmul.u32.u64.compose %v819, %v818
        %v821 = vextract.low.u32 %v820
        %v822 = vextract.high.u32 %v820
        %v823 = vmul.u32.u64.compose %v819, %v814
        %v824 = vextract.low.u32 %v823
        %v825 = vextract.high.u32 %v823
        %v826 = vmul.u32 %v819, %v810
        %v827 = vadd.s32 %v822, %v824
        %vm828 = vc.u32 %v822, %v824
        %v829 = vadd.s32 %v825, 1
        %v830 = vsel %vm828, %v829, %v825
        %v831 = vadd.s32 %v826, %v830
        %v832 = vadd.s32 %v831, 536870912
        %v833 = vshrl.u32 %v832, 30
        %v834 = vshll.u32 %v833, 30
        %v835 = vsub.s32 %v831, %v834
        %vm836 = vcmp.lt.s32.totalorder %v835, 0
        %v837 = vsub.s32 0, %v835
        %v838 = vsel %vm836, %v837, %v835
        %v839 = vclz %v838
        %v840 = vsub.s32 %v839, 2
        %vm841 = vcmp.gt.s32.totalorder 0, %v840
        %v842 = vsel %vm841, 0, %v840
        %v843 = vsub.s32 32, %v842
        %v844 = vshll.u32 %v835, %v842
        %v845 = vshrl.u32 %v827, %v843
        %v846 = vor.u32 %v844, %v845
        %v847 = vsub.s32 4294967266, %v842
        %v848 = vadd.s32 %v847, 127
        %v849 = vshll.u32 %v848, 23
        %v850 = vor.u32 4788187, %v849
        %v851 = vand.u32 2147483647, %v850
        %v853 = vcvt.s32.f32 %v846
        %v854 = vmul.f32 %v853, %v851
        %v855 = vxor.u32 %v854, 2147483648
        %v856 = vsel %vm773, %v855, %v854
        %v857 = vsub.s32 4, %v833
        %v858 = vsel %vm773, %v857, %v833
        %v859 = vsel %vm772, %v160, %v856
        %v860 = vsel %vm772, 0, %v858
        %v861 = vcosq.f32.pop %v859
        %v862 = vsinq.f32.pop %v859
        %vm863 = vweird.f32 %v160
        %v864 = vadd.s32 %v860, 3
        %v865 = vand.u32 %v864, 3
        %vm866 = vcmp.lt.s32.totalorder %v865, 2
        %vm867 = vcmp.eq.s32.totalorder %v865, 0
        %v868 = vxor.u32 %v862, 2147483648
        %v869 = vsel %vm867, %v861, %v868
        %vm870 = vcmp.eq.s32.totalorder %v865, 2
        %v871 = vxor.u32 %v861, 2147483648
        %v872 = vsel %vm870, %v871, %v862
        %v873 = vsel %vm866, %v869, %v872
        %v874 = vsel %vm863, nan, %v873
        %v875 = vand.u32 2147483647, %v161
        %vm876 = vcmp.le.f32.partialorder %v875, 0.7853982
        %vm877 = vcmp.lt.s32.totalorder %v161, 0
        %v878 = vand.u32 %v161, 2139095040
        %v879 = vshrl.u32 %v878, 23
        %v880 = vsub.s32 %v879, 127
        %v881 = vand.u32 2147483647, %v161
        %v882 = vand.u32 %v881, 8388607
        %v883 = vor.u32 %v882, 8388608
        %v884 = vsub.s32 0, %v883
        %v885 = vadd.s32 %v880, 1
        %vm886 = vcmp.gt.s32.totalorder %v885, 0
        %v887 = vsel %vm886, %v885, 0
        %v888 = vshrl.u32 %v887, 5
        %v889 = vand.u32 %v887, 31
        %v890 = vsub.s32 32, %v889
        %v891 = vshrl.u32 683565275, %v890
        %v892 = vshll.u32 683565275, %v889
        %v893 = vshrl.u32 2475754826, %v890
        %v894 = vor.u32 %v892, %v893
        %v895 = vshll.u32 2475754826, %v889
        %v896 = vshrl.u32 2131351028, %v890
        %v897 = vor.u32 %v895, %v896
        %v898 = vshll.u32 2131351028, %v889
        %v899 = vshrl.u32 2102212464, %v890
        %v900 = vor.u32 %v898, %v899
        %v901 = vshll.u32 2102212464, %v889
        %v902 = vshrl.u32 920167782, %v890
        %v903 = vor.u32 %v901, %v902
        %v904 = vshll.u32 920167782, %v889
        %v905 = vshrl.u32 1326507024, %v890
        %v906 = vor.u32 %v904, %v905
        %vm907 = vcmp.lt.s32.totalorder %v888, 1
        %vm908 = vcmp.lt.s32.totalorder %v888, 2
        %vm909 = vcmp.lt.s32.totalorder %v888, 3
        %vm910 = vcmp.lt.s32.totalorder %v888, 4
        %v911 = vsel %vm907, %v891, %v894
        %v912 = vsel %vm910, %v900, 2102212464
        %v913 = vsel %vm909, %v897, %v912
        %v914 = vsel %vm908, %v911, %v913
        %v915 = vsel %vm907, %v894, %v897
        %v916 = vsel %vm910, %v903, 920167782
        %v917 = vsel %vm909, %v900, %v916
        %v918 = vsel %vm908, %v915, %v917
        %v919 = vsel %vm907, %v897, %v900
        %v920 = vsel %vm910, %v906, 1326507024
        %v921 = vsel %vm909, %v903, %v920
        %v922 = vsel %vm908, %v919, %v921
        %v923 = vshll.u32 %v883, 8
        %v924 = vmul.u32.u64.compose %v923, %v922
        %v925 = vextract.low.u32 %v924
        %v926 = vextract.high.u32 %v924
        %v927 = vmul.u32.u64.compose %v923, %v918
        %v928 = vextract.low.u32 %v927
        %v929 = vextract.high.u32 %v927
        %v930 = vmul.u32 %v923, %v914
        %v931 = vadd.s32 %v926, %v928
        %vm932 = vc.u32 %v926, %v928
        %v933 = vadd.s32 %v929, 1
        %v934 = vsel %vm932, %v933, %v929
        %v935 = vadd.s32 %v930, %v934
        %v936 = vadd.s32 %v935, 536870912
        %v937 = vshrl.u32 %v936, 30
        %v938 = vshll.u32 %v937, 30
        %v939 = vsub.s32 %v935, %v938
        %vm940 = vcmp.lt.s32.totalorder %v939, 0
        %v941 = vsub.s32 0, %v939
        %v942 = vsel %vm940, %v941, %v939
        %v943 = vclz %v942
        %v944 = vsub.s32 %v943, 2
        %vm945 = vcmp.gt.s32.totalorder 0, %v944
        %v946 = vsel %vm945, 0, %v944
        %v947 = vsub.s32 32, %v946
        %v948 = vshll.u32 %v939, %v946
        %v949 = vshrl.u32 %v931, %v947
        %v950 = vor.u32 %v948, %v949
        %v951 = vsub.s32 4294967266, %v946
        %v952 = vadd.s32 %v951, 127
        %v953 = vshll.u32 %v952, 23
        %v954 = vor.u32 4788187, %v953
        %v955 = vand.u32 2147483647, %v954
        %v957 = vcvt.s32.f32 %v950
        %v958 = vmul.f32 %v957, %v955
        %v959 = vxor.u32 %v958, 2147483648
        %v960 = vsel %vm877, %v959, %v958
        %v961 = vsub.s32 4, %v937
        %v962 = vsel %vm877, %v961, %v937
        %v963 = vsel %vm876, %v161, %v960
        %v964 = vsel %vm876, 0, %v962
        %v965 = vcosq.f32.pop %v963
        %v966 = vsinq.f32.pop %v963
        %vm967 = vweird.f32 %v161
        %v968 = vadd.s32 %v964, 3
        %v969 = vand.u32 %v968, 3
        %vm970 = vcmp.lt.s32.totalorder %v969, 2
        %vm971 = vcmp.eq.s32.totalorder %v969, 0
        %v972 = vxor.u32 %v966, 2147483648
        %v973 = vsel %vm971, %v965, %v972
        %vm974 = vcmp.eq.s32.totalorder %v969, 2
        %v975 = vxor.u32 %v965, 2147483648
        %v976 = vsel %vm974, %v975, %v966
        %v977 = vsel %vm970, %v973, %v976
        %v978 = vsel %vm967, nan, %v977
        %v979 = vand.u32 2147483647, %v162
        %vm980 = vcmp.le.f32.partialorder %v979, 0.7853982
        %vm981 = vcmp.lt.s32.totalorder %v162, 0
        %v982 = vand.u32 %v162, 2139095040
        %v983 = vshrl.u32 %v982, 23
        %v984 = vsub.s32 %v983, 127
        %v985 = vand.u32 2147483647, %v162
        %v986 = vand.u32 %v985, 8388607
        %v987 = vor.u32 %v986, 8388608
        %v988 = vsub.s32 0, %v987
        %v989 = vadd.s32 %v984, 1
        %vm990 = vcmp.gt.s32.totalorder %v989, 0
        %v991 = vsel %vm990, %v989, 0
        %v992 = vshrl.u32 %v991, 5
        %v993 = vand.u32 %v991, 31
        %v994 = vsub.s32 32, %v993
        %v995 = vshrl.u32 683565275, %v994
        %v996 = vshll.u32 683565275, %v993
        %v997 = vshrl.u32 2475754826, %v994
        %v998 = vor.u32 %v996, %v997
        %v999 = vshll.u32 2475754826, %v993
        %v1000 = vshrl.u32 2131351028, %v994
        %v1001 = vor.u32 %v999, %v1000
        %v1002 = vshll.u32 2131351028, %v993
        %v1003 = vshrl.u32 2102212464, %v994
        %v1004 = vor.u32 %v1002, %v1003
        %v1005 = vshll.u32 2102212464, %v993
        %v1006 = vshrl.u32 920167782, %v994
        %v1007 = vor.u32 %v1005, %v1006
        %v1008 = vshll.u32 920167782, %v993
        %v1009 = vshrl.u32 1326507024, %v994
        %v1010 = vor.u32 %v1008, %v1009
        %vm1011 = vcmp.lt.s32.totalorder %v992, 1
        %vm1012 = vcmp.lt.s32.totalorder %v992, 2
        %vm1013 = vcmp.lt.s32.totalorder %v992, 3
        %vm1014 = vcmp.lt.s32.totalorder %v992, 4
        %v1015 = vsel %vm1011, %v995, %v998
        %v1016 = vsel %vm1014, %v1004, 2102212464
        %v1017 = vsel %vm1013, %v1001, %v1016
        %v1018 = vsel %vm1012, %v1015, %v1017
        %v1019 = vsel %vm1011, %v998, %v1001
        %v1020 = vsel %vm1014, %v1007, 920167782
        %v1021 = vsel %vm1013, %v1004, %v1020
        %v1022 = vsel %vm1012, %v1019, %v1021
        %v1023 = vsel %vm1011, %v1001, %v1004
        %v1024 = vsel %vm1014, %v1010, 1326507024
        %v1025 = vsel %vm1013, %v1007, %v1024
        %v1026 = vsel %vm1012, %v1023, %v1025
        %v1027 = vshll.u32 %v987, 8
        %v1028 = vmul.u32.u64.compose %v1027, %v1026
        %v1029 = vextract.low.u32 %v1028
        %v1030 = vextract.high.u32 %v1028
        %v1031 = vmul.u32.u64.compose %v1027, %v1022
        %v1032 = vextract.low.u32 %v1031
        %v1033 = vextract.high.u32 %v1031
        %v1034 = vmul.u32 %v1027, %v1018
        %v1035 = vadd.s32 %v1030, %v1032
        %vm1036 = vc.u32 %v1030, %v1032
        %v1037 = vadd.s32 %v1033, 1
        %v1038 = vsel %vm1036, %v1037, %v1033
        %v1039 = vadd.s32 %v1034, %v1038
        %v1040 = vadd.s32 %v1039, 536870912
        %v1041 = vshrl.u32 %v1040, 30
        %v1042 = vshll.u32 %v1041, 30
        %v1043 = vsub.s32 %v1039, %v1042
        %vm1044 = vcmp.lt.s32.totalorder %v1043, 0
        %v1045 = vsub.s32 0, %v1043
        %v1046 = vsel %vm1044, %v1045, %v1043
        %v1047 = vclz %v1046
        %v1048 = vsub.s32 %v1047, 2
        %vm1049 = vcmp.gt.s32.totalorder 0, %v1048
        %v1050 = vsel %vm1049, 0, %v1048
        %v1051 = vsub.s32 32, %v1050
        %v1052 = vshll.u32 %v1043, %v1050
        %v1053 = vshrl.u32 %v1035, %v1051
        %v1054 = vor.u32 %v1052, %v1053
        %v1055 = vsub.s32 4294967266, %v1050
        %v1056 = vadd.s32 %v1055, 127
        %v1057 = vshll.u32 %v1056, 23
        %v1058 = vor.u32 4788187, %v1057
        %v1059 = vand.u32 2147483647, %v1058
        %v1061 = vcvt.s32.f32 %v1054
        %v1062 = vmul.f32 %v1061, %v1059
        %v1063 = vxor.u32 %v1062, 2147483648
        %v1064 = vsel %vm981, %v1063, %v1062
        %v1065 = vsub.s32 4, %v1041
        %v1066 = vsel %vm981, %v1065, %v1041
        %v1067 = vsel %vm980, %v162, %v1064
        %v1068 = vsel %vm980, 0, %v1066
        %v1069 = vcosq.f32.pop %v1067
        %v1070 = vsinq.f32.pop %v1067
        %vm1071 = vweird.f32 %v162
        %v1072 = vadd.s32 %v1068, 3
        %v1073 = vand.u32 %v1072, 3
        %vm1074 = vcmp.lt.s32.totalorder %v1073, 2
        %vm1075 = vcmp.eq.s32.totalorder %v1073, 0
        %v1076 = vxor.u32 %v1070, 2147483648
        %v1077 = vsel %vm1075, %v1069, %v1076
        %vm1078 = vcmp.eq.s32.totalorder %v1073, 2
        %v1079 = vxor.u32 %v1069, 2147483648
        %v1080 = vsel %vm1078, %v1079, %v1070
        %v1081 = vsel %vm1074, %v1077, %v1080
        %v1082 = vsel %vm1071, nan, %v1081
        %v1083 = vand.u32 2147483647, %v163
        %vm1084 = vcmp.le.f32.partialorder %v1083, 0.7853982
        %vm1085 = vcmp.lt.s32.totalorder %v163, 0
        %v1086 = vand.u32 %v163, 2139095040
        %v1087 = vshrl.u32 %v1086, 23
        %v1088 = vsub.s32 %v1087, 127
        %v1089 = vand.u32 2147483647, %v163
        %v1090 = vand.u32 %v1089, 8388607
        %v1091 = vor.u32 %v1090, 8388608
        %v1092 = vsub.s32 0, %v1091
        %v1093 = vadd.s32 %v1088, 1
        %vm1094 = vcmp.gt.s32.totalorder %v1093, 0
        %v1095 = vsel %vm1094, %v1093, 0
        %v1096 = vshrl.u32 %v1095, 5
        %v1097 = vand.u32 %v1095, 31
        %v1098 = vsub.s32 32, %v1097
        %v1099 = vshrl.u32 683565275, %v1098
        %v1100 = vshll.u32 683565275, %v1097
        %v1101 = vshrl.u32 2475754826, %v1098
        %v1102 = vor.u32 %v1100, %v1101
        %v1103 = vshll.u32 2475754826, %v1097
        %v1104 = vshrl.u32 2131351028, %v1098
        %v1105 = vor.u32 %v1103, %v1104
        %v1106 = vshll.u32 2131351028, %v1097
        %v1107 = vshrl.u32 2102212464, %v1098
        %v1108 = vor.u32 %v1106, %v1107
        %v1109 = vshll.u32 2102212464, %v1097
        %v1110 = vshrl.u32 920167782, %v1098
        %v1111 = vor.u32 %v1109, %v1110
        %v1112 = vshll.u32 920167782, %v1097
        %v1113 = vshrl.u32 1326507024, %v1098
        %v1114 = vor.u32 %v1112, %v1113
        %vm1115 = vcmp.lt.s32.totalorder %v1096, 1
        %vm1116 = vcmp.lt.s32.totalorder %v1096, 2
        %vm1117 = vcmp.lt.s32.totalorder %v1096, 3
        %vm1118 = vcmp.lt.s32.totalorder %v1096, 4
        %v1119 = vsel %vm1115, %v1099, %v1102
        %v1120 = vsel %vm1118, %v1108, 2102212464
        %v1121 = vsel %vm1117, %v1105, %v1120
        %v1122 = vsel %vm1116, %v1119, %v1121
        %v1123 = vsel %vm1115, %v1102, %v1105
        %v1124 = vsel %vm1118, %v1111, 920167782
        %v1125 = vsel %vm1117, %v1108, %v1124
        %v1126 = vsel %vm1116, %v1123, %v1125
        %v1127 = vsel %vm1115, %v1105, %v1108
        %v1128 = vsel %vm1118, %v1114, 1326507024
        %v1129 = vsel %vm1117, %v1111, %v1128
        %v1130 = vsel %vm1116, %v1127, %v1129
        %v1131 = vshll.u32 %v1091, 8
        %v1132 = vmul.u32.u64.compose %v1131, %v1130
        %v1133 = vextract.low.u32 %v1132
        %v1134 = vextract.high.u32 %v1132
        %v1135 = vmul.u32.u64.compose %v1131, %v1126
        %v1136 = vextract.low.u32 %v1135
        %v1137 = vextract.high.u32 %v1135
        %v1138 = vmul.u32 %v1131, %v1122
        %v1139 = vadd.s32 %v1134, %v1136
        %vm1140 = vc.u32 %v1134, %v1136
        %v1141 = vadd.s32 %v1137, 1
        %v1142 = vsel %vm1140, %v1141, %v1137
        %v1143 = vadd.s32 %v1138, %v1142
        %v1144 = vadd.s32 %v1143, 536870912
        %v1145 = vshrl.u32 %v1144, 30
        %v1146 = vshll.u32 %v1145, 30
        %v1147 = vsub.s32 %v1143, %v1146
        %vm1148 = vcmp.lt.s32.totalorder %v1147, 0
        %v1149 = vsub.s32 0, %v1147
        %v1150 = vsel %vm1148, %v1149, %v1147
        %v1151 = vclz %v1150
        %v1152 = vsub.s32 %v1151, 2
        %vm1153 = vcmp.gt.s32.totalorder 0, %v1152
        %v1154 = vsel %vm1153, 0, %v1152
        %v1155 = vsub.s32 32, %v1154
        %v1156 = vshll.u32 %v1147, %v1154
        %v1157 = vshrl.u32 %v1139, %v1155
        %v1158 = vor.u32 %v1156, %v1157
        %v1159 = vsub.s32 4294967266, %v1154
        %v1160 = vadd.s32 %v1159, 127
        %v1161 = vshll.u32 %v1160, 23
        %v1162 = vor.u32 4788187, %v1161
        %v1163 = vand.u32 2147483647, %v1162
        %v1165 = vcvt.s32.f32 %v1158
        %v1166 = vmul.f32 %v1165, %v1163
        %v1167 = vxor.u32 %v1166, 2147483648
        %v1168 = vsel %vm1085, %v1167, %v1166
        %v1169 = vsub.s32 4, %v1145
        %v1170 = vsel %vm1085, %v1169, %v1145
        %v1171 = vsel %vm1084, %v163, %v1168
        %v1172 = vsel %vm1084, 0, %v1170
        %v1173 = vcosq.f32.pop %v1171
        %v1174 = vsinq.f32.pop %v1171
        %vm1175 = vweird.f32 %v163
        %v1176 = vadd.s32 %v1172, 3
        %v1177 = vand.u32 %v1176, 3
        %vm1178 = vcmp.lt.s32.totalorder %v1177, 2
        %vm1179 = vcmp.eq.s32.totalorder %v1177, 0
        %v1180 = vxor.u32 %v1174, 2147483648
        %v1181 = vsel %vm1179, %v1173, %v1180
        %vm1182 = vcmp.eq.s32.totalorder %v1177, 2
        %v1183 = vxor.u32 %v1173, 2147483648
        %v1184 = vsel %vm1182, %v1183, %v1174
        %v1185 = vsel %vm1178, %v1181, %v1184
        %v1186 = vsel %vm1175, nan, %v1185
        %v1187 = vand.u32 2147483647, %v164
        %vm1188 = vcmp.le.f32.partialorder %v1187, 0.7853982
        %vm1189 = vcmp.lt.s32.totalorder %v164, 0
        %v1190 = vand.u32 %v164, 2139095040
        %v1191 = vshrl.u32 %v1190, 23
        %v1192 = vsub.s32 %v1191, 127
        %v1193 = vand.u32 2147483647, %v164
        %v1194 = vand.u32 %v1193, 8388607
        %v1195 = vor.u32 %v1194, 8388608
        %v1196 = vsub.s32 0, %v1195
        %v1197 = vadd.s32 %v1192, 1
        %vm1198 = vcmp.gt.s32.totalorder %v1197, 0
        %v1199 = vsel %vm1198, %v1197, 0
        %v1200 = vshrl.u32 %v1199, 5
        %v1201 = vand.u32 %v1199, 31
        %v1202 = vsub.s32 32, %v1201
        %v1203 = vshrl.u32 683565275, %v1202
        %v1204 = vshll.u32 683565275, %v1201
        %v1205 = vshrl.u32 2475754826, %v1202
        %v1206 = vor.u32 %v1204, %v1205
        %v1207 = vshll.u32 2475754826, %v1201
        %v1208 = vshrl.u32 2131351028, %v1202
        %v1209 = vor.u32 %v1207, %v1208
        %v1210 = vshll.u32 2131351028, %v1201
        %v1211 = vshrl.u32 2102212464, %v1202
        %v1212 = vor.u32 %v1210, %v1211
        %v1213 = vshll.u32 2102212464, %v1201
        %v1214 = vshrl.u32 920167782, %v1202
        %v1215 = vor.u32 %v1213, %v1214
        %v1216 = vshll.u32 920167782, %v1201
        %v1217 = vshrl.u32 1326507024, %v1202
        %v1218 = vor.u32 %v1216, %v1217
        %vm1219 = vcmp.lt.s32.totalorder %v1200, 1
        %vm1220 = vcmp.lt.s32.totalorder %v1200, 2
        %vm1221 = vcmp.lt.s32.totalorder %v1200, 3
        %vm1222 = vcmp.lt.s32.totalorder %v1200, 4
        %v1223 = vsel %vm1219, %v1203, %v1206
        %v1224 = vsel %vm1222, %v1212, 2102212464
        %v1225 = vsel %vm1221, %v1209, %v1224
        %v1226 = vsel %vm1220, %v1223, %v1225
        %v1227 = vsel %vm1219, %v1206, %v1209
        %v1228 = vsel %vm1222, %v1215, 920167782
        %v1229 = vsel %vm1221, %v1212, %v1228
        %v1230 = vsel %vm1220, %v1227, %v1229
        %v1231 = vsel %vm1219, %v1209, %v1212
        %v1232 = vsel %vm1222, %v1218, 1326507024
        %v1233 = vsel %vm1221, %v1215, %v1232
        %v1234 = vsel %vm1220, %v1231, %v1233
        %v1235 = vshll.u32 %v1195, 8
        %v1236 = vmul.u32.u64.compose %v1235, %v1234
        %v1237 = vextract.low.u32 %v1236
        %v1238 = vextract.high.u32 %v1236
        %v1239 = vmul.u32.u64.compose %v1235, %v1230
        %v1240 = vextract.low.u32 %v1239
        %v1241 = vextract.high.u32 %v1239
        %v1242 = vmul.u32 %v1235, %v1226
        %v1243 = vadd.s32 %v1238, %v1240
        %vm1244 = vc.u32 %v1238, %v1240
        %v1245 = vadd.s32 %v1241, 1
        %v1246 = vsel %vm1244, %v1245, %v1241
        %v1247 = vadd.s32 %v1242, %v1246
        %v1248 = vadd.s32 %v1247, 536870912
        %v1249 = vshrl.u32 %v1248, 30
        %v1250 = vshll.u32 %v1249, 30
        %v1251 = vsub.s32 %v1247, %v1250
        %vm1252 = vcmp.lt.s32.totalorder %v1251, 0
        %v1253 = vsub.s32 0, %v1251
        %v1254 = vsel %vm1252, %v1253, %v1251
        %v1255 = vclz %v1254
        %v1256 = vsub.s32 %v1255, 2
        %vm1257 = vcmp.gt.s32.totalorder 0, %v1256
        %v1258 = vsel %vm1257, 0, %v1256
        %v1259 = vsub.s32 32, %v1258
        %v1260 = vshll.u32 %v1251, %v1258
        %v1261 = vshrl.u32 %v1243, %v1259
        %v1262 = vor.u32 %v1260, %v1261
        %v1263 = vsub.s32 4294967266, %v1258
        %v1264 = vadd.s32 %v1263, 127
        %v1265 = vshll.u32 %v1264, 23
        %v1266 = vor.u32 4788187, %v1265
        %v1267 = vand.u32 2147483647, %v1266
        %v1269 = vcvt.s32.f32 %v1262
        %v1270 = vmul.f32 %v1269, %v1267
        %v1271 = vxor.u32 %v1270, 2147483648
        %v1272 = vsel %vm1189, %v1271, %v1270
        %v1273 = vsub.s32 4, %v1249
        %v1274 = vsel %vm1189, %v1273, %v1249
        %v1275 = vsel %vm1188, %v164, %v1272
        %v1276 = vsel %vm1188, 0, %v1274
        %v1277 = vcosq.f32.pop %v1275
        %v1278 = vsinq.f32.pop %v1275
        %vm1279 = vweird.f32 %v164
        %v1280 = vadd.s32 %v1276, 3
        %v1281 = vand.u32 %v1280, 3
        %vm1282 = vcmp.lt.s32.totalorder %v1281, 2
        %vm1283 = vcmp.eq.s32.totalorder %v1281, 0
        %v1284 = vxor.u32 %v1278, 2147483648
        %v1285 = vsel %vm1283, %v1277, %v1284
        %vm1286 = vcmp.eq.s32.totalorder %v1281, 2
        %v1287 = vxor.u32 %v1277, 2147483648
        %v1288 = vsel %vm1286, %v1287, %v1278
        %v1289 = vsel %vm1282, %v1285, %v1288
        %v1290 = vsel %vm1279, nan, %v1289
        %v1291 = vand.u32 2147483647, %v165
        %vm1292 = vcmp.le.f32.partialorder %v1291, 0.7853982
        %vm1293 = vcmp.lt.s32.totalorder %v165, 0
        %v1294 = vand.u32 %v165, 2139095040
        %v1295 = vshrl.u32 %v1294, 23
        %v1296 = vsub.s32 %v1295, 127
        %v1297 = vand.u32 2147483647, %v165
        %v1298 = vand.u32 %v1297, 8388607
        %v1299 = vor.u32 %v1298, 8388608
        %v1300 = vsub.s32 0, %v1299
        %v1301 = vadd.s32 %v1296, 1
        %vm1302 = vcmp.gt.s32.totalorder %v1301, 0
        %v1303 = vsel %vm1302, %v1301, 0
        %v1304 = vshrl.u32 %v1303, 5
        %v1305 = vand.u32 %v1303, 31
        %v1306 = vsub.s32 32, %v1305
        %v1307 = vshrl.u32 683565275, %v1306
        %v1308 = vshll.u32 683565275, %v1305
        %v1309 = vshrl.u32 2475754826, %v1306
        %v1310 = vor.u32 %v1308, %v1309
        %v1311 = vshll.u32 2475754826, %v1305
        %v1312 = vshrl.u32 2131351028, %v1306
        %v1313 = vor.u32 %v1311, %v1312
        %v1314 = vshll.u32 2131351028, %v1305
        %v1315 = vshrl.u32 2102212464, %v1306
        %v1316 = vor.u32 %v1314, %v1315
        %v1317 = vshll.u32 2102212464, %v1305
        %v1318 = vshrl.u32 920167782, %v1306
        %v1319 = vor.u32 %v1317, %v1318
        %v1320 = vshll.u32 920167782, %v1305
        %v1321 = vshrl.u32 1326507024, %v1306
        %v1322 = vor.u32 %v1320, %v1321
        %vm1323 = vcmp.lt.s32.totalorder %v1304, 1
        %vm1324 = vcmp.lt.s32.totalorder %v1304, 2
        %vm1325 = vcmp.lt.s32.totalorder %v1304, 3
        %vm1326 = vcmp.lt.s32.totalorder %v1304, 4
        %v1327 = vsel %vm1323, %v1307, %v1310
        %v1328 = vsel %vm1326, %v1316, 2102212464
        %v1329 = vsel %vm1325, %v1313, %v1328
        %v1330 = vsel %vm1324, %v1327, %v1329
        %v1331 = vsel %vm1323, %v1310, %v1313
        %v1332 = vsel %vm1326, %v1319, 920167782
        %v1333 = vsel %vm1325, %v1316, %v1332
        %v1334 = vsel %vm1324, %v1331, %v1333
        %v1335 = vsel %vm1323, %v1313, %v1316
        %v1336 = vsel %vm1326, %v1322, 1326507024
        %v1337 = vsel %vm1325, %v1319, %v1336
        %v1338 = vsel %vm1324, %v1335, %v1337
        %v1339 = vshll.u32 %v1299, 8
        %v1340 = vmul.u32.u64.compose %v1339, %v1338
        %v1341 = vextract.low.u32 %v1340
        %v1342 = vextract.high.u32 %v1340
        %v1343 = vmul.u32.u64.compose %v1339, %v1334
        %v1344 = vextract.low.u32 %v1343
        %v1345 = vextract.high.u32 %v1343
        %v1346 = vmul.u32 %v1339, %v1330
        %v1347 = vadd.s32 %v1342, %v1344
        %vm1348 = vc.u32 %v1342, %v1344
        %v1349 = vadd.s32 %v1345, 1
        %v1350 = vsel %vm1348, %v1349, %v1345
        %v1351 = vadd.s32 %v1346, %v1350
        %v1352 = vadd.s32 %v1351, 536870912
        %v1353 = vshrl.u32 %v1352, 30
        %v1354 = vshll.u32 %v1353, 30
        %v1355 = vsub.s32 %v1351, %v1354
        %vm1356 = vcmp.lt.s32.totalorder %v1355, 0
        %v1357 = vsub.s32 0, %v1355
        %v1358 = vsel %vm1356, %v1357, %v1355
        %v1359 = vclz %v1358
        %v1360 = vsub.s32 %v1359, 2
        %vm1361 = vcmp.gt.s32.totalorder 0, %v1360
        %v1362 = vsel %vm1361, 0, %v1360
        %v1363 = vsub.s32 32, %v1362
        %v1364 = vshll.u32 %v1355, %v1362
        %v1365 = vshrl.u32 %v1347, %v1363
        %v1366 = vor.u32 %v1364, %v1365
        %v1367 = vsub.s32 4294967266, %v1362
        %v1368 = vadd.s32 %v1367, 127
        %v1369 = vshll.u32 %v1368, 23
        %v1370 = vor.u32 4788187, %v1369
        %v1371 = vand.u32 2147483647, %v1370
        %v1373 = vcvt.s32.f32 %v1366
        %v1374 = vmul.f32 %v1373, %v1371
        %v1375 = vxor.u32 %v1374, 2147483648
        %v1376 = vsel %vm1293, %v1375, %v1374
        %v1377 = vsub.s32 4, %v1353
        %v1378 = vsel %vm1293, %v1377, %v1353
        %v1379 = vsel %vm1292, %v165, %v1376
        %v1380 = vsel %vm1292, 0, %v1378
        %v1381 = vcosq.f32.pop %v1379
        %v1382 = vsinq.f32.pop %v1379
        %vm1383 = vweird.f32 %v165
        %v1384 = vadd.s32 %v1380, 3
        %v1385 = vand.u32 %v1384, 3
        %vm1386 = vcmp.lt.s32.totalorder %v1385, 2
        %vm1387 = vcmp.eq.s32.totalorder %v1385, 0
        %v1388 = vxor.u32 %v1382, 2147483648
        %v1389 = vsel %vm1387, %v1381, %v1388
        %vm1390 = vcmp.eq.s32.totalorder %v1385, 2
        %v1391 = vxor.u32 %v1381, 2147483648
        %v1392 = vsel %vm1390, %v1391, %v1382
        %v1393 = vsel %vm1386, %v1389, %v1392
        %v1394 = vsel %vm1383, nan, %v1393
        %v1395 = vand.u32 2147483647, %v166
        %vm1396 = vcmp.le.f32.partialorder %v1395, 0.7853982
        %vm1397 = vcmp.lt.s32.totalorder %v166, 0
        %v1398 = vand.u32 %v166, 2139095040
        %v1399 = vshrl.u32 %v1398, 23
        %v1400 = vsub.s32 %v1399, 127
        %v1401 = vand.u32 2147483647, %v166
        %v1402 = vand.u32 %v1401, 8388607
        %v1403 = vor.u32 %v1402, 8388608
        %v1404 = vsub.s32 0, %v1403
        %v1405 = vadd.s32 %v1400, 1
        %vm1406 = vcmp.gt.s32.totalorder %v1405, 0
        %v1407 = vsel %vm1406, %v1405, 0
        %v1408 = vshrl.u32 %v1407, 5
        %v1409 = vand.u32 %v1407, 31
        %v1410 = vsub.s32 32, %v1409
        %v1411 = vshrl.u32 683565275, %v1410
        %v1412 = vshll.u32 683565275, %v1409
        %v1413 = vshrl.u32 2475754826, %v1410
        %v1414 = vor.u32 %v1412, %v1413
        %v1415 = vshll.u32 2475754826, %v1409
        %v1416 = vshrl.u32 2131351028, %v1410
        %v1417 = vor.u32 %v1415, %v1416
        %v1418 = vshll.u32 2131351028, %v1409
        %v1419 = vshrl.u32 2102212464, %v1410
        %v1420 = vor.u32 %v1418, %v1419
        %v1421 = vshll.u32 2102212464, %v1409
        %v1422 = vshrl.u32 920167782, %v1410
        %v1423 = vor.u32 %v1421, %v1422
        %v1424 = vshll.u32 920167782, %v1409
        %v1425 = vshrl.u32 1326507024, %v1410
        %v1426 = vor.u32 %v1424, %v1425
        %vm1427 = vcmp.lt.s32.totalorder %v1408, 1
        %vm1428 = vcmp.lt.s32.totalorder %v1408, 2
        %vm1429 = vcmp.lt.s32.totalorder %v1408, 3
        %vm1430 = vcmp.lt.s32.totalorder %v1408, 4
        %v1431 = vsel %vm1427, %v1411, %v1414
        %v1432 = vsel %vm1430, %v1420, 2102212464
        %v1433 = vsel %vm1429, %v1417, %v1432
        %v1434 = vsel %vm1428, %v1431, %v1433
        %v1435 = vsel %vm1427, %v1414, %v1417
        %v1436 = vsel %vm1430, %v1423, 920167782
        %v1437 = vsel %vm1429, %v1420, %v1436
        %v1438 = vsel %vm1428, %v1435, %v1437
        %v1439 = vsel %vm1427, %v1417, %v1420
        %v1440 = vsel %vm1430, %v1426, 1326507024
        %v1441 = vsel %vm1429, %v1423, %v1440
        %v1442 = vsel %vm1428, %v1439, %v1441
        %v1443 = vshll.u32 %v1403, 8
        %v1444 = vmul.u32.u64.compose %v1443, %v1442
        %v1445 = vextract.low.u32 %v1444
        %v1446 = vextract.high.u32 %v1444
        %v1447 = vmul.u32.u64.compose %v1443, %v1438
        %v1448 = vextract.low.u32 %v1447
        %v1449 = vextract.high.u32 %v1447
        %v1450 = vmul.u32 %v1443, %v1434
        %v1451 = vadd.s32 %v1446, %v1448
        %vm1452 = vc.u32 %v1446, %v1448
        %v1453 = vadd.s32 %v1449, 1
        %v1454 = vsel %vm1452, %v1453, %v1449
        %v1455 = vadd.s32 %v1450, %v1454
        %v1456 = vadd.s32 %v1455, 536870912
        %v1457 = vshrl.u32 %v1456, 30
        %v1458 = vshll.u32 %v1457, 30
        %v1459 = vsub.s32 %v1455, %v1458
        %vm1460 = vcmp.lt.s32.totalorder %v1459, 0
        %v1461 = vsub.s32 0, %v1459
        %v1462 = vsel %vm1460, %v1461, %v1459
        %v1463 = vclz %v1462
        %v1464 = vsub.s32 %v1463, 2
        %vm1465 = vcmp.gt.s32.totalorder 0, %v1464
        %v1466 = vsel %vm1465, 0, %v1464
        %v1467 = vsub.s32 32, %v1466
        %v1468 = vshll.u32 %v1459, %v1466
        %v1469 = vshrl.u32 %v1451, %v1467
        %v1470 = vor.u32 %v1468, %v1469
        %v1471 = vsub.s32 4294967266, %v1466
        %v1472 = vadd.s32 %v1471, 127
        %v1473 = vshll.u32 %v1472, 23
        %v1474 = vor.u32 4788187, %v1473
        %v1475 = vand.u32 2147483647, %v1474
        %v1477 = vcvt.s32.f32 %v1470
        %v1478 = vmul.f32 %v1477, %v1475
        %v1479 = vxor.u32 %v1478, 2147483648
        %v1480 = vsel %vm1397, %v1479, %v1478
        %v1481 = vsub.s32 4, %v1457
        %v1482 = vsel %vm1397, %v1481, %v1457
        %v1483 = vsel %vm1396, %v166, %v1480
        %v1484 = vsel %vm1396, 0, %v1482
        %v1485 = vcosq.f32.pop %v1483
        %v1486 = vsinq.f32.pop %v1483
        %vm1487 = vweird.f32 %v166
        %v1488 = vadd.s32 %v1484, 3
        %v1489 = vand.u32 %v1488, 3
        %vm1490 = vcmp.lt.s32.totalorder %v1489, 2
        %vm1491 = vcmp.eq.s32.totalorder %v1489, 0
        %v1492 = vxor.u32 %v1486, 2147483648
        %v1493 = vsel %vm1491, %v1485, %v1492
        %vm1494 = vcmp.eq.s32.totalorder %v1489, 2
        %v1495 = vxor.u32 %v1485, 2147483648
        %v1496 = vsel %vm1494, %v1495, %v1486
        %v1497 = vsel %vm1490, %v1493, %v1496
        %v1498 = vsel %vm1487, nan, %v1497
        %v1499 = vand.u32 2147483647, %v167
        %vm1500 = vcmp.le.f32.partialorder %v1499, 0.7853982
        %vm1501 = vcmp.lt.s32.totalorder %v167, 0
        %v1502 = vand.u32 %v167, 2139095040
        %v1503 = vshrl.u32 %v1502, 23
        %v1504 = vsub.s32 %v1503, 127
        %v1505 = vand.u32 2147483647, %v167
        %v1506 = vand.u32 %v1505, 8388607
        %v1507 = vor.u32 %v1506, 8388608
        %v1508 = vsub.s32 0, %v1507
        %v1509 = vadd.s32 %v1504, 1
        %vm1510 = vcmp.gt.s32.totalorder %v1509, 0
        %v1511 = vsel %vm1510, %v1509, 0
        %v1512 = vshrl.u32 %v1511, 5
        %v1513 = vand.u32 %v1511, 31
        %v1514 = vsub.s32 32, %v1513
        %v1515 = vshrl.u32 683565275, %v1514
        %v1516 = vshll.u32 683565275, %v1513
        %v1517 = vshrl.u32 2475754826, %v1514
        %v1518 = vor.u32 %v1516, %v1517
        %v1519 = vshll.u32 2475754826, %v1513
        %v1520 = vshrl.u32 2131351028, %v1514
        %v1521 = vor.u32 %v1519, %v1520
        %v1522 = vshll.u32 2131351028, %v1513
        %v1523 = vshrl.u32 2102212464, %v1514
        %v1524 = vor.u32 %v1522, %v1523
        %v1525 = vshll.u32 2102212464, %v1513
        %v1526 = vshrl.u32 920167782, %v1514
        %v1527 = vor.u32 %v1525, %v1526
        %v1528 = vshll.u32 920167782, %v1513
        %v1529 = vshrl.u32 1326507024, %v1514
        %v1530 = vor.u32 %v1528, %v1529
        %vm1531 = vcmp.lt.s32.totalorder %v1512, 1
        %vm1532 = vcmp.lt.s32.totalorder %v1512, 2
        %vm1533 = vcmp.lt.s32.totalorder %v1512, 3
        %vm1534 = vcmp.lt.s32.totalorder %v1512, 4
        %v1535 = vsel %vm1531, %v1515, %v1518
        %v1536 = vsel %vm1534, %v1524, 2102212464
        %v1537 = vsel %vm1533, %v1521, %v1536
        %v1538 = vsel %vm1532, %v1535, %v1537
        %v1539 = vsel %vm1531, %v1518, %v1521
        %v1540 = vsel %vm1534, %v1527, 920167782
        %v1541 = vsel %vm1533, %v1524, %v1540
        %v1542 = vsel %vm1532, %v1539, %v1541
        %v1543 = vsel %vm1531, %v1521, %v1524
        %v1544 = vsel %vm1534, %v1530, 1326507024
        %v1545 = vsel %vm1533, %v1527, %v1544
        %v1546 = vsel %vm1532, %v1543, %v1545
        %v1547 = vshll.u32 %v1507, 8
        %v1548 = vmul.u32.u64.compose %v1547, %v1546
        %v1549 = vextract.low.u32 %v1548
        %v1550 = vextract.high.u32 %v1548
        %v1551 = vmul.u32.u64.compose %v1547, %v1542
        %v1552 = vextract.low.u32 %v1551
        %v1553 = vextract.high.u32 %v1551
        %v1554 = vmul.u32 %v1547, %v1538
        %v1555 = vadd.s32 %v1550, %v1552
        %vm1556 = vc.u32 %v1550, %v1552
        %v1557 = vadd.s32 %v1553, 1
        %v1558 = vsel %vm1556, %v1557, %v1553
        %v1559 = vadd.s32 %v1554, %v1558
        %v1560 = vadd.s32 %v1559, 536870912
        %v1561 = vshrl.u32 %v1560, 30
        %v1562 = vshll.u32 %v1561, 30
        %v1563 = vsub.s32 %v1559, %v1562
        %vm1564 = vcmp.lt.s32.totalorder %v1563, 0
        %v1565 = vsub.s32 0, %v1563
        %v1566 = vsel %vm1564, %v1565, %v1563
        %v1567 = vclz %v1566
        %v1568 = vsub.s32 %v1567, 2
        %vm1569 = vcmp.gt.s32.totalorder 0, %v1568
        %v1570 = vsel %vm1569, 0, %v1568
        %v1571 = vsub.s32 32, %v1570
        %v1572 = vshll.u32 %v1563, %v1570
        %v1573 = vshrl.u32 %v1555, %v1571
        %v1574 = vor.u32 %v1572, %v1573
        %v1575 = vsub.s32 4294967266, %v1570
        %v1576 = vadd.s32 %v1575, 127
        %v1577 = vshll.u32 %v1576, 23
        %v1578 = vor.u32 4788187, %v1577
        %v1579 = vand.u32 2147483647, %v1578
        %v1581 = vcvt.s32.f32 %v1574
        %v1582 = vmul.f32 %v1581, %v1579
        %v1583 = vxor.u32 %v1582, 2147483648
        %v1584 = vsel %vm1501, %v1583, %v1582
        %v1585 = vsub.s32 4, %v1561
        %v1586 = vsel %vm1501, %v1585, %v1561
        %v1587 = vsel %vm1500, %v167, %v1584
        %v1588 = vsel %vm1500, 0, %v1586
        %v1589 = vcosq.f32.pop %v1587
        %v1590 = vsinq.f32.pop %v1587
        %vm1591 = vweird.f32 %v167
        %v1592 = vadd.s32 %v1588, 3
        %v1593 = vand.u32 %v1592, 3
        %vm1594 = vcmp.lt.s32.totalorder %v1593, 2
        %vm1595 = vcmp.eq.s32.totalorder %v1593, 0
        %v1596 = vxor.u32 %v1590, 2147483648
        %v1597 = vsel %vm1595, %v1589, %v1596
        %vm1598 = vcmp.eq.s32.totalorder %v1593, 2
        %v1599 = vxor.u32 %v1589, 2147483648
        %v1600 = vsel %vm1598, %v1599, %v1590
        %v1601 = vsel %vm1594, %v1597, %v1600
        %v1602 = vsel %vm1591, nan, %v1601
        %v1603 = vand.u32 2147483647, %v168
        %vm1604 = vcmp.le.f32.partialorder %v1603, 0.7853982
        %vm1605 = vcmp.lt.s32.totalorder %v168, 0
        %v1606 = vand.u32 %v168, 2139095040
        %v1607 = vshrl.u32 %v1606, 23
        %v1608 = vsub.s32 %v1607, 127
        %v1609 = vand.u32 2147483647, %v168
        %v1610 = vand.u32 %v1609, 8388607
        %v1611 = vor.u32 %v1610, 8388608
        %v1612 = vsub.s32 0, %v1611
        %v1613 = vadd.s32 %v1608, 1
        %vm1614 = vcmp.gt.s32.totalorder %v1613, 0
        %v1615 = vsel %vm1614, %v1613, 0
        %v1616 = vshrl.u32 %v1615, 5
        %v1617 = vand.u32 %v1615, 31
        %v1618 = vsub.s32 32, %v1617
        %v1619 = vshrl.u32 683565275, %v1618
        %v1620 = vshll.u32 683565275, %v1617
        %v1621 = vshrl.u32 2475754826, %v1618
        %v1622 = vor.u32 %v1620, %v1621
        %v1623 = vshll.u32 2475754826, %v1617
        %v1624 = vshrl.u32 2131351028, %v1618
        %v1625 = vor.u32 %v1623, %v1624
        %v1626 = vshll.u32 2131351028, %v1617
        %v1627 = vshrl.u32 2102212464, %v1618
        %v1628 = vor.u32 %v1626, %v1627
        %v1629 = vshll.u32 2102212464, %v1617
        %v1630 = vshrl.u32 920167782, %v1618
        %v1631 = vor.u32 %v1629, %v1630
        %v1632 = vshll.u32 920167782, %v1617
        %v1633 = vshrl.u32 1326507024, %v1618
        %v1634 = vor.u32 %v1632, %v1633
        %vm1635 = vcmp.lt.s32.totalorder %v1616, 1
        %vm1636 = vcmp.lt.s32.totalorder %v1616, 2
        %vm1637 = vcmp.lt.s32.totalorder %v1616, 3
        %vm1638 = vcmp.lt.s32.totalorder %v1616, 4
        %v1639 = vsel %vm1635, %v1619, %v1622
        %v1640 = vsel %vm1638, %v1628, 2102212464
        %v1641 = vsel %vm1637, %v1625, %v1640
        %v1642 = vsel %vm1636, %v1639, %v1641
        %v1643 = vsel %vm1635, %v1622, %v1625
        %v1644 = vsel %vm1638, %v1631, 920167782
        %v1645 = vsel %vm1637, %v1628, %v1644
        %v1646 = vsel %vm1636, %v1643, %v1645
        %v1647 = vsel %vm1635, %v1625, %v1628
        %v1648 = vsel %vm1638, %v1634, 1326507024
        %v1649 = vsel %vm1637, %v1631, %v1648
        %v1650 = vsel %vm1636, %v1647, %v1649
        %v1651 = vshll.u32 %v1611, 8
        %v1652 = vmul.u32.u64.compose %v1651, %v1650
        %v1653 = vextract.low.u32 %v1652
        %v1654 = vextract.high.u32 %v1652
        %v1655 = vmul.u32.u64.compose %v1651, %v1646
        %v1656 = vextract.low.u32 %v1655
        %v1657 = vextract.high.u32 %v1655
        %v1658 = vmul.u32 %v1651, %v1642
        %v1659 = vadd.s32 %v1654, %v1656
        %vm1660 = vc.u32 %v1654, %v1656
        %v1661 = vadd.s32 %v1657, 1
        %v1662 = vsel %vm1660, %v1661, %v1657
        %v1663 = vadd.s32 %v1658, %v1662
        %v1664 = vadd.s32 %v1663, 536870912
        %v1665 = vshrl.u32 %v1664, 30
        %v1666 = vshll.u32 %v1665, 30
        %v1667 = vsub.s32 %v1663, %v1666
        %vm1668 = vcmp.lt.s32.totalorder %v1667, 0
        %v1669 = vsub.s32 0, %v1667
        %v1670 = vsel %vm1668, %v1669, %v1667
        %v1671 = vclz %v1670
        %v1672 = vsub.s32 %v1671, 2
        %vm1673 = vcmp.gt.s32.totalorder 0, %v1672
        %v1674 = vsel %vm1673, 0, %v1672
        %v1675 = vsub.s32 32, %v1674
        %v1676 = vshll.u32 %v1667, %v1674
        %v1677 = vshrl.u32 %v1659, %v1675
        %v1678 = vor.u32 %v1676, %v1677
        %v1679 = vsub.s32 4294967266, %v1674
        %v1680 = vadd.s32 %v1679, 127
        %v1681 = vshll.u32 %v1680, 23
        %v1682 = vor.u32 4788187, %v1681
        %v1683 = vand.u32 2147483647, %v1682
        %v1685 = vcvt.s32.f32 %v1678
        %v1686 = vmul.f32 %v1685, %v1683
        %v1687 = vxor.u32 %v1686, 2147483648
        %v1688 = vsel %vm1605, %v1687, %v1686
        %v1689 = vsub.s32 4, %v1665
        %v1690 = vsel %vm1605, %v1689, %v1665
        %v1691 = vsel %vm1604, %v168, %v1688
        %v1692 = vsel %vm1604, 0, %v1690
        %v1693 = vcosq.f32.pop %v1691
        %v1694 = vsinq.f32.pop %v1691
        %vm1695 = vweird.f32 %v168
        %v1696 = vadd.s32 %v1692, 3
        %v1697 = vand.u32 %v1696, 3
        %vm1698 = vcmp.lt.s32.totalorder %v1697, 2
        %vm1699 = vcmp.eq.s32.totalorder %v1697, 0
        %v1700 = vxor.u32 %v1694, 2147483648
        %v1701 = vsel %vm1699, %v1693, %v1700
        %vm1702 = vcmp.eq.s32.totalorder %v1697, 2
        %v1703 = vxor.u32 %v1693, 2147483648
        %v1704 = vsel %vm1702, %v1703, %v1694
        %v1705 = vsel %vm1698, %v1701, %v1704
        %v1706 = vsel %vm1695, nan, %v1705
        %v1707 = vand.u32 2147483647, %v169
        %vm1708 = vcmp.le.f32.partialorder %v1707, 0.7853982
        %vm1709 = vcmp.lt.s32.totalorder %v169, 0
        %v1710 = vand.u32 %v169, 2139095040
        %v1711 = vshrl.u32 %v1710, 23
        %v1712 = vsub.s32 %v1711, 127
        %v1713 = vand.u32 2147483647, %v169
        %v1714 = vand.u32 %v1713, 8388607
        %v1715 = vor.u32 %v1714, 8388608
        %v1716 = vsub.s32 0, %v1715
        %v1717 = vadd.s32 %v1712, 1
        %vm1718 = vcmp.gt.s32.totalorder %v1717, 0
        %v1719 = vsel %vm1718, %v1717, 0
        %v1720 = vshrl.u32 %v1719, 5
        %v1721 = vand.u32 %v1719, 31
        %v1722 = vsub.s32 32, %v1721
        %v1723 = vshrl.u32 683565275, %v1722
        %v1724 = vshll.u32 683565275, %v1721
        %v1725 = vshrl.u32 2475754826, %v1722
        %v1726 = vor.u32 %v1724, %v1725
        %v1727 = vshll.u32 2475754826, %v1721
        %v1728 = vshrl.u32 2131351028, %v1722
        %v1729 = vor.u32 %v1727, %v1728
        %v1730 = vshll.u32 2131351028, %v1721
        %v1731 = vshrl.u32 2102212464, %v1722
        %v1732 = vor.u32 %v1730, %v1731
        %v1733 = vshll.u32 2102212464, %v1721
        %v1734 = vshrl.u32 920167782, %v1722
        %v1735 = vor.u32 %v1733, %v1734
        %v1736 = vshll.u32 920167782, %v1721
        %v1737 = vshrl.u32 1326507024, %v1722
        %v1738 = vor.u32 %v1736, %v1737
        %vm1739 = vcmp.lt.s32.totalorder %v1720, 1
        %vm1740 = vcmp.lt.s32.totalorder %v1720, 2
        %vm1741 = vcmp.lt.s32.totalorder %v1720, 3
        %vm1742 = vcmp.lt.s32.totalorder %v1720, 4
        %v1743 = vsel %vm1739, %v1723, %v1726
        %v1744 = vsel %vm1742, %v1732, 2102212464
        %v1745 = vsel %vm1741, %v1729, %v1744
        %v1746 = vsel %vm1740, %v1743, %v1745
        %v1747 = vsel %vm1739, %v1726, %v1729
        %v1748 = vsel %vm1742, %v1735, 920167782
        %v1749 = vsel %vm1741, %v1732, %v1748
        %v1750 = vsel %vm1740, %v1747, %v1749
        %v1751 = vsel %vm1739, %v1729, %v1732
        %v1752 = vsel %vm1742, %v1738, 1326507024
        %v1753 = vsel %vm1741, %v1735, %v1752
        %v1754 = vsel %vm1740, %v1751, %v1753
        %v1755 = vshll.u32 %v1715, 8
        %v1756 = vmul.u32.u64.compose %v1755, %v1754
        %v1757 = vextract.low.u32 %v1756
        %v1758 = vextract.high.u32 %v1756
        %v1759 = vmul.u32.u64.compose %v1755, %v1750
        %v1760 = vextract.low.u32 %v1759
        %v1761 = vextract.high.u32 %v1759
        %v1762 = vmul.u32 %v1755, %v1746
        %v1763 = vadd.s32 %v1758, %v1760
        %vm1764 = vc.u32 %v1758, %v1760
        %v1765 = vadd.s32 %v1761, 1
        %v1766 = vsel %vm1764, %v1765, %v1761
        %v1767 = vadd.s32 %v1762, %v1766
        %v1768 = vadd.s32 %v1767, 536870912
        %v1769 = vshrl.u32 %v1768, 30
        %v1770 = vshll.u32 %v1769, 30
        %v1771 = vsub.s32 %v1767, %v1770
        %vm1772 = vcmp.lt.s32.totalorder %v1771, 0
        %v1773 = vsub.s32 0, %v1771
        %v1774 = vsel %vm1772, %v1773, %v1771
        %v1775 = vclz %v1774
        %v1776 = vsub.s32 %v1775, 2
        %vm1777 = vcmp.gt.s32.totalorder 0, %v1776
        %v1778 = vsel %vm1777, 0, %v1776
        %v1779 = vsub.s32 32, %v1778
        %v1780 = vshll.u32 %v1771, %v1778
        %v1781 = vshrl.u32 %v1763, %v1779
        %v1782 = vor.u32 %v1780, %v1781
        %v1783 = vsub.s32 4294967266, %v1778
        %v1784 = vadd.s32 %v1783, 127
        %v1785 = vshll.u32 %v1784, 23
        %v1786 = vor.u32 4788187, %v1785
        %v1787 = vand.u32 2147483647, %v1786
        %v1789 = vcvt.s32.f32 %v1782
        %v1790 = vmul.f32 %v1789, %v1787
        %v1791 = vxor.u32 %v1790, 2147483648
        %v1792 = vsel %vm1709, %v1791, %v1790
        %v1793 = vsub.s32 4, %v1769
        %v1794 = vsel %vm1709, %v1793, %v1769
        %v1795 = vsel %vm1708, %v169, %v1792
        %v1796 = vsel %vm1708, 0, %v1794
        %v1797 = vcosq.f32.pop %v1795
        %v1798 = vsinq.f32.pop %v1795
        %vm1799 = vweird.f32 %v169
        %v1800 = vadd.s32 %v1796, 3
        %v1801 = vand.u32 %v1800, 3
        %vm1802 = vcmp.lt.s32.totalorder %v1801, 2
        %vm1803 = vcmp.eq.s32.totalorder %v1801, 0
        %v1804 = vxor.u32 %v1798, 2147483648
        %v1805 = vsel %vm1803, %v1797, %v1804
        %vm1806 = vcmp.eq.s32.totalorder %v1801, 2
        %v1807 = vxor.u32 %v1797, 2147483648
        %v1808 = vsel %vm1806, %v1807, %v1798
        %v1809 = vsel %vm1802, %v1805, %v1808
        %v1810 = vsel %vm1799, nan, %v1809
        %v1811 = vand.u32 2147483647, %v170
        %vm1812 = vcmp.le.f32.partialorder %v1811, 0.7853982
        %vm1813 = vcmp.lt.s32.totalorder %v170, 0
        %v1814 = vand.u32 %v170, 2139095040
        %v1815 = vshrl.u32 %v1814, 23
        %v1816 = vsub.s32 %v1815, 127
        %v1817 = vand.u32 2147483647, %v170
        %v1818 = vand.u32 %v1817, 8388607
        %v1819 = vor.u32 %v1818, 8388608
        %v1820 = vsub.s32 0, %v1819
        %v1821 = vadd.s32 %v1816, 1
        %vm1822 = vcmp.gt.s32.totalorder %v1821, 0
        %v1823 = vsel %vm1822, %v1821, 0
        %v1824 = vshrl.u32 %v1823, 5
        %v1825 = vand.u32 %v1823, 31
        %v1826 = vsub.s32 32, %v1825
        %v1827 = vshrl.u32 683565275, %v1826
        %v1828 = vshll.u32 683565275, %v1825
        %v1829 = vshrl.u32 2475754826, %v1826
        %v1830 = vor.u32 %v1828, %v1829
        %v1831 = vshll.u32 2475754826, %v1825
        %v1832 = vshrl.u32 2131351028, %v1826
        %v1833 = vor.u32 %v1831, %v1832
        %v1834 = vshll.u32 2131351028, %v1825
        %v1835 = vshrl.u32 2102212464, %v1826
        %v1836 = vor.u32 %v1834, %v1835
        %v1837 = vshll.u32 2102212464, %v1825
        %v1838 = vshrl.u32 920167782, %v1826
        %v1839 = vor.u32 %v1837, %v1838
        %v1840 = vshll.u32 920167782, %v1825
        %v1841 = vshrl.u32 1326507024, %v1826
        %v1842 = vor.u32 %v1840, %v1841
        %vm1843 = vcmp.lt.s32.totalorder %v1824, 1
        %vm1844 = vcmp.lt.s32.totalorder %v1824, 2
        %vm1845 = vcmp.lt.s32.totalorder %v1824, 3
        %vm1846 = vcmp.lt.s32.totalorder %v1824, 4
        %v1847 = vsel %vm1843, %v1827, %v1830
        %v1848 = vsel %vm1846, %v1836, 2102212464
        %v1849 = vsel %vm1845, %v1833, %v1848
        %v1850 = vsel %vm1844, %v1847, %v1849
        %v1851 = vsel %vm1843, %v1830, %v1833
        %v1852 = vsel %vm1846, %v1839, 920167782
        %v1853 = vsel %vm1845, %v1836, %v1852
        %v1854 = vsel %vm1844, %v1851, %v1853
        %v1855 = vsel %vm1843, %v1833, %v1836
        %v1856 = vsel %vm1846, %v1842, 1326507024
        %v1857 = vsel %vm1845, %v1839, %v1856
        %v1858 = vsel %vm1844, %v1855, %v1857
        %v1859 = vshll.u32 %v1819, 8
        %v1860 = vmul.u32.u64.compose %v1859, %v1858
        %v1861 = vextract.low.u32 %v1860
        %v1862 = vextract.high.u32 %v1860
        %v1863 = vmul.u32.u64.compose %v1859, %v1854
        %v1864 = vextract.low.u32 %v1863
        %v1865 = vextract.high.u32 %v1863
        %v1866 = vmul.u32 %v1859, %v1850
        %v1867 = vadd.s32 %v1862, %v1864
        %vm1868 = vc.u32 %v1862, %v1864
        %v1869 = vadd.s32 %v1865, 1
        %v1870 = vsel %vm1868, %v1869, %v1865
        %v1871 = vadd.s32 %v1866, %v1870
        %v1872 = vadd.s32 %v1871, 536870912
        %v1873 = vshrl.u32 %v1872, 30
        %v1874 = vshll.u32 %v1873, 30
        %v1875 = vsub.s32 %v1871, %v1874
        %vm1876 = vcmp.lt.s32.totalorder %v1875, 0
        %v1877 = vsub.s32 0, %v1875
        %v1878 = vsel %vm1876, %v1877, %v1875
        %v1879 = vclz %v1878
        %v1880 = vsub.s32 %v1879, 2
        %vm1881 = vcmp.gt.s32.totalorder 0, %v1880
        %v1882 = vsel %vm1881, 0, %v1880
        %v1883 = vsub.s32 32, %v1882
        %v1884 = vshll.u32 %v1875, %v1882
        %v1885 = vshrl.u32 %v1867, %v1883
        %v1886 = vor.u32 %v1884, %v1885
        %v1887 = vsub.s32 4294967266, %v1882
        %v1888 = vadd.s32 %v1887, 127
        %v1889 = vshll.u32 %v1888, 23
        %v1890 = vor.u32 4788187, %v1889
        %v1891 = vand.u32 2147483647, %v1890
        %v1893 = vcvt.s32.f32 %v1886
        %v1894 = vmul.f32 %v1893, %v1891
        %v1895 = vxor.u32 %v1894, 2147483648
        %v1896 = vsel %vm1813, %v1895, %v1894
        %v1897 = vsub.s32 4, %v1873
        %v1898 = vsel %vm1813, %v1897, %v1873
        %v1899 = vsel %vm1812, %v170, %v1896
        %v1900 = vsel %vm1812, 0, %v1898
        %v1901 = vcosq.f32.pop %v1899
        %v1902 = vsinq.f32.pop %v1899
        %vm1903 = vweird.f32 %v170
        %v1904 = vadd.s32 %v1900, 3
        %v1905 = vand.u32 %v1904, 3
        %vm1906 = vcmp.lt.s32.totalorder %v1905, 2
        %vm1907 = vcmp.eq.s32.totalorder %v1905, 0
        %v1908 = vxor.u32 %v1902, 2147483648
        %v1909 = vsel %vm1907, %v1901, %v1908
        %vm1910 = vcmp.eq.s32.totalorder %v1905, 2
        %v1911 = vxor.u32 %v1901, 2147483648
        %v1912 = vsel %vm1910, %v1911, %v1902
        %v1913 = vsel %vm1906, %v1909, %v1912
        %v1914 = vsel %vm1903, nan, %v1913
        %v1915 = vand.u32 2147483647, %v171
        %vm1916 = vcmp.le.f32.partialorder %v1915, 0.7853982
        %vm1917 = vcmp.lt.s32.totalorder %v171, 0
        %v1918 = vand.u32 %v171, 2139095040
        %v1919 = vshrl.u32 %v1918, 23
        %v1920 = vsub.s32 %v1919, 127
        %v1921 = vand.u32 2147483647, %v171
        %v1922 = vand.u32 %v1921, 8388607
        %v1923 = vor.u32 %v1922, 8388608
        %v1924 = vsub.s32 0, %v1923
        %v1925 = vadd.s32 %v1920, 1
        %vm1926 = vcmp.gt.s32.totalorder %v1925, 0
        %v1927 = vsel %vm1926, %v1925, 0
        %v1928 = vshrl.u32 %v1927, 5
        %v1929 = vand.u32 %v1927, 31
        %v1930 = vsub.s32 32, %v1929
        %v1931 = vshrl.u32 683565275, %v1930
        %v1932 = vshll.u32 683565275, %v1929
        %v1933 = vshrl.u32 2475754826, %v1930
        %v1934 = vor.u32 %v1932, %v1933
        %v1935 = vshll.u32 2475754826, %v1929
        %v1936 = vshrl.u32 2131351028, %v1930
        %v1937 = vor.u32 %v1935, %v1936
        %v1938 = vshll.u32 2131351028, %v1929
        %v1939 = vshrl.u32 2102212464, %v1930
        %v1940 = vor.u32 %v1938, %v1939
        %v1941 = vshll.u32 2102212464, %v1929
        %v1942 = vshrl.u32 920167782, %v1930
        %v1943 = vor.u32 %v1941, %v1942
        %v1944 = vshll.u32 920167782, %v1929
        %v1945 = vshrl.u32 1326507024, %v1930
        %v1946 = vor.u32 %v1944, %v1945
        %vm1947 = vcmp.lt.s32.totalorder %v1928, 1
        %vm1948 = vcmp.lt.s32.totalorder %v1928, 2
        %vm1949 = vcmp.lt.s32.totalorder %v1928, 3
        %vm1950 = vcmp.lt.s32.totalorder %v1928, 4
        %v1951 = vsel %vm1947, %v1931, %v1934
        %v1952 = vsel %vm1950, %v1940, 2102212464
        %v1953 = vsel %vm1949, %v1937, %v1952
        %v1954 = vsel %vm1948, %v1951, %v1953
        %v1955 = vsel %vm1947, %v1934, %v1937
        %v1956 = vsel %vm1950, %v1943, 920167782
        %v1957 = vsel %vm1949, %v1940, %v1956
        %v1958 = vsel %vm1948, %v1955, %v1957
        %v1959 = vsel %vm1947, %v1937, %v1940
        %v1960 = vsel %vm1950, %v1946, 1326507024
        %v1961 = vsel %vm1949, %v1943, %v1960
        %v1962 = vsel %vm1948, %v1959, %v1961
        %v1963 = vshll.u32 %v1923, 8
        %v1964 = vmul.u32.u64.compose %v1963, %v1962
        %v1965 = vextract.low.u32 %v1964
        %v1966 = vextract.high.u32 %v1964
        %v1967 = vmul.u32.u64.compose %v1963, %v1958
        %v1968 = vextract.low.u32 %v1967
        %v1969 = vextract.high.u32 %v1967
        %v1970 = vmul.u32 %v1963, %v1954
        %v1971 = vadd.s32 %v1966, %v1968
        %vm1972 = vc.u32 %v1966, %v1968
        %v1973 = vadd.s32 %v1969, 1
        %v1974 = vsel %vm1972, %v1973, %v1969
        %v1975 = vadd.s32 %v1970, %v1974
        %v1976 = vadd.s32 %v1975, 536870912
        %v1977 = vshrl.u32 %v1976, 30
        %v1978 = vshll.u32 %v1977, 30
        %v1979 = vsub.s32 %v1975, %v1978
        %vm1980 = vcmp.lt.s32.totalorder %v1979, 0
        %v1981 = vsub.s32 0, %v1979
        %v1982 = vsel %vm1980, %v1981, %v1979
        %v1983 = vclz %v1982
        %v1984 = vsub.s32 %v1983, 2
        %vm1985 = vcmp.gt.s32.totalorder 0, %v1984
        %v1986 = vsel %vm1985, 0, %v1984
        %v1987 = vsub.s32 32, %v1986
        %v1988 = vshll.u32 %v1979, %v1986
        %v1989 = vshrl.u32 %v1971, %v1987
        %v1990 = vor.u32 %v1988, %v1989
        %v1991 = vsub.s32 4294967266, %v1986
        %v1992 = vadd.s32 %v1991, 127
        %v1993 = vshll.u32 %v1992, 23
        %v1994 = vor.u32 4788187, %v1993
        %v1995 = vand.u32 2147483647, %v1994
        %v1997 = vcvt.s32.f32 %v1990
        %v1998 = vmul.f32 %v1997, %v1995
        %v1999 = vxor.u32 %v1998, 2147483648
        %v2000 = vsel %vm1917, %v1999, %v1998
        %v2001 = vsub.s32 4, %v1977
        %v2002 = vsel %vm1917, %v2001, %v1977
        %v2003 = vsel %vm1916, %v171, %v2000
        %v2004 = vsel %vm1916, 0, %v2002
        %v2005 = vcosq.f32.pop %v2003
        %v2006 = vsinq.f32.pop %v2003
        %vm2007 = vweird.f32 %v171
        %v2008 = vadd.s32 %v2004, 3
        %v2009 = vand.u32 %v2008, 3
        %vm2010 = vcmp.lt.s32.totalorder %v2009, 2
        %vm2011 = vcmp.eq.s32.totalorder %v2009, 0
        %v2012 = vxor.u32 %v2006, 2147483648
        %v2013 = vsel %vm2011, %v2005, %v2012
        %vm2014 = vcmp.eq.s32.totalorder %v2009, 2
        %v2015 = vxor.u32 %v2005, 2147483648
        %v2016 = vsel %vm2014, %v2015, %v2006
        %v2017 = vsel %vm2010, %v2013, %v2016
        %v2018 = vsel %vm2007, nan, %v2017
        %v2019 = vand.u32 2147483647, %v172
        %vm2020 = vcmp.le.f32.partialorder %v2019, 0.7853982
        %vm2021 = vcmp.lt.s32.totalorder %v172, 0
        %v2022 = vand.u32 %v172, 2139095040
        %v2023 = vshrl.u32 %v2022, 23
        %v2024 = vsub.s32 %v2023, 127
        %v2025 = vand.u32 2147483647, %v172
        %v2026 = vand.u32 %v2025, 8388607
        %v2027 = vor.u32 %v2026, 8388608
        %v2028 = vsub.s32 0, %v2027
        %v2029 = vadd.s32 %v2024, 1
        %vm2030 = vcmp.gt.s32.totalorder %v2029, 0
        %v2031 = vsel %vm2030, %v2029, 0
        %v2032 = vshrl.u32 %v2031, 5
        %v2033 = vand.u32 %v2031, 31
        %v2034 = vsub.s32 32, %v2033
        %v2035 = vshrl.u32 683565275, %v2034
        %v2036 = vshll.u32 683565275, %v2033
        %v2037 = vshrl.u32 2475754826, %v2034
        %v2038 = vor.u32 %v2036, %v2037
        %v2039 = vshll.u32 2475754826, %v2033
        %v2040 = vshrl.u32 2131351028, %v2034
        %v2041 = vor.u32 %v2039, %v2040
        %v2042 = vshll.u32 2131351028, %v2033
        %v2043 = vshrl.u32 2102212464, %v2034
        %v2044 = vor.u32 %v2042, %v2043
        %v2045 = vshll.u32 2102212464, %v2033
        %v2046 = vshrl.u32 920167782, %v2034
        %v2047 = vor.u32 %v2045, %v2046
        %v2048 = vshll.u32 920167782, %v2033
        %v2049 = vshrl.u32 1326507024, %v2034
        %v2050 = vor.u32 %v2048, %v2049
        %vm2051 = vcmp.lt.s32.totalorder %v2032, 1
        %vm2052 = vcmp.lt.s32.totalorder %v2032, 2
        %vm2053 = vcmp.lt.s32.totalorder %v2032, 3
        %vm2054 = vcmp.lt.s32.totalorder %v2032, 4
        %v2055 = vsel %vm2051, %v2035, %v2038
        %v2056 = vsel %vm2054, %v2044, 2102212464
        %v2057 = vsel %vm2053, %v2041, %v2056
        %v2058 = vsel %vm2052, %v2055, %v2057
        %v2059 = vsel %vm2051, %v2038, %v2041
        %v2060 = vsel %vm2054, %v2047, 920167782
        %v2061 = vsel %vm2053, %v2044, %v2060
        %v2062 = vsel %vm2052, %v2059, %v2061
        %v2063 = vsel %vm2051, %v2041, %v2044
        %v2064 = vsel %vm2054, %v2050, 1326507024
        %v2065 = vsel %vm2053, %v2047, %v2064
        %v2066 = vsel %vm2052, %v2063, %v2065
        %v2067 = vshll.u32 %v2027, 8
        %v2068 = vmul.u32.u64.compose %v2067, %v2066
        %v2069 = vextract.low.u32 %v2068
        %v2070 = vextract.high.u32 %v2068
        %v2071 = vmul.u32.u64.compose %v2067, %v2062
        %v2072 = vextract.low.u32 %v2071
        %v2073 = vextract.high.u32 %v2071
        %v2074 = vmul.u32 %v2067, %v2058
        %v2075 = vadd.s32 %v2070, %v2072
        %vm2076 = vc.u32 %v2070, %v2072
        %v2077 = vadd.s32 %v2073, 1
        %v2078 = vsel %vm2076, %v2077, %v2073
        %v2079 = vadd.s32 %v2074, %v2078
        %v2080 = vadd.s32 %v2079, 536870912
        %v2081 = vshrl.u32 %v2080, 30
        %v2082 = vshll.u32 %v2081, 30
        %v2083 = vsub.s32 %v2079, %v2082
        %vm2084 = vcmp.lt.s32.totalorder %v2083, 0
        %v2085 = vsub.s32 0, %v2083
        %v2086 = vsel %vm2084, %v2085, %v2083
        %v2087 = vclz %v2086
        %v2088 = vsub.s32 %v2087, 2
        %vm2089 = vcmp.gt.s32.totalorder 0, %v2088
        %v2090 = vsel %vm2089, 0, %v2088
        %v2091 = vsub.s32 32, %v2090
        %v2092 = vshll.u32 %v2083, %v2090
        %v2093 = vshrl.u32 %v2075, %v2091
        %v2094 = vor.u32 %v2092, %v2093
        %v2095 = vsub.s32 4294967266, %v2090
        %v2096 = vadd.s32 %v2095, 127
        %v2097 = vshll.u32 %v2096, 23
        %v2098 = vor.u32 4788187, %v2097
        %v2099 = vand.u32 2147483647, %v2098
        %v2101 = vcvt.s32.f32 %v2094
        %v2102 = vmul.f32 %v2101, %v2099
        %v2103 = vxor.u32 %v2102, 2147483648
        %v2104 = vsel %vm2021, %v2103, %v2102
        %v2105 = vsub.s32 4, %v2081
        %v2106 = vsel %vm2021, %v2105, %v2081
        %v2107 = vsel %vm2020, %v172, %v2104
        %v2108 = vsel %vm2020, 0, %v2106
        %v2109 = vcosq.f32.pop %v2107
        %v2110 = vsinq.f32.pop %v2107
        %vm2111 = vweird.f32 %v172
        %v2112 = vadd.s32 %v2108, 3
        %v2113 = vand.u32 %v2112, 3
        %vm2114 = vcmp.lt.s32.totalorder %v2113, 2
        %vm2115 = vcmp.eq.s32.totalorder %v2113, 0
        %v2116 = vxor.u32 %v2110, 2147483648
        %v2117 = vsel %vm2115, %v2109, %v2116
        %vm2118 = vcmp.eq.s32.totalorder %v2113, 2
        %v2119 = vxor.u32 %v2109, 2147483648
        %v2120 = vsel %vm2118, %v2119, %v2110
        %v2121 = vsel %vm2114, %v2117, %v2120
        %v2122 = vsel %vm2111, nan, %v2121
        %v2123 = vand.u32 2147483647, %v173
        %vm2124 = vcmp.le.f32.partialorder %v2123, 0.7853982
        %vm2125 = vcmp.lt.s32.totalorder %v173, 0
        %v2126 = vand.u32 %v173, 2139095040
        %v2127 = vshrl.u32 %v2126, 23
        %v2128 = vsub.s32 %v2127, 127
        %v2129 = vand.u32 2147483647, %v173
        %v2130 = vand.u32 %v2129, 8388607
        %v2131 = vor.u32 %v2130, 8388608
        %v2132 = vsub.s32 0, %v2131
        %v2133 = vadd.s32 %v2128, 1
        %vm2134 = vcmp.gt.s32.totalorder %v2133, 0
        %v2135 = vsel %vm2134, %v2133, 0
        %v2136 = vshrl.u32 %v2135, 5
        %v2137 = vand.u32 %v2135, 31
        %v2138 = vsub.s32 32, %v2137
        %v2139 = vshrl.u32 683565275, %v2138
        %v2140 = vshll.u32 683565275, %v2137
        %v2141 = vshrl.u32 2475754826, %v2138
        %v2142 = vor.u32 %v2140, %v2141
        %v2143 = vshll.u32 2475754826, %v2137
        %v2144 = vshrl.u32 2131351028, %v2138
        %v2145 = vor.u32 %v2143, %v2144
        %v2146 = vshll.u32 2131351028, %v2137
        %v2147 = vshrl.u32 2102212464, %v2138
        %v2148 = vor.u32 %v2146, %v2147
        %v2149 = vshll.u32 2102212464, %v2137
        %v2150 = vshrl.u32 920167782, %v2138
        %v2151 = vor.u32 %v2149, %v2150
        %v2152 = vshll.u32 920167782, %v2137
        %v2153 = vshrl.u32 1326507024, %v2138
        %v2154 = vor.u32 %v2152, %v2153
        %vm2155 = vcmp.lt.s32.totalorder %v2136, 1
        %vm2156 = vcmp.lt.s32.totalorder %v2136, 2
        %vm2157 = vcmp.lt.s32.totalorder %v2136, 3
        %vm2158 = vcmp.lt.s32.totalorder %v2136, 4
        %v2159 = vsel %vm2155, %v2139, %v2142
        %v2160 = vsel %vm2158, %v2148, 2102212464
        %v2161 = vsel %vm2157, %v2145, %v2160
        %v2162 = vsel %vm2156, %v2159, %v2161
        %v2163 = vsel %vm2155, %v2142, %v2145
        %v2164 = vsel %vm2158, %v2151, 920167782
        %v2165 = vsel %vm2157, %v2148, %v2164
        %v2166 = vsel %vm2156, %v2163, %v2165
        %v2167 = vsel %vm2155, %v2145, %v2148
        %v2168 = vsel %vm2158, %v2154, 1326507024
        %v2169 = vsel %vm2157, %v2151, %v2168
        %v2170 = vsel %vm2156, %v2167, %v2169
        %v2171 = vshll.u32 %v2131, 8
        %v2172 = vmul.u32.u64.compose %v2171, %v2170
        %v2173 = vextract.low.u32 %v2172
        %v2174 = vextract.high.u32 %v2172
        %v2175 = vmul.u32.u64.compose %v2171, %v2166
        %v2176 = vextract.low.u32 %v2175
        %v2177 = vextract.high.u32 %v2175
        %v2178 = vmul.u32 %v2171, %v2162
        %v2179 = vadd.s32 %v2174, %v2176
        %vm2180 = vc.u32 %v2174, %v2176
        %v2181 = vadd.s32 %v2177, 1
        %v2182 = vsel %vm2180, %v2181, %v2177
        %v2183 = vadd.s32 %v2178, %v2182
        %v2184 = vadd.s32 %v2183, 536870912
        %v2185 = vshrl.u32 %v2184, 30
        %v2186 = vshll.u32 %v2185, 30
        %v2187 = vsub.s32 %v2183, %v2186
        %vm2188 = vcmp.lt.s32.totalorder %v2187, 0
        %v2189 = vsub.s32 0, %v2187
        %v2190 = vsel %vm2188, %v2189, %v2187
        %v2191 = vclz %v2190
        %v2192 = vsub.s32 %v2191, 2
        %vm2193 = vcmp.gt.s32.totalorder 0, %v2192
        %v2194 = vsel %vm2193, 0, %v2192
        %v2195 = vsub.s32 32, %v2194
        %v2196 = vshll.u32 %v2187, %v2194
        %v2197 = vshrl.u32 %v2179, %v2195
        %v2198 = vor.u32 %v2196, %v2197
        %v2199 = vsub.s32 4294967266, %v2194
        %v2200 = vadd.s32 %v2199, 127
        %v2201 = vshll.u32 %v2200, 23
        %v2202 = vor.u32 4788187, %v2201
        %v2203 = vand.u32 2147483647, %v2202
        %v2205 = vcvt.s32.f32 %v2198
        %v2206 = vmul.f32 %v2205, %v2203
        %v2207 = vxor.u32 %v2206, 2147483648
        %v2208 = vsel %vm2125, %v2207, %v2206
        %v2209 = vsub.s32 4, %v2185
        %v2210 = vsel %vm2125, %v2209, %v2185
        %v2211 = vsel %vm2124, %v173, %v2208
        %v2212 = vsel %vm2124, 0, %v2210
        %v2213 = vcosq.f32.pop %v2211
        %v2214 = vsinq.f32.pop %v2211
        %vm2215 = vweird.f32 %v173
        %v2216 = vadd.s32 %v2212, 3
        %v2217 = vand.u32 %v2216, 3
        %vm2218 = vcmp.lt.s32.totalorder %v2217, 2
        %vm2219 = vcmp.eq.s32.totalorder %v2217, 0
        %v2220 = vxor.u32 %v2214, 2147483648
        %v2221 = vsel %vm2219, %v2213, %v2220
        %vm2222 = vcmp.eq.s32.totalorder %v2217, 2
        %v2223 = vxor.u32 %v2213, 2147483648
        %v2224 = vsel %vm2222, %v2223, %v2214
        %v2225 = vsel %vm2218, %v2221, %v2224
        %v2226 = vsel %vm2215, nan, %v2225
        %v2227 = vand.u32 2147483647, %v174
        %vm2228 = vcmp.le.f32.partialorder %v2227, 0.7853982
        %vm2229 = vcmp.lt.s32.totalorder %v174, 0
        %v2230 = vand.u32 %v174, 2139095040
        %v2231 = vshrl.u32 %v2230, 23
        %v2232 = vsub.s32 %v2231, 127
        %v2233 = vand.u32 2147483647, %v174
        %v2234 = vand.u32 %v2233, 8388607
        %v2235 = vor.u32 %v2234, 8388608
        %v2236 = vsub.s32 0, %v2235
        %v2237 = vadd.s32 %v2232, 1
        %vm2238 = vcmp.gt.s32.totalorder %v2237, 0
        %v2239 = vsel %vm2238, %v2237, 0
        %v2240 = vshrl.u32 %v2239, 5
        %v2241 = vand.u32 %v2239, 31
        %v2242 = vsub.s32 32, %v2241
        %v2243 = vshrl.u32 683565275, %v2242
        %v2244 = vshll.u32 683565275, %v2241
        %v2245 = vshrl.u32 2475754826, %v2242
        %v2246 = vor.u32 %v2244, %v2245
        %v2247 = vshll.u32 2475754826, %v2241
        %v2248 = vshrl.u32 2131351028, %v2242
        %v2249 = vor.u32 %v2247, %v2248
        %v2250 = vshll.u32 2131351028, %v2241
        %v2251 = vshrl.u32 2102212464, %v2242
        %v2252 = vor.u32 %v2250, %v2251
        %v2253 = vshll.u32 2102212464, %v2241
        %v2254 = vshrl.u32 920167782, %v2242
        %v2255 = vor.u32 %v2253, %v2254
        %v2256 = vshll.u32 920167782, %v2241
        %v2257 = vshrl.u32 1326507024, %v2242
        %v2258 = vor.u32 %v2256, %v2257
        %vm2259 = vcmp.lt.s32.totalorder %v2240, 1
        %vm2260 = vcmp.lt.s32.totalorder %v2240, 2
        %vm2261 = vcmp.lt.s32.totalorder %v2240, 3
        %vm2262 = vcmp.lt.s32.totalorder %v2240, 4
        %v2263 = vsel %vm2259, %v2243, %v2246
        %v2264 = vsel %vm2262, %v2252, 2102212464
        %v2265 = vsel %vm2261, %v2249, %v2264
        %v2266 = vsel %vm2260, %v2263, %v2265
        %v2267 = vsel %vm2259, %v2246, %v2249
        %v2268 = vsel %vm2262, %v2255, 920167782
        %v2269 = vsel %vm2261, %v2252, %v2268
        %v2270 = vsel %vm2260, %v2267, %v2269
        %v2271 = vsel %vm2259, %v2249, %v2252
        %v2272 = vsel %vm2262, %v2258, 1326507024
        %v2273 = vsel %vm2261, %v2255, %v2272
        %v2274 = vsel %vm2260, %v2271, %v2273
        %v2275 = vshll.u32 %v2235, 8
        %v2276 = vmul.u32.u64.compose %v2275, %v2274
        %v2277 = vextract.low.u32 %v2276
        %v2278 = vextract.high.u32 %v2276
        %v2279 = vmul.u32.u64.compose %v2275, %v2270
        %v2280 = vextract.low.u32 %v2279
        %v2281 = vextract.high.u32 %v2279
        %v2282 = vmul.u32 %v2275, %v2266
        %v2283 = vadd.s32 %v2278, %v2280
        %vm2284 = vc.u32 %v2278, %v2280
        %v2285 = vadd.s32 %v2281, 1
        %v2286 = vsel %vm2284, %v2285, %v2281
        %v2287 = vadd.s32 %v2282, %v2286
        %v2288 = vadd.s32 %v2287, 536870912
        %v2289 = vshrl.u32 %v2288, 30
        %v2290 = vshll.u32 %v2289, 30
        %v2291 = vsub.s32 %v2287, %v2290
        %vm2292 = vcmp.lt.s32.totalorder %v2291, 0
        %v2293 = vsub.s32 0, %v2291
        %v2294 = vsel %vm2292, %v2293, %v2291
        %v2295 = vclz %v2294
        %v2296 = vsub.s32 %v2295, 2
        %vm2297 = vcmp.gt.s32.totalorder 0, %v2296
        %v2298 = vsel %vm2297, 0, %v2296
        %v2299 = vsub.s32 32, %v2298
        %v2300 = vshll.u32 %v2291, %v2298
        %v2301 = vshrl.u32 %v2283, %v2299
        %v2302 = vor.u32 %v2300, %v2301
        %v2303 = vsub.s32 4294967266, %v2298
        %v2304 = vadd.s32 %v2303, 127
        %v2305 = vshll.u32 %v2304, 23
        %v2306 = vor.u32 4788187, %v2305
        %v2307 = vand.u32 2147483647, %v2306
        %v2309 = vcvt.s32.f32 %v2302
        %v2310 = vmul.f32 %v2309, %v2307
        %v2311 = vxor.u32 %v2310, 2147483648
        %v2312 = vsel %vm2229, %v2311, %v2310
        %v2313 = vsub.s32 4, %v2289
        %v2314 = vsel %vm2229, %v2313, %v2289
        %v2315 = vsel %vm2228, %v174, %v2312
        %v2316 = vsel %vm2228, 0, %v2314
        %v2317 = vcosq.f32.pop %v2315
        %v2318 = vsinq.f32.pop %v2315
        %vm2319 = vweird.f32 %v174
        %v2320 = vadd.s32 %v2316, 3
        %v2321 = vand.u32 %v2320, 3
        %vm2322 = vcmp.lt.s32.totalorder %v2321, 2
        %vm2323 = vcmp.eq.s32.totalorder %v2321, 0
        %v2324 = vxor.u32 %v2318, 2147483648
        %v2325 = vsel %vm2323, %v2317, %v2324
        %vm2326 = vcmp.eq.s32.totalorder %v2321, 2
        %v2327 = vxor.u32 %v2317, 2147483648
        %v2328 = vsel %vm2326, %v2327, %v2318
        %v2329 = vsel %vm2322, %v2325, %v2328
        %v2330 = vsel %vm2319, nan, %v2329
        %v2331 = vand.u32 2147483647, %v175
        %vm2332 = vcmp.le.f32.partialorder %v2331, 0.7853982
        %vm2333 = vcmp.lt.s32.totalorder %v175, 0
        %v2334 = vand.u32 %v175, 2139095040
        %v2335 = vshrl.u32 %v2334, 23
        %v2336 = vsub.s32 %v2335, 127
        %v2337 = vand.u32 2147483647, %v175
        %v2338 = vand.u32 %v2337, 8388607
        %v2339 = vor.u32 %v2338, 8388608
        %v2340 = vsub.s32 0, %v2339
        %v2341 = vadd.s32 %v2336, 1
        %vm2342 = vcmp.gt.s32.totalorder %v2341, 0
        %v2343 = vsel %vm2342, %v2341, 0
        %v2344 = vshrl.u32 %v2343, 5
        %v2345 = vand.u32 %v2343, 31
        %v2346 = vsub.s32 32, %v2345
        %v2347 = vshrl.u32 683565275, %v2346
        %v2348 = vshll.u32 683565275, %v2345
        %v2349 = vshrl.u32 2475754826, %v2346
        %v2350 = vor.u32 %v2348, %v2349
        %v2351 = vshll.u32 2475754826, %v2345
        %v2352 = vshrl.u32 2131351028, %v2346
        %v2353 = vor.u32 %v2351, %v2352
        %v2354 = vshll.u32 2131351028, %v2345
        %v2355 = vshrl.u32 2102212464, %v2346
        %v2356 = vor.u32 %v2354, %v2355
        %v2357 = vshll.u32 2102212464, %v2345
        %v2358 = vshrl.u32 920167782, %v2346
        %v2359 = vor.u32 %v2357, %v2358
        %v2360 = vshll.u32 920167782, %v2345
        %v2361 = vshrl.u32 1326507024, %v2346
        %v2362 = vor.u32 %v2360, %v2361
        %vm2363 = vcmp.lt.s32.totalorder %v2344, 1
        %vm2364 = vcmp.lt.s32.totalorder %v2344, 2
        %vm2365 = vcmp.lt.s32.totalorder %v2344, 3
        %vm2366 = vcmp.lt.s32.totalorder %v2344, 4
        %v2367 = vsel %vm2363, %v2347, %v2350
        %v2368 = vsel %vm2366, %v2356, 2102212464
        %v2369 = vsel %vm2365, %v2353, %v2368
        %v2370 = vsel %vm2364, %v2367, %v2369
        %v2371 = vsel %vm2363, %v2350, %v2353
        %v2372 = vsel %vm2366, %v2359, 920167782
        %v2373 = vsel %vm2365, %v2356, %v2372
        %v2374 = vsel %vm2364, %v2371, %v2373
        %v2375 = vsel %vm2363, %v2353, %v2356
        %v2376 = vsel %vm2366, %v2362, 1326507024
        %v2377 = vsel %vm2365, %v2359, %v2376
        %v2378 = vsel %vm2364, %v2375, %v2377
        %v2379 = vshll.u32 %v2339, 8
        %v2380 = vmul.u32.u64.compose %v2379, %v2378
        %v2381 = vextract.low.u32 %v2380
        %v2382 = vextract.high.u32 %v2380
        %v2383 = vmul.u32.u64.compose %v2379, %v2374
        %v2384 = vextract.low.u32 %v2383
        %v2385 = vextract.high.u32 %v2383
        %v2386 = vmul.u32 %v2379, %v2370
        %v2387 = vadd.s32 %v2382, %v2384
        %vm2388 = vc.u32 %v2382, %v2384
        %v2389 = vadd.s32 %v2385, 1
        %v2390 = vsel %vm2388, %v2389, %v2385
        %v2391 = vadd.s32 %v2386, %v2390
        %v2392 = vadd.s32 %v2391, 536870912
        %v2393 = vshrl.u32 %v2392, 30
        %v2394 = vshll.u32 %v2393, 30
        %v2395 = vsub.s32 %v2391, %v2394
        %vm2396 = vcmp.lt.s32.totalorder %v2395, 0
        %v2397 = vsub.s32 0, %v2395
        %v2398 = vsel %vm2396, %v2397, %v2395
        %v2399 = vclz %v2398
        %v2400 = vsub.s32 %v2399, 2
        %vm2401 = vcmp.gt.s32.totalorder 0, %v2400
        %v2402 = vsel %vm2401, 0, %v2400
        %v2403 = vsub.s32 32, %v2402
        %v2404 = vshll.u32 %v2395, %v2402
        %v2405 = vshrl.u32 %v2387, %v2403
        %v2406 = vor.u32 %v2404, %v2405
        %v2407 = vsub.s32 4294967266, %v2402
        %v2408 = vadd.s32 %v2407, 127
        %v2409 = vshll.u32 %v2408, 23
        %v2410 = vor.u32 4788187, %v2409
        %v2411 = vand.u32 2147483647, %v2410
        %v2413 = vcvt.s32.f32 %v2406
        %v2414 = vmul.f32 %v2413, %v2411
        %v2415 = vxor.u32 %v2414, 2147483648
        %v2416 = vsel %vm2333, %v2415, %v2414
        %v2417 = vsub.s32 4, %v2393
        %v2418 = vsel %vm2333, %v2417, %v2393
        %v2419 = vsel %vm2332, %v175, %v2416
        %v2420 = vsel %vm2332, 0, %v2418
        %v2421 = vcosq.f32.pop %v2419
        %v2422 = vsinq.f32.pop %v2419
        %vm2423 = vweird.f32 %v175
        %v2424 = vadd.s32 %v2420, 3
        %v2425 = vand.u32 %v2424, 3
        %vm2426 = vcmp.lt.s32.totalorder %v2425, 2
        %vm2427 = vcmp.eq.s32.totalorder %v2425, 0
        %v2428 = vxor.u32 %v2422, 2147483648
        %v2429 = vsel %vm2427, %v2421, %v2428
        %vm2430 = vcmp.eq.s32.totalorder %v2425, 2
        %v2431 = vxor.u32 %v2421, 2147483648
        %v2432 = vsel %vm2430, %v2431, %v2422
        %v2433 = vsel %vm2426, %v2429, %v2432
        %v2434 = vsel %vm2423, nan, %v2433
        %v2435 = vand.u32 2147483647, %v176
        %vm2436 = vcmp.le.f32.partialorder %v2435, 0.7853982
        %vm2437 = vcmp.lt.s32.totalorder %v176, 0
        %v2438 = vand.u32 %v176, 2139095040
        %v2439 = vshrl.u32 %v2438, 23
        %v2440 = vsub.s32 %v2439, 127
        %v2441 = vand.u32 2147483647, %v176
        %v2442 = vand.u32 %v2441, 8388607
        %v2443 = vor.u32 %v2442, 8388608
        %v2444 = vsub.s32 0, %v2443
        %v2445 = vadd.s32 %v2440, 1
        %vm2446 = vcmp.gt.s32.totalorder %v2445, 0
        %v2447 = vsel %vm2446, %v2445, 0
        %v2448 = vshrl.u32 %v2447, 5
        %v2449 = vand.u32 %v2447, 31
        %v2450 = vsub.s32 32, %v2449
        %v2451 = vshrl.u32 683565275, %v2450
        %v2452 = vshll.u32 683565275, %v2449
        %v2453 = vshrl.u32 2475754826, %v2450
        %v2454 = vor.u32 %v2452, %v2453
        %v2455 = vshll.u32 2475754826, %v2449
        %v2456 = vshrl.u32 2131351028, %v2450
        %v2457 = vor.u32 %v2455, %v2456
        %v2458 = vshll.u32 2131351028, %v2449
        %v2459 = vshrl.u32 2102212464, %v2450
        %v2460 = vor.u32 %v2458, %v2459
        %v2461 = vshll.u32 2102212464, %v2449
        %v2462 = vshrl.u32 920167782, %v2450
        %v2463 = vor.u32 %v2461, %v2462
        %v2464 = vshll.u32 920167782, %v2449
        %v2465 = vshrl.u32 1326507024, %v2450
        %v2466 = vor.u32 %v2464, %v2465
        %vm2467 = vcmp.lt.s32.totalorder %v2448, 1
        %vm2468 = vcmp.lt.s32.totalorder %v2448, 2
        %vm2469 = vcmp.lt.s32.totalorder %v2448, 3
        %vm2470 = vcmp.lt.s32.totalorder %v2448, 4
        %v2471 = vsel %vm2467, %v2451, %v2454
        %v2472 = vsel %vm2470, %v2460, 2102212464
        %v2473 = vsel %vm2469, %v2457, %v2472
        %v2474 = vsel %vm2468, %v2471, %v2473
        %v2475 = vsel %vm2467, %v2454, %v2457
        %v2476 = vsel %vm2470, %v2463, 920167782
        %v2477 = vsel %vm2469, %v2460, %v2476
        %v2478 = vsel %vm2468, %v2475, %v2477
        %v2479 = vsel %vm2467, %v2457, %v2460
        %v2480 = vsel %vm2470, %v2466, 1326507024
        %v2481 = vsel %vm2469, %v2463, %v2480
        %v2482 = vsel %vm2468, %v2479, %v2481
        %v2483 = vshll.u32 %v2443, 8
        %v2484 = vmul.u32.u64.compose %v2483, %v2482
        %v2485 = vextract.low.u32 %v2484
        %v2486 = vextract.high.u32 %v2484
        %v2487 = vmul.u32.u64.compose %v2483, %v2478
        %v2488 = vextract.low.u32 %v2487
        %v2489 = vextract.high.u32 %v2487
        %v2490 = vmul.u32 %v2483, %v2474
        %v2491 = vadd.s32 %v2486, %v2488
        %vm2492 = vc.u32 %v2486, %v2488
        %v2493 = vadd.s32 %v2489, 1
        %v2494 = vsel %vm2492, %v2493, %v2489
        %v2495 = vadd.s32 %v2490, %v2494
        %v2496 = vadd.s32 %v2495, 536870912
        %v2497 = vshrl.u32 %v2496, 30
        %v2498 = vshll.u32 %v2497, 30
        %v2499 = vsub.s32 %v2495, %v2498
        %vm2500 = vcmp.lt.s32.totalorder %v2499, 0
        %v2501 = vsub.s32 0, %v2499
        %v2502 = vsel %vm2500, %v2501, %v2499
        %v2503 = vclz %v2502
        %v2504 = vsub.s32 %v2503, 2
        %vm2505 = vcmp.gt.s32.totalorder 0, %v2504
        %v2506 = vsel %vm2505, 0, %v2504
        %v2507 = vsub.s32 32, %v2506
        %v2508 = vshll.u32 %v2499, %v2506
        %v2509 = vshrl.u32 %v2491, %v2507
        %v2510 = vor.u32 %v2508, %v2509
        %v2511 = vsub.s32 4294967266, %v2506
        %v2512 = vadd.s32 %v2511, 127
        %v2513 = vshll.u32 %v2512, 23
        %v2514 = vor.u32 4788187, %v2513
        %v2515 = vand.u32 2147483647, %v2514
        %v2517 = vcvt.s32.f32 %v2510
        %v2518 = vmul.f32 %v2517, %v2515
        %v2519 = vxor.u32 %v2518, 2147483648
        %v2520 = vsel %vm2437, %v2519, %v2518
        %v2521 = vsub.s32 4, %v2497
        %v2522 = vsel %vm2437, %v2521, %v2497
        %v2523 = vsel %vm2436, %v176, %v2520
        %v2524 = vsel %vm2436, 0, %v2522
        %v2525 = vcosq.f32.pop %v2523
        %v2526 = vsinq.f32.pop %v2523
        %vm2527 = vweird.f32 %v176
        %v2528 = vadd.s32 %v2524, 3
        %v2529 = vand.u32 %v2528, 3
        %vm2530 = vcmp.lt.s32.totalorder %v2529, 2
        %vm2531 = vcmp.eq.s32.totalorder %v2529, 0
        %v2532 = vxor.u32 %v2526, 2147483648
        %v2533 = vsel %vm2531, %v2525, %v2532
        %vm2534 = vcmp.eq.s32.totalorder %v2529, 2
        %v2535 = vxor.u32 %v2525, 2147483648
        %v2536 = vsel %vm2534, %v2535, %v2526
        %v2537 = vsel %vm2530, %v2533, %v2536
        %v2538 = vsel %vm2527, nan, %v2537
        %v2539 = vand.u32 2147483647, %v177
        %vm2540 = vcmp.le.f32.partialorder %v2539, 0.7853982
        %vm2541 = vcmp.lt.s32.totalorder %v177, 0
        %v2542 = vand.u32 %v177, 2139095040
        %v2543 = vshrl.u32 %v2542, 23
        %v2544 = vsub.s32 %v2543, 127
        %v2545 = vand.u32 2147483647, %v177
        %v2546 = vand.u32 %v2545, 8388607
        %v2547 = vor.u32 %v2546, 8388608
        %v2548 = vsub.s32 0, %v2547
        %v2549 = vadd.s32 %v2544, 1
        %vm2550 = vcmp.gt.s32.totalorder %v2549, 0
        %v2551 = vsel %vm2550, %v2549, 0
        %v2552 = vshrl.u32 %v2551, 5
        %v2553 = vand.u32 %v2551, 31
        %v2554 = vsub.s32 32, %v2553
        %v2555 = vshrl.u32 683565275, %v2554
        %v2556 = vshll.u32 683565275, %v2553
        %v2557 = vshrl.u32 2475754826, %v2554
        %v2558 = vor.u32 %v2556, %v2557
        %v2559 = vshll.u32 2475754826, %v2553
        %v2560 = vshrl.u32 2131351028, %v2554
        %v2561 = vor.u32 %v2559, %v2560
        %v2562 = vshll.u32 2131351028, %v2553
        %v2563 = vshrl.u32 2102212464, %v2554
        %v2564 = vor.u32 %v2562, %v2563
        %v2565 = vshll.u32 2102212464, %v2553
        %v2566 = vshrl.u32 920167782, %v2554
        %v2567 = vor.u32 %v2565, %v2566
        %v2568 = vshll.u32 920167782, %v2553
        %v2569 = vshrl.u32 1326507024, %v2554
        %v2570 = vor.u32 %v2568, %v2569
        %vm2571 = vcmp.lt.s32.totalorder %v2552, 1
        %vm2572 = vcmp.lt.s32.totalorder %v2552, 2
        %vm2573 = vcmp.lt.s32.totalorder %v2552, 3
        %vm2574 = vcmp.lt.s32.totalorder %v2552, 4
        %v2575 = vsel %vm2571, %v2555, %v2558
        %v2576 = vsel %vm2574, %v2564, 2102212464
        %v2577 = vsel %vm2573, %v2561, %v2576
        %v2578 = vsel %vm2572, %v2575, %v2577
        %v2579 = vsel %vm2571, %v2558, %v2561
        %v2580 = vsel %vm2574, %v2567, 920167782
        %v2581 = vsel %vm2573, %v2564, %v2580
        %v2582 = vsel %vm2572, %v2579, %v2581
        %v2583 = vsel %vm2571, %v2561, %v2564
        %v2584 = vsel %vm2574, %v2570, 1326507024
        %v2585 = vsel %vm2573, %v2567, %v2584
        %v2586 = vsel %vm2572, %v2583, %v2585
        %v2587 = vshll.u32 %v2547, 8
        %v2588 = vmul.u32.u64.compose %v2587, %v2586
        %v2589 = vextract.low.u32 %v2588
        %v2590 = vextract.high.u32 %v2588
        %v2591 = vmul.u32.u64.compose %v2587, %v2582
        %v2592 = vextract.low.u32 %v2591
        %v2593 = vextract.high.u32 %v2591
        %v2594 = vmul.u32 %v2587, %v2578
        %v2595 = vadd.s32 %v2590, %v2592
        %vm2596 = vc.u32 %v2590, %v2592
        %v2597 = vadd.s32 %v2593, 1
        %v2598 = vsel %vm2596, %v2597, %v2593
        %v2599 = vadd.s32 %v2594, %v2598
        %v2600 = vadd.s32 %v2599, 536870912
        %v2601 = vshrl.u32 %v2600, 30
        %v2602 = vshll.u32 %v2601, 30
        %v2603 = vsub.s32 %v2599, %v2602
        %vm2604 = vcmp.lt.s32.totalorder %v2603, 0
        %v2605 = vsub.s32 0, %v2603
        %v2606 = vsel %vm2604, %v2605, %v2603
        %v2607 = vclz %v2606
        %v2608 = vsub.s32 %v2607, 2
        %vm2609 = vcmp.gt.s32.totalorder 0, %v2608
        %v2610 = vsel %vm2609, 0, %v2608
        %v2611 = vsub.s32 32, %v2610
        %v2612 = vshll.u32 %v2603, %v2610
        %v2613 = vshrl.u32 %v2595, %v2611
        %v2614 = vor.u32 %v2612, %v2613
        %v2615 = vsub.s32 4294967266, %v2610
        %v2616 = vadd.s32 %v2615, 127
        %v2617 = vshll.u32 %v2616, 23
        %v2618 = vor.u32 4788187, %v2617
        %v2619 = vand.u32 2147483647, %v2618
        %v2621 = vcvt.s32.f32 %v2614
        %v2622 = vmul.f32 %v2621, %v2619
        %v2623 = vxor.u32 %v2622, 2147483648
        %v2624 = vsel %vm2541, %v2623, %v2622
        %v2625 = vsub.s32 4, %v2601
        %v2626 = vsel %vm2541, %v2625, %v2601
        %v2627 = vsel %vm2540, %v177, %v2624
        %v2628 = vsel %vm2540, 0, %v2626
        %v2629 = vcosq.f32.pop %v2627
        %v2630 = vsinq.f32.pop %v2627
        %vm2631 = vweird.f32 %v177
        %v2632 = vadd.s32 %v2628, 3
        %v2633 = vand.u32 %v2632, 3
        %vm2634 = vcmp.lt.s32.totalorder %v2633, 2
        %vm2635 = vcmp.eq.s32.totalorder %v2633, 0
        %v2636 = vxor.u32 %v2630, 2147483648
        %v2637 = vsel %vm2635, %v2629, %v2636
        %vm2638 = vcmp.eq.s32.totalorder %v2633, 2
        %v2639 = vxor.u32 %v2629, 2147483648
        %v2640 = vsel %vm2638, %v2639, %v2630
        %v2641 = vsel %vm2634, %v2637, %v2640
        %v2642 = vsel %vm2631, nan, %v2641
        %v2643 = vand.u32 2147483647, %v178
        %vm2644 = vcmp.le.f32.partialorder %v2643, 0.7853982
        %vm2645 = vcmp.lt.s32.totalorder %v178, 0
        %v2646 = vand.u32 %v178, 2139095040
        %v2647 = vshrl.u32 %v2646, 23
        %v2648 = vsub.s32 %v2647, 127
        %v2649 = vand.u32 2147483647, %v178
        %v2650 = vand.u32 %v2649, 8388607
        %v2651 = vor.u32 %v2650, 8388608
        %v2652 = vsub.s32 0, %v2651
        %v2653 = vadd.s32 %v2648, 1
        %vm2654 = vcmp.gt.s32.totalorder %v2653, 0
        %v2655 = vsel %vm2654, %v2653, 0
        %v2656 = vshrl.u32 %v2655, 5
        %v2657 = vand.u32 %v2655, 31
        %v2658 = vsub.s32 32, %v2657
        %v2659 = vshrl.u32 683565275, %v2658
        %v2660 = vshll.u32 683565275, %v2657
        %v2661 = vshrl.u32 2475754826, %v2658
        %v2662 = vor.u32 %v2660, %v2661
        %v2663 = vshll.u32 2475754826, %v2657
        %v2664 = vshrl.u32 2131351028, %v2658
        %v2665 = vor.u32 %v2663, %v2664
        %v2666 = vshll.u32 2131351028, %v2657
        %v2667 = vshrl.u32 2102212464, %v2658
        %v2668 = vor.u32 %v2666, %v2667
        %v2669 = vshll.u32 2102212464, %v2657
        %v2670 = vshrl.u32 920167782, %v2658
        %v2671 = vor.u32 %v2669, %v2670
        %v2672 = vshll.u32 920167782, %v2657
        %v2673 = vshrl.u32 1326507024, %v2658
        %v2674 = vor.u32 %v2672, %v2673
        %vm2675 = vcmp.lt.s32.totalorder %v2656, 1
        %vm2676 = vcmp.lt.s32.totalorder %v2656, 2
        %vm2677 = vcmp.lt.s32.totalorder %v2656, 3
        %vm2678 = vcmp.lt.s32.totalorder %v2656, 4
        %v2679 = vsel %vm2675, %v2659, %v2662
        %v2680 = vsel %vm2678, %v2668, 2102212464
        %v2681 = vsel %vm2677, %v2665, %v2680
        %v2682 = vsel %vm2676, %v2679, %v2681
        %v2683 = vsel %vm2675, %v2662, %v2665
        %v2684 = vsel %vm2678, %v2671, 920167782
        %v2685 = vsel %vm2677, %v2668, %v2684
        %v2686 = vsel %vm2676, %v2683, %v2685
        %v2687 = vsel %vm2675, %v2665, %v2668
        %v2688 = vsel %vm2678, %v2674, 1326507024
        %v2689 = vsel %vm2677, %v2671, %v2688
        %v2690 = vsel %vm2676, %v2687, %v2689
        %v2691 = vshll.u32 %v2651, 8
        %v2692 = vmul.u32.u64.compose %v2691, %v2690
        %v2693 = vextract.low.u32 %v2692
        %v2694 = vextract.high.u32 %v2692
        %v2695 = vmul.u32.u64.compose %v2691, %v2686
        %v2696 = vextract.low.u32 %v2695
        %v2697 = vextract.high.u32 %v2695
        %v2698 = vmul.u32 %v2691, %v2682
        %v2699 = vadd.s32 %v2694, %v2696
        %vm2700 = vc.u32 %v2694, %v2696
        %v2701 = vadd.s32 %v2697, 1
        %v2702 = vsel %vm2700, %v2701, %v2697
        %v2703 = vadd.s32 %v2698, %v2702
        %v2704 = vadd.s32 %v2703, 536870912
        %v2705 = vshrl.u32 %v2704, 30
        %v2706 = vshll.u32 %v2705, 30
        %v2707 = vsub.s32 %v2703, %v2706
        %vm2708 = vcmp.lt.s32.totalorder %v2707, 0
        %v2709 = vsub.s32 0, %v2707
        %v2710 = vsel %vm2708, %v2709, %v2707
        %v2711 = vclz %v2710
        %v2712 = vsub.s32 %v2711, 2
        %vm2713 = vcmp.gt.s32.totalorder 0, %v2712
        %v2714 = vsel %vm2713, 0, %v2712
        %v2715 = vsub.s32 32, %v2714
        %v2716 = vshll.u32 %v2707, %v2714
        %v2717 = vshrl.u32 %v2699, %v2715
        %v2718 = vor.u32 %v2716, %v2717
        %v2719 = vsub.s32 4294967266, %v2714
        %v2720 = vadd.s32 %v2719, 127
        %v2721 = vshll.u32 %v2720, 23
        %v2722 = vor.u32 4788187, %v2721
        %v2723 = vand.u32 2147483647, %v2722
        %v2725 = vcvt.s32.f32 %v2718
        %v2726 = vmul.f32 %v2725, %v2723
        %v2727 = vxor.u32 %v2726, 2147483648
        %v2728 = vsel %vm2645, %v2727, %v2726
        %v2729 = vsub.s32 4, %v2705
        %v2730 = vsel %vm2645, %v2729, %v2705
        %v2731 = vsel %vm2644, %v178, %v2728
        %v2732 = vsel %vm2644, 0, %v2730
        %v2733 = vcosq.f32.pop %v2731
        %v2734 = vsinq.f32.pop %v2731
        %vm2735 = vweird.f32 %v178
        %v2736 = vadd.s32 %v2732, 3
        %v2737 = vand.u32 %v2736, 3
        %vm2738 = vcmp.lt.s32.totalorder %v2737, 2
        %vm2739 = vcmp.eq.s32.totalorder %v2737, 0
        %v2740 = vxor.u32 %v2734, 2147483648
        %v2741 = vsel %vm2739, %v2733, %v2740
        %vm2742 = vcmp.eq.s32.totalorder %v2737, 2
        %v2743 = vxor.u32 %v2733, 2147483648
        %v2744 = vsel %vm2742, %v2743, %v2734
        %v2745 = vsel %vm2738, %v2741, %v2744
        %v2746 = vsel %vm2735, nan, %v2745
        %v2747 = vand.u32 2147483647, %v179
        %vm2748 = vcmp.le.f32.partialorder %v2747, 0.7853982
        %vm2749 = vcmp.lt.s32.totalorder %v179, 0
        %v2750 = vand.u32 %v179, 2139095040
        %v2751 = vshrl.u32 %v2750, 23
        %v2752 = vsub.s32 %v2751, 127
        %v2753 = vand.u32 2147483647, %v179
        %v2754 = vand.u32 %v2753, 8388607
        %v2755 = vor.u32 %v2754, 8388608
        %v2756 = vsub.s32 0, %v2755
        %v2757 = vadd.s32 %v2752, 1
        %vm2758 = vcmp.gt.s32.totalorder %v2757, 0
        %v2759 = vsel %vm2758, %v2757, 0
        %v2760 = vshrl.u32 %v2759, 5
        %v2761 = vand.u32 %v2759, 31
        %v2762 = vsub.s32 32, %v2761
        %v2763 = vshrl.u32 683565275, %v2762
        %v2764 = vshll.u32 683565275, %v2761
        %v2765 = vshrl.u32 2475754826, %v2762
        %v2766 = vor.u32 %v2764, %v2765
        %v2767 = vshll.u32 2475754826, %v2761
        %v2768 = vshrl.u32 2131351028, %v2762
        %v2769 = vor.u32 %v2767, %v2768
        %v2770 = vshll.u32 2131351028, %v2761
        %v2771 = vshrl.u32 2102212464, %v2762
        %v2772 = vor.u32 %v2770, %v2771
        %v2773 = vshll.u32 2102212464, %v2761
        %v2774 = vshrl.u32 920167782, %v2762
        %v2775 = vor.u32 %v2773, %v2774
        %v2776 = vshll.u32 920167782, %v2761
        %v2777 = vshrl.u32 1326507024, %v2762
        %v2778 = vor.u32 %v2776, %v2777
        %vm2779 = vcmp.lt.s32.totalorder %v2760, 1
        %vm2780 = vcmp.lt.s32.totalorder %v2760, 2
        %vm2781 = vcmp.lt.s32.totalorder %v2760, 3
        %vm2782 = vcmp.lt.s32.totalorder %v2760, 4
        %v2783 = vsel %vm2779, %v2763, %v2766
        %v2784 = vsel %vm2782, %v2772, 2102212464
        %v2785 = vsel %vm2781, %v2769, %v2784
        %v2786 = vsel %vm2780, %v2783, %v2785
        %v2787 = vsel %vm2779, %v2766, %v2769
        %v2788 = vsel %vm2782, %v2775, 920167782
        %v2789 = vsel %vm2781, %v2772, %v2788
        %v2790 = vsel %vm2780, %v2787, %v2789
        %v2791 = vsel %vm2779, %v2769, %v2772
        %v2792 = vsel %vm2782, %v2778, 1326507024
        %v2793 = vsel %vm2781, %v2775, %v2792
        %v2794 = vsel %vm2780, %v2791, %v2793
        %v2795 = vshll.u32 %v2755, 8
        %v2796 = vmul.u32.u64.compose %v2795, %v2794
        %v2797 = vextract.low.u32 %v2796
        %v2798 = vextract.high.u32 %v2796
        %v2799 = vmul.u32.u64.compose %v2795, %v2790
        %v2800 = vextract.low.u32 %v2799
        %v2801 = vextract.high.u32 %v2799
        %v2802 = vmul.u32 %v2795, %v2786
        %v2803 = vadd.s32 %v2798, %v2800
        %vm2804 = vc.u32 %v2798, %v2800
        %v2805 = vadd.s32 %v2801, 1
        %v2806 = vsel %vm2804, %v2805, %v2801
        %v2807 = vadd.s32 %v2802, %v2806
        %v2808 = vadd.s32 %v2807, 536870912
        %v2809 = vshrl.u32 %v2808, 30
        %v2810 = vshll.u32 %v2809, 30
        %v2811 = vsub.s32 %v2807, %v2810
        %vm2812 = vcmp.lt.s32.totalorder %v2811, 0
        %v2813 = vsub.s32 0, %v2811
        %v2814 = vsel %vm2812, %v2813, %v2811
        %v2815 = vclz %v2814
        %v2816 = vsub.s32 %v2815, 2
        %vm2817 = vcmp.gt.s32.totalorder 0, %v2816
        %v2818 = vsel %vm2817, 0, %v2816
        %v2819 = vsub.s32 32, %v2818
        %v2820 = vshll.u32 %v2811, %v2818
        %v2821 = vshrl.u32 %v2803, %v2819
        %v2822 = vor.u32 %v2820, %v2821
        %v2823 = vsub.s32 4294967266, %v2818
        %v2824 = vadd.s32 %v2823, 127
        %v2825 = vshll.u32 %v2824, 23
        %v2826 = vor.u32 4788187, %v2825
        %v2827 = vand.u32 2147483647, %v2826
        %v2829 = vcvt.s32.f32 %v2822
        %v2830 = vmul.f32 %v2829, %v2827
        %v2831 = vxor.u32 %v2830, 2147483648
        %v2832 = vsel %vm2749, %v2831, %v2830
        %v2833 = vsub.s32 4, %v2809
        %v2834 = vsel %vm2749, %v2833, %v2809
        %v2835 = vsel %vm2748, %v179, %v2832
        %v2836 = vsel %vm2748, 0, %v2834
        %v2837 = vcosq.f32.pop %v2835
        %v2838 = vsinq.f32.pop %v2835
        %vm2839 = vweird.f32 %v179
        %v2840 = vadd.s32 %v2836, 3
        %v2841 = vand.u32 %v2840, 3
        %vm2842 = vcmp.lt.s32.totalorder %v2841, 2
        %vm2843 = vcmp.eq.s32.totalorder %v2841, 0
        %v2844 = vxor.u32 %v2838, 2147483648
        %v2845 = vsel %vm2843, %v2837, %v2844
        %vm2846 = vcmp.eq.s32.totalorder %v2841, 2
        %v2847 = vxor.u32 %v2837, 2147483648
        %v2848 = vsel %vm2846, %v2847, %v2838
        %v2849 = vsel %vm2842, %v2845, %v2848
        %v2850 = vsel %vm2839, nan, %v2849
        %v2851 = vand.u32 2147483647, %v180
        %vm2852 = vcmp.le.f32.partialorder %v2851, 0.7853982
        %vm2853 = vcmp.lt.s32.totalorder %v180, 0
        %v2854 = vand.u32 %v180, 2139095040
        %v2855 = vshrl.u32 %v2854, 23
        %v2856 = vsub.s32 %v2855, 127
        %v2857 = vand.u32 2147483647, %v180
        %v2858 = vand.u32 %v2857, 8388607
        %v2859 = vor.u32 %v2858, 8388608
        %v2860 = vsub.s32 0, %v2859
        %v2861 = vadd.s32 %v2856, 1
        %vm2862 = vcmp.gt.s32.totalorder %v2861, 0
        %v2863 = vsel %vm2862, %v2861, 0
        %v2864 = vshrl.u32 %v2863, 5
        %v2865 = vand.u32 %v2863, 31
        %v2866 = vsub.s32 32, %v2865
        %v2867 = vshrl.u32 683565275, %v2866
        %v2868 = vshll.u32 683565275, %v2865
        %v2869 = vshrl.u32 2475754826, %v2866
        %v2870 = vor.u32 %v2868, %v2869
        %v2871 = vshll.u32 2475754826, %v2865
        %v2872 = vshrl.u32 2131351028, %v2866
        %v2873 = vor.u32 %v2871, %v2872
        %v2874 = vshll.u32 2131351028, %v2865
        %v2875 = vshrl.u32 2102212464, %v2866
        %v2876 = vor.u32 %v2874, %v2875
        %v2877 = vshll.u32 2102212464, %v2865
        %v2878 = vshrl.u32 920167782, %v2866
        %v2879 = vor.u32 %v2877, %v2878
        %v2880 = vshll.u32 920167782, %v2865
        %v2881 = vshrl.u32 1326507024, %v2866
        %v2882 = vor.u32 %v2880, %v2881
        %vm2883 = vcmp.lt.s32.totalorder %v2864, 1
        %vm2884 = vcmp.lt.s32.totalorder %v2864, 2
        %vm2885 = vcmp.lt.s32.totalorder %v2864, 3
        %vm2886 = vcmp.lt.s32.totalorder %v2864, 4
        %v2887 = vsel %vm2883, %v2867, %v2870
        %v2888 = vsel %vm2886, %v2876, 2102212464
        %v2889 = vsel %vm2885, %v2873, %v2888
        %v2890 = vsel %vm2884, %v2887, %v2889
        %v2891 = vsel %vm2883, %v2870, %v2873
        %v2892 = vsel %vm2886, %v2879, 920167782
        %v2893 = vsel %vm2885, %v2876, %v2892
        %v2894 = vsel %vm2884, %v2891, %v2893
        %v2895 = vsel %vm2883, %v2873, %v2876
        %v2896 = vsel %vm2886, %v2882, 1326507024
        %v2897 = vsel %vm2885, %v2879, %v2896
        %v2898 = vsel %vm2884, %v2895, %v2897
        %v2899 = vshll.u32 %v2859, 8
        %v2900 = vmul.u32.u64.compose %v2899, %v2898
        %v2901 = vextract.low.u32 %v2900
        %v2902 = vextract.high.u32 %v2900
        %v2903 = vmul.u32.u64.compose %v2899, %v2894
        %v2904 = vextract.low.u32 %v2903
        %v2905 = vextract.high.u32 %v2903
        %v2906 = vmul.u32 %v2899, %v2890
        %v2907 = vadd.s32 %v2902, %v2904
        %vm2908 = vc.u32 %v2902, %v2904
        %v2909 = vadd.s32 %v2905, 1
        %v2910 = vsel %vm2908, %v2909, %v2905
        %v2911 = vadd.s32 %v2906, %v2910
        %v2912 = vadd.s32 %v2911, 536870912
        %v2913 = vshrl.u32 %v2912, 30
        %v2914 = vshll.u32 %v2913, 30
        %v2915 = vsub.s32 %v2911, %v2914
        %vm2916 = vcmp.lt.s32.totalorder %v2915, 0
        %v2917 = vsub.s32 0, %v2915
        %v2918 = vsel %vm2916, %v2917, %v2915
        %v2919 = vclz %v2918
        %v2920 = vsub.s32 %v2919, 2
        %vm2921 = vcmp.gt.s32.totalorder 0, %v2920
        %v2922 = vsel %vm2921, 0, %v2920
        %v2923 = vsub.s32 32, %v2922
        %v2924 = vshll.u32 %v2915, %v2922
        %v2925 = vshrl.u32 %v2907, %v2923
        %v2926 = vor.u32 %v2924, %v2925
        %v2927 = vsub.s32 4294967266, %v2922
        %v2928 = vadd.s32 %v2927, 127
        %v2929 = vshll.u32 %v2928, 23
        %v2930 = vor.u32 4788187, %v2929
        %v2931 = vand.u32 2147483647, %v2930
        %v2933 = vcvt.s32.f32 %v2926
        %v2934 = vmul.f32 %v2933, %v2931
        %v2935 = vxor.u32 %v2934, 2147483648
        %v2936 = vsel %vm2853, %v2935, %v2934
        %v2937 = vsub.s32 4, %v2913
        %v2938 = vsel %vm2853, %v2937, %v2913
        %v2939 = vsel %vm2852, %v180, %v2936
        %v2940 = vsel %vm2852, 0, %v2938
        %v2941 = vcosq.f32.pop %v2939
        %v2942 = vsinq.f32.pop %v2939
        %vm2943 = vweird.f32 %v180
        %v2944 = vadd.s32 %v2940, 3
        %v2945 = vand.u32 %v2944, 3
        %vm2946 = vcmp.lt.s32.totalorder %v2945, 2
        %vm2947 = vcmp.eq.s32.totalorder %v2945, 0
        %v2948 = vxor.u32 %v2942, 2147483648
        %v2949 = vsel %vm2947, %v2941, %v2948
        %vm2950 = vcmp.eq.s32.totalorder %v2945, 2
        %v2951 = vxor.u32 %v2941, 2147483648
        %v2952 = vsel %vm2950, %v2951, %v2942
        %v2953 = vsel %vm2946, %v2949, %v2952
        %v2954 = vsel %vm2943, nan, %v2953
        %v2955 = vand.u32 2147483647, %v181
        %vm2956 = vcmp.le.f32.partialorder %v2955, 0.7853982
        %vm2957 = vcmp.lt.s32.totalorder %v181, 0
        %v2958 = vand.u32 %v181, 2139095040
        %v2959 = vshrl.u32 %v2958, 23
        %v2960 = vsub.s32 %v2959, 127
        %v2961 = vand.u32 2147483647, %v181
        %v2962 = vand.u32 %v2961, 8388607
        %v2963 = vor.u32 %v2962, 8388608
        %v2964 = vsub.s32 0, %v2963
        %v2965 = vadd.s32 %v2960, 1
        %vm2966 = vcmp.gt.s32.totalorder %v2965, 0
        %v2967 = vsel %vm2966, %v2965, 0
        %v2968 = vshrl.u32 %v2967, 5
        %v2969 = vand.u32 %v2967, 31
        %v2970 = vsub.s32 32, %v2969
        %v2971 = vshrl.u32 683565275, %v2970
        %v2972 = vshll.u32 683565275, %v2969
        %v2973 = vshrl.u32 2475754826, %v2970
        %v2974 = vor.u32 %v2972, %v2973
        %v2975 = vshll.u32 2475754826, %v2969
        %v2976 = vshrl.u32 2131351028, %v2970
        %v2977 = vor.u32 %v2975, %v2976
        %v2978 = vshll.u32 2131351028, %v2969
        %v2979 = vshrl.u32 2102212464, %v2970
        %v2980 = vor.u32 %v2978, %v2979
        %v2981 = vshll.u32 2102212464, %v2969
        %v2982 = vshrl.u32 920167782, %v2970
        %v2983 = vor.u32 %v2981, %v2982
        %v2984 = vshll.u32 920167782, %v2969
        %v2985 = vshrl.u32 1326507024, %v2970
        %v2986 = vor.u32 %v2984, %v2985
        %vm2987 = vcmp.lt.s32.totalorder %v2968, 1
        %vm2988 = vcmp.lt.s32.totalorder %v2968, 2
        %vm2989 = vcmp.lt.s32.totalorder %v2968, 3
        %vm2990 = vcmp.lt.s32.totalorder %v2968, 4
        %v2991 = vsel %vm2987, %v2971, %v2974
        %v2992 = vsel %vm2990, %v2980, 2102212464
        %v2993 = vsel %vm2989, %v2977, %v2992
        %v2994 = vsel %vm2988, %v2991, %v2993
        %v2995 = vsel %vm2987, %v2974, %v2977
        %v2996 = vsel %vm2990, %v2983, 920167782
        %v2997 = vsel %vm2989, %v2980, %v2996
        %v2998 = vsel %vm2988, %v2995, %v2997
        %v2999 = vsel %vm2987, %v2977, %v2980
        %v3000 = vsel %vm2990, %v2986, 1326507024
        %v3001 = vsel %vm2989, %v2983, %v3000
        %v3002 = vsel %vm2988, %v2999, %v3001
        %v3003 = vshll.u32 %v2963, 8
        %v3004 = vmul.u32.u64.compose %v3003, %v3002
        %v3005 = vextract.low.u32 %v3004
        %v3006 = vextract.high.u32 %v3004
        %v3007 = vmul.u32.u64.compose %v3003, %v2998
        %v3008 = vextract.low.u32 %v3007
        %v3009 = vextract.high.u32 %v3007
        %v3010 = vmul.u32 %v3003, %v2994
        %v3011 = vadd.s32 %v3006, %v3008
        %vm3012 = vc.u32 %v3006, %v3008
        %v3013 = vadd.s32 %v3009, 1
        %v3014 = vsel %vm3012, %v3013, %v3009
        %v3015 = vadd.s32 %v3010, %v3014
        %v3016 = vadd.s32 %v3015, 536870912
        %v3017 = vshrl.u32 %v3016, 30
        %v3018 = vshll.u32 %v3017, 30
        %v3019 = vsub.s32 %v3015, %v3018
        %vm3020 = vcmp.lt.s32.totalorder %v3019, 0
        %v3021 = vsub.s32 0, %v3019
        %v3022 = vsel %vm3020, %v3021, %v3019
        %v3023 = vclz %v3022
        %v3024 = vsub.s32 %v3023, 2
        %vm3025 = vcmp.gt.s32.totalorder 0, %v3024
        %v3026 = vsel %vm3025, 0, %v3024
        %v3027 = vsub.s32 32, %v3026
        %v3028 = vshll.u32 %v3019, %v3026
        %v3029 = vshrl.u32 %v3011, %v3027
        %v3030 = vor.u32 %v3028, %v3029
        %v3031 = vsub.s32 4294967266, %v3026
        %v3032 = vadd.s32 %v3031, 127
        %v3033 = vshll.u32 %v3032, 23
        %v3034 = vor.u32 4788187, %v3033
        %v3035 = vand.u32 2147483647, %v3034
        %v3037 = vcvt.s32.f32 %v3030
        %v3038 = vmul.f32 %v3037, %v3035
        %v3039 = vxor.u32 %v3038, 2147483648
        %v3040 = vsel %vm2957, %v3039, %v3038
        %v3041 = vsub.s32 4, %v3017
        %v3042 = vsel %vm2957, %v3041, %v3017
        %v3043 = vsel %vm2956, %v181, %v3040
        %v3044 = vsel %vm2956, 0, %v3042
        %v3045 = vcosq.f32.pop %v3043
        %v3046 = vsinq.f32.pop %v3043
        %vm3047 = vweird.f32 %v181
        %v3048 = vadd.s32 %v3044, 3
        %v3049 = vand.u32 %v3048, 3
        %vm3050 = vcmp.lt.s32.totalorder %v3049, 2
        %vm3051 = vcmp.eq.s32.totalorder %v3049, 0
        %v3052 = vxor.u32 %v3046, 2147483648
        %v3053 = vsel %vm3051, %v3045, %v3052
        %vm3054 = vcmp.eq.s32.totalorder %v3049, 2
        %v3055 = vxor.u32 %v3045, 2147483648
        %v3056 = vsel %vm3054, %v3055, %v3046
        %v3057 = vsel %vm3050, %v3053, %v3056
        %v3058 = vsel %vm3047, nan, %v3057
        %v3059 = vand.u32 2147483647, %v182
        %vm3060 = vcmp.le.f32.partialorder %v3059, 0.7853982
        %vm3061 = vcmp.lt.s32.totalorder %v182, 0
        %v3062 = vand.u32 %v182, 2139095040
        %v3063 = vshrl.u32 %v3062, 23
        %v3064 = vsub.s32 %v3063, 127
        %v3065 = vand.u32 2147483647, %v182
        %v3066 = vand.u32 %v3065, 8388607
        %v3067 = vor.u32 %v3066, 8388608
        %v3068 = vsub.s32 0, %v3067
        %v3069 = vadd.s32 %v3064, 1
        %vm3070 = vcmp.gt.s32.totalorder %v3069, 0
        %v3071 = vsel %vm3070, %v3069, 0
        %v3072 = vshrl.u32 %v3071, 5
        %v3073 = vand.u32 %v3071, 31
        %v3074 = vsub.s32 32, %v3073
        %v3075 = vshrl.u32 683565275, %v3074
        %v3076 = vshll.u32 683565275, %v3073
        %v3077 = vshrl.u32 2475754826, %v3074
        %v3078 = vor.u32 %v3076, %v3077
        %v3079 = vshll.u32 2475754826, %v3073
        %v3080 = vshrl.u32 2131351028, %v3074
        %v3081 = vor.u32 %v3079, %v3080
        %v3082 = vshll.u32 2131351028, %v3073
        %v3083 = vshrl.u32 2102212464, %v3074
        %v3084 = vor.u32 %v3082, %v3083
        %v3085 = vshll.u32 2102212464, %v3073
        %v3086 = vshrl.u32 920167782, %v3074
        %v3087 = vor.u32 %v3085, %v3086
        %v3088 = vshll.u32 920167782, %v3073
        %v3089 = vshrl.u32 1326507024, %v3074
        %v3090 = vor.u32 %v3088, %v3089
        %vm3091 = vcmp.lt.s32.totalorder %v3072, 1
        %vm3092 = vcmp.lt.s32.totalorder %v3072, 2
        %vm3093 = vcmp.lt.s32.totalorder %v3072, 3
        %vm3094 = vcmp.lt.s32.totalorder %v3072, 4
        %v3095 = vsel %vm3091, %v3075, %v3078
        %v3096 = vsel %vm3094, %v3084, 2102212464
        %v3097 = vsel %vm3093, %v3081, %v3096
        %v3098 = vsel %vm3092, %v3095, %v3097
        %v3099 = vsel %vm3091, %v3078, %v3081
        %v3100 = vsel %vm3094, %v3087, 920167782
        %v3101 = vsel %vm3093, %v3084, %v3100
        %v3102 = vsel %vm3092, %v3099, %v3101
        %v3103 = vsel %vm3091, %v3081, %v3084
        %v3104 = vsel %vm3094, %v3090, 1326507024
        %v3105 = vsel %vm3093, %v3087, %v3104
        %v3106 = vsel %vm3092, %v3103, %v3105
        %v3107 = vshll.u32 %v3067, 8
        %v3108 = vmul.u32.u64.compose %v3107, %v3106
        %v3109 = vextract.low.u32 %v3108
        %v3110 = vextract.high.u32 %v3108
        %v3111 = vmul.u32.u64.compose %v3107, %v3102
        %v3112 = vextract.low.u32 %v3111
        %v3113 = vextract.high.u32 %v3111
        %v3114 = vmul.u32 %v3107, %v3098
        %v3115 = vadd.s32 %v3110, %v3112
        %vm3116 = vc.u32 %v3110, %v3112
        %v3117 = vadd.s32 %v3113, 1
        %v3118 = vsel %vm3116, %v3117, %v3113
        %v3119 = vadd.s32 %v3114, %v3118
        %v3120 = vadd.s32 %v3119, 536870912
        %v3121 = vshrl.u32 %v3120, 30
        %v3122 = vshll.u32 %v3121, 30
        %v3123 = vsub.s32 %v3119, %v3122
        %vm3124 = vcmp.lt.s32.totalorder %v3123, 0
        %v3125 = vsub.s32 0, %v3123
        %v3126 = vsel %vm3124, %v3125, %v3123
        %v3127 = vclz %v3126
        %v3128 = vsub.s32 %v3127, 2
        %vm3129 = vcmp.gt.s32.totalorder 0, %v3128
        %v3130 = vsel %vm3129, 0, %v3128
        %v3131 = vsub.s32 32, %v3130
        %v3132 = vshll.u32 %v3123, %v3130
        %v3133 = vshrl.u32 %v3115, %v3131
        %v3134 = vor.u32 %v3132, %v3133
        %v3135 = vsub.s32 4294967266, %v3130
        %v3136 = vadd.s32 %v3135, 127
        %v3137 = vshll.u32 %v3136, 23
        %v3138 = vor.u32 4788187, %v3137
        %v3139 = vand.u32 2147483647, %v3138
        %v3141 = vcvt.s32.f32 %v3134
        %v3142 = vmul.f32 %v3141, %v3139
        %v3143 = vxor.u32 %v3142, 2147483648
        %v3144 = vsel %vm3061, %v3143, %v3142
        %v3145 = vsub.s32 4, %v3121
        %v3146 = vsel %vm3061, %v3145, %v3121
        %v3147 = vsel %vm3060, %v182, %v3144
        %v3148 = vsel %vm3060, 0, %v3146
        %v3149 = vcosq.f32.pop %v3147
        %v3150 = vsinq.f32.pop %v3147
        %vm3151 = vweird.f32 %v182
        %v3152 = vadd.s32 %v3148, 3
        %v3153 = vand.u32 %v3152, 3
        %vm3154 = vcmp.lt.s32.totalorder %v3153, 2
        %vm3155 = vcmp.eq.s32.totalorder %v3153, 0
        %v3156 = vxor.u32 %v3150, 2147483648
        %v3157 = vsel %vm3155, %v3149, %v3156
        %vm3158 = vcmp.eq.s32.totalorder %v3153, 2
        %v3159 = vxor.u32 %v3149, 2147483648
        %v3160 = vsel %vm3158, %v3159, %v3150
        %v3161 = vsel %vm3154, %v3157, %v3160
        %v3162 = vsel %vm3151, nan, %v3161
        %v3163 = vand.u32 2147483647, %v183
        %vm3164 = vcmp.le.f32.partialorder %v3163, 0.7853982
        %vm3165 = vcmp.lt.s32.totalorder %v183, 0
        %v3166 = vand.u32 %v183, 2139095040
        %v3167 = vshrl.u32 %v3166, 23
        %v3168 = vsub.s32 %v3167, 127
        %v3169 = vand.u32 2147483647, %v183
        %v3170 = vand.u32 %v3169, 8388607
        %v3171 = vor.u32 %v3170, 8388608
        %v3172 = vsub.s32 0, %v3171
        %v3173 = vadd.s32 %v3168, 1
        %vm3174 = vcmp.gt.s32.totalorder %v3173, 0
        %v3175 = vsel %vm3174, %v3173, 0
        %v3176 = vshrl.u32 %v3175, 5
        %v3177 = vand.u32 %v3175, 31
        %v3178 = vsub.s32 32, %v3177
        %v3179 = vshrl.u32 683565275, %v3178
        %v3180 = vshll.u32 683565275, %v3177
        %v3181 = vshrl.u32 2475754826, %v3178
        %v3182 = vor.u32 %v3180, %v3181
        %v3183 = vshll.u32 2475754826, %v3177
        %v3184 = vshrl.u32 2131351028, %v3178
        %v3185 = vor.u32 %v3183, %v3184
        %v3186 = vshll.u32 2131351028, %v3177
        %v3187 = vshrl.u32 2102212464, %v3178
        %v3188 = vor.u32 %v3186, %v3187
        %v3189 = vshll.u32 2102212464, %v3177
        %v3190 = vshrl.u32 920167782, %v3178
        %v3191 = vor.u32 %v3189, %v3190
        %v3192 = vshll.u32 920167782, %v3177
        %v3193 = vshrl.u32 1326507024, %v3178
        %v3194 = vor.u32 %v3192, %v3193
        %vm3195 = vcmp.lt.s32.totalorder %v3176, 1
        %vm3196 = vcmp.lt.s32.totalorder %v3176, 2
        %vm3197 = vcmp.lt.s32.totalorder %v3176, 3
        %vm3198 = vcmp.lt.s32.totalorder %v3176, 4
        %v3199 = vsel %vm3195, %v3179, %v3182
        %v3200 = vsel %vm3198, %v3188, 2102212464
        %v3201 = vsel %vm3197, %v3185, %v3200
        %v3202 = vsel %vm3196, %v3199, %v3201
        %v3203 = vsel %vm3195, %v3182, %v3185
        %v3204 = vsel %vm3198, %v3191, 920167782
        %v3205 = vsel %vm3197, %v3188, %v3204
        %v3206 = vsel %vm3196, %v3203, %v3205
        %v3207 = vsel %vm3195, %v3185, %v3188
        %v3208 = vsel %vm3198, %v3194, 1326507024
        %v3209 = vsel %vm3197, %v3191, %v3208
        %v3210 = vsel %vm3196, %v3207, %v3209
        %v3211 = vshll.u32 %v3171, 8
        %v3212 = vmul.u32.u64.compose %v3211, %v3210
        %v3213 = vextract.low.u32 %v3212
        %v3214 = vextract.high.u32 %v3212
        %v3215 = vmul.u32.u64.compose %v3211, %v3206
        %v3216 = vextract.low.u32 %v3215
        %v3217 = vextract.high.u32 %v3215
        %v3218 = vmul.u32 %v3211, %v3202
        %v3219 = vadd.s32 %v3214, %v3216
        %vm3220 = vc.u32 %v3214, %v3216
        %v3221 = vadd.s32 %v3217, 1
        %v3222 = vsel %vm3220, %v3221, %v3217
        %v3223 = vadd.s32 %v3218, %v3222
        %v3224 = vadd.s32 %v3223, 536870912
        %v3225 = vshrl.u32 %v3224, 30
        %v3226 = vshll.u32 %v3225, 30
        %v3227 = vsub.s32 %v3223, %v3226
        %vm3228 = vcmp.lt.s32.totalorder %v3227, 0
        %v3229 = vsub.s32 0, %v3227
        %v3230 = vsel %vm3228, %v3229, %v3227
        %v3231 = vclz %v3230
        %v3232 = vsub.s32 %v3231, 2
        %vm3233 = vcmp.gt.s32.totalorder 0, %v3232
        %v3234 = vsel %vm3233, 0, %v3232
        %v3235 = vsub.s32 32, %v3234
        %v3236 = vshll.u32 %v3227, %v3234
        %v3237 = vshrl.u32 %v3219, %v3235
        %v3238 = vor.u32 %v3236, %v3237
        %v3239 = vsub.s32 4294967266, %v3234
        %v3240 = vadd.s32 %v3239, 127
        %v3241 = vshll.u32 %v3240, 23
        %v3242 = vor.u32 4788187, %v3241
        %v3243 = vand.u32 2147483647, %v3242
        %v3245 = vcvt.s32.f32 %v3238
        %v3246 = vmul.f32 %v3245, %v3243
        %v3247 = vxor.u32 %v3246, 2147483648
        %v3248 = vsel %vm3165, %v3247, %v3246
        %v3249 = vsub.s32 4, %v3225
        %v3250 = vsel %vm3165, %v3249, %v3225
        %v3251 = vsel %vm3164, %v183, %v3248
        %v3252 = vsel %vm3164, 0, %v3250
        %v3253 = vcosq.f32.pop %v3251
        %v3254 = vsinq.f32.pop %v3251
        %vm3255 = vweird.f32 %v183
        %v3256 = vadd.s32 %v3252, 3
        %v3257 = vand.u32 %v3256, 3
        %vm3258 = vcmp.lt.s32.totalorder %v3257, 2
        %vm3259 = vcmp.eq.s32.totalorder %v3257, 0
        %v3260 = vxor.u32 %v3254, 2147483648
        %v3261 = vsel %vm3259, %v3253, %v3260
        %vm3262 = vcmp.eq.s32.totalorder %v3257, 2
        %v3263 = vxor.u32 %v3253, 2147483648
        %v3264 = vsel %vm3262, %v3263, %v3254
        %v3265 = vsel %vm3258, %v3261, %v3264
        %v3266 = vsel %vm3255, nan, %v3265
        %v3267 = vand.u32 2147483647, %v184
        %vm3268 = vcmp.le.f32.partialorder %v3267, 0.7853982
        %vm3269 = vcmp.lt.s32.totalorder %v184, 0
        %v3270 = vand.u32 %v184, 2139095040
        %v3271 = vshrl.u32 %v3270, 23
        %v3272 = vsub.s32 %v3271, 127
        %v3273 = vand.u32 2147483647, %v184
        %v3274 = vand.u32 %v3273, 8388607
        %v3275 = vor.u32 %v3274, 8388608
        %v3276 = vsub.s32 0, %v3275
        %v3277 = vadd.s32 %v3272, 1
        %vm3278 = vcmp.gt.s32.totalorder %v3277, 0
        %v3279 = vsel %vm3278, %v3277, 0
        %v3280 = vshrl.u32 %v3279, 5
        %v3281 = vand.u32 %v3279, 31
        %v3282 = vsub.s32 32, %v3281
        %v3283 = vshrl.u32 683565275, %v3282
        %v3284 = vshll.u32 683565275, %v3281
        %v3285 = vshrl.u32 2475754826, %v3282
        %v3286 = vor.u32 %v3284, %v3285
        %v3287 = vshll.u32 2475754826, %v3281
        %v3288 = vshrl.u32 2131351028, %v3282
        %v3289 = vor.u32 %v3287, %v3288
        %v3290 = vshll.u32 2131351028, %v3281
        %v3291 = vshrl.u32 2102212464, %v3282
        %v3292 = vor.u32 %v3290, %v3291
        %v3293 = vshll.u32 2102212464, %v3281
        %v3294 = vshrl.u32 920167782, %v3282
        %v3295 = vor.u32 %v3293, %v3294
        %v3296 = vshll.u32 920167782, %v3281
        %v3297 = vshrl.u32 1326507024, %v3282
        %v3298 = vor.u32 %v3296, %v3297
        %vm3299 = vcmp.lt.s32.totalorder %v3280, 1
        %vm3300 = vcmp.lt.s32.totalorder %v3280, 2
        %vm3301 = vcmp.lt.s32.totalorder %v3280, 3
        %vm3302 = vcmp.lt.s32.totalorder %v3280, 4
        %v3303 = vsel %vm3299, %v3283, %v3286
        %v3304 = vsel %vm3302, %v3292, 2102212464
        %v3305 = vsel %vm3301, %v3289, %v3304
        %v3306 = vsel %vm3300, %v3303, %v3305
        %v3307 = vsel %vm3299, %v3286, %v3289
        %v3308 = vsel %vm3302, %v3295, 920167782
        %v3309 = vsel %vm3301, %v3292, %v3308
        %v3310 = vsel %vm3300, %v3307, %v3309
        %v3311 = vsel %vm3299, %v3289, %v3292
        %v3312 = vsel %vm3302, %v3298, 1326507024
        %v3313 = vsel %vm3301, %v3295, %v3312
        %v3314 = vsel %vm3300, %v3311, %v3313
        %v3315 = vshll.u32 %v3275, 8
        %v3316 = vmul.u32.u64.compose %v3315, %v3314
        %v3317 = vextract.low.u32 %v3316
        %v3318 = vextract.high.u32 %v3316
        %v3319 = vmul.u32.u64.compose %v3315, %v3310
        %v3320 = vextract.low.u32 %v3319
        %v3321 = vextract.high.u32 %v3319
        %v3322 = vmul.u32 %v3315, %v3306
        %v3323 = vadd.s32 %v3318, %v3320
        %vm3324 = vc.u32 %v3318, %v3320
        %v3325 = vadd.s32 %v3321, 1
        %v3326 = vsel %vm3324, %v3325, %v3321
        %v3327 = vadd.s32 %v3322, %v3326
        %v3328 = vadd.s32 %v3327, 536870912
        %v3329 = vshrl.u32 %v3328, 30
        %v3330 = vshll.u32 %v3329, 30
        %v3331 = vsub.s32 %v3327, %v3330
        %vm3332 = vcmp.lt.s32.totalorder %v3331, 0
        %v3333 = vsub.s32 0, %v3331
        %v3334 = vsel %vm3332, %v3333, %v3331
        %v3335 = vclz %v3334
        %v3336 = vsub.s32 %v3335, 2
        %vm3337 = vcmp.gt.s32.totalorder 0, %v3336
        %v3338 = vsel %vm3337, 0, %v3336
        %v3339 = vsub.s32 32, %v3338
        %v3340 = vshll.u32 %v3331, %v3338
        %v3341 = vshrl.u32 %v3323, %v3339
        %v3342 = vor.u32 %v3340, %v3341
        %v3343 = vsub.s32 4294967266, %v3338
        %v3344 = vadd.s32 %v3343, 127
        %v3345 = vshll.u32 %v3344, 23
        %v3346 = vor.u32 4788187, %v3345
        %v3347 = vand.u32 2147483647, %v3346
        %v3349 = vcvt.s32.f32 %v3342
        %v3350 = vmul.f32 %v3349, %v3347
        %v3351 = vxor.u32 %v3350, 2147483648
        %v3352 = vsel %vm3269, %v3351, %v3350
        %v3353 = vsub.s32 4, %v3329
        %v3354 = vsel %vm3269, %v3353, %v3329
        %v3355 = vsel %vm3268, %v184, %v3352
        %v3356 = vsel %vm3268, 0, %v3354
        %v3357 = vcosq.f32.pop %v3355
        %v3358 = vsinq.f32.pop %v3355
        %vm3359 = vweird.f32 %v184
        %v3360 = vadd.s32 %v3356, 3
        %v3361 = vand.u32 %v3360, 3
        %vm3362 = vcmp.lt.s32.totalorder %v3361, 2
        %vm3363 = vcmp.eq.s32.totalorder %v3361, 0
        %v3364 = vxor.u32 %v3358, 2147483648
        %v3365 = vsel %vm3363, %v3357, %v3364
        %vm3366 = vcmp.eq.s32.totalorder %v3361, 2
        %v3367 = vxor.u32 %v3357, 2147483648
        %v3368 = vsel %vm3366, %v3367, %v3358
        %v3369 = vsel %vm3362, %v3365, %v3368
        %v3370 = vsel %vm3359, nan, %v3369
        %v3371 = vand.u32 2147483647, %v185
        %vm3372 = vcmp.le.f32.partialorder %v3371, 0.7853982
        %vm3373 = vcmp.lt.s32.totalorder %v185, 0
        %v3374 = vand.u32 %v185, 2139095040
        %v3375 = vshrl.u32 %v3374, 23
        %v3376 = vsub.s32 %v3375, 127
        %v3377 = vand.u32 2147483647, %v185
        %v3378 = vand.u32 %v3377, 8388607
        %v3379 = vor.u32 %v3378, 8388608
        %v3380 = vsub.s32 0, %v3379
        %v3381 = vadd.s32 %v3376, 1
        %vm3382 = vcmp.gt.s32.totalorder %v3381, 0
        %v3383 = vsel %vm3382, %v3381, 0
        %v3384 = vshrl.u32 %v3383, 5
        %v3385 = vand.u32 %v3383, 31
        %v3386 = vsub.s32 32, %v3385
        %v3387 = vshrl.u32 683565275, %v3386
        %v3388 = vshll.u32 683565275, %v3385
        %v3389 = vshrl.u32 2475754826, %v3386
        %v3390 = vor.u32 %v3388, %v3389
        %v3391 = vshll.u32 2475754826, %v3385
        %v3392 = vshrl.u32 2131351028, %v3386
        %v3393 = vor.u32 %v3391, %v3392
        %v3394 = vshll.u32 2131351028, %v3385
        %v3395 = vshrl.u32 2102212464, %v3386
        %v3396 = vor.u32 %v3394, %v3395
        %v3397 = vshll.u32 2102212464, %v3385
        %v3398 = vshrl.u32 920167782, %v3386
        %v3399 = vor.u32 %v3397, %v3398
        %v3400 = vshll.u32 920167782, %v3385
        %v3401 = vshrl.u32 1326507024, %v3386
        %v3402 = vor.u32 %v3400, %v3401
        %vm3403 = vcmp.lt.s32.totalorder %v3384, 1
        %vm3404 = vcmp.lt.s32.totalorder %v3384, 2
        %vm3405 = vcmp.lt.s32.totalorder %v3384, 3
        %vm3406 = vcmp.lt.s32.totalorder %v3384, 4
        %v3407 = vsel %vm3403, %v3387, %v3390
        %v3408 = vsel %vm3406, %v3396, 2102212464
        %v3409 = vsel %vm3405, %v3393, %v3408
        %v3410 = vsel %vm3404, %v3407, %v3409
        %v3411 = vsel %vm3403, %v3390, %v3393
        %v3412 = vsel %vm3406, %v3399, 920167782
        %v3413 = vsel %vm3405, %v3396, %v3412
        %v3414 = vsel %vm3404, %v3411, %v3413
        %v3415 = vsel %vm3403, %v3393, %v3396
        %v3416 = vsel %vm3406, %v3402, 1326507024
        %v3417 = vsel %vm3405, %v3399, %v3416
        %v3418 = vsel %vm3404, %v3415, %v3417
        %v3419 = vshll.u32 %v3379, 8
        %v3420 = vmul.u32.u64.compose %v3419, %v3418
        %v3421 = vextract.low.u32 %v3420
        %v3422 = vextract.high.u32 %v3420
        %v3423 = vmul.u32.u64.compose %v3419, %v3414
        %v3424 = vextract.low.u32 %v3423
        %v3425 = vextract.high.u32 %v3423
        %v3426 = vmul.u32 %v3419, %v3410
        %v3427 = vadd.s32 %v3422, %v3424
        %vm3428 = vc.u32 %v3422, %v3424
        %v3429 = vadd.s32 %v3425, 1
        %v3430 = vsel %vm3428, %v3429, %v3425
        %v3431 = vadd.s32 %v3426, %v3430
        %v3432 = vadd.s32 %v3431, 536870912
        %v3433 = vshrl.u32 %v3432, 30
        %v3434 = vshll.u32 %v3433, 30
        %v3435 = vsub.s32 %v3431, %v3434
        %vm3436 = vcmp.lt.s32.totalorder %v3435, 0
        %v3437 = vsub.s32 0, %v3435
        %v3438 = vsel %vm3436, %v3437, %v3435
        %v3439 = vclz %v3438
        %v3440 = vsub.s32 %v3439, 2
        %vm3441 = vcmp.gt.s32.totalorder 0, %v3440
        %v3442 = vsel %vm3441, 0, %v3440
        %v3443 = vsub.s32 32, %v3442
        %v3444 = vshll.u32 %v3435, %v3442
        %v3445 = vshrl.u32 %v3427, %v3443
        %v3446 = vor.u32 %v3444, %v3445
        %v3447 = vsub.s32 4294967266, %v3442
        %v3448 = vadd.s32 %v3447, 127
        %v3449 = vshll.u32 %v3448, 23
        %v3450 = vor.u32 4788187, %v3449
        %v3451 = vand.u32 2147483647, %v3450
        %v3453 = vcvt.s32.f32 %v3446
        %v3454 = vmul.f32 %v3453, %v3451
        %v3455 = vxor.u32 %v3454, 2147483648
        %v3456 = vsel %vm3373, %v3455, %v3454
        %v3457 = vsub.s32 4, %v3433
        %v3458 = vsel %vm3373, %v3457, %v3433
        %v3459 = vsel %vm3372, %v185, %v3456
        %v3460 = vsel %vm3372, 0, %v3458
        %v3461 = vcosq.f32.pop %v3459
        %v3462 = vsinq.f32.pop %v3459
        %vm3463 = vweird.f32 %v185
        %v3464 = vadd.s32 %v3460, 3
        %v3465 = vand.u32 %v3464, 3
        %vm3466 = vcmp.lt.s32.totalorder %v3465, 2
        %vm3467 = vcmp.eq.s32.totalorder %v3465, 0
        %v3468 = vxor.u32 %v3462, 2147483648
        %v3469 = vsel %vm3467, %v3461, %v3468
        %vm3470 = vcmp.eq.s32.totalorder %v3465, 2
        %v3471 = vxor.u32 %v3461, 2147483648
        %v3472 = vsel %vm3470, %v3471, %v3462
        %v3473 = vsel %vm3466, %v3469, %v3472
        %v3474 = vsel %vm3463, nan, %v3473
        %v3475 = vand.u32 2147483647, %v186
        %vm3476 = vcmp.le.f32.partialorder %v3475, 0.7853982
        %vm3477 = vcmp.lt.s32.totalorder %v186, 0
        %v3478 = vand.u32 %v186, 2139095040
        %v3479 = vshrl.u32 %v3478, 23
        %v3480 = vsub.s32 %v3479, 127
        %v3481 = vand.u32 2147483647, %v186
        %v3482 = vand.u32 %v3481, 8388607
        %v3483 = vor.u32 %v3482, 8388608
        %v3484 = vsub.s32 0, %v3483
        %v3485 = vadd.s32 %v3480, 1
        %vm3486 = vcmp.gt.s32.totalorder %v3485, 0
        %v3487 = vsel %vm3486, %v3485, 0
        %v3488 = vshrl.u32 %v3487, 5
        %v3489 = vand.u32 %v3487, 31
        %v3490 = vsub.s32 32, %v3489
        %v3491 = vshrl.u32 683565275, %v3490
        %v3492 = vshll.u32 683565275, %v3489
        %v3493 = vshrl.u32 2475754826, %v3490
        %v3494 = vor.u32 %v3492, %v3493
        %v3495 = vshll.u32 2475754826, %v3489
        %v3496 = vshrl.u32 2131351028, %v3490
        %v3497 = vor.u32 %v3495, %v3496
        %v3498 = vshll.u32 2131351028, %v3489
        %v3499 = vshrl.u32 2102212464, %v3490
        %v3500 = vor.u32 %v3498, %v3499
        %v3501 = vshll.u32 2102212464, %v3489
        %v3502 = vshrl.u32 920167782, %v3490
        %v3503 = vor.u32 %v3501, %v3502
        %v3504 = vshll.u32 920167782, %v3489
        %v3505 = vshrl.u32 1326507024, %v3490
        %v3506 = vor.u32 %v3504, %v3505
        %vm3507 = vcmp.lt.s32.totalorder %v3488, 1
        %vm3508 = vcmp.lt.s32.totalorder %v3488, 2
        %vm3509 = vcmp.lt.s32.totalorder %v3488, 3
        %vm3510 = vcmp.lt.s32.totalorder %v3488, 4
        %v3511 = vsel %vm3507, %v3491, %v3494
        %v3512 = vsel %vm3510, %v3500, 2102212464
        %v3513 = vsel %vm3509, %v3497, %v3512
        %v3514 = vsel %vm3508, %v3511, %v3513
        %v3515 = vsel %vm3507, %v3494, %v3497
        %v3516 = vsel %vm3510, %v3503, 920167782
        %v3517 = vsel %vm3509, %v3500, %v3516
        %v3518 = vsel %vm3508, %v3515, %v3517
        %v3519 = vsel %vm3507, %v3497, %v3500
        %v3520 = vsel %vm3510, %v3506, 1326507024
        %v3521 = vsel %vm3509, %v3503, %v3520
        %v3522 = vsel %vm3508, %v3519, %v3521
        %v3523 = vshll.u32 %v3483, 8
        %v3524 = vmul.u32.u64.compose %v3523, %v3522
        %v3525 = vextract.low.u32 %v3524
        %v3526 = vextract.high.u32 %v3524
        %v3527 = vmul.u32.u64.compose %v3523, %v3518
        %v3528 = vextract.low.u32 %v3527
        %v3529 = vextract.high.u32 %v3527
        %v3530 = vmul.u32 %v3523, %v3514
        %v3531 = vadd.s32 %v3526, %v3528
        %vm3532 = vc.u32 %v3526, %v3528
        %v3533 = vadd.s32 %v3529, 1
        %v3534 = vsel %vm3532, %v3533, %v3529
        %v3535 = vadd.s32 %v3530, %v3534
        %v3536 = vadd.s32 %v3535, 536870912
        %v3537 = vshrl.u32 %v3536, 30
        %v3538 = vshll.u32 %v3537, 30
        %v3539 = vsub.s32 %v3535, %v3538
        %vm3540 = vcmp.lt.s32.totalorder %v3539, 0
        %v3541 = vsub.s32 0, %v3539
        %v3542 = vsel %vm3540, %v3541, %v3539
        %v3543 = vclz %v3542
        %v3544 = vsub.s32 %v3543, 2
        %vm3545 = vcmp.gt.s32.totalorder 0, %v3544
        %v3546 = vsel %vm3545, 0, %v3544
        %v3547 = vsub.s32 32, %v3546
        %v3548 = vshll.u32 %v3539, %v3546
        %v3549 = vshrl.u32 %v3531, %v3547
        %v3550 = vor.u32 %v3548, %v3549
        %v3551 = vsub.s32 4294967266, %v3546
        %v3552 = vadd.s32 %v3551, 127
        %v3553 = vshll.u32 %v3552, 23
        %v3554 = vor.u32 4788187, %v3553
        %v3555 = vand.u32 2147483647, %v3554
        %v3557 = vcvt.s32.f32 %v3550
        %v3558 = vmul.f32 %v3557, %v3555
        %v3559 = vxor.u32 %v3558, 2147483648
        %v3560 = vsel %vm3477, %v3559, %v3558
        %v3561 = vsub.s32 4, %v3537
        %v3562 = vsel %vm3477, %v3561, %v3537
        %v3563 = vsel %vm3476, %v186, %v3560
        %v3564 = vsel %vm3476, 0, %v3562
        %v3565 = vcosq.f32.pop %v3563
        %v3566 = vsinq.f32.pop %v3563
        %vm3567 = vweird.f32 %v186
        %v3568 = vadd.s32 %v3564, 3
        %v3569 = vand.u32 %v3568, 3
        %vm3570 = vcmp.lt.s32.totalorder %v3569, 2
        %vm3571 = vcmp.eq.s32.totalorder %v3569, 0
        %v3572 = vxor.u32 %v3566, 2147483648
        %v3573 = vsel %vm3571, %v3565, %v3572
        %vm3574 = vcmp.eq.s32.totalorder %v3569, 2
        %v3575 = vxor.u32 %v3565, 2147483648
        %v3576 = vsel %vm3574, %v3575, %v3566
        %v3577 = vsel %vm3570, %v3573, %v3576
        %v3578 = vsel %vm3567, nan, %v3577
        %v3579 = vand.u32 2147483647, %v187
        %vm3580 = vcmp.le.f32.partialorder %v3579, 0.7853982
        %vm3581 = vcmp.lt.s32.totalorder %v187, 0
        %v3582 = vand.u32 %v187, 2139095040
        %v3583 = vshrl.u32 %v3582, 23
        %v3584 = vsub.s32 %v3583, 127
        %v3585 = vand.u32 2147483647, %v187
        %v3586 = vand.u32 %v3585, 8388607
        %v3587 = vor.u32 %v3586, 8388608
        %v3588 = vsub.s32 0, %v3587
        %v3589 = vadd.s32 %v3584, 1
        %vm3590 = vcmp.gt.s32.totalorder %v3589, 0
        %v3591 = vsel %vm3590, %v3589, 0
        %v3592 = vshrl.u32 %v3591, 5
        %v3593 = vand.u32 %v3591, 31
        %v3594 = vsub.s32 32, %v3593
        %v3595 = vshrl.u32 683565275, %v3594
        %v3596 = vshll.u32 683565275, %v3593
        %v3597 = vshrl.u32 2475754826, %v3594
        %v3598 = vor.u32 %v3596, %v3597
        %v3599 = vshll.u32 2475754826, %v3593
        %v3600 = vshrl.u32 2131351028, %v3594
        %v3601 = vor.u32 %v3599, %v3600
        %v3602 = vshll.u32 2131351028, %v3593
        %v3603 = vshrl.u32 2102212464, %v3594
        %v3604 = vor.u32 %v3602, %v3603
        %v3605 = vshll.u32 2102212464, %v3593
        %v3606 = vshrl.u32 920167782, %v3594
        %v3607 = vor.u32 %v3605, %v3606
        %v3608 = vshll.u32 920167782, %v3593
        %v3609 = vshrl.u32 1326507024, %v3594
        %v3610 = vor.u32 %v3608, %v3609
        %vm3611 = vcmp.lt.s32.totalorder %v3592, 1
        %vm3612 = vcmp.lt.s32.totalorder %v3592, 2
        %vm3613 = vcmp.lt.s32.totalorder %v3592, 3
        %vm3614 = vcmp.lt.s32.totalorder %v3592, 4
        %v3615 = vsel %vm3611, %v3595, %v3598
        %v3616 = vsel %vm3614, %v3604, 2102212464
        %v3617 = vsel %vm3613, %v3601, %v3616
        %v3618 = vsel %vm3612, %v3615, %v3617
        %v3619 = vsel %vm3611, %v3598, %v3601
        %v3620 = vsel %vm3614, %v3607, 920167782
        %v3621 = vsel %vm3613, %v3604, %v3620
        %v3622 = vsel %vm3612, %v3619, %v3621
        %v3623 = vsel %vm3611, %v3601, %v3604
        %v3624 = vsel %vm3614, %v3610, 1326507024
        %v3625 = vsel %vm3613, %v3607, %v3624
        %v3626 = vsel %vm3612, %v3623, %v3625
        %v3627 = vshll.u32 %v3587, 8
        %v3628 = vmul.u32.u64.compose %v3627, %v3626
        %v3629 = vextract.low.u32 %v3628
        %v3630 = vextract.high.u32 %v3628
        %v3631 = vmul.u32.u64.compose %v3627, %v3622
        %v3632 = vextract.low.u32 %v3631
        %v3633 = vextract.high.u32 %v3631
        %v3634 = vmul.u32 %v3627, %v3618
        %v3635 = vadd.s32 %v3630, %v3632
        %vm3636 = vc.u32 %v3630, %v3632
        %v3637 = vadd.s32 %v3633, 1
        %v3638 = vsel %vm3636, %v3637, %v3633
        %v3639 = vadd.s32 %v3634, %v3638
        %v3640 = vadd.s32 %v3639, 536870912
        %v3641 = vshrl.u32 %v3640, 30
        %v3642 = vshll.u32 %v3641, 30
        %v3643 = vsub.s32 %v3639, %v3642
        %vm3644 = vcmp.lt.s32.totalorder %v3643, 0
        %v3645 = vsub.s32 0, %v3643
        %v3646 = vsel %vm3644, %v3645, %v3643
        %v3647 = vclz %v3646
        %v3648 = vsub.s32 %v3647, 2
        %vm3649 = vcmp.gt.s32.totalorder 0, %v3648
        %v3650 = vsel %vm3649, 0, %v3648
        %v3651 = vsub.s32 32, %v3650
        %v3652 = vshll.u32 %v3643, %v3650
        %v3653 = vshrl.u32 %v3635, %v3651
        %v3654 = vor.u32 %v3652, %v3653
        %v3655 = vsub.s32 4294967266, %v3650
        %v3656 = vadd.s32 %v3655, 127
        %v3657 = vshll.u32 %v3656, 23
        %v3658 = vor.u32 4788187, %v3657
        %v3659 = vand.u32 2147483647, %v3658
        %v3661 = vcvt.s32.f32 %v3654
        %v3662 = vmul.f32 %v3661, %v3659
        %v3663 = vxor.u32 %v3662, 2147483648
        %v3664 = vsel %vm3581, %v3663, %v3662
        %v3665 = vsub.s32 4, %v3641
        %v3666 = vsel %vm3581, %v3665, %v3641
        %v3667 = vsel %vm3580, %v187, %v3664
        %v3668 = vsel %vm3580, 0, %v3666
        %v3669 = vcosq.f32.pop %v3667
        %v3670 = vsinq.f32.pop %v3667
        %vm3671 = vweird.f32 %v187
        %v3672 = vadd.s32 %v3668, 3
        %v3673 = vand.u32 %v3672, 3
        %vm3674 = vcmp.lt.s32.totalorder %v3673, 2
        %vm3675 = vcmp.eq.s32.totalorder %v3673, 0
        %v3676 = vxor.u32 %v3670, 2147483648
        %v3677 = vsel %vm3675, %v3669, %v3676
        %vm3678 = vcmp.eq.s32.totalorder %v3673, 2
        %v3679 = vxor.u32 %v3669, 2147483648
        %v3680 = vsel %vm3678, %v3679, %v3670
        %v3681 = vsel %vm3674, %v3677, %v3680
        %v3682 = vsel %vm3671, nan, %v3681
        %v3683 = vand.u32 2147483647, %v188
        %vm3684 = vcmp.le.f32.partialorder %v3683, 0.7853982
        %vm3685 = vcmp.lt.s32.totalorder %v188, 0
        %v3686 = vand.u32 %v188, 2139095040
        %v3687 = vshrl.u32 %v3686, 23
        %v3688 = vsub.s32 %v3687, 127
        %v3689 = vand.u32 2147483647, %v188
        %v3690 = vand.u32 %v3689, 8388607
        %v3691 = vor.u32 %v3690, 8388608
        %v3692 = vsub.s32 0, %v3691
        %v3693 = vadd.s32 %v3688, 1
        %vm3694 = vcmp.gt.s32.totalorder %v3693, 0
        %v3695 = vsel %vm3694, %v3693, 0
        %v3696 = vshrl.u32 %v3695, 5
        %v3697 = vand.u32 %v3695, 31
        %v3698 = vsub.s32 32, %v3697
        %v3699 = vshrl.u32 683565275, %v3698
        %v3700 = vshll.u32 683565275, %v3697
        %v3701 = vshrl.u32 2475754826, %v3698
        %v3702 = vor.u32 %v3700, %v3701
        %v3703 = vshll.u32 2475754826, %v3697
        %v3704 = vshrl.u32 2131351028, %v3698
        %v3705 = vor.u32 %v3703, %v3704
        %v3706 = vshll.u32 2131351028, %v3697
        %v3707 = vshrl.u32 2102212464, %v3698
        %v3708 = vor.u32 %v3706, %v3707
        %v3709 = vshll.u32 2102212464, %v3697
        %v3710 = vshrl.u32 920167782, %v3698
        %v3711 = vor.u32 %v3709, %v3710
        %v3712 = vshll.u32 920167782, %v3697
        %v3713 = vshrl.u32 1326507024, %v3698
        %v3714 = vor.u32 %v3712, %v3713
        %vm3715 = vcmp.lt.s32.totalorder %v3696, 1
        %vm3716 = vcmp.lt.s32.totalorder %v3696, 2
        %vm3717 = vcmp.lt.s32.totalorder %v3696, 3
        %vm3718 = vcmp.lt.s32.totalorder %v3696, 4
        %v3719 = vsel %vm3715, %v3699, %v3702
        %v3720 = vsel %vm3718, %v3708, 2102212464
        %v3721 = vsel %vm3717, %v3705, %v3720
        %v3722 = vsel %vm3716, %v3719, %v3721
        %v3723 = vsel %vm3715, %v3702, %v3705
        %v3724 = vsel %vm3718, %v3711, 920167782
        %v3725 = vsel %vm3717, %v3708, %v3724
        %v3726 = vsel %vm3716, %v3723, %v3725
        %v3727 = vsel %vm3715, %v3705, %v3708
        %v3728 = vsel %vm3718, %v3714, 1326507024
        %v3729 = vsel %vm3717, %v3711, %v3728
        %v3730 = vsel %vm3716, %v3727, %v3729
        %v3731 = vshll.u32 %v3691, 8
        %v3732 = vmul.u32.u64.compose %v3731, %v3730
        %v3733 = vextract.low.u32 %v3732
        %v3734 = vextract.high.u32 %v3732
        %v3735 = vmul.u32.u64.compose %v3731, %v3726
        %v3736 = vextract.low.u32 %v3735
        %v3737 = vextract.high.u32 %v3735
        %v3738 = vmul.u32 %v3731, %v3722
        %v3739 = vadd.s32 %v3734, %v3736
        %vm3740 = vc.u32 %v3734, %v3736
        %v3741 = vadd.s32 %v3737, 1
        %v3742 = vsel %vm3740, %v3741, %v3737
        %v3743 = vadd.s32 %v3738, %v3742
        %v3744 = vadd.s32 %v3743, 536870912
        %v3745 = vshrl.u32 %v3744, 30
        %v3746 = vshll.u32 %v3745, 30
        %v3747 = vsub.s32 %v3743, %v3746
        %vm3748 = vcmp.lt.s32.totalorder %v3747, 0
        %v3749 = vsub.s32 0, %v3747
        %v3750 = vsel %vm3748, %v3749, %v3747
        %v3751 = vclz %v3750
        %v3752 = vsub.s32 %v3751, 2
        %vm3753 = vcmp.gt.s32.totalorder 0, %v3752
        %v3754 = vsel %vm3753, 0, %v3752
        %v3755 = vsub.s32 32, %v3754
        %v3756 = vshll.u32 %v3747, %v3754
        %v3757 = vshrl.u32 %v3739, %v3755
        %v3758 = vor.u32 %v3756, %v3757
        %v3759 = vsub.s32 4294967266, %v3754
        %v3760 = vadd.s32 %v3759, 127
        %v3761 = vshll.u32 %v3760, 23
        %v3762 = vor.u32 4788187, %v3761
        %v3763 = vand.u32 2147483647, %v3762
        %v3765 = vcvt.s32.f32 %v3758
        %v3766 = vmul.f32 %v3765, %v3763
        %v3767 = vxor.u32 %v3766, 2147483648
        %v3768 = vsel %vm3685, %v3767, %v3766
        %v3769 = vsub.s32 4, %v3745
        %v3770 = vsel %vm3685, %v3769, %v3745
        %v3771 = vsel %vm3684, %v188, %v3768
        %v3772 = vsel %vm3684, 0, %v3770
        %v3773 = vcosq.f32.pop %v3771
        %v3774 = vsinq.f32.pop %v3771
        %vm3775 = vweird.f32 %v188
        %v3776 = vadd.s32 %v3772, 3
        %v3777 = vand.u32 %v3776, 3
        %vm3778 = vcmp.lt.s32.totalorder %v3777, 2
        %vm3779 = vcmp.eq.s32.totalorder %v3777, 0
        %v3780 = vxor.u32 %v3774, 2147483648
        %v3781 = vsel %vm3779, %v3773, %v3780
        %vm3782 = vcmp.eq.s32.totalorder %v3777, 2
        %v3783 = vxor.u32 %v3773, 2147483648
        %v3784 = vsel %vm3782, %v3783, %v3774
        %v3785 = vsel %vm3778, %v3781, %v3784
        %v3786 = vsel %vm3775, nan, %v3785
        %v3787 = vand.u32 2147483647, %v189
        %vm3788 = vcmp.le.f32.partialorder %v3787, 0.7853982
        %vm3789 = vcmp.lt.s32.totalorder %v189, 0
        %v3790 = vand.u32 %v189, 2139095040
        %v3791 = vshrl.u32 %v3790, 23
        %v3792 = vsub.s32 %v3791, 127
        %v3793 = vand.u32 2147483647, %v189
        %v3794 = vand.u32 %v3793, 8388607
        %v3795 = vor.u32 %v3794, 8388608
        %v3796 = vsub.s32 0, %v3795
        %v3797 = vadd.s32 %v3792, 1
        %vm3798 = vcmp.gt.s32.totalorder %v3797, 0
        %v3799 = vsel %vm3798, %v3797, 0
        %v3800 = vshrl.u32 %v3799, 5
        %v3801 = vand.u32 %v3799, 31
        %v3802 = vsub.s32 32, %v3801
        %v3803 = vshrl.u32 683565275, %v3802
        %v3804 = vshll.u32 683565275, %v3801
        %v3805 = vshrl.u32 2475754826, %v3802
        %v3806 = vor.u32 %v3804, %v3805
        %v3807 = vshll.u32 2475754826, %v3801
        %v3808 = vshrl.u32 2131351028, %v3802
        %v3809 = vor.u32 %v3807, %v3808
        %v3810 = vshll.u32 2131351028, %v3801
        %v3811 = vshrl.u32 2102212464, %v3802
        %v3812 = vor.u32 %v3810, %v3811
        %v3813 = vshll.u32 2102212464, %v3801
        %v3814 = vshrl.u32 920167782, %v3802
        %v3815 = vor.u32 %v3813, %v3814
        %v3816 = vshll.u32 920167782, %v3801
        %v3817 = vshrl.u32 1326507024, %v3802
        %v3818 = vor.u32 %v3816, %v3817
        %vm3819 = vcmp.lt.s32.totalorder %v3800, 1
        %vm3820 = vcmp.lt.s32.totalorder %v3800, 2
        %vm3821 = vcmp.lt.s32.totalorder %v3800, 3
        %vm3822 = vcmp.lt.s32.totalorder %v3800, 4
        %v3823 = vsel %vm3819, %v3803, %v3806
        %v3824 = vsel %vm3822, %v3812, 2102212464
        %v3825 = vsel %vm3821, %v3809, %v3824
        %v3826 = vsel %vm3820, %v3823, %v3825
        %v3827 = vsel %vm3819, %v3806, %v3809
        %v3828 = vsel %vm3822, %v3815, 920167782
        %v3829 = vsel %vm3821, %v3812, %v3828
        %v3830 = vsel %vm3820, %v3827, %v3829
        %v3831 = vsel %vm3819, %v3809, %v3812
        %v3832 = vsel %vm3822, %v3818, 1326507024
        %v3833 = vsel %vm3821, %v3815, %v3832
        %v3834 = vsel %vm3820, %v3831, %v3833
        %v3835 = vshll.u32 %v3795, 8
        %v3836 = vmul.u32.u64.compose %v3835, %v3834
        %v3837 = vextract.low.u32 %v3836
        %v3838 = vextract.high.u32 %v3836
        %v3839 = vmul.u32.u64.compose %v3835, %v3830
        %v3840 = vextract.low.u32 %v3839
        %v3841 = vextract.high.u32 %v3839
        %v3842 = vmul.u32 %v3835, %v3826
        %v3843 = vadd.s32 %v3838, %v3840
        %vm3844 = vc.u32 %v3838, %v3840
        %v3845 = vadd.s32 %v3841, 1
        %v3846 = vsel %vm3844, %v3845, %v3841
        %v3847 = vadd.s32 %v3842, %v3846
        %v3848 = vadd.s32 %v3847, 536870912
        %v3849 = vshrl.u32 %v3848, 30
        %v3850 = vshll.u32 %v3849, 30
        %v3851 = vsub.s32 %v3847, %v3850
        %vm3852 = vcmp.lt.s32.totalorder %v3851, 0
        %v3853 = vsub.s32 0, %v3851
        %v3854 = vsel %vm3852, %v3853, %v3851
        %v3855 = vclz %v3854
        %v3856 = vsub.s32 %v3855, 2
        %vm3857 = vcmp.gt.s32.totalorder 0, %v3856
        %v3858 = vsel %vm3857, 0, %v3856
        %v3859 = vsub.s32 32, %v3858
        %v3860 = vshll.u32 %v3851, %v3858
        %v3861 = vshrl.u32 %v3843, %v3859
        %v3862 = vor.u32 %v3860, %v3861
        %v3863 = vsub.s32 4294967266, %v3858
        %v3864 = vadd.s32 %v3863, 127
        %v3865 = vshll.u32 %v3864, 23
        %v3866 = vor.u32 4788187, %v3865
        %v3867 = vand.u32 2147483647, %v3866
        %v3869 = vcvt.s32.f32 %v3862
        %v3870 = vmul.f32 %v3869, %v3867
        %v3871 = vxor.u32 %v3870, 2147483648
        %v3872 = vsel %vm3789, %v3871, %v3870
        %v3873 = vsub.s32 4, %v3849
        %v3874 = vsel %vm3789, %v3873, %v3849
        %v3875 = vsel %vm3788, %v189, %v3872
        %v3876 = vsel %vm3788, 0, %v3874
        %v3877 = vcosq.f32.pop %v3875
        %v3878 = vsinq.f32.pop %v3875
        %vm3879 = vweird.f32 %v189
        %v3880 = vadd.s32 %v3876, 3
        %v3881 = vand.u32 %v3880, 3
        %vm3882 = vcmp.lt.s32.totalorder %v3881, 2
        %vm3883 = vcmp.eq.s32.totalorder %v3881, 0
        %v3884 = vxor.u32 %v3878, 2147483648
        %v3885 = vsel %vm3883, %v3877, %v3884
        %vm3886 = vcmp.eq.s32.totalorder %v3881, 2
        %v3887 = vxor.u32 %v3877, 2147483648
        %v3888 = vsel %vm3886, %v3887, %v3878
        %v3889 = vsel %vm3882, %v3885, %v3888
        %v3890 = vsel %vm3879, nan, %v3889
        %v3891 = vand.u32 2147483647, %v190
        %vm3892 = vcmp.le.f32.partialorder %v3891, 0.7853982
        %vm3893 = vcmp.lt.s32.totalorder %v190, 0
        %v3894 = vand.u32 %v190, 2139095040
        %v3895 = vshrl.u32 %v3894, 23
        %v3896 = vsub.s32 %v3895, 127
        %v3897 = vand.u32 2147483647, %v190
        %v3898 = vand.u32 %v3897, 8388607
        %v3899 = vor.u32 %v3898, 8388608
        %v3900 = vsub.s32 0, %v3899
        %v3901 = vadd.s32 %v3896, 1
        %vm3902 = vcmp.gt.s32.totalorder %v3901, 0
        %v3903 = vsel %vm3902, %v3901, 0
        %v3904 = vshrl.u32 %v3903, 5
        %v3905 = vand.u32 %v3903, 31
        %v3906 = vsub.s32 32, %v3905
        %v3907 = vshrl.u32 683565275, %v3906
        %v3908 = vshll.u32 683565275, %v3905
        %v3909 = vshrl.u32 2475754826, %v3906
        %v3910 = vor.u32 %v3908, %v3909
        %v3911 = vshll.u32 2475754826, %v3905
        %v3912 = vshrl.u32 2131351028, %v3906
        %v3913 = vor.u32 %v3911, %v3912
        %v3914 = vshll.u32 2131351028, %v3905
        %v3915 = vshrl.u32 2102212464, %v3906
        %v3916 = vor.u32 %v3914, %v3915
        %v3917 = vshll.u32 2102212464, %v3905
        %v3918 = vshrl.u32 920167782, %v3906
        %v3919 = vor.u32 %v3917, %v3918
        %v3920 = vshll.u32 920167782, %v3905
        %v3921 = vshrl.u32 1326507024, %v3906
        %v3922 = vor.u32 %v3920, %v3921
        %vm3923 = vcmp.lt.s32.totalorder %v3904, 1
        %vm3924 = vcmp.lt.s32.totalorder %v3904, 2
        %vm3925 = vcmp.lt.s32.totalorder %v3904, 3
        %vm3926 = vcmp.lt.s32.totalorder %v3904, 4
        %v3927 = vsel %vm3923, %v3907, %v3910
        %v3928 = vsel %vm3926, %v3916, 2102212464
        %v3929 = vsel %vm3925, %v3913, %v3928
        %v3930 = vsel %vm3924, %v3927, %v3929
        %v3931 = vsel %vm3923, %v3910, %v3913
        %v3932 = vsel %vm3926, %v3919, 920167782
        %v3933 = vsel %vm3925, %v3916, %v3932
        %v3934 = vsel %vm3924, %v3931, %v3933
        %v3935 = vsel %vm3923, %v3913, %v3916
        %v3936 = vsel %vm3926, %v3922, 1326507024
        %v3937 = vsel %vm3925, %v3919, %v3936
        %v3938 = vsel %vm3924, %v3935, %v3937
        %v3939 = vshll.u32 %v3899, 8
        %v3940 = vmul.u32.u64.compose %v3939, %v3938
        %v3941 = vextract.low.u32 %v3940
        %v3942 = vextract.high.u32 %v3940
        %v3943 = vmul.u32.u64.compose %v3939, %v3934
        %v3944 = vextract.low.u32 %v3943
        %v3945 = vextract.high.u32 %v3943
        %v3946 = vmul.u32 %v3939, %v3930
        %v3947 = vadd.s32 %v3942, %v3944
        %vm3948 = vc.u32 %v3942, %v3944
        %v3949 = vadd.s32 %v3945, 1
        %v3950 = vsel %vm3948, %v3949, %v3945
        %v3951 = vadd.s32 %v3946, %v3950
        %v3952 = vadd.s32 %v3951, 536870912
        %v3953 = vshrl.u32 %v3952, 30
        %v3954 = vshll.u32 %v3953, 30
        %v3955 = vsub.s32 %v3951, %v3954
        %vm3956 = vcmp.lt.s32.totalorder %v3955, 0
        %v3957 = vsub.s32 0, %v3955
        %v3958 = vsel %vm3956, %v3957, %v3955
        %v3959 = vclz %v3958
        %v3960 = vsub.s32 %v3959, 2
        %vm3961 = vcmp.gt.s32.totalorder 0, %v3960
        %v3962 = vsel %vm3961, 0, %v3960
        %v3963 = vsub.s32 32, %v3962
        %v3964 = vshll.u32 %v3955, %v3962
        %v3965 = vshrl.u32 %v3947, %v3963
        %v3966 = vor.u32 %v3964, %v3965
        %v3967 = vsub.s32 4294967266, %v3962
        %v3968 = vadd.s32 %v3967, 127
        %v3969 = vshll.u32 %v3968, 23
        %v3970 = vor.u32 4788187, %v3969
        %v3971 = vand.u32 2147483647, %v3970
        %v3973 = vcvt.s32.f32 %v3966
        %v3974 = vmul.f32 %v3973, %v3971
        %v3975 = vxor.u32 %v3974, 2147483648
        %v3976 = vsel %vm3893, %v3975, %v3974
        %v3977 = vsub.s32 4, %v3953
        %v3978 = vsel %vm3893, %v3977, %v3953
        %v3979 = vsel %vm3892, %v190, %v3976
        %v3980 = vsel %vm3892, 0, %v3978
        %v3981 = vcosq.f32.pop %v3979
        %v3982 = vsinq.f32.pop %v3979
        %vm3983 = vweird.f32 %v190
        %v3984 = vadd.s32 %v3980, 3
        %v3985 = vand.u32 %v3984, 3
        %vm3986 = vcmp.lt.s32.totalorder %v3985, 2
        %vm3987 = vcmp.eq.s32.totalorder %v3985, 0
        %v3988 = vxor.u32 %v3982, 2147483648
        %v3989 = vsel %vm3987, %v3981, %v3988
        %vm3990 = vcmp.eq.s32.totalorder %v3985, 2
        %v3991 = vxor.u32 %v3981, 2147483648
        %v3992 = vsel %vm3990, %v3991, %v3982
        %v3993 = vsel %vm3986, %v3989, %v3992
        %v3994 = vsel %vm3983, nan, %v3993
        %v3995 = vand.u32 2147483647, %v191
        %vm3996 = vcmp.le.f32.partialorder %v3995, 0.7853982
        %vm3997 = vcmp.lt.s32.totalorder %v191, 0
        %v3998 = vand.u32 %v191, 2139095040
        %v3999 = vshrl.u32 %v3998, 23
        %v4000 = vsub.s32 %v3999, 127
        %v4001 = vand.u32 2147483647, %v191
        %v4002 = vand.u32 %v4001, 8388607
        %v4003 = vor.u32 %v4002, 8388608
        %v4004 = vsub.s32 0, %v4003
        %v4005 = vadd.s32 %v4000, 1
        %vm4006 = vcmp.gt.s32.totalorder %v4005, 0
        %v4007 = vsel %vm4006, %v4005, 0
        %v4008 = vshrl.u32 %v4007, 5
        %v4009 = vand.u32 %v4007, 31
        %v4010 = vsub.s32 32, %v4009
        %v4011 = vshrl.u32 683565275, %v4010
        %v4012 = vshll.u32 683565275, %v4009
        %v4013 = vshrl.u32 2475754826, %v4010
        %v4014 = vor.u32 %v4012, %v4013
        %v4015 = vshll.u32 2475754826, %v4009
        %v4016 = vshrl.u32 2131351028, %v4010
        %v4017 = vor.u32 %v4015, %v4016
        %v4018 = vshll.u32 2131351028, %v4009
        %v4019 = vshrl.u32 2102212464, %v4010
        %v4020 = vor.u32 %v4018, %v4019
        %v4021 = vshll.u32 2102212464, %v4009
        %v4022 = vshrl.u32 920167782, %v4010
        %v4023 = vor.u32 %v4021, %v4022
        %v4024 = vshll.u32 920167782, %v4009
        %v4025 = vshrl.u32 1326507024, %v4010
        %v4026 = vor.u32 %v4024, %v4025
        %vm4027 = vcmp.lt.s32.totalorder %v4008, 1
        %vm4028 = vcmp.lt.s32.totalorder %v4008, 2
        %vm4029 = vcmp.lt.s32.totalorder %v4008, 3
        %vm4030 = vcmp.lt.s32.totalorder %v4008, 4
        %v4031 = vsel %vm4027, %v4011, %v4014
        %v4032 = vsel %vm4030, %v4020, 2102212464
        %v4033 = vsel %vm4029, %v4017, %v4032
        %v4034 = vsel %vm4028, %v4031, %v4033
        %v4035 = vsel %vm4027, %v4014, %v4017
        %v4036 = vsel %vm4030, %v4023, 920167782
        %v4037 = vsel %vm4029, %v4020, %v4036
        %v4038 = vsel %vm4028, %v4035, %v4037
        %v4039 = vsel %vm4027, %v4017, %v4020
        %v4040 = vsel %vm4030, %v4026, 1326507024
        %v4041 = vsel %vm4029, %v4023, %v4040
        %v4042 = vsel %vm4028, %v4039, %v4041
        %v4043 = vshll.u32 %v4003, 8
        %v4044 = vmul.u32.u64.compose %v4043, %v4042
        %v4045 = vextract.low.u32 %v4044
        %v4046 = vextract.high.u32 %v4044
        %v4047 = vmul.u32.u64.compose %v4043, %v4038
        %v4048 = vextract.low.u32 %v4047
        %v4049 = vextract.high.u32 %v4047
        %v4050 = vmul.u32 %v4043, %v4034
        %v4051 = vadd.s32 %v4046, %v4048
        %vm4052 = vc.u32 %v4046, %v4048
        %v4053 = vadd.s32 %v4049, 1
        %v4054 = vsel %vm4052, %v4053, %v4049
        %v4055 = vadd.s32 %v4050, %v4054
        %v4056 = vadd.s32 %v4055, 536870912
        %v4057 = vshrl.u32 %v4056, 30
        %v4058 = vshll.u32 %v4057, 30
        %v4059 = vsub.s32 %v4055, %v4058
        %vm4060 = vcmp.lt.s32.totalorder %v4059, 0
        %v4061 = vsub.s32 0, %v4059
        %v4062 = vsel %vm4060, %v4061, %v4059
        %v4063 = vclz %v4062
        %v4064 = vsub.s32 %v4063, 2
        %vm4065 = vcmp.gt.s32.totalorder 0, %v4064
        %v4066 = vsel %vm4065, 0, %v4064
        %v4067 = vsub.s32 32, %v4066
        %v4068 = vshll.u32 %v4059, %v4066
        %v4069 = vshrl.u32 %v4051, %v4067
        %v4070 = vor.u32 %v4068, %v4069
        %v4071 = vsub.s32 4294967266, %v4066
        %v4072 = vadd.s32 %v4071, 127
        %v4073 = vshll.u32 %v4072, 23
        %v4074 = vor.u32 4788187, %v4073
        %v4075 = vand.u32 2147483647, %v4074
        %v4077 = vcvt.s32.f32 %v4070
        %v4078 = vmul.f32 %v4077, %v4075
        %v4079 = vxor.u32 %v4078, 2147483648
        %v4080 = vsel %vm3997, %v4079, %v4078
        %v4081 = vsub.s32 4, %v4057
        %v4082 = vsel %vm3997, %v4081, %v4057
        %v4083 = vsel %vm3996, %v191, %v4080
        %v4084 = vsel %vm3996, 0, %v4082
        %v4085 = vcosq.f32.pop %v4083
        %v4086 = vsinq.f32.pop %v4083
        %vm4087 = vweird.f32 %v191
        %v4088 = vadd.s32 %v4084, 3
        %v4089 = vand.u32 %v4088, 3
        %vm4090 = vcmp.lt.s32.totalorder %v4089, 2
        %vm4091 = vcmp.eq.s32.totalorder %v4089, 0
        %v4092 = vxor.u32 %v4086, 2147483648
        %v4093 = vsel %vm4091, %v4085, %v4092
        %vm4094 = vcmp.eq.s32.totalorder %v4089, 2
        %v4095 = vxor.u32 %v4085, 2147483648
        %v4096 = vsel %vm4094, %v4095, %v4086
        %v4097 = vsel %vm4090, %v4093, %v4096
        %v4098 = vsel %vm4087, nan, %v4097
        %v4099 = vand.u32 2147483647, %v192
        %vm4100 = vcmp.le.f32.partialorder %v4099, 0.7853982
        %vm4101 = vcmp.lt.s32.totalorder %v192, 0
        %v4102 = vand.u32 %v192, 2139095040
        %v4103 = vshrl.u32 %v4102, 23
        %v4104 = vsub.s32 %v4103, 127
        %v4105 = vand.u32 2147483647, %v192
        %v4106 = vand.u32 %v4105, 8388607
        %v4107 = vor.u32 %v4106, 8388608
        %v4108 = vsub.s32 0, %v4107
        %v4109 = vadd.s32 %v4104, 1
        %vm4110 = vcmp.gt.s32.totalorder %v4109, 0
        %v4111 = vsel %vm4110, %v4109, 0
        %v4112 = vshrl.u32 %v4111, 5
        %v4113 = vand.u32 %v4111, 31
        %v4114 = vsub.s32 32, %v4113
        %v4115 = vshrl.u32 683565275, %v4114
        %v4116 = vshll.u32 683565275, %v4113
        %v4117 = vshrl.u32 2475754826, %v4114
        %v4118 = vor.u32 %v4116, %v4117
        %v4119 = vshll.u32 2475754826, %v4113
        %v4120 = vshrl.u32 2131351028, %v4114
        %v4121 = vor.u32 %v4119, %v4120
        %v4122 = vshll.u32 2131351028, %v4113
        %v4123 = vshrl.u32 2102212464, %v4114
        %v4124 = vor.u32 %v4122, %v4123
        %v4125 = vshll.u32 2102212464, %v4113
        %v4126 = vshrl.u32 920167782, %v4114
        %v4127 = vor.u32 %v4125, %v4126
        %v4128 = vshll.u32 920167782, %v4113
        %v4129 = vshrl.u32 1326507024, %v4114
        %v4130 = vor.u32 %v4128, %v4129
        %vm4131 = vcmp.lt.s32.totalorder %v4112, 1
        %vm4132 = vcmp.lt.s32.totalorder %v4112, 2
        %vm4133 = vcmp.lt.s32.totalorder %v4112, 3
        %vm4134 = vcmp.lt.s32.totalorder %v4112, 4
        %v4135 = vsel %vm4131, %v4115, %v4118
        %v4136 = vsel %vm4134, %v4124, 2102212464
        %v4137 = vsel %vm4133, %v4121, %v4136
        %v4138 = vsel %vm4132, %v4135, %v4137
        %v4139 = vsel %vm4131, %v4118, %v4121
        %v4140 = vsel %vm4134, %v4127, 920167782
        %v4141 = vsel %vm4133, %v4124, %v4140
        %v4142 = vsel %vm4132, %v4139, %v4141
        %v4143 = vsel %vm4131, %v4121, %v4124
        %v4144 = vsel %vm4134, %v4130, 1326507024
        %v4145 = vsel %vm4133, %v4127, %v4144
        %v4146 = vsel %vm4132, %v4143, %v4145
        %v4147 = vshll.u32 %v4107, 8
        %v4148 = vmul.u32.u64.compose %v4147, %v4146
        %v4149 = vextract.low.u32 %v4148
        %v4150 = vextract.high.u32 %v4148
        %v4151 = vmul.u32.u64.compose %v4147, %v4142
        %v4152 = vextract.low.u32 %v4151
        %v4153 = vextract.high.u32 %v4151
        %v4154 = vmul.u32 %v4147, %v4138
        %v4155 = vadd.s32 %v4150, %v4152
        %vm4156 = vc.u32 %v4150, %v4152
        %v4157 = vadd.s32 %v4153, 1
        %v4158 = vsel %vm4156, %v4157, %v4153
        %v4159 = vadd.s32 %v4154, %v4158
        %v4160 = vadd.s32 %v4159, 536870912
        %v4161 = vshrl.u32 %v4160, 30
        %v4162 = vshll.u32 %v4161, 30
        %v4163 = vsub.s32 %v4159, %v4162
        %vm4164 = vcmp.lt.s32.totalorder %v4163, 0
        %v4165 = vsub.s32 0, %v4163
        %v4166 = vsel %vm4164, %v4165, %v4163
        %v4167 = vclz %v4166
        %v4168 = vsub.s32 %v4167, 2
        %vm4169 = vcmp.gt.s32.totalorder 0, %v4168
        %v4170 = vsel %vm4169, 0, %v4168
        %v4171 = vsub.s32 32, %v4170
        %v4172 = vshll.u32 %v4163, %v4170
        %v4173 = vshrl.u32 %v4155, %v4171
        %v4174 = vor.u32 %v4172, %v4173
        %v4175 = vsub.s32 4294967266, %v4170
        %v4176 = vadd.s32 %v4175, 127
        %v4177 = vshll.u32 %v4176, 23
        %v4178 = vor.u32 4788187, %v4177
        %v4179 = vand.u32 2147483647, %v4178
        %v4181 = vcvt.s32.f32 %v4174
        %v4182 = vmul.f32 %v4181, %v4179
        %v4183 = vxor.u32 %v4182, 2147483648
        %v4184 = vsel %vm4101, %v4183, %v4182
        %v4185 = vsub.s32 4, %v4161
        %v4186 = vsel %vm4101, %v4185, %v4161
        %v4187 = vsel %vm4100, %v192, %v4184
        %v4188 = vsel %vm4100, 0, %v4186
        %v4189 = vcosq.f32.pop %v4187
        %v4190 = vsinq.f32.pop %v4187
        %vm4191 = vweird.f32 %v192
        %v4192 = vadd.s32 %v4188, 3
        %v4193 = vand.u32 %v4192, 3
        %vm4194 = vcmp.lt.s32.totalorder %v4193, 2
        %vm4195 = vcmp.eq.s32.totalorder %v4193, 0
        %v4196 = vxor.u32 %v4190, 2147483648
        %v4197 = vsel %vm4195, %v4189, %v4196
        %vm4198 = vcmp.eq.s32.totalorder %v4193, 2
        %v4199 = vxor.u32 %v4189, 2147483648
        %v4200 = vsel %vm4198, %v4199, %v4190
        %v4201 = vsel %vm4194, %v4197, %v4200
        %v4202 = vsel %vm4191, nan, %v4201
        %v4203 = vand.u32 2147483647, %v193
        %vm4204 = vcmp.le.f32.partialorder %v4203, 0.7853982
        %vm4205 = vcmp.lt.s32.totalorder %v193, 0
        %v4206 = vand.u32 %v193, 2139095040
        %v4207 = vshrl.u32 %v4206, 23
        %v4208 = vsub.s32 %v4207, 127
        %v4209 = vand.u32 2147483647, %v193
        %v4210 = vand.u32 %v4209, 8388607
        %v4211 = vor.u32 %v4210, 8388608
        %v4212 = vsub.s32 0, %v4211
        %v4213 = vadd.s32 %v4208, 1
        %vm4214 = vcmp.gt.s32.totalorder %v4213, 0
        %v4215 = vsel %vm4214, %v4213, 0
        %v4216 = vshrl.u32 %v4215, 5
        %v4217 = vand.u32 %v4215, 31
        %v4218 = vsub.s32 32, %v4217
        %v4219 = vshrl.u32 683565275, %v4218
        %v4220 = vshll.u32 683565275, %v4217
        %v4221 = vshrl.u32 2475754826, %v4218
        %v4222 = vor.u32 %v4220, %v4221
        %v4223 = vshll.u32 2475754826, %v4217
        %v4224 = vshrl.u32 2131351028, %v4218
        %v4225 = vor.u32 %v4223, %v4224
        %v4226 = vshll.u32 2131351028, %v4217
        %v4227 = vshrl.u32 2102212464, %v4218
        %v4228 = vor.u32 %v4226, %v4227
        %v4229 = vshll.u32 2102212464, %v4217
        %v4230 = vshrl.u32 920167782, %v4218
        %v4231 = vor.u32 %v4229, %v4230
        %v4232 = vshll.u32 920167782, %v4217
        %v4233 = vshrl.u32 1326507024, %v4218
        %v4234 = vor.u32 %v4232, %v4233
        %vm4235 = vcmp.lt.s32.totalorder %v4216, 1
        %vm4236 = vcmp.lt.s32.totalorder %v4216, 2
        %vm4237 = vcmp.lt.s32.totalorder %v4216, 3
        %vm4238 = vcmp.lt.s32.totalorder %v4216, 4
        %v4239 = vsel %vm4235, %v4219, %v4222
        %v4240 = vsel %vm4238, %v4228, 2102212464
        %v4241 = vsel %vm4237, %v4225, %v4240
        %v4242 = vsel %vm4236, %v4239, %v4241
        %v4243 = vsel %vm4235, %v4222, %v4225
        %v4244 = vsel %vm4238, %v4231, 920167782
        %v4245 = vsel %vm4237, %v4228, %v4244
        %v4246 = vsel %vm4236, %v4243, %v4245
        %v4247 = vsel %vm4235, %v4225, %v4228
        %v4248 = vsel %vm4238, %v4234, 1326507024
        %v4249 = vsel %vm4237, %v4231, %v4248
        %v4250 = vsel %vm4236, %v4247, %v4249
        %v4251 = vshll.u32 %v4211, 8
        %v4252 = vmul.u32.u64.compose %v4251, %v4250
        %v4253 = vextract.low.u32 %v4252
        %v4254 = vextract.high.u32 %v4252
        %v4255 = vmul.u32.u64.compose %v4251, %v4246
        %v4256 = vextract.low.u32 %v4255
        %v4257 = vextract.high.u32 %v4255
        %v4258 = vmul.u32 %v4251, %v4242
        %v4259 = vadd.s32 %v4254, %v4256
        %vm4260 = vc.u32 %v4254, %v4256
        %v4261 = vadd.s32 %v4257, 1
        %v4262 = vsel %vm4260, %v4261, %v4257
        %v4263 = vadd.s32 %v4258, %v4262
        %v4264 = vadd.s32 %v4263, 536870912
        %v4265 = vshrl.u32 %v4264, 30
        %v4266 = vshll.u32 %v4265, 30
        %v4267 = vsub.s32 %v4263, %v4266
        %vm4268 = vcmp.lt.s32.totalorder %v4267, 0
        %v4269 = vsub.s32 0, %v4267
        %v4270 = vsel %vm4268, %v4269, %v4267
        %v4271 = vclz %v4270
        %v4272 = vsub.s32 %v4271, 2
        %vm4273 = vcmp.gt.s32.totalorder 0, %v4272
        %v4274 = vsel %vm4273, 0, %v4272
        %v4275 = vsub.s32 32, %v4274
        %v4276 = vshll.u32 %v4267, %v4274
        %v4277 = vshrl.u32 %v4259, %v4275
        %v4278 = vor.u32 %v4276, %v4277
        %v4279 = vsub.s32 4294967266, %v4274
        %v4280 = vadd.s32 %v4279, 127
        %v4281 = vshll.u32 %v4280, 23
        %v4282 = vor.u32 4788187, %v4281
        %v4283 = vand.u32 2147483647, %v4282
        %v4285 = vcvt.s32.f32 %v4278
        %v4286 = vmul.f32 %v4285, %v4283
        %v4287 = vxor.u32 %v4286, 2147483648
        %v4288 = vsel %vm4205, %v4287, %v4286
        %v4289 = vsub.s32 4, %v4265
        %v4290 = vsel %vm4205, %v4289, %v4265
        %v4291 = vsel %vm4204, %v193, %v4288
        %v4292 = vsel %vm4204, 0, %v4290
        %v4293 = vcosq.f32.pop %v4291
        %v4294 = vsinq.f32.pop %v4291
        %vm4295 = vweird.f32 %v193
        %v4296 = vadd.s32 %v4292, 3
        %v4297 = vand.u32 %v4296, 3
        %vm4298 = vcmp.lt.s32.totalorder %v4297, 2
        %vm4299 = vcmp.eq.s32.totalorder %v4297, 0
        %v4300 = vxor.u32 %v4294, 2147483648
        %v4301 = vsel %vm4299, %v4293, %v4300
        %vm4302 = vcmp.eq.s32.totalorder %v4297, 2
        %v4303 = vxor.u32 %v4293, 2147483648
        %v4304 = vsel %vm4302, %v4303, %v4294
        %v4305 = vsel %vm4298, %v4301, %v4304
        %v4306 = vsel %vm4295, nan, %v4305
        %v4307 = vand.u32 2147483647, %v194
        %vm4308 = vcmp.le.f32.partialorder %v4307, 0.7853982
        %vm4309 = vcmp.lt.s32.totalorder %v194, 0
        %v4310 = vand.u32 %v194, 2139095040
        %v4311 = vshrl.u32 %v4310, 23
        %v4312 = vsub.s32 %v4311, 127
        %v4313 = vand.u32 2147483647, %v194
        %v4314 = vand.u32 %v4313, 8388607
        %v4315 = vor.u32 %v4314, 8388608
        %v4316 = vsub.s32 0, %v4315
        %v4317 = vadd.s32 %v4312, 1
        %vm4318 = vcmp.gt.s32.totalorder %v4317, 0
        %v4319 = vsel %vm4318, %v4317, 0
        %v4320 = vshrl.u32 %v4319, 5
        %v4321 = vand.u32 %v4319, 31
        %v4322 = vsub.s32 32, %v4321
        %v4323 = vshrl.u32 683565275, %v4322
        %v4324 = vshll.u32 683565275, %v4321
        %v4325 = vshrl.u32 2475754826, %v4322
        %v4326 = vor.u32 %v4324, %v4325
        %v4327 = vshll.u32 2475754826, %v4321
        %v4328 = vshrl.u32 2131351028, %v4322
        %v4329 = vor.u32 %v4327, %v4328
        %v4330 = vshll.u32 2131351028, %v4321
        %v4331 = vshrl.u32 2102212464, %v4322
        %v4332 = vor.u32 %v4330, %v4331
        %v4333 = vshll.u32 2102212464, %v4321
        %v4334 = vshrl.u32 920167782, %v4322
        %v4335 = vor.u32 %v4333, %v4334
        %v4336 = vshll.u32 920167782, %v4321
        %v4337 = vshrl.u32 1326507024, %v4322
        %v4338 = vor.u32 %v4336, %v4337
        %vm4339 = vcmp.lt.s32.totalorder %v4320, 1
        %vm4340 = vcmp.lt.s32.totalorder %v4320, 2
        %vm4341 = vcmp.lt.s32.totalorder %v4320, 3
        %vm4342 = vcmp.lt.s32.totalorder %v4320, 4
        %v4343 = vsel %vm4339, %v4323, %v4326
        %v4344 = vsel %vm4342, %v4332, 2102212464
        %v4345 = vsel %vm4341, %v4329, %v4344
        %v4346 = vsel %vm4340, %v4343, %v4345
        %v4347 = vsel %vm4339, %v4326, %v4329
        %v4348 = vsel %vm4342, %v4335, 920167782
        %v4349 = vsel %vm4341, %v4332, %v4348
        %v4350 = vsel %vm4340, %v4347, %v4349
        %v4351 = vsel %vm4339, %v4329, %v4332
        %v4352 = vsel %vm4342, %v4338, 1326507024
        %v4353 = vsel %vm4341, %v4335, %v4352
        %v4354 = vsel %vm4340, %v4351, %v4353
        %v4355 = vshll.u32 %v4315, 8
        %v4356 = vmul.u32.u64.compose %v4355, %v4354
        %v4357 = vextract.low.u32 %v4356
        %v4358 = vextract.high.u32 %v4356
        %v4359 = vmul.u32.u64.compose %v4355, %v4350
        %v4360 = vextract.low.u32 %v4359
        %v4361 = vextract.high.u32 %v4359
        %v4362 = vmul.u32 %v4355, %v4346
        %v4363 = vadd.s32 %v4358, %v4360
        %vm4364 = vc.u32 %v4358, %v4360
        %v4365 = vadd.s32 %v4361, 1
        %v4366 = vsel %vm4364, %v4365, %v4361
        %v4367 = vadd.s32 %v4362, %v4366
        %v4368 = vadd.s32 %v4367, 536870912
        %v4369 = vshrl.u32 %v4368, 30
        %v4370 = vshll.u32 %v4369, 30
        %v4371 = vsub.s32 %v4367, %v4370
        %vm4372 = vcmp.lt.s32.totalorder %v4371, 0
        %v4373 = vsub.s32 0, %v4371
        %v4374 = vsel %vm4372, %v4373, %v4371
        %v4375 = vclz %v4374
        %v4376 = vsub.s32 %v4375, 2
        %vm4377 = vcmp.gt.s32.totalorder 0, %v4376
        %v4378 = vsel %vm4377, 0, %v4376
        %v4379 = vsub.s32 32, %v4378
        %v4380 = vshll.u32 %v4371, %v4378
        %v4381 = vshrl.u32 %v4363, %v4379
        %v4382 = vor.u32 %v4380, %v4381
        %v4383 = vsub.s32 4294967266, %v4378
        %v4384 = vadd.s32 %v4383, 127
        %v4385 = vshll.u32 %v4384, 23
        %v4386 = vor.u32 4788187, %v4385
        %v4387 = vand.u32 2147483647, %v4386
        %v4389 = vcvt.s32.f32 %v4382
        %v4390 = vmul.f32 %v4389, %v4387
        %v4391 = vxor.u32 %v4390, 2147483648
        %v4392 = vsel %vm4309, %v4391, %v4390
        %v4393 = vsub.s32 4, %v4369
        %v4394 = vsel %vm4309, %v4393, %v4369
        %v4395 = vsel %vm4308, %v194, %v4392
        %v4396 = vsel %vm4308, 0, %v4394
        %v4397 = vcosq.f32.pop %v4395
        %v4398 = vsinq.f32.pop %v4395
        %vm4399 = vweird.f32 %v194
        %v4400 = vadd.s32 %v4396, 3
        %v4401 = vand.u32 %v4400, 3
        %vm4402 = vcmp.lt.s32.totalorder %v4401, 2
        %vm4403 = vcmp.eq.s32.totalorder %v4401, 0
        %v4404 = vxor.u32 %v4398, 2147483648
        %v4405 = vsel %vm4403, %v4397, %v4404
        %vm4406 = vcmp.eq.s32.totalorder %v4401, 2
        %v4407 = vxor.u32 %v4397, 2147483648
        %v4408 = vsel %vm4406, %v4407, %v4398
        %v4409 = vsel %vm4402, %v4405, %v4408
        %v4410 = vsel %vm4399, nan, %v4409
        %v4411 = vand.u32 2147483647, %v195
        %vm4412 = vcmp.le.f32.partialorder %v4411, 0.7853982
        %vm4413 = vcmp.lt.s32.totalorder %v195, 0
        %v4414 = vand.u32 %v195, 2139095040
        %v4415 = vshrl.u32 %v4414, 23
        %v4416 = vsub.s32 %v4415, 127
        %v4417 = vand.u32 2147483647, %v195
        %v4418 = vand.u32 %v4417, 8388607
        %v4419 = vor.u32 %v4418, 8388608
        %v4420 = vsub.s32 0, %v4419
        %v4421 = vadd.s32 %v4416, 1
        %vm4422 = vcmp.gt.s32.totalorder %v4421, 0
        %v4423 = vsel %vm4422, %v4421, 0
        %v4424 = vshrl.u32 %v4423, 5
        %v4425 = vand.u32 %v4423, 31
        %v4426 = vsub.s32 32, %v4425
        %v4427 = vshrl.u32 683565275, %v4426
        %v4428 = vshll.u32 683565275, %v4425
        %v4429 = vshrl.u32 2475754826, %v4426
        %v4430 = vor.u32 %v4428, %v4429
        %v4431 = vshll.u32 2475754826, %v4425
        %v4432 = vshrl.u32 2131351028, %v4426
        %v4433 = vor.u32 %v4431, %v4432
        %v4434 = vshll.u32 2131351028, %v4425
        %v4435 = vshrl.u32 2102212464, %v4426
        %v4436 = vor.u32 %v4434, %v4435
        %v4437 = vshll.u32 2102212464, %v4425
        %v4438 = vshrl.u32 920167782, %v4426
        %v4439 = vor.u32 %v4437, %v4438
        %v4440 = vshll.u32 920167782, %v4425
        %v4441 = vshrl.u32 1326507024, %v4426
        %v4442 = vor.u32 %v4440, %v4441
        %vm4443 = vcmp.lt.s32.totalorder %v4424, 1
        %vm4444 = vcmp.lt.s32.totalorder %v4424, 2
        %vm4445 = vcmp.lt.s32.totalorder %v4424, 3
        %vm4446 = vcmp.lt.s32.totalorder %v4424, 4
        %v4447 = vsel %vm4443, %v4427, %v4430
        %v4448 = vsel %vm4446, %v4436, 2102212464
        %v4449 = vsel %vm4445, %v4433, %v4448
        %v4450 = vsel %vm4444, %v4447, %v4449
        %v4451 = vsel %vm4443, %v4430, %v4433
        %v4452 = vsel %vm4446, %v4439, 920167782
        %v4453 = vsel %vm4445, %v4436, %v4452
        %v4454 = vsel %vm4444, %v4451, %v4453
        %v4455 = vsel %vm4443, %v4433, %v4436
        %v4456 = vsel %vm4446, %v4442, 1326507024
        %v4457 = vsel %vm4445, %v4439, %v4456
        %v4458 = vsel %vm4444, %v4455, %v4457
        %v4459 = vshll.u32 %v4419, 8
        %v4460 = vmul.u32.u64.compose %v4459, %v4458
        %v4461 = vextract.low.u32 %v4460
        %v4462 = vextract.high.u32 %v4460
        %v4463 = vmul.u32.u64.compose %v4459, %v4454
        %v4464 = vextract.low.u32 %v4463
        %v4465 = vextract.high.u32 %v4463
        %v4466 = vmul.u32 %v4459, %v4450
        %v4467 = vadd.s32 %v4462, %v4464
        %vm4468 = vc.u32 %v4462, %v4464
        %v4469 = vadd.s32 %v4465, 1
        %v4470 = vsel %vm4468, %v4469, %v4465
        %v4471 = vadd.s32 %v4466, %v4470
        %v4472 = vadd.s32 %v4471, 536870912
        %v4473 = vshrl.u32 %v4472, 30
        %v4474 = vshll.u32 %v4473, 30
        %v4475 = vsub.s32 %v4471, %v4474
        %vm4476 = vcmp.lt.s32.totalorder %v4475, 0
        %v4477 = vsub.s32 0, %v4475
        %v4478 = vsel %vm4476, %v4477, %v4475
        %v4479 = vclz %v4478
        %v4480 = vsub.s32 %v4479, 2
        %vm4481 = vcmp.gt.s32.totalorder 0, %v4480
        %v4482 = vsel %vm4481, 0, %v4480
        %v4483 = vsub.s32 32, %v4482
        %v4484 = vshll.u32 %v4475, %v4482
        %v4485 = vshrl.u32 %v4467, %v4483
        %v4486 = vor.u32 %v4484, %v4485
        %v4487 = vsub.s32 4294967266, %v4482
        %v4488 = vadd.s32 %v4487, 127
        %v4489 = vshll.u32 %v4488, 23
        %v4490 = vor.u32 4788187, %v4489
        %v4491 = vand.u32 2147483647, %v4490
        %v4493 = vcvt.s32.f32 %v4486
        %v4494 = vmul.f32 %v4493, %v4491
        %v4495 = vxor.u32 %v4494, 2147483648
        %v4496 = vsel %vm4413, %v4495, %v4494
        %v4497 = vsub.s32 4, %v4473
        %v4498 = vsel %vm4413, %v4497, %v4473
        %v4499 = vsel %vm4412, %v195, %v4496
        %v4500 = vsel %vm4412, 0, %v4498
        %v4501 = vcosq.f32.pop %v4499
        %v4502 = vsinq.f32.pop %v4499
        %vm4503 = vweird.f32 %v195
        %v4504 = vadd.s32 %v4500, 3
        %v4505 = vand.u32 %v4504, 3
        %vm4506 = vcmp.lt.s32.totalorder %v4505, 2
        %vm4507 = vcmp.eq.s32.totalorder %v4505, 0
        %v4508 = vxor.u32 %v4502, 2147483648
        %v4509 = vsel %vm4507, %v4501, %v4508
        %vm4510 = vcmp.eq.s32.totalorder %v4505, 2
        %v4511 = vxor.u32 %v4501, 2147483648
        %v4512 = vsel %vm4510, %v4511, %v4502
        %v4513 = vsel %vm4506, %v4509, %v4512
        %v4514 = vsel %vm4503, nan, %v4513
        %v4515 = vand.u32 2147483647, %v196
        %vm4516 = vcmp.le.f32.partialorder %v4515, 0.7853982
        %vm4517 = vcmp.lt.s32.totalorder %v196, 0
        %v4518 = vand.u32 %v196, 2139095040
        %v4519 = vshrl.u32 %v4518, 23
        %v4520 = vsub.s32 %v4519, 127
        %v4521 = vand.u32 2147483647, %v196
        %v4522 = vand.u32 %v4521, 8388607
        %v4523 = vor.u32 %v4522, 8388608
        %v4524 = vsub.s32 0, %v4523
        %v4525 = vadd.s32 %v4520, 1
        %vm4526 = vcmp.gt.s32.totalorder %v4525, 0
        %v4527 = vsel %vm4526, %v4525, 0
        %v4528 = vshrl.u32 %v4527, 5
        %v4529 = vand.u32 %v4527, 31
        %v4530 = vsub.s32 32, %v4529
        %v4531 = vshrl.u32 683565275, %v4530
        %v4532 = vshll.u32 683565275, %v4529
        %v4533 = vshrl.u32 2475754826, %v4530
        %v4534 = vor.u32 %v4532, %v4533
        %v4535 = vshll.u32 2475754826, %v4529
        %v4536 = vshrl.u32 2131351028, %v4530
        %v4537 = vor.u32 %v4535, %v4536
        %v4538 = vshll.u32 2131351028, %v4529
        %v4539 = vshrl.u32 2102212464, %v4530
        %v4540 = vor.u32 %v4538, %v4539
        %v4541 = vshll.u32 2102212464, %v4529
        %v4542 = vshrl.u32 920167782, %v4530
        %v4543 = vor.u32 %v4541, %v4542
        %v4544 = vshll.u32 920167782, %v4529
        %v4545 = vshrl.u32 1326507024, %v4530
        %v4546 = vor.u32 %v4544, %v4545
        %vm4547 = vcmp.lt.s32.totalorder %v4528, 1
        %vm4548 = vcmp.lt.s32.totalorder %v4528, 2
        %vm4549 = vcmp.lt.s32.totalorder %v4528, 3
        %vm4550 = vcmp.lt.s32.totalorder %v4528, 4
        %v4551 = vsel %vm4547, %v4531, %v4534
        %v4552 = vsel %vm4550, %v4540, 2102212464
        %v4553 = vsel %vm4549, %v4537, %v4552
        %v4554 = vsel %vm4548, %v4551, %v4553
        %v4555 = vsel %vm4547, %v4534, %v4537
        %v4556 = vsel %vm4550, %v4543, 920167782
        %v4557 = vsel %vm4549, %v4540, %v4556
        %v4558 = vsel %vm4548, %v4555, %v4557
        %v4559 = vsel %vm4547, %v4537, %v4540
        %v4560 = vsel %vm4550, %v4546, 1326507024
        %v4561 = vsel %vm4549, %v4543, %v4560
        %v4562 = vsel %vm4548, %v4559, %v4561
        %v4563 = vshll.u32 %v4523, 8
        %v4564 = vmul.u32.u64.compose %v4563, %v4562
        %v4565 = vextract.low.u32 %v4564
        %v4566 = vextract.high.u32 %v4564
        %v4567 = vmul.u32.u64.compose %v4563, %v4558
        %v4568 = vextract.low.u32 %v4567
        %v4569 = vextract.high.u32 %v4567
        %v4570 = vmul.u32 %v4563, %v4554
        %v4571 = vadd.s32 %v4566, %v4568
        %vm4572 = vc.u32 %v4566, %v4568
        %v4573 = vadd.s32 %v4569, 1
        %v4574 = vsel %vm4572, %v4573, %v4569
        %v4575 = vadd.s32 %v4570, %v4574
        %v4576 = vadd.s32 %v4575, 536870912
        %v4577 = vshrl.u32 %v4576, 30
        %v4578 = vshll.u32 %v4577, 30
        %v4579 = vsub.s32 %v4575, %v4578
        %vm4580 = vcmp.lt.s32.totalorder %v4579, 0
        %v4581 = vsub.s32 0, %v4579
        %v4582 = vsel %vm4580, %v4581, %v4579
        %v4583 = vclz %v4582
        %v4584 = vsub.s32 %v4583, 2
        %vm4585 = vcmp.gt.s32.totalorder 0, %v4584
        %v4586 = vsel %vm4585, 0, %v4584
        %v4587 = vsub.s32 32, %v4586
        %v4588 = vshll.u32 %v4579, %v4586
        %v4589 = vshrl.u32 %v4571, %v4587
        %v4590 = vor.u32 %v4588, %v4589
        %v4591 = vsub.s32 4294967266, %v4586
        %v4592 = vadd.s32 %v4591, 127
        %v4593 = vshll.u32 %v4592, 23
        %v4594 = vor.u32 4788187, %v4593
        %v4595 = vand.u32 2147483647, %v4594
        %v4597 = vcvt.s32.f32 %v4590
        %v4598 = vmul.f32 %v4597, %v4595
        %v4599 = vxor.u32 %v4598, 2147483648
        %v4600 = vsel %vm4517, %v4599, %v4598
        %v4601 = vsub.s32 4, %v4577
        %v4602 = vsel %vm4517, %v4601, %v4577
        %v4603 = vsel %vm4516, %v196, %v4600
        %v4604 = vsel %vm4516, 0, %v4602
        %v4605 = vcosq.f32.pop %v4603
        %v4606 = vsinq.f32.pop %v4603
        %vm4607 = vweird.f32 %v196
        %v4608 = vadd.s32 %v4604, 3
        %v4609 = vand.u32 %v4608, 3
        %vm4610 = vcmp.lt.s32.totalorder %v4609, 2
        %vm4611 = vcmp.eq.s32.totalorder %v4609, 0
        %v4612 = vxor.u32 %v4606, 2147483648
        %v4613 = vsel %vm4611, %v4605, %v4612
        %vm4614 = vcmp.eq.s32.totalorder %v4609, 2
        %v4615 = vxor.u32 %v4605, 2147483648
        %v4616 = vsel %vm4614, %v4615, %v4606
        %v4617 = vsel %vm4610, %v4613, %v4616
        %v4618 = vsel %vm4607, nan, %v4617
        %v4619 = vand.u32 2147483647, %v197
        %vm4620 = vcmp.le.f32.partialorder %v4619, 0.7853982
        %vm4621 = vcmp.lt.s32.totalorder %v197, 0
        %v4622 = vand.u32 %v197, 2139095040
        %v4623 = vshrl.u32 %v4622, 23
        %v4624 = vsub.s32 %v4623, 127
        %v4625 = vand.u32 2147483647, %v197
        %v4626 = vand.u32 %v4625, 8388607
        %v4627 = vor.u32 %v4626, 8388608
        %v4628 = vsub.s32 0, %v4627
        %v4629 = vadd.s32 %v4624, 1
        %vm4630 = vcmp.gt.s32.totalorder %v4629, 0
        %v4631 = vsel %vm4630, %v4629, 0
        %v4632 = vshrl.u32 %v4631, 5
        %v4633 = vand.u32 %v4631, 31
        %v4634 = vsub.s32 32, %v4633
        %v4635 = vshrl.u32 683565275, %v4634
        %v4636 = vshll.u32 683565275, %v4633
        %v4637 = vshrl.u32 2475754826, %v4634
        %v4638 = vor.u32 %v4636, %v4637
        %v4639 = vshll.u32 2475754826, %v4633
        %v4640 = vshrl.u32 2131351028, %v4634
        %v4641 = vor.u32 %v4639, %v4640
        %v4642 = vshll.u32 2131351028, %v4633
        %v4643 = vshrl.u32 2102212464, %v4634
        %v4644 = vor.u32 %v4642, %v4643
        %v4645 = vshll.u32 2102212464, %v4633
        %v4646 = vshrl.u32 920167782, %v4634
        %v4647 = vor.u32 %v4645, %v4646
        %v4648 = vshll.u32 920167782, %v4633
        %v4649 = vshrl.u32 1326507024, %v4634
        %v4650 = vor.u32 %v4648, %v4649
        %vm4651 = vcmp.lt.s32.totalorder %v4632, 1
        %vm4652 = vcmp.lt.s32.totalorder %v4632, 2
        %vm4653 = vcmp.lt.s32.totalorder %v4632, 3
        %vm4654 = vcmp.lt.s32.totalorder %v4632, 4
        %v4655 = vsel %vm4651, %v4635, %v4638
        %v4656 = vsel %vm4654, %v4644, 2102212464
        %v4657 = vsel %vm4653, %v4641, %v4656
        %v4658 = vsel %vm4652, %v4655, %v4657
        %v4659 = vsel %vm4651, %v4638, %v4641
        %v4660 = vsel %vm4654, %v4647, 920167782
        %v4661 = vsel %vm4653, %v4644, %v4660
        %v4662 = vsel %vm4652, %v4659, %v4661
        %v4663 = vsel %vm4651, %v4641, %v4644
        %v4664 = vsel %vm4654, %v4650, 1326507024
        %v4665 = vsel %vm4653, %v4647, %v4664
        %v4666 = vsel %vm4652, %v4663, %v4665
        %v4667 = vshll.u32 %v4627, 8
        %v4668 = vmul.u32.u64.compose %v4667, %v4666
        %v4669 = vextract.low.u32 %v4668
        %v4670 = vextract.high.u32 %v4668
        %v4671 = vmul.u32.u64.compose %v4667, %v4662
        %v4672 = vextract.low.u32 %v4671
        %v4673 = vextract.high.u32 %v4671
        %v4674 = vmul.u32 %v4667, %v4658
        %v4675 = vadd.s32 %v4670, %v4672
        %vm4676 = vc.u32 %v4670, %v4672
        %v4677 = vadd.s32 %v4673, 1
        %v4678 = vsel %vm4676, %v4677, %v4673
        %v4679 = vadd.s32 %v4674, %v4678
        %v4680 = vadd.s32 %v4679, 536870912
        %v4681 = vshrl.u32 %v4680, 30
        %v4682 = vshll.u32 %v4681, 30
        %v4683 = vsub.s32 %v4679, %v4682
        %vm4684 = vcmp.lt.s32.totalorder %v4683, 0
        %v4685 = vsub.s32 0, %v4683
        %v4686 = vsel %vm4684, %v4685, %v4683
        %v4687 = vclz %v4686
        %v4688 = vsub.s32 %v4687, 2
        %vm4689 = vcmp.gt.s32.totalorder 0, %v4688
        %v4690 = vsel %vm4689, 0, %v4688
        %v4691 = vsub.s32 32, %v4690
        %v4692 = vshll.u32 %v4683, %v4690
        %v4693 = vshrl.u32 %v4675, %v4691
        %v4694 = vor.u32 %v4692, %v4693
        %v4695 = vsub.s32 4294967266, %v4690
        %v4696 = vadd.s32 %v4695, 127
        %v4697 = vshll.u32 %v4696, 23
        %v4698 = vor.u32 4788187, %v4697
        %v4699 = vand.u32 2147483647, %v4698
        %v4701 = vcvt.s32.f32 %v4694
        %v4702 = vmul.f32 %v4701, %v4699
        %v4703 = vxor.u32 %v4702, 2147483648
        %v4704 = vsel %vm4621, %v4703, %v4702
        %v4705 = vsub.s32 4, %v4681
        %v4706 = vsel %vm4621, %v4705, %v4681
        %v4707 = vsel %vm4620, %v197, %v4704
        %v4708 = vsel %vm4620, 0, %v4706
        %v4709 = vcosq.f32.pop %v4707
        %v4710 = vsinq.f32.pop %v4707
        %vm4711 = vweird.f32 %v197
        %v4712 = vadd.s32 %v4708, 3
        %v4713 = vand.u32 %v4712, 3
        %vm4714 = vcmp.lt.s32.totalorder %v4713, 2
        %vm4715 = vcmp.eq.s32.totalorder %v4713, 0
        %v4716 = vxor.u32 %v4710, 2147483648
        %v4717 = vsel %vm4715, %v4709, %v4716
        %vm4718 = vcmp.eq.s32.totalorder %v4713, 2
        %v4719 = vxor.u32 %v4709, 2147483648
        %v4720 = vsel %vm4718, %v4719, %v4710
        %v4721 = vsel %vm4714, %v4717, %v4720
        %v4722 = vsel %vm4711, nan, %v4721
        %v4723 = vand.u32 2147483647, %v198
        %vm4724 = vcmp.le.f32.partialorder %v4723, 0.7853982
        %vm4725 = vcmp.lt.s32.totalorder %v198, 0
        %v4726 = vand.u32 %v198, 2139095040
        %v4727 = vshrl.u32 %v4726, 23
        %v4728 = vsub.s32 %v4727, 127
        %v4729 = vand.u32 2147483647, %v198
        %v4730 = vand.u32 %v4729, 8388607
        %v4731 = vor.u32 %v4730, 8388608
        %v4732 = vsub.s32 0, %v4731
        %v4733 = vadd.s32 %v4728, 1
        %vm4734 = vcmp.gt.s32.totalorder %v4733, 0
        %v4735 = vsel %vm4734, %v4733, 0
        %v4736 = vshrl.u32 %v4735, 5
        %v4737 = vand.u32 %v4735, 31
        %v4738 = vsub.s32 32, %v4737
        %v4739 = vshrl.u32 683565275, %v4738
        %v4740 = vshll.u32 683565275, %v4737
        %v4741 = vshrl.u32 2475754826, %v4738
        %v4742 = vor.u32 %v4740, %v4741
        %v4743 = vshll.u32 2475754826, %v4737
        %v4744 = vshrl.u32 2131351028, %v4738
        %v4745 = vor.u32 %v4743, %v4744
        %v4746 = vshll.u32 2131351028, %v4737
        %v4747 = vshrl.u32 2102212464, %v4738
        %v4748 = vor.u32 %v4746, %v4747
        %v4749 = vshll.u32 2102212464, %v4737
        %v4750 = vshrl.u32 920167782, %v4738
        %v4751 = vor.u32 %v4749, %v4750
        %v4752 = vshll.u32 920167782, %v4737
        %v4753 = vshrl.u32 1326507024, %v4738
        %v4754 = vor.u32 %v4752, %v4753
        %vm4755 = vcmp.lt.s32.totalorder %v4736, 1
        %vm4756 = vcmp.lt.s32.totalorder %v4736, 2
        %vm4757 = vcmp.lt.s32.totalorder %v4736, 3
        %vm4758 = vcmp.lt.s32.totalorder %v4736, 4
        %v4759 = vsel %vm4755, %v4739, %v4742
        %v4760 = vsel %vm4758, %v4748, 2102212464
        %v4761 = vsel %vm4757, %v4745, %v4760
        %v4762 = vsel %vm4756, %v4759, %v4761
        %v4763 = vsel %vm4755, %v4742, %v4745
        %v4764 = vsel %vm4758, %v4751, 920167782
        %v4765 = vsel %vm4757, %v4748, %v4764
        %v4766 = vsel %vm4756, %v4763, %v4765
        %v4767 = vsel %vm4755, %v4745, %v4748
        %v4768 = vsel %vm4758, %v4754, 1326507024
        %v4769 = vsel %vm4757, %v4751, %v4768
        %v4770 = vsel %vm4756, %v4767, %v4769
        %v4771 = vshll.u32 %v4731, 8
        %v4772 = vmul.u32.u64.compose %v4771, %v4770
        %v4773 = vextract.low.u32 %v4772
        %v4774 = vextract.high.u32 %v4772
        %v4775 = vmul.u32.u64.compose %v4771, %v4766
        %v4776 = vextract.low.u32 %v4775
        %v4777 = vextract.high.u32 %v4775
        %v4778 = vmul.u32 %v4771, %v4762
        %v4779 = vadd.s32 %v4774, %v4776
        %vm4780 = vc.u32 %v4774, %v4776
        %v4781 = vadd.s32 %v4777, 1
        %v4782 = vsel %vm4780, %v4781, %v4777
        %v4783 = vadd.s32 %v4778, %v4782
        %v4784 = vadd.s32 %v4783, 536870912
        %v4785 = vshrl.u32 %v4784, 30
        %v4786 = vshll.u32 %v4785, 30
        %v4787 = vsub.s32 %v4783, %v4786
        %vm4788 = vcmp.lt.s32.totalorder %v4787, 0
        %v4789 = vsub.s32 0, %v4787
        %v4790 = vsel %vm4788, %v4789, %v4787
        %v4791 = vclz %v4790
        %v4792 = vsub.s32 %v4791, 2
        %vm4793 = vcmp.gt.s32.totalorder 0, %v4792
        %v4794 = vsel %vm4793, 0, %v4792
        %v4795 = vsub.s32 32, %v4794
        %v4796 = vshll.u32 %v4787, %v4794
        %v4797 = vshrl.u32 %v4779, %v4795
        %v4798 = vor.u32 %v4796, %v4797
        %v4799 = vsub.s32 4294967266, %v4794
        %v4800 = vadd.s32 %v4799, 127
        %v4801 = vshll.u32 %v4800, 23
        %v4802 = vor.u32 4788187, %v4801
        %v4803 = vand.u32 2147483647, %v4802
        %v4805 = vcvt.s32.f32 %v4798
        %v4806 = vmul.f32 %v4805, %v4803
        %v4807 = vxor.u32 %v4806, 2147483648
        %v4808 = vsel %vm4725, %v4807, %v4806
        %v4809 = vsub.s32 4, %v4785
        %v4810 = vsel %vm4725, %v4809, %v4785
        %v4811 = vsel %vm4724, %v198, %v4808
        %v4812 = vsel %vm4724, 0, %v4810
        %v4813 = vcosq.f32.pop %v4811
        %v4814 = vsinq.f32.pop %v4811
        %vm4815 = vweird.f32 %v198
        %v4816 = vadd.s32 %v4812, 3
        %v4817 = vand.u32 %v4816, 3
        %vm4818 = vcmp.lt.s32.totalorder %v4817, 2
        %vm4819 = vcmp.eq.s32.totalorder %v4817, 0
        %v4820 = vxor.u32 %v4814, 2147483648
        %v4821 = vsel %vm4819, %v4813, %v4820
        %vm4822 = vcmp.eq.s32.totalorder %v4817, 2
        %v4823 = vxor.u32 %v4813, 2147483648
        %v4824 = vsel %vm4822, %v4823, %v4814
        %v4825 = vsel %vm4818, %v4821, %v4824
        %v4826 = vsel %vm4815, nan, %v4825
        %v4827 = vand.u32 2147483647, %v199
        %vm4828 = vcmp.le.f32.partialorder %v4827, 0.7853982
        %vm4829 = vcmp.lt.s32.totalorder %v199, 0
        %v4830 = vand.u32 %v199, 2139095040
        %v4831 = vshrl.u32 %v4830, 23
        %v4832 = vsub.s32 %v4831, 127
        %v4833 = vand.u32 2147483647, %v199
        %v4834 = vand.u32 %v4833, 8388607
        %v4835 = vor.u32 %v4834, 8388608
        %v4836 = vsub.s32 0, %v4835
        %v4837 = vadd.s32 %v4832, 1
        %vm4838 = vcmp.gt.s32.totalorder %v4837, 0
        %v4839 = vsel %vm4838, %v4837, 0
        %v4840 = vshrl.u32 %v4839, 5
        %v4841 = vand.u32 %v4839, 31
        %v4842 = vsub.s32 32, %v4841
        %v4843 = vshrl.u32 683565275, %v4842
        %v4844 = vshll.u32 683565275, %v4841
        %v4845 = vshrl.u32 2475754826, %v4842
        %v4846 = vor.u32 %v4844, %v4845
        %v4847 = vshll.u32 2475754826, %v4841
        %v4848 = vshrl.u32 2131351028, %v4842
        %v4849 = vor.u32 %v4847, %v4848
        %v4850 = vshll.u32 2131351028, %v4841
        %v4851 = vshrl.u32 2102212464, %v4842
        %v4852 = vor.u32 %v4850, %v4851
        %v4853 = vshll.u32 2102212464, %v4841
        %v4854 = vshrl.u32 920167782, %v4842
        %v4855 = vor.u32 %v4853, %v4854
        %v4856 = vshll.u32 920167782, %v4841
        %v4857 = vshrl.u32 1326507024, %v4842
        %v4858 = vor.u32 %v4856, %v4857
        %vm4859 = vcmp.lt.s32.totalorder %v4840, 1
        %vm4860 = vcmp.lt.s32.totalorder %v4840, 2
        %vm4861 = vcmp.lt.s32.totalorder %v4840, 3
        %vm4862 = vcmp.lt.s32.totalorder %v4840, 4
        %v4863 = vsel %vm4859, %v4843, %v4846
        %v4864 = vsel %vm4862, %v4852, 2102212464
        %v4865 = vsel %vm4861, %v4849, %v4864
        %v4866 = vsel %vm4860, %v4863, %v4865
        %v4867 = vsel %vm4859, %v4846, %v4849
        %v4868 = vsel %vm4862, %v4855, 920167782
        %v4869 = vsel %vm4861, %v4852, %v4868
        %v4870 = vsel %vm4860, %v4867, %v4869
        %v4871 = vsel %vm4859, %v4849, %v4852
        %v4872 = vsel %vm4862, %v4858, 1326507024
        %v4873 = vsel %vm4861, %v4855, %v4872
        %v4874 = vsel %vm4860, %v4871, %v4873
        %v4875 = vshll.u32 %v4835, 8
        %v4876 = vmul.u32.u64.compose %v4875, %v4874
        %v4877 = vextract.low.u32 %v4876
        %v4878 = vextract.high.u32 %v4876
        %v4879 = vmul.u32.u64.compose %v4875, %v4870
        %v4880 = vextract.low.u32 %v4879
        %v4881 = vextract.high.u32 %v4879
        %v4882 = vmul.u32 %v4875, %v4866
        %v4883 = vadd.s32 %v4878, %v4880
        %vm4884 = vc.u32 %v4878, %v4880
        %v4885 = vadd.s32 %v4881, 1
        %v4886 = vsel %vm4884, %v4885, %v4881
        %v4887 = vadd.s32 %v4882, %v4886
        %v4888 = vadd.s32 %v4887, 536870912
        %v4889 = vshrl.u32 %v4888, 30
        %v4890 = vshll.u32 %v4889, 30
        %v4891 = vsub.s32 %v4887, %v4890
        %vm4892 = vcmp.lt.s32.totalorder %v4891, 0
        %v4893 = vsub.s32 0, %v4891
        %v4894 = vsel %vm4892, %v4893, %v4891
        %v4895 = vclz %v4894
        %v4896 = vsub.s32 %v4895, 2
        %vm4897 = vcmp.gt.s32.totalorder 0, %v4896
        %v4898 = vsel %vm4897, 0, %v4896
        %v4899 = vsub.s32 32, %v4898
        %v4900 = vshll.u32 %v4891, %v4898
        %v4901 = vshrl.u32 %v4883, %v4899
        %v4902 = vor.u32 %v4900, %v4901
        %v4903 = vsub.s32 4294967266, %v4898
        %v4904 = vadd.s32 %v4903, 127
        %v4905 = vshll.u32 %v4904, 23
        %v4906 = vor.u32 4788187, %v4905
        %v4907 = vand.u32 2147483647, %v4906
        %v4909 = vcvt.s32.f32 %v4902
        %v4910 = vmul.f32 %v4909, %v4907
        %v4911 = vxor.u32 %v4910, 2147483648
        %v4912 = vsel %vm4829, %v4911, %v4910
        %v4913 = vsub.s32 4, %v4889
        %v4914 = vsel %vm4829, %v4913, %v4889
        %v4915 = vsel %vm4828, %v199, %v4912
        %v4916 = vsel %vm4828, 0, %v4914
        %v4917 = vcosq.f32.pop %v4915
        %v4918 = vsinq.f32.pop %v4915
        %vm4919 = vweird.f32 %v199
        %v4920 = vadd.s32 %v4916, 3
        %v4921 = vand.u32 %v4920, 3
        %vm4922 = vcmp.lt.s32.totalorder %v4921, 2
        %vm4923 = vcmp.eq.s32.totalorder %v4921, 0
        %v4924 = vxor.u32 %v4918, 2147483648
        %v4925 = vsel %vm4923, %v4917, %v4924
        %vm4926 = vcmp.eq.s32.totalorder %v4921, 2
        %v4927 = vxor.u32 %v4917, 2147483648
        %v4928 = vsel %vm4926, %v4927, %v4918
        %v4929 = vsel %vm4922, %v4925, %v4928
        %v4930 = vsel %vm4919, nan, %v4929
        %v4931 = vand.u32 2147483647, %v200
        %vm4932 = vcmp.le.f32.partialorder %v4931, 0.7853982
        %vm4933 = vcmp.lt.s32.totalorder %v200, 0
        %v4934 = vand.u32 %v200, 2139095040
        %v4935 = vshrl.u32 %v4934, 23
        %v4936 = vsub.s32 %v4935, 127
        %v4937 = vand.u32 2147483647, %v200
        %v4938 = vand.u32 %v4937, 8388607
        %v4939 = vor.u32 %v4938, 8388608
        %v4940 = vsub.s32 0, %v4939
        %v4941 = vadd.s32 %v4936, 1
        %vm4942 = vcmp.gt.s32.totalorder %v4941, 0
        %v4943 = vsel %vm4942, %v4941, 0
        %v4944 = vshrl.u32 %v4943, 5
        %v4945 = vand.u32 %v4943, 31
        %v4946 = vsub.s32 32, %v4945
        %v4947 = vshrl.u32 683565275, %v4946
        %v4948 = vshll.u32 683565275, %v4945
        %v4949 = vshrl.u32 2475754826, %v4946
        %v4950 = vor.u32 %v4948, %v4949
        %v4951 = vshll.u32 2475754826, %v4945
        %v4952 = vshrl.u32 2131351028, %v4946
        %v4953 = vor.u32 %v4951, %v4952
        %v4954 = vshll.u32 2131351028, %v4945
        %v4955 = vshrl.u32 2102212464, %v4946
        %v4956 = vor.u32 %v4954, %v4955
        %v4957 = vshll.u32 2102212464, %v4945
        %v4958 = vshrl.u32 920167782, %v4946
        %v4959 = vor.u32 %v4957, %v4958
        %v4960 = vshll.u32 920167782, %v4945
        %v4961 = vshrl.u32 1326507024, %v4946
        %v4962 = vor.u32 %v4960, %v4961
        %vm4963 = vcmp.lt.s32.totalorder %v4944, 1
        %vm4964 = vcmp.lt.s32.totalorder %v4944, 2
        %vm4965 = vcmp.lt.s32.totalorder %v4944, 3
        %vm4966 = vcmp.lt.s32.totalorder %v4944, 4
        %v4967 = vsel %vm4963, %v4947, %v4950
        %v4968 = vsel %vm4966, %v4956, 2102212464
        %v4969 = vsel %vm4965, %v4953, %v4968
        %v4970 = vsel %vm4964, %v4967, %v4969
        %v4971 = vsel %vm4963, %v4950, %v4953
        %v4972 = vsel %vm4966, %v4959, 920167782
        %v4973 = vsel %vm4965, %v4956, %v4972
        %v4974 = vsel %vm4964, %v4971, %v4973
        %v4975 = vsel %vm4963, %v4953, %v4956
        %v4976 = vsel %vm4966, %v4962, 1326507024
        %v4977 = vsel %vm4965, %v4959, %v4976
        %v4978 = vsel %vm4964, %v4975, %v4977
        %v4979 = vshll.u32 %v4939, 8
        %v4980 = vmul.u32.u64.compose %v4979, %v4978
        %v4981 = vextract.low.u32 %v4980
        %v4982 = vextract.high.u32 %v4980
        %v4983 = vmul.u32.u64.compose %v4979, %v4974
        %v4984 = vextract.low.u32 %v4983
        %v4985 = vextract.high.u32 %v4983
        %v4986 = vmul.u32 %v4979, %v4970
        %v4987 = vadd.s32 %v4982, %v4984
        %vm4988 = vc.u32 %v4982, %v4984
        %v4989 = vadd.s32 %v4985, 1
        %v4990 = vsel %vm4988, %v4989, %v4985
        %v4991 = vadd.s32 %v4986, %v4990
        %v4992 = vadd.s32 %v4991, 536870912
        %v4993 = vshrl.u32 %v4992, 30
        %v4994 = vshll.u32 %v4993, 30
        %v4995 = vsub.s32 %v4991, %v4994
        %vm4996 = vcmp.lt.s32.totalorder %v4995, 0
        %v4997 = vsub.s32 0, %v4995
        %v4998 = vsel %vm4996, %v4997, %v4995
        %v4999 = vclz %v4998
        %v5000 = vsub.s32 %v4999, 2
        %vm5001 = vcmp.gt.s32.totalorder 0, %v5000
        %v5002 = vsel %vm5001, 0, %v5000
        %v5003 = vsub.s32 32, %v5002
        %v5004 = vshll.u32 %v4995, %v5002
        %v5005 = vshrl.u32 %v4987, %v5003
        %v5006 = vor.u32 %v5004, %v5005
        %v5007 = vsub.s32 4294967266, %v5002
        %v5008 = vadd.s32 %v5007, 127
        %v5009 = vshll.u32 %v5008, 23
        %v5010 = vor.u32 4788187, %v5009
        %v5011 = vand.u32 2147483647, %v5010
        %v5013 = vcvt.s32.f32 %v5006
        %v5014 = vmul.f32 %v5013, %v5011
        %v5015 = vxor.u32 %v5014, 2147483648
        %v5016 = vsel %vm4933, %v5015, %v5014
        %v5017 = vsub.s32 4, %v4993
        %v5018 = vsel %vm4933, %v5017, %v4993
        %v5019 = vsel %vm4932, %v200, %v5016
        %v5020 = vsel %vm4932, 0, %v5018
        %v5021 = vcosq.f32.pop %v5019
        %v5022 = vsinq.f32.pop %v5019
        %vm5023 = vweird.f32 %v200
        %v5024 = vadd.s32 %v5020, 3
        %v5025 = vand.u32 %v5024, 3
        %vm5026 = vcmp.lt.s32.totalorder %v5025, 2
        %vm5027 = vcmp.eq.s32.totalorder %v5025, 0
        %v5028 = vxor.u32 %v5022, 2147483648
        %v5029 = vsel %vm5027, %v5021, %v5028
        %vm5030 = vcmp.eq.s32.totalorder %v5025, 2
        %v5031 = vxor.u32 %v5021, 2147483648
        %v5032 = vsel %vm5030, %v5031, %v5022
        %v5033 = vsel %vm5026, %v5029, %v5032
        %v5034 = vsel %vm5023, nan, %v5033
        %v5035 = vand.u32 2147483647, %v201
        %vm5036 = vcmp.le.f32.partialorder %v5035, 0.7853982
        %vm5037 = vcmp.lt.s32.totalorder %v201, 0
        %v5038 = vand.u32 %v201, 2139095040
        %v5039 = vshrl.u32 %v5038, 23
        %v5040 = vsub.s32 %v5039, 127
        %v5041 = vand.u32 2147483647, %v201
        %v5042 = vand.u32 %v5041, 8388607
        %v5043 = vor.u32 %v5042, 8388608
        %v5044 = vsub.s32 0, %v5043
        %v5045 = vadd.s32 %v5040, 1
        %vm5046 = vcmp.gt.s32.totalorder %v5045, 0
        %v5047 = vsel %vm5046, %v5045, 0
        %v5048 = vshrl.u32 %v5047, 5
        %v5049 = vand.u32 %v5047, 31
        %v5050 = vsub.s32 32, %v5049
        %v5051 = vshrl.u32 683565275, %v5050
        %v5052 = vshll.u32 683565275, %v5049
        %v5053 = vshrl.u32 2475754826, %v5050
        %v5054 = vor.u32 %v5052, %v5053
        %v5055 = vshll.u32 2475754826, %v5049
        %v5056 = vshrl.u32 2131351028, %v5050
        %v5057 = vor.u32 %v5055, %v5056
        %v5058 = vshll.u32 2131351028, %v5049
        %v5059 = vshrl.u32 2102212464, %v5050
        %v5060 = vor.u32 %v5058, %v5059
        %v5061 = vshll.u32 2102212464, %v5049
        %v5062 = vshrl.u32 920167782, %v5050
        %v5063 = vor.u32 %v5061, %v5062
        %v5064 = vshll.u32 920167782, %v5049
        %v5065 = vshrl.u32 1326507024, %v5050
        %v5066 = vor.u32 %v5064, %v5065
        %vm5067 = vcmp.lt.s32.totalorder %v5048, 1
        %vm5068 = vcmp.lt.s32.totalorder %v5048, 2
        %vm5069 = vcmp.lt.s32.totalorder %v5048, 3
        %vm5070 = vcmp.lt.s32.totalorder %v5048, 4
        %v5071 = vsel %vm5067, %v5051, %v5054
        %v5072 = vsel %vm5070, %v5060, 2102212464
        %v5073 = vsel %vm5069, %v5057, %v5072
        %v5074 = vsel %vm5068, %v5071, %v5073
        %v5075 = vsel %vm5067, %v5054, %v5057
        %v5076 = vsel %vm5070, %v5063, 920167782
        %v5077 = vsel %vm5069, %v5060, %v5076
        %v5078 = vsel %vm5068, %v5075, %v5077
        %v5079 = vsel %vm5067, %v5057, %v5060
        %v5080 = vsel %vm5070, %v5066, 1326507024
        %v5081 = vsel %vm5069, %v5063, %v5080
        %v5082 = vsel %vm5068, %v5079, %v5081
        %v5083 = vshll.u32 %v5043, 8
        %v5084 = vmul.u32.u64.compose %v5083, %v5082
        %v5085 = vextract.low.u32 %v5084
        %v5086 = vextract.high.u32 %v5084
        %v5087 = vmul.u32.u64.compose %v5083, %v5078
        %v5088 = vextract.low.u32 %v5087
        %v5089 = vextract.high.u32 %v5087
        %v5090 = vmul.u32 %v5083, %v5074
        %v5091 = vadd.s32 %v5086, %v5088
        %vm5092 = vc.u32 %v5086, %v5088
        %v5093 = vadd.s32 %v5089, 1
        %v5094 = vsel %vm5092, %v5093, %v5089
        %v5095 = vadd.s32 %v5090, %v5094
        %v5096 = vadd.s32 %v5095, 536870912
        %v5097 = vshrl.u32 %v5096, 30
        %v5098 = vshll.u32 %v5097, 30
        %v5099 = vsub.s32 %v5095, %v5098
        %vm5100 = vcmp.lt.s32.totalorder %v5099, 0
        %v5101 = vsub.s32 0, %v5099
        %v5102 = vsel %vm5100, %v5101, %v5099
        %v5103 = vclz %v5102
        %v5104 = vsub.s32 %v5103, 2
        %vm5105 = vcmp.gt.s32.totalorder 0, %v5104
        %v5106 = vsel %vm5105, 0, %v5104
        %v5107 = vsub.s32 32, %v5106
        %v5108 = vshll.u32 %v5099, %v5106
        %v5109 = vshrl.u32 %v5091, %v5107
        %v5110 = vor.u32 %v5108, %v5109
        %v5111 = vsub.s32 4294967266, %v5106
        %v5112 = vadd.s32 %v5111, 127
        %v5113 = vshll.u32 %v5112, 23
        %v5114 = vor.u32 4788187, %v5113
        %v5115 = vand.u32 2147483647, %v5114
        %v5117 = vcvt.s32.f32 %v5110
        %v5118 = vmul.f32 %v5117, %v5115
        %v5119 = vxor.u32 %v5118, 2147483648
        %v5120 = vsel %vm5037, %v5119, %v5118
        %v5121 = vsub.s32 4, %v5097
        %v5122 = vsel %vm5037, %v5121, %v5097
        %v5123 = vsel %vm5036, %v201, %v5120
        %v5124 = vsel %vm5036, 0, %v5122
        %v5125 = vcosq.f32.pop %v5123
        %v5126 = vsinq.f32.pop %v5123
        %vm5127 = vweird.f32 %v201
        %v5128 = vadd.s32 %v5124, 3
        %v5129 = vand.u32 %v5128, 3
        %vm5130 = vcmp.lt.s32.totalorder %v5129, 2
        %vm5131 = vcmp.eq.s32.totalorder %v5129, 0
        %v5132 = vxor.u32 %v5126, 2147483648
        %v5133 = vsel %vm5131, %v5125, %v5132
        %vm5134 = vcmp.eq.s32.totalorder %v5129, 2
        %v5135 = vxor.u32 %v5125, 2147483648
        %v5136 = vsel %vm5134, %v5135, %v5126
        %v5137 = vsel %vm5130, %v5133, %v5136
        %v5138 = vsel %vm5127, nan, %v5137
        %v5139 = vand.u32 2147483647, %v202
        %vm5140 = vcmp.le.f32.partialorder %v5139, 0.7853982
        %vm5141 = vcmp.lt.s32.totalorder %v202, 0
        %v5142 = vand.u32 %v202, 2139095040
        %v5143 = vshrl.u32 %v5142, 23
        %v5144 = vsub.s32 %v5143, 127
        %v5145 = vand.u32 2147483647, %v202
        %v5146 = vand.u32 %v5145, 8388607
        %v5147 = vor.u32 %v5146, 8388608
        %v5148 = vsub.s32 0, %v5147
        %v5149 = vadd.s32 %v5144, 1
        %vm5150 = vcmp.gt.s32.totalorder %v5149, 0
        %v5151 = vsel %vm5150, %v5149, 0
        %v5152 = vshrl.u32 %v5151, 5
        %v5153 = vand.u32 %v5151, 31
        %v5154 = vsub.s32 32, %v5153
        %v5155 = vshrl.u32 683565275, %v5154
        %v5156 = vshll.u32 683565275, %v5153
        %v5157 = vshrl.u32 2475754826, %v5154
        %v5158 = vor.u32 %v5156, %v5157
        %v5159 = vshll.u32 2475754826, %v5153
        %v5160 = vshrl.u32 2131351028, %v5154
        %v5161 = vor.u32 %v5159, %v5160
        %v5162 = vshll.u32 2131351028, %v5153
        %v5163 = vshrl.u32 2102212464, %v5154
        %v5164 = vor.u32 %v5162, %v5163
        %v5165 = vshll.u32 2102212464, %v5153
        %v5166 = vshrl.u32 920167782, %v5154
        %v5167 = vor.u32 %v5165, %v5166
        %v5168 = vshll.u32 920167782, %v5153
        %v5169 = vshrl.u32 1326507024, %v5154
        %v5170 = vor.u32 %v5168, %v5169
        %vm5171 = vcmp.lt.s32.totalorder %v5152, 1
        %vm5172 = vcmp.lt.s32.totalorder %v5152, 2
        %vm5173 = vcmp.lt.s32.totalorder %v5152, 3
        %vm5174 = vcmp.lt.s32.totalorder %v5152, 4
        %v5175 = vsel %vm5171, %v5155, %v5158
        %v5176 = vsel %vm5174, %v5164, 2102212464
        %v5177 = vsel %vm5173, %v5161, %v5176
        %v5178 = vsel %vm5172, %v5175, %v5177
        %v5179 = vsel %vm5171, %v5158, %v5161
        %v5180 = vsel %vm5174, %v5167, 920167782
        %v5181 = vsel %vm5173, %v5164, %v5180
        %v5182 = vsel %vm5172, %v5179, %v5181
        %v5183 = vsel %vm5171, %v5161, %v5164
        %v5184 = vsel %vm5174, %v5170, 1326507024
        %v5185 = vsel %vm5173, %v5167, %v5184
        %v5186 = vsel %vm5172, %v5183, %v5185
        %v5187 = vshll.u32 %v5147, 8
        %v5188 = vmul.u32.u64.compose %v5187, %v5186
        %v5189 = vextract.low.u32 %v5188
        %v5190 = vextract.high.u32 %v5188
        %v5191 = vmul.u32.u64.compose %v5187, %v5182
        %v5192 = vextract.low.u32 %v5191
        %v5193 = vextract.high.u32 %v5191
        %v5194 = vmul.u32 %v5187, %v5178
        %v5195 = vadd.s32 %v5190, %v5192
        %vm5196 = vc.u32 %v5190, %v5192
        %v5197 = vadd.s32 %v5193, 1
        %v5198 = vsel %vm5196, %v5197, %v5193
        %v5199 = vadd.s32 %v5194, %v5198
        %v5200 = vadd.s32 %v5199, 536870912
        %v5201 = vshrl.u32 %v5200, 30
        %v5202 = vshll.u32 %v5201, 30
        %v5203 = vsub.s32 %v5199, %v5202
        %vm5204 = vcmp.lt.s32.totalorder %v5203, 0
        %v5205 = vsub.s32 0, %v5203
        %v5206 = vsel %vm5204, %v5205, %v5203
        %v5207 = vclz %v5206
        %v5208 = vsub.s32 %v5207, 2
        %vm5209 = vcmp.gt.s32.totalorder 0, %v5208
        %v5210 = vsel %vm5209, 0, %v5208
        %v5211 = vsub.s32 32, %v5210
        %v5212 = vshll.u32 %v5203, %v5210
        %v5213 = vshrl.u32 %v5195, %v5211
        %v5214 = vor.u32 %v5212, %v5213
        %v5215 = vsub.s32 4294967266, %v5210
        %v5216 = vadd.s32 %v5215, 127
        %v5217 = vshll.u32 %v5216, 23
        %v5218 = vor.u32 4788187, %v5217
        %v5219 = vand.u32 2147483647, %v5218
        %v5221 = vcvt.s32.f32 %v5214
        %v5222 = vmul.f32 %v5221, %v5219
        %v5223 = vxor.u32 %v5222, 2147483648
        %v5224 = vsel %vm5141, %v5223, %v5222
        %v5225 = vsub.s32 4, %v5201
        %v5226 = vsel %vm5141, %v5225, %v5201
        %v5227 = vsel %vm5140, %v202, %v5224
        %v5228 = vsel %vm5140, 0, %v5226
        %v5229 = vcosq.f32.pop %v5227
        %v5230 = vsinq.f32.pop %v5227
        %vm5231 = vweird.f32 %v202
        %v5232 = vadd.s32 %v5228, 3
        %v5233 = vand.u32 %v5232, 3
        %vm5234 = vcmp.lt.s32.totalorder %v5233, 2
        %vm5235 = vcmp.eq.s32.totalorder %v5233, 0
        %v5236 = vxor.u32 %v5230, 2147483648
        %v5237 = vsel %vm5235, %v5229, %v5236
        %vm5238 = vcmp.eq.s32.totalorder %v5233, 2
        %v5239 = vxor.u32 %v5229, 2147483648
        %v5240 = vsel %vm5238, %v5239, %v5230
        %v5241 = vsel %vm5234, %v5237, %v5240
        %v5242 = vsel %vm5231, nan, %v5241
        %v5243 = vand.u32 2147483647, %v203
        %vm5244 = vcmp.le.f32.partialorder %v5243, 0.7853982
        %vm5245 = vcmp.lt.s32.totalorder %v203, 0
        %v5246 = vand.u32 %v203, 2139095040
        %v5247 = vshrl.u32 %v5246, 23
        %v5248 = vsub.s32 %v5247, 127
        %v5249 = vand.u32 2147483647, %v203
        %v5250 = vand.u32 %v5249, 8388607
        %v5251 = vor.u32 %v5250, 8388608
        %v5252 = vsub.s32 0, %v5251
        %v5253 = vadd.s32 %v5248, 1
        %vm5254 = vcmp.gt.s32.totalorder %v5253, 0
        %v5255 = vsel %vm5254, %v5253, 0
        %v5256 = vshrl.u32 %v5255, 5
        %v5257 = vand.u32 %v5255, 31
        %v5258 = vsub.s32 32, %v5257
        %v5259 = vshrl.u32 683565275, %v5258
        %v5260 = vshll.u32 683565275, %v5257
        %v5261 = vshrl.u32 2475754826, %v5258
        %v5262 = vor.u32 %v5260, %v5261
        %v5263 = vshll.u32 2475754826, %v5257
        %v5264 = vshrl.u32 2131351028, %v5258
        %v5265 = vor.u32 %v5263, %v5264
        %v5266 = vshll.u32 2131351028, %v5257
        %v5267 = vshrl.u32 2102212464, %v5258
        %v5268 = vor.u32 %v5266, %v5267
        %v5269 = vshll.u32 2102212464, %v5257
        %v5270 = vshrl.u32 920167782, %v5258
        %v5271 = vor.u32 %v5269, %v5270
        %v5272 = vshll.u32 920167782, %v5257
        %v5273 = vshrl.u32 1326507024, %v5258
        %v5274 = vor.u32 %v5272, %v5273
        %vm5275 = vcmp.lt.s32.totalorder %v5256, 1
        %vm5276 = vcmp.lt.s32.totalorder %v5256, 2
        %vm5277 = vcmp.lt.s32.totalorder %v5256, 3
        %vm5278 = vcmp.lt.s32.totalorder %v5256, 4
        %v5279 = vsel %vm5275, %v5259, %v5262
        %v5280 = vsel %vm5278, %v5268, 2102212464
        %v5281 = vsel %vm5277, %v5265, %v5280
        %v5282 = vsel %vm5276, %v5279, %v5281
        %v5283 = vsel %vm5275, %v5262, %v5265
        %v5284 = vsel %vm5278, %v5271, 920167782
        %v5285 = vsel %vm5277, %v5268, %v5284
        %v5286 = vsel %vm5276, %v5283, %v5285
        %v5287 = vsel %vm5275, %v5265, %v5268
        %v5288 = vsel %vm5278, %v5274, 1326507024
        %v5289 = vsel %vm5277, %v5271, %v5288
        %v5290 = vsel %vm5276, %v5287, %v5289
        %v5291 = vshll.u32 %v5251, 8
        %v5292 = vmul.u32.u64.compose %v5291, %v5290
        %v5293 = vextract.low.u32 %v5292
        %v5294 = vextract.high.u32 %v5292
        %v5295 = vmul.u32.u64.compose %v5291, %v5286
        %v5296 = vextract.low.u32 %v5295
        %v5297 = vextract.high.u32 %v5295
        %v5298 = vmul.u32 %v5291, %v5282
        %v5299 = vadd.s32 %v5294, %v5296
        %vm5300 = vc.u32 %v5294, %v5296
        %v5301 = vadd.s32 %v5297, 1
        %v5302 = vsel %vm5300, %v5301, %v5297
        %v5303 = vadd.s32 %v5298, %v5302
        %v5304 = vadd.s32 %v5303, 536870912
        %v5305 = vshrl.u32 %v5304, 30
        %v5306 = vshll.u32 %v5305, 30
        %v5307 = vsub.s32 %v5303, %v5306
        %vm5308 = vcmp.lt.s32.totalorder %v5307, 0
        %v5309 = vsub.s32 0, %v5307
        %v5310 = vsel %vm5308, %v5309, %v5307
        %v5311 = vclz %v5310
        %v5312 = vsub.s32 %v5311, 2
        %vm5313 = vcmp.gt.s32.totalorder 0, %v5312
        %v5314 = vsel %vm5313, 0, %v5312
        %v5315 = vsub.s32 32, %v5314
        %v5316 = vshll.u32 %v5307, %v5314
        %v5317 = vshrl.u32 %v5299, %v5315
        %v5318 = vor.u32 %v5316, %v5317
        %v5319 = vsub.s32 4294967266, %v5314
        %v5320 = vadd.s32 %v5319, 127
        %v5321 = vshll.u32 %v5320, 23
        %v5322 = vor.u32 4788187, %v5321
        %v5323 = vand.u32 2147483647, %v5322
        %v5325 = vcvt.s32.f32 %v5318
        %v5326 = vmul.f32 %v5325, %v5323
        %v5327 = vxor.u32 %v5326, 2147483648
        %v5328 = vsel %vm5245, %v5327, %v5326
        %v5329 = vsub.s32 4, %v5305
        %v5330 = vsel %vm5245, %v5329, %v5305
        %v5331 = vsel %vm5244, %v203, %v5328
        %v5332 = vsel %vm5244, 0, %v5330
        %v5333 = vcosq.f32.pop %v5331
        %v5334 = vsinq.f32.pop %v5331
        %vm5335 = vweird.f32 %v203
        %v5336 = vadd.s32 %v5332, 3
        %v5337 = vand.u32 %v5336, 3
        %vm5338 = vcmp.lt.s32.totalorder %v5337, 2
        %vm5339 = vcmp.eq.s32.totalorder %v5337, 0
        %v5340 = vxor.u32 %v5334, 2147483648
        %v5341 = vsel %vm5339, %v5333, %v5340
        %vm5342 = vcmp.eq.s32.totalorder %v5337, 2
        %v5343 = vxor.u32 %v5333, 2147483648
        %v5344 = vsel %vm5342, %v5343, %v5334
        %v5345 = vsel %vm5338, %v5341, %v5344
        %v5346 = vsel %vm5335, nan, %v5345
        %v5347 = vand.u32 2147483647, %v204
        %vm5348 = vcmp.le.f32.partialorder %v5347, 0.7853982
        %vm5349 = vcmp.lt.s32.totalorder %v204, 0
        %v5350 = vand.u32 %v204, 2139095040
        %v5351 = vshrl.u32 %v5350, 23
        %v5352 = vsub.s32 %v5351, 127
        %v5353 = vand.u32 2147483647, %v204
        %v5354 = vand.u32 %v5353, 8388607
        %v5355 = vor.u32 %v5354, 8388608
        %v5356 = vsub.s32 0, %v5355
        %v5357 = vadd.s32 %v5352, 1
        %vm5358 = vcmp.gt.s32.totalorder %v5357, 0
        %v5359 = vsel %vm5358, %v5357, 0
        %v5360 = vshrl.u32 %v5359, 5
        %v5361 = vand.u32 %v5359, 31
        %v5362 = vsub.s32 32, %v5361
        %v5363 = vshrl.u32 683565275, %v5362
        %v5364 = vshll.u32 683565275, %v5361
        %v5365 = vshrl.u32 2475754826, %v5362
        %v5366 = vor.u32 %v5364, %v5365
        %v5367 = vshll.u32 2475754826, %v5361
        %v5368 = vshrl.u32 2131351028, %v5362
        %v5369 = vor.u32 %v5367, %v5368
        %v5370 = vshll.u32 2131351028, %v5361
        %v5371 = vshrl.u32 2102212464, %v5362
        %v5372 = vor.u32 %v5370, %v5371
        %v5373 = vshll.u32 2102212464, %v5361
        %v5374 = vshrl.u32 920167782, %v5362
        %v5375 = vor.u32 %v5373, %v5374
        %v5376 = vshll.u32 920167782, %v5361
        %v5377 = vshrl.u32 1326507024, %v5362
        %v5378 = vor.u32 %v5376, %v5377
        %vm5379 = vcmp.lt.s32.totalorder %v5360, 1
        %vm5380 = vcmp.lt.s32.totalorder %v5360, 2
        %vm5381 = vcmp.lt.s32.totalorder %v5360, 3
        %vm5382 = vcmp.lt.s32.totalorder %v5360, 4
        %v5383 = vsel %vm5379, %v5363, %v5366
        %v5384 = vsel %vm5382, %v5372, 2102212464
        %v5385 = vsel %vm5381, %v5369, %v5384
        %v5386 = vsel %vm5380, %v5383, %v5385
        %v5387 = vsel %vm5379, %v5366, %v5369
        %v5388 = vsel %vm5382, %v5375, 920167782
        %v5389 = vsel %vm5381, %v5372, %v5388
        %v5390 = vsel %vm5380, %v5387, %v5389
        %v5391 = vsel %vm5379, %v5369, %v5372
        %v5392 = vsel %vm5382, %v5378, 1326507024
        %v5393 = vsel %vm5381, %v5375, %v5392
        %v5394 = vsel %vm5380, %v5391, %v5393
        %v5395 = vshll.u32 %v5355, 8
        %v5396 = vmul.u32.u64.compose %v5395, %v5394
        %v5397 = vextract.low.u32 %v5396
        %v5398 = vextract.high.u32 %v5396
        %v5399 = vmul.u32.u64.compose %v5395, %v5390
        %v5400 = vextract.low.u32 %v5399
        %v5401 = vextract.high.u32 %v5399
        %v5402 = vmul.u32 %v5395, %v5386
        %v5403 = vadd.s32 %v5398, %v5400
        %vm5404 = vc.u32 %v5398, %v5400
        %v5405 = vadd.s32 %v5401, 1
        %v5406 = vsel %vm5404, %v5405, %v5401
        %v5407 = vadd.s32 %v5402, %v5406
        %v5408 = vadd.s32 %v5407, 536870912
        %v5409 = vshrl.u32 %v5408, 30
        %v5410 = vshll.u32 %v5409, 30
        %v5411 = vsub.s32 %v5407, %v5410
        %vm5412 = vcmp.lt.s32.totalorder %v5411, 0
        %v5413 = vsub.s32 0, %v5411
        %v5414 = vsel %vm5412, %v5413, %v5411
        %v5415 = vclz %v5414
        %v5416 = vsub.s32 %v5415, 2
        %vm5417 = vcmp.gt.s32.totalorder 0, %v5416
        %v5418 = vsel %vm5417, 0, %v5416
        %v5419 = vsub.s32 32, %v5418
        %v5420 = vshll.u32 %v5411, %v5418
        %v5421 = vshrl.u32 %v5403, %v5419
        %v5422 = vor.u32 %v5420, %v5421
        %v5423 = vsub.s32 4294967266, %v5418
        %v5424 = vadd.s32 %v5423, 127
        %v5425 = vshll.u32 %v5424, 23
        %v5426 = vor.u32 4788187, %v5425
        %v5427 = vand.u32 2147483647, %v5426
        %v5429 = vcvt.s32.f32 %v5422
        %v5430 = vmul.f32 %v5429, %v5427
        %v5431 = vxor.u32 %v5430, 2147483648
        %v5432 = vsel %vm5349, %v5431, %v5430
        %v5433 = vsub.s32 4, %v5409
        %v5434 = vsel %vm5349, %v5433, %v5409
        %v5435 = vsel %vm5348, %v204, %v5432
        %v5436 = vsel %vm5348, 0, %v5434
        %v5437 = vcosq.f32.pop %v5435
        %v5438 = vsinq.f32.pop %v5435
        %vm5439 = vweird.f32 %v204
        %v5440 = vadd.s32 %v5436, 3
        %v5441 = vand.u32 %v5440, 3
        %vm5442 = vcmp.lt.s32.totalorder %v5441, 2
        %vm5443 = vcmp.eq.s32.totalorder %v5441, 0
        %v5444 = vxor.u32 %v5438, 2147483648
        %v5445 = vsel %vm5443, %v5437, %v5444
        %vm5446 = vcmp.eq.s32.totalorder %v5441, 2
        %v5447 = vxor.u32 %v5437, 2147483648
        %v5448 = vsel %vm5446, %v5447, %v5438
        %v5449 = vsel %vm5442, %v5445, %v5448
        %v5450 = vsel %vm5439, nan, %v5449
        %v5451 = vand.u32 2147483647, %v205
        %vm5452 = vcmp.le.f32.partialorder %v5451, 0.7853982
        %vm5453 = vcmp.lt.s32.totalorder %v205, 0
        %v5454 = vand.u32 %v205, 2139095040
        %v5455 = vshrl.u32 %v5454, 23
        %v5456 = vsub.s32 %v5455, 127
        %v5457 = vand.u32 2147483647, %v205
        %v5458 = vand.u32 %v5457, 8388607
        %v5459 = vor.u32 %v5458, 8388608
        %v5460 = vsub.s32 0, %v5459
        %v5461 = vadd.s32 %v5456, 1
        %vm5462 = vcmp.gt.s32.totalorder %v5461, 0
        %v5463 = vsel %vm5462, %v5461, 0
        %v5464 = vshrl.u32 %v5463, 5
        %v5465 = vand.u32 %v5463, 31
        %v5466 = vsub.s32 32, %v5465
        %v5467 = vshrl.u32 683565275, %v5466
        %v5468 = vshll.u32 683565275, %v5465
        %v5469 = vshrl.u32 2475754826, %v5466
        %v5470 = vor.u32 %v5468, %v5469
        %v5471 = vshll.u32 2475754826, %v5465
        %v5472 = vshrl.u32 2131351028, %v5466
        %v5473 = vor.u32 %v5471, %v5472
        %v5474 = vshll.u32 2131351028, %v5465
        %v5475 = vshrl.u32 2102212464, %v5466
        %v5476 = vor.u32 %v5474, %v5475
        %v5477 = vshll.u32 2102212464, %v5465
        %v5478 = vshrl.u32 920167782, %v5466
        %v5479 = vor.u32 %v5477, %v5478
        %v5480 = vshll.u32 920167782, %v5465
        %v5481 = vshrl.u32 1326507024, %v5466
        %v5482 = vor.u32 %v5480, %v5481
        %vm5483 = vcmp.lt.s32.totalorder %v5464, 1
        %vm5484 = vcmp.lt.s32.totalorder %v5464, 2
        %vm5485 = vcmp.lt.s32.totalorder %v5464, 3
        %vm5486 = vcmp.lt.s32.totalorder %v5464, 4
        %v5487 = vsel %vm5483, %v5467, %v5470
        %v5488 = vsel %vm5486, %v5476, 2102212464
        %v5489 = vsel %vm5485, %v5473, %v5488
        %v5490 = vsel %vm5484, %v5487, %v5489
        %v5491 = vsel %vm5483, %v5470, %v5473
        %v5492 = vsel %vm5486, %v5479, 920167782
        %v5493 = vsel %vm5485, %v5476, %v5492
        %v5494 = vsel %vm5484, %v5491, %v5493
        %v5495 = vsel %vm5483, %v5473, %v5476
        %v5496 = vsel %vm5486, %v5482, 1326507024
        %v5497 = vsel %vm5485, %v5479, %v5496
        %v5498 = vsel %vm5484, %v5495, %v5497
        %v5499 = vshll.u32 %v5459, 8
        %v5500 = vmul.u32.u64.compose %v5499, %v5498
        %v5501 = vextract.low.u32 %v5500
        %v5502 = vextract.high.u32 %v5500
        %v5503 = vmul.u32.u64.compose %v5499, %v5494
        %v5504 = vextract.low.u32 %v5503
        %v5505 = vextract.high.u32 %v5503
        %v5506 = vmul.u32 %v5499, %v5490
        %v5507 = vadd.s32 %v5502, %v5504
        %vm5508 = vc.u32 %v5502, %v5504
        %v5509 = vadd.s32 %v5505, 1
        %v5510 = vsel %vm5508, %v5509, %v5505
        %v5511 = vadd.s32 %v5506, %v5510
        %v5512 = vadd.s32 %v5511, 536870912
        %v5513 = vshrl.u32 %v5512, 30
        %v5514 = vshll.u32 %v5513, 30
        %v5515 = vsub.s32 %v5511, %v5514
        %vm5516 = vcmp.lt.s32.totalorder %v5515, 0
        %v5517 = vsub.s32 0, %v5515
        %v5518 = vsel %vm5516, %v5517, %v5515
        %v5519 = vclz %v5518
        %v5520 = vsub.s32 %v5519, 2
        %vm5521 = vcmp.gt.s32.totalorder 0, %v5520
        %v5522 = vsel %vm5521, 0, %v5520
        %v5523 = vsub.s32 32, %v5522
        %v5524 = vshll.u32 %v5515, %v5522
        %v5525 = vshrl.u32 %v5507, %v5523
        %v5526 = vor.u32 %v5524, %v5525
        %v5527 = vsub.s32 4294967266, %v5522
        %v5528 = vadd.s32 %v5527, 127
        %v5529 = vshll.u32 %v5528, 23
        %v5530 = vor.u32 4788187, %v5529
        %v5531 = vand.u32 2147483647, %v5530
        %v5533 = vcvt.s32.f32 %v5526
        %v5534 = vmul.f32 %v5533, %v5531
        %v5535 = vxor.u32 %v5534, 2147483648
        %v5536 = vsel %vm5453, %v5535, %v5534
        %v5537 = vsub.s32 4, %v5513
        %v5538 = vsel %vm5453, %v5537, %v5513
        %v5539 = vsel %vm5452, %v205, %v5536
        %v5540 = vsel %vm5452, 0, %v5538
        %v5541 = vcosq.f32.pop %v5539
        %v5542 = vsinq.f32.pop %v5539
        %vm5543 = vweird.f32 %v205
        %v5544 = vadd.s32 %v5540, 3
        %v5545 = vand.u32 %v5544, 3
        %vm5546 = vcmp.lt.s32.totalorder %v5545, 2
        %vm5547 = vcmp.eq.s32.totalorder %v5545, 0
        %v5548 = vxor.u32 %v5542, 2147483648
        %v5549 = vsel %vm5547, %v5541, %v5548
        %vm5550 = vcmp.eq.s32.totalorder %v5545, 2
        %v5551 = vxor.u32 %v5541, 2147483648
        %v5552 = vsel %vm5550, %v5551, %v5542
        %v5553 = vsel %vm5546, %v5549, %v5552
        %v5554 = vsel %vm5543, nan, %v5553
        %v5555 = vand.u32 2147483647, %v206
        %vm5556 = vcmp.le.f32.partialorder %v5555, 0.7853982
        %vm5557 = vcmp.lt.s32.totalorder %v206, 0
        %v5558 = vand.u32 %v206, 2139095040
        %v5559 = vshrl.u32 %v5558, 23
        %v5560 = vsub.s32 %v5559, 127
        %v5561 = vand.u32 2147483647, %v206
        %v5562 = vand.u32 %v5561, 8388607
        %v5563 = vor.u32 %v5562, 8388608
        %v5564 = vsub.s32 0, %v5563
        %v5565 = vadd.s32 %v5560, 1
        %vm5566 = vcmp.gt.s32.totalorder %v5565, 0
        %v5567 = vsel %vm5566, %v5565, 0
        %v5568 = vshrl.u32 %v5567, 5
        %v5569 = vand.u32 %v5567, 31
        %v5570 = vsub.s32 32, %v5569
        %v5571 = vshrl.u32 683565275, %v5570
        %v5572 = vshll.u32 683565275, %v5569
        %v5573 = vshrl.u32 2475754826, %v5570
        %v5574 = vor.u32 %v5572, %v5573
        %v5575 = vshll.u32 2475754826, %v5569
        %v5576 = vshrl.u32 2131351028, %v5570
        %v5577 = vor.u32 %v5575, %v5576
        %v5578 = vshll.u32 2131351028, %v5569
        %v5579 = vshrl.u32 2102212464, %v5570
        %v5580 = vor.u32 %v5578, %v5579
        %v5581 = vshll.u32 2102212464, %v5569
        %v5582 = vshrl.u32 920167782, %v5570
        %v5583 = vor.u32 %v5581, %v5582
        %v5584 = vshll.u32 920167782, %v5569
        %v5585 = vshrl.u32 1326507024, %v5570
        %v5586 = vor.u32 %v5584, %v5585
        %vm5587 = vcmp.lt.s32.totalorder %v5568, 1
        %vm5588 = vcmp.lt.s32.totalorder %v5568, 2
        %vm5589 = vcmp.lt.s32.totalorder %v5568, 3
        %vm5590 = vcmp.lt.s32.totalorder %v5568, 4
        %v5591 = vsel %vm5587, %v5571, %v5574
        %v5592 = vsel %vm5590, %v5580, 2102212464
        %v5593 = vsel %vm5589, %v5577, %v5592
        %v5594 = vsel %vm5588, %v5591, %v5593
        %v5595 = vsel %vm5587, %v5574, %v5577
        %v5596 = vsel %vm5590, %v5583, 920167782
        %v5597 = vsel %vm5589, %v5580, %v5596
        %v5598 = vsel %vm5588, %v5595, %v5597
        %v5599 = vsel %vm5587, %v5577, %v5580
        %v5600 = vsel %vm5590, %v5586, 1326507024
        %v5601 = vsel %vm5589, %v5583, %v5600
        %v5602 = vsel %vm5588, %v5599, %v5601
        %v5603 = vshll.u32 %v5563, 8
        %v5604 = vmul.u32.u64.compose %v5603, %v5602
        %v5605 = vextract.low.u32 %v5604
        %v5606 = vextract.high.u32 %v5604
        %v5607 = vmul.u32.u64.compose %v5603, %v5598
        %v5608 = vextract.low.u32 %v5607
        %v5609 = vextract.high.u32 %v5607
        %v5610 = vmul.u32 %v5603, %v5594
        %v5611 = vadd.s32 %v5606, %v5608
        %vm5612 = vc.u32 %v5606, %v5608
        %v5613 = vadd.s32 %v5609, 1
        %v5614 = vsel %vm5612, %v5613, %v5609
        %v5615 = vadd.s32 %v5610, %v5614
        %v5616 = vadd.s32 %v5615, 536870912
        %v5617 = vshrl.u32 %v5616, 30
        %v5618 = vshll.u32 %v5617, 30
        %v5619 = vsub.s32 %v5615, %v5618
        %vm5620 = vcmp.lt.s32.totalorder %v5619, 0
        %v5621 = vsub.s32 0, %v5619
        %v5622 = vsel %vm5620, %v5621, %v5619
        %v5623 = vclz %v5622
        %v5624 = vsub.s32 %v5623, 2
        %vm5625 = vcmp.gt.s32.totalorder 0, %v5624
        %v5626 = vsel %vm5625, 0, %v5624
        %v5627 = vsub.s32 32, %v5626
        %v5628 = vshll.u32 %v5619, %v5626
        %v5629 = vshrl.u32 %v5611, %v5627
        %v5630 = vor.u32 %v5628, %v5629
        %v5631 = vsub.s32 4294967266, %v5626
        %v5632 = vadd.s32 %v5631, 127
        %v5633 = vshll.u32 %v5632, 23
        %v5634 = vor.u32 4788187, %v5633
        %v5635 = vand.u32 2147483647, %v5634
        %v5637 = vcvt.s32.f32 %v5630
        %v5638 = vmul.f32 %v5637, %v5635
        %v5639 = vxor.u32 %v5638, 2147483648
        %v5640 = vsel %vm5557, %v5639, %v5638
        %v5641 = vsub.s32 4, %v5617
        %v5642 = vsel %vm5557, %v5641, %v5617
        %v5643 = vsel %vm5556, %v206, %v5640
        %v5644 = vsel %vm5556, 0, %v5642
        %v5645 = vcosq.f32.pop %v5643
        %v5646 = vsinq.f32.pop %v5643
        %vm5647 = vweird.f32 %v206
        %v5648 = vadd.s32 %v5644, 3
        %v5649 = vand.u32 %v5648, 3
        %vm5650 = vcmp.lt.s32.totalorder %v5649, 2
        %vm5651 = vcmp.eq.s32.totalorder %v5649, 0
        %v5652 = vxor.u32 %v5646, 2147483648
        %v5653 = vsel %vm5651, %v5645, %v5652
        %vm5654 = vcmp.eq.s32.totalorder %v5649, 2
        %v5655 = vxor.u32 %v5645, 2147483648
        %v5656 = vsel %vm5654, %v5655, %v5646
        %v5657 = vsel %vm5650, %v5653, %v5656
        %v5658 = vsel %vm5647, nan, %v5657
        %v5659 = vand.u32 2147483647, %v207
        %vm5660 = vcmp.le.f32.partialorder %v5659, 0.7853982
        %vm5661 = vcmp.lt.s32.totalorder %v207, 0
        %v5662 = vand.u32 %v207, 2139095040
        %v5663 = vshrl.u32 %v5662, 23
        %v5664 = vsub.s32 %v5663, 127
        %v5665 = vand.u32 2147483647, %v207
        %v5666 = vand.u32 %v5665, 8388607
        %v5667 = vor.u32 %v5666, 8388608
        %v5668 = vsub.s32 0, %v5667
        %v5669 = vadd.s32 %v5664, 1
        %vm5670 = vcmp.gt.s32.totalorder %v5669, 0
        %v5671 = vsel %vm5670, %v5669, 0
        %v5672 = vshrl.u32 %v5671, 5
        %v5673 = vand.u32 %v5671, 31
        %v5674 = vsub.s32 32, %v5673
        %v5675 = vshrl.u32 683565275, %v5674
        %v5676 = vshll.u32 683565275, %v5673
        %v5677 = vshrl.u32 2475754826, %v5674
        %v5678 = vor.u32 %v5676, %v5677
        %v5679 = vshll.u32 2475754826, %v5673
        %v5680 = vshrl.u32 2131351028, %v5674
        %v5681 = vor.u32 %v5679, %v5680
        %v5682 = vshll.u32 2131351028, %v5673
        %v5683 = vshrl.u32 2102212464, %v5674
        %v5684 = vor.u32 %v5682, %v5683
        %v5685 = vshll.u32 2102212464, %v5673
        %v5686 = vshrl.u32 920167782, %v5674
        %v5687 = vor.u32 %v5685, %v5686
        %v5688 = vshll.u32 920167782, %v5673
        %v5689 = vshrl.u32 1326507024, %v5674
        %v5690 = vor.u32 %v5688, %v5689
        %vm5691 = vcmp.lt.s32.totalorder %v5672, 1
        %vm5692 = vcmp.lt.s32.totalorder %v5672, 2
        %vm5693 = vcmp.lt.s32.totalorder %v5672, 3
        %vm5694 = vcmp.lt.s32.totalorder %v5672, 4
        %v5695 = vsel %vm5691, %v5675, %v5678
        %v5696 = vsel %vm5694, %v5684, 2102212464
        %v5697 = vsel %vm5693, %v5681, %v5696
        %v5698 = vsel %vm5692, %v5695, %v5697
        %v5699 = vsel %vm5691, %v5678, %v5681
        %v5700 = vsel %vm5694, %v5687, 920167782
        %v5701 = vsel %vm5693, %v5684, %v5700
        %v5702 = vsel %vm5692, %v5699, %v5701
        %v5703 = vsel %vm5691, %v5681, %v5684
        %v5704 = vsel %vm5694, %v5690, 1326507024
        %v5705 = vsel %vm5693, %v5687, %v5704
        %v5706 = vsel %vm5692, %v5703, %v5705
        %v5707 = vshll.u32 %v5667, 8
        %v5708 = vmul.u32.u64.compose %v5707, %v5706
        %v5709 = vextract.low.u32 %v5708
        %v5710 = vextract.high.u32 %v5708
        %v5711 = vmul.u32.u64.compose %v5707, %v5702
        %v5712 = vextract.low.u32 %v5711
        %v5713 = vextract.high.u32 %v5711
        %v5714 = vmul.u32 %v5707, %v5698
        %v5715 = vadd.s32 %v5710, %v5712
        %vm5716 = vc.u32 %v5710, %v5712
        %v5717 = vadd.s32 %v5713, 1
        %v5718 = vsel %vm5716, %v5717, %v5713
        %v5719 = vadd.s32 %v5714, %v5718
        %v5720 = vadd.s32 %v5719, 536870912
        %v5721 = vshrl.u32 %v5720, 30
        %v5722 = vshll.u32 %v5721, 30
        %v5723 = vsub.s32 %v5719, %v5722
        %vm5724 = vcmp.lt.s32.totalorder %v5723, 0
        %v5725 = vsub.s32 0, %v5723
        %v5726 = vsel %vm5724, %v5725, %v5723
        %v5727 = vclz %v5726
        %v5728 = vsub.s32 %v5727, 2
        %vm5729 = vcmp.gt.s32.totalorder 0, %v5728
        %v5730 = vsel %vm5729, 0, %v5728
        %v5731 = vsub.s32 32, %v5730
        %v5732 = vshll.u32 %v5723, %v5730
        %v5733 = vshrl.u32 %v5715, %v5731
        %v5734 = vor.u32 %v5732, %v5733
        %v5735 = vsub.s32 4294967266, %v5730
        %v5736 = vadd.s32 %v5735, 127
        %v5737 = vshll.u32 %v5736, 23
        %v5738 = vor.u32 4788187, %v5737
        %v5739 = vand.u32 2147483647, %v5738
        %v5741 = vcvt.s32.f32 %v5734
        %v5742 = vmul.f32 %v5741, %v5739
        %v5743 = vxor.u32 %v5742, 2147483648
        %v5744 = vsel %vm5661, %v5743, %v5742
        %v5745 = vsub.s32 4, %v5721
        %v5746 = vsel %vm5661, %v5745, %v5721
        %v5747 = vsel %vm5660, %v207, %v5744
        %v5748 = vsel %vm5660, 0, %v5746
        %v5749 = vcosq.f32.pop %v5747
        %v5750 = vsinq.f32.pop %v5747
        %vm5751 = vweird.f32 %v207
        %v5752 = vadd.s32 %v5748, 3
        %v5753 = vand.u32 %v5752, 3
        %vm5754 = vcmp.lt.s32.totalorder %v5753, 2
        %vm5755 = vcmp.eq.s32.totalorder %v5753, 0
        %v5756 = vxor.u32 %v5750, 2147483648
        %v5757 = vsel %vm5755, %v5749, %v5756
        %vm5758 = vcmp.eq.s32.totalorder %v5753, 2
        %v5759 = vxor.u32 %v5749, 2147483648
        %v5760 = vsel %vm5758, %v5759, %v5750
        %v5761 = vsel %vm5754, %v5757, %v5760
        %v5762 = vsel %vm5751, nan, %v5761
        %v5763 = vand.u32 2147483647, %v208
        %vm5764 = vcmp.le.f32.partialorder %v5763, 0.7853982
        %vm5765 = vcmp.lt.s32.totalorder %v208, 0
        %v5766 = vand.u32 %v208, 2139095040
        %v5767 = vshrl.u32 %v5766, 23
        %v5768 = vsub.s32 %v5767, 127
        %v5769 = vand.u32 2147483647, %v208
        %v5770 = vand.u32 %v5769, 8388607
        %v5771 = vor.u32 %v5770, 8388608
        %v5772 = vsub.s32 0, %v5771
        %v5773 = vadd.s32 %v5768, 1
        %vm5774 = vcmp.gt.s32.totalorder %v5773, 0
        %v5775 = vsel %vm5774, %v5773, 0
        %v5776 = vshrl.u32 %v5775, 5
        %v5777 = vand.u32 %v5775, 31
        %v5778 = vsub.s32 32, %v5777
        %v5779 = vshrl.u32 683565275, %v5778
        %v5780 = vshll.u32 683565275, %v5777
        %v5781 = vshrl.u32 2475754826, %v5778
        %v5782 = vor.u32 %v5780, %v5781
        %v5783 = vshll.u32 2475754826, %v5777
        %v5784 = vshrl.u32 2131351028, %v5778
        %v5785 = vor.u32 %v5783, %v5784
        %v5786 = vshll.u32 2131351028, %v5777
        %v5787 = vshrl.u32 2102212464, %v5778
        %v5788 = vor.u32 %v5786, %v5787
        %v5789 = vshll.u32 2102212464, %v5777
        %v5790 = vshrl.u32 920167782, %v5778
        %v5791 = vor.u32 %v5789, %v5790
        %v5792 = vshll.u32 920167782, %v5777
        %v5793 = vshrl.u32 1326507024, %v5778
        %v5794 = vor.u32 %v5792, %v5793
        %vm5795 = vcmp.lt.s32.totalorder %v5776, 1
        %vm5796 = vcmp.lt.s32.totalorder %v5776, 2
        %vm5797 = vcmp.lt.s32.totalorder %v5776, 3
        %vm5798 = vcmp.lt.s32.totalorder %v5776, 4
        %v5799 = vsel %vm5795, %v5779, %v5782
        %v5800 = vsel %vm5798, %v5788, 2102212464
        %v5801 = vsel %vm5797, %v5785, %v5800
        %v5802 = vsel %vm5796, %v5799, %v5801
        %v5803 = vsel %vm5795, %v5782, %v5785
        %v5804 = vsel %vm5798, %v5791, 920167782
        %v5805 = vsel %vm5797, %v5788, %v5804
        %v5806 = vsel %vm5796, %v5803, %v5805
        %v5807 = vsel %vm5795, %v5785, %v5788
        %v5808 = vsel %vm5798, %v5794, 1326507024
        %v5809 = vsel %vm5797, %v5791, %v5808
        %v5810 = vsel %vm5796, %v5807, %v5809
        %v5811 = vshll.u32 %v5771, 8
        %v5812 = vmul.u32.u64.compose %v5811, %v5810
        %v5813 = vextract.low.u32 %v5812
        %v5814 = vextract.high.u32 %v5812
        %v5815 = vmul.u32.u64.compose %v5811, %v5806
        %v5816 = vextract.low.u32 %v5815
        %v5817 = vextract.high.u32 %v5815
        %v5818 = vmul.u32 %v5811, %v5802
        %v5819 = vadd.s32 %v5814, %v5816
        %vm5820 = vc.u32 %v5814, %v5816
        %v5821 = vadd.s32 %v5817, 1
        %v5822 = vsel %vm5820, %v5821, %v5817
        %v5823 = vadd.s32 %v5818, %v5822
        %v5824 = vadd.s32 %v5823, 536870912
        %v5825 = vshrl.u32 %v5824, 30
        %v5826 = vshll.u32 %v5825, 30
        %v5827 = vsub.s32 %v5823, %v5826
        %vm5828 = vcmp.lt.s32.totalorder %v5827, 0
        %v5829 = vsub.s32 0, %v5827
        %v5830 = vsel %vm5828, %v5829, %v5827
        %v5831 = vclz %v5830
        %v5832 = vsub.s32 %v5831, 2
        %vm5833 = vcmp.gt.s32.totalorder 0, %v5832
        %v5834 = vsel %vm5833, 0, %v5832
        %v5835 = vsub.s32 32, %v5834
        %v5836 = vshll.u32 %v5827, %v5834
        %v5837 = vshrl.u32 %v5819, %v5835
        %v5838 = vor.u32 %v5836, %v5837
        %v5839 = vsub.s32 4294967266, %v5834
        %v5840 = vadd.s32 %v5839, 127
        %v5841 = vshll.u32 %v5840, 23
        %v5842 = vor.u32 4788187, %v5841
        %v5843 = vand.u32 2147483647, %v5842
        %v5845 = vcvt.s32.f32 %v5838
        %v5846 = vmul.f32 %v5845, %v5843
        %v5847 = vxor.u32 %v5846, 2147483648
        %v5848 = vsel %vm5765, %v5847, %v5846
        %v5849 = vsub.s32 4, %v5825
        %v5850 = vsel %vm5765, %v5849, %v5825
        %v5851 = vsel %vm5764, %v208, %v5848
        %v5852 = vsel %vm5764, 0, %v5850
        %v5853 = vcosq.f32.pop %v5851
        %v5854 = vsinq.f32.pop %v5851
        %vm5855 = vweird.f32 %v208
        %v5856 = vadd.s32 %v5852, 3
        %v5857 = vand.u32 %v5856, 3
        %vm5858 = vcmp.lt.s32.totalorder %v5857, 2
        %vm5859 = vcmp.eq.s32.totalorder %v5857, 0
        %v5860 = vxor.u32 %v5854, 2147483648
        %v5861 = vsel %vm5859, %v5853, %v5860
        %vm5862 = vcmp.eq.s32.totalorder %v5857, 2
        %v5863 = vxor.u32 %v5853, 2147483648
        %v5864 = vsel %vm5862, %v5863, %v5854
        %v5865 = vsel %vm5858, %v5861, %v5864
        %v5866 = vsel %vm5855, nan, %v5865
        %v5867 = vand.u32 2147483647, %v209
        %vm5868 = vcmp.le.f32.partialorder %v5867, 0.7853982
        %vm5869 = vcmp.lt.s32.totalorder %v209, 0
        %v5870 = vand.u32 %v209, 2139095040
        %v5871 = vshrl.u32 %v5870, 23
        %v5872 = vsub.s32 %v5871, 127
        %v5873 = vand.u32 2147483647, %v209
        %v5874 = vand.u32 %v5873, 8388607
        %v5875 = vor.u32 %v5874, 8388608
        %v5876 = vsub.s32 0, %v5875
        %v5877 = vadd.s32 %v5872, 1
        %vm5878 = vcmp.gt.s32.totalorder %v5877, 0
        %v5879 = vsel %vm5878, %v5877, 0
        %v5880 = vshrl.u32 %v5879, 5
        %v5881 = vand.u32 %v5879, 31
        %v5882 = vsub.s32 32, %v5881
        %v5883 = vshrl.u32 683565275, %v5882
        %v5884 = vshll.u32 683565275, %v5881
        %v5885 = vshrl.u32 2475754826, %v5882
        %v5886 = vor.u32 %v5884, %v5885
        %v5887 = vshll.u32 2475754826, %v5881
        %v5888 = vshrl.u32 2131351028, %v5882
        %v5889 = vor.u32 %v5887, %v5888
        %v5890 = vshll.u32 2131351028, %v5881
        %v5891 = vshrl.u32 2102212464, %v5882
        %v5892 = vor.u32 %v5890, %v5891
        %v5893 = vshll.u32 2102212464, %v5881
        %v5894 = vshrl.u32 920167782, %v5882
        %v5895 = vor.u32 %v5893, %v5894
        %v5896 = vshll.u32 920167782, %v5881
        %v5897 = vshrl.u32 1326507024, %v5882
        %v5898 = vor.u32 %v5896, %v5897
        %vm5899 = vcmp.lt.s32.totalorder %v5880, 1
        %vm5900 = vcmp.lt.s32.totalorder %v5880, 2
        %vm5901 = vcmp.lt.s32.totalorder %v5880, 3
        %vm5902 = vcmp.lt.s32.totalorder %v5880, 4
        %v5903 = vsel %vm5899, %v5883, %v5886
        %v5904 = vsel %vm5902, %v5892, 2102212464
        %v5905 = vsel %vm5901, %v5889, %v5904
        %v5906 = vsel %vm5900, %v5903, %v5905
        %v5907 = vsel %vm5899, %v5886, %v5889
        %v5908 = vsel %vm5902, %v5895, 920167782
        %v5909 = vsel %vm5901, %v5892, %v5908
        %v5910 = vsel %vm5900, %v5907, %v5909
        %v5911 = vsel %vm5899, %v5889, %v5892
        %v5912 = vsel %vm5902, %v5898, 1326507024
        %v5913 = vsel %vm5901, %v5895, %v5912
        %v5914 = vsel %vm5900, %v5911, %v5913
        %v5915 = vshll.u32 %v5875, 8
        %v5916 = vmul.u32.u64.compose %v5915, %v5914
        %v5917 = vextract.low.u32 %v5916
        %v5918 = vextract.high.u32 %v5916
        %v5919 = vmul.u32.u64.compose %v5915, %v5910
        %v5920 = vextract.low.u32 %v5919
        %v5921 = vextract.high.u32 %v5919
        %v5922 = vmul.u32 %v5915, %v5906
        %v5923 = vadd.s32 %v5918, %v5920
        %vm5924 = vc.u32 %v5918, %v5920
        %v5925 = vadd.s32 %v5921, 1
        %v5926 = vsel %vm5924, %v5925, %v5921
        %v5927 = vadd.s32 %v5922, %v5926
        %v5928 = vadd.s32 %v5927, 536870912
        %v5929 = vshrl.u32 %v5928, 30
        %v5930 = vshll.u32 %v5929, 30
        %v5931 = vsub.s32 %v5927, %v5930
        %vm5932 = vcmp.lt.s32.totalorder %v5931, 0
        %v5933 = vsub.s32 0, %v5931
        %v5934 = vsel %vm5932, %v5933, %v5931
        %v5935 = vclz %v5934
        %v5936 = vsub.s32 %v5935, 2
        %vm5937 = vcmp.gt.s32.totalorder 0, %v5936
        %v5938 = vsel %vm5937, 0, %v5936
        %v5939 = vsub.s32 32, %v5938
        %v5940 = vshll.u32 %v5931, %v5938
        %v5941 = vshrl.u32 %v5923, %v5939
        %v5942 = vor.u32 %v5940, %v5941
        %v5943 = vsub.s32 4294967266, %v5938
        %v5944 = vadd.s32 %v5943, 127
        %v5945 = vshll.u32 %v5944, 23
        %v5946 = vor.u32 4788187, %v5945
        %v5947 = vand.u32 2147483647, %v5946
        %v5949 = vcvt.s32.f32 %v5942
        %v5950 = vmul.f32 %v5949, %v5947
        %v5951 = vxor.u32 %v5950, 2147483648
        %v5952 = vsel %vm5869, %v5951, %v5950
        %v5953 = vsub.s32 4, %v5929
        %v5954 = vsel %vm5869, %v5953, %v5929
        %v5955 = vsel %vm5868, %v209, %v5952
        %v5956 = vsel %vm5868, 0, %v5954
        %v5957 = vcosq.f32.pop %v5955
        %v5958 = vsinq.f32.pop %v5955
        %vm5959 = vweird.f32 %v209
        %v5960 = vadd.s32 %v5956, 3
        %v5961 = vand.u32 %v5960, 3
        %vm5962 = vcmp.lt.s32.totalorder %v5961, 2
        %vm5963 = vcmp.eq.s32.totalorder %v5961, 0
        %v5964 = vxor.u32 %v5958, 2147483648
        %v5965 = vsel %vm5963, %v5957, %v5964
        %vm5966 = vcmp.eq.s32.totalorder %v5961, 2
        %v5967 = vxor.u32 %v5957, 2147483648
        %v5968 = vsel %vm5966, %v5967, %v5958
        %v5969 = vsel %vm5962, %v5965, %v5968
        %v5970 = vsel %vm5959, nan, %v5969
        %v5971 = vand.u32 2147483647, %v210
        %vm5972 = vcmp.le.f32.partialorder %v5971, 0.7853982
        %vm5973 = vcmp.lt.s32.totalorder %v210, 0
        %v5974 = vand.u32 %v210, 2139095040
        %v5975 = vshrl.u32 %v5974, 23
        %v5976 = vsub.s32 %v5975, 127
        %v5977 = vand.u32 2147483647, %v210
        %v5978 = vand.u32 %v5977, 8388607
        %v5979 = vor.u32 %v5978, 8388608
        %v5980 = vsub.s32 0, %v5979
        %v5981 = vadd.s32 %v5976, 1
        %vm5982 = vcmp.gt.s32.totalorder %v5981, 0
        %v5983 = vsel %vm5982, %v5981, 0
        %v5984 = vshrl.u32 %v5983, 5
        %v5985 = vand.u32 %v5983, 31
        %v5986 = vsub.s32 32, %v5985
        %v5987 = vshrl.u32 683565275, %v5986
        %v5988 = vshll.u32 683565275, %v5985
        %v5989 = vshrl.u32 2475754826, %v5986
        %v5990 = vor.u32 %v5988, %v5989
        %v5991 = vshll.u32 2475754826, %v5985
        %v5992 = vshrl.u32 2131351028, %v5986
        %v5993 = vor.u32 %v5991, %v5992
        %v5994 = vshll.u32 2131351028, %v5985
        %v5995 = vshrl.u32 2102212464, %v5986
        %v5996 = vor.u32 %v5994, %v5995
        %v5997 = vshll.u32 2102212464, %v5985
        %v5998 = vshrl.u32 920167782, %v5986
        %v5999 = vor.u32 %v5997, %v5998
        %v6000 = vshll.u32 920167782, %v5985
        %v6001 = vshrl.u32 1326507024, %v5986
        %v6002 = vor.u32 %v6000, %v6001
        %vm6003 = vcmp.lt.s32.totalorder %v5984, 1
        %vm6004 = vcmp.lt.s32.totalorder %v5984, 2
        %vm6005 = vcmp.lt.s32.totalorder %v5984, 3
        %vm6006 = vcmp.lt.s32.totalorder %v5984, 4
        %v6007 = vsel %vm6003, %v5987, %v5990
        %v6008 = vsel %vm6006, %v5996, 2102212464
        %v6009 = vsel %vm6005, %v5993, %v6008
        %v6010 = vsel %vm6004, %v6007, %v6009
        %v6011 = vsel %vm6003, %v5990, %v5993
        %v6012 = vsel %vm6006, %v5999, 920167782
        %v6013 = vsel %vm6005, %v5996, %v6012
        %v6014 = vsel %vm6004, %v6011, %v6013
        %v6015 = vsel %vm6003, %v5993, %v5996
        %v6016 = vsel %vm6006, %v6002, 1326507024
        %v6017 = vsel %vm6005, %v5999, %v6016
        %v6018 = vsel %vm6004, %v6015, %v6017
        %v6019 = vshll.u32 %v5979, 8
        %v6020 = vmul.u32.u64.compose %v6019, %v6018
        %v6021 = vextract.low.u32 %v6020
        %v6022 = vextract.high.u32 %v6020
        %v6023 = vmul.u32.u64.compose %v6019, %v6014
        %v6024 = vextract.low.u32 %v6023
        %v6025 = vextract.high.u32 %v6023
        %v6026 = vmul.u32 %v6019, %v6010
        %v6027 = vadd.s32 %v6022, %v6024
        %vm6028 = vc.u32 %v6022, %v6024
        %v6029 = vadd.s32 %v6025, 1
        %v6030 = vsel %vm6028, %v6029, %v6025
        %v6031 = vadd.s32 %v6026, %v6030
        %v6032 = vadd.s32 %v6031, 536870912
        %v6033 = vshrl.u32 %v6032, 30
        %v6034 = vshll.u32 %v6033, 30
        %v6035 = vsub.s32 %v6031, %v6034
        %vm6036 = vcmp.lt.s32.totalorder %v6035, 0
        %v6037 = vsub.s32 0, %v6035
        %v6038 = vsel %vm6036, %v6037, %v6035
        %v6039 = vclz %v6038
        %v6040 = vsub.s32 %v6039, 2
        %vm6041 = vcmp.gt.s32.totalorder 0, %v6040
        %v6042 = vsel %vm6041, 0, %v6040
        %v6043 = vsub.s32 32, %v6042
        %v6044 = vshll.u32 %v6035, %v6042
        %v6045 = vshrl.u32 %v6027, %v6043
        %v6046 = vor.u32 %v6044, %v6045
        %v6047 = vsub.s32 4294967266, %v6042
        %v6048 = vadd.s32 %v6047, 127
        %v6049 = vshll.u32 %v6048, 23
        %v6050 = vor.u32 4788187, %v6049
        %v6051 = vand.u32 2147483647, %v6050
        %v6053 = vcvt.s32.f32 %v6046
        %v6054 = vmul.f32 %v6053, %v6051
        %v6055 = vxor.u32 %v6054, 2147483648
        %v6056 = vsel %vm5973, %v6055, %v6054
        %v6057 = vsub.s32 4, %v6033
        %v6058 = vsel %vm5973, %v6057, %v6033
        %v6059 = vsel %vm5972, %v210, %v6056
        %v6060 = vsel %vm5972, 0, %v6058
        %v6061 = vcosq.f32.pop %v6059
        %v6062 = vsinq.f32.pop %v6059
        %vm6063 = vweird.f32 %v210
        %v6064 = vadd.s32 %v6060, 3
        %v6065 = vand.u32 %v6064, 3
        %vm6066 = vcmp.lt.s32.totalorder %v6065, 2
        %vm6067 = vcmp.eq.s32.totalorder %v6065, 0
        %v6068 = vxor.u32 %v6062, 2147483648
        %v6069 = vsel %vm6067, %v6061, %v6068
        %vm6070 = vcmp.eq.s32.totalorder %v6065, 2
        %v6071 = vxor.u32 %v6061, 2147483648
        %v6072 = vsel %vm6070, %v6071, %v6062
        %v6073 = vsel %vm6066, %v6069, %v6072
        %v6074 = vsel %vm6063, nan, %v6073
        %v6075 = vand.u32 2147483647, %v211
        %vm6076 = vcmp.le.f32.partialorder %v6075, 0.7853982
        %vm6077 = vcmp.lt.s32.totalorder %v211, 0
        %v6078 = vand.u32 %v211, 2139095040
        %v6079 = vshrl.u32 %v6078, 23
        %v6080 = vsub.s32 %v6079, 127
        %v6081 = vand.u32 2147483647, %v211
        %v6082 = vand.u32 %v6081, 8388607
        %v6083 = vor.u32 %v6082, 8388608
        %v6084 = vsub.s32 0, %v6083
        %v6085 = vadd.s32 %v6080, 1
        %vm6086 = vcmp.gt.s32.totalorder %v6085, 0
        %v6087 = vsel %vm6086, %v6085, 0
        %v6088 = vshrl.u32 %v6087, 5
        %v6089 = vand.u32 %v6087, 31
        %v6090 = vsub.s32 32, %v6089
        %v6091 = vshrl.u32 683565275, %v6090
        %v6092 = vshll.u32 683565275, %v6089
        %v6093 = vshrl.u32 2475754826, %v6090
        %v6094 = vor.u32 %v6092, %v6093
        %v6095 = vshll.u32 2475754826, %v6089
        %v6096 = vshrl.u32 2131351028, %v6090
        %v6097 = vor.u32 %v6095, %v6096
        %v6098 = vshll.u32 2131351028, %v6089
        %v6099 = vshrl.u32 2102212464, %v6090
        %v6100 = vor.u32 %v6098, %v6099
        %v6101 = vshll.u32 2102212464, %v6089
        %v6102 = vshrl.u32 920167782, %v6090
        %v6103 = vor.u32 %v6101, %v6102
        %v6104 = vshll.u32 920167782, %v6089
        %v6105 = vshrl.u32 1326507024, %v6090
        %v6106 = vor.u32 %v6104, %v6105
        %vm6107 = vcmp.lt.s32.totalorder %v6088, 1
        %vm6108 = vcmp.lt.s32.totalorder %v6088, 2
        %vm6109 = vcmp.lt.s32.totalorder %v6088, 3
        %vm6110 = vcmp.lt.s32.totalorder %v6088, 4
        %v6111 = vsel %vm6107, %v6091, %v6094
        %v6112 = vsel %vm6110, %v6100, 2102212464
        %v6113 = vsel %vm6109, %v6097, %v6112
        %v6114 = vsel %vm6108, %v6111, %v6113
        %v6115 = vsel %vm6107, %v6094, %v6097
        %v6116 = vsel %vm6110, %v6103, 920167782
        %v6117 = vsel %vm6109, %v6100, %v6116
        %v6118 = vsel %vm6108, %v6115, %v6117
        %v6119 = vsel %vm6107, %v6097, %v6100
        %v6120 = vsel %vm6110, %v6106, 1326507024
        %v6121 = vsel %vm6109, %v6103, %v6120
        %v6122 = vsel %vm6108, %v6119, %v6121
        %v6123 = vshll.u32 %v6083, 8
        %v6124 = vmul.u32.u64.compose %v6123, %v6122
        %v6125 = vextract.low.u32 %v6124
        %v6126 = vextract.high.u32 %v6124
        %v6127 = vmul.u32.u64.compose %v6123, %v6118
        %v6128 = vextract.low.u32 %v6127
        %v6129 = vextract.high.u32 %v6127
        %v6130 = vmul.u32 %v6123, %v6114
        %v6131 = vadd.s32 %v6126, %v6128
        %vm6132 = vc.u32 %v6126, %v6128
        %v6133 = vadd.s32 %v6129, 1
        %v6134 = vsel %vm6132, %v6133, %v6129
        %v6135 = vadd.s32 %v6130, %v6134
        %v6136 = vadd.s32 %v6135, 536870912
        %v6137 = vshrl.u32 %v6136, 30
        %v6138 = vshll.u32 %v6137, 30
        %v6139 = vsub.s32 %v6135, %v6138
        %vm6140 = vcmp.lt.s32.totalorder %v6139, 0
        %v6141 = vsub.s32 0, %v6139
        %v6142 = vsel %vm6140, %v6141, %v6139
        %v6143 = vclz %v6142
        %v6144 = vsub.s32 %v6143, 2
        %vm6145 = vcmp.gt.s32.totalorder 0, %v6144
        %v6146 = vsel %vm6145, 0, %v6144
        %v6147 = vsub.s32 32, %v6146
        %v6148 = vshll.u32 %v6139, %v6146
        %v6149 = vshrl.u32 %v6131, %v6147
        %v6150 = vor.u32 %v6148, %v6149
        %v6151 = vsub.s32 4294967266, %v6146
        %v6152 = vadd.s32 %v6151, 127
        %v6153 = vshll.u32 %v6152, 23
        %v6154 = vor.u32 4788187, %v6153
        %v6155 = vand.u32 2147483647, %v6154
        %v6157 = vcvt.s32.f32 %v6150
        %v6158 = vmul.f32 %v6157, %v6155
        %v6159 = vxor.u32 %v6158, 2147483648
        %v6160 = vsel %vm6077, %v6159, %v6158
        %v6161 = vsub.s32 4, %v6137
        %v6162 = vsel %vm6077, %v6161, %v6137
        %v6163 = vsel %vm6076, %v211, %v6160
        %v6164 = vsel %vm6076, 0, %v6162
        %v6165 = vcosq.f32.pop %v6163
        %v6166 = vsinq.f32.pop %v6163
        %vm6167 = vweird.f32 %v211
        %v6168 = vadd.s32 %v6164, 3
        %v6169 = vand.u32 %v6168, 3
        %vm6170 = vcmp.lt.s32.totalorder %v6169, 2
        %vm6171 = vcmp.eq.s32.totalorder %v6169, 0
        %v6172 = vxor.u32 %v6166, 2147483648
        %v6173 = vsel %vm6171, %v6165, %v6172
        %vm6174 = vcmp.eq.s32.totalorder %v6169, 2
        %v6175 = vxor.u32 %v6165, 2147483648
        %v6176 = vsel %vm6174, %v6175, %v6166
        %v6177 = vsel %vm6170, %v6173, %v6176
        %v6178 = vsel %vm6167, nan, %v6177
        %v6179 = vand.u32 2147483647, %v212
        %vm6180 = vcmp.le.f32.partialorder %v6179, 0.7853982
        %vm6181 = vcmp.lt.s32.totalorder %v212, 0
        %v6182 = vand.u32 %v212, 2139095040
        %v6183 = vshrl.u32 %v6182, 23
        %v6184 = vsub.s32 %v6183, 127
        %v6185 = vand.u32 2147483647, %v212
        %v6186 = vand.u32 %v6185, 8388607
        %v6187 = vor.u32 %v6186, 8388608
        %v6188 = vsub.s32 0, %v6187
        %v6189 = vadd.s32 %v6184, 1
        %vm6190 = vcmp.gt.s32.totalorder %v6189, 0
        %v6191 = vsel %vm6190, %v6189, 0
        %v6192 = vshrl.u32 %v6191, 5
        %v6193 = vand.u32 %v6191, 31
        %v6194 = vsub.s32 32, %v6193
        %v6195 = vshrl.u32 683565275, %v6194
        %v6196 = vshll.u32 683565275, %v6193
        %v6197 = vshrl.u32 2475754826, %v6194
        %v6198 = vor.u32 %v6196, %v6197
        %v6199 = vshll.u32 2475754826, %v6193
        %v6200 = vshrl.u32 2131351028, %v6194
        %v6201 = vor.u32 %v6199, %v6200
        %v6202 = vshll.u32 2131351028, %v6193
        %v6203 = vshrl.u32 2102212464, %v6194
        %v6204 = vor.u32 %v6202, %v6203
        %v6205 = vshll.u32 2102212464, %v6193
        %v6206 = vshrl.u32 920167782, %v6194
        %v6207 = vor.u32 %v6205, %v6206
        %v6208 = vshll.u32 920167782, %v6193
        %v6209 = vshrl.u32 1326507024, %v6194
        %v6210 = vor.u32 %v6208, %v6209
        %vm6211 = vcmp.lt.s32.totalorder %v6192, 1
        %vm6212 = vcmp.lt.s32.totalorder %v6192, 2
        %vm6213 = vcmp.lt.s32.totalorder %v6192, 3
        %vm6214 = vcmp.lt.s32.totalorder %v6192, 4
        %v6215 = vsel %vm6211, %v6195, %v6198
        %v6216 = vsel %vm6214, %v6204, 2102212464
        %v6217 = vsel %vm6213, %v6201, %v6216
        %v6218 = vsel %vm6212, %v6215, %v6217
        %v6219 = vsel %vm6211, %v6198, %v6201
        %v6220 = vsel %vm6214, %v6207, 920167782
        %v6221 = vsel %vm6213, %v6204, %v6220
        %v6222 = vsel %vm6212, %v6219, %v6221
        %v6223 = vsel %vm6211, %v6201, %v6204
        %v6224 = vsel %vm6214, %v6210, 1326507024
        %v6225 = vsel %vm6213, %v6207, %v6224
        %v6226 = vsel %vm6212, %v6223, %v6225
        %v6227 = vshll.u32 %v6187, 8
        %v6228 = vmul.u32.u64.compose %v6227, %v6226
        %v6229 = vextract.low.u32 %v6228
        %v6230 = vextract.high.u32 %v6228
        %v6231 = vmul.u32.u64.compose %v6227, %v6222
        %v6232 = vextract.low.u32 %v6231
        %v6233 = vextract.high.u32 %v6231
        %v6234 = vmul.u32 %v6227, %v6218
        %v6235 = vadd.s32 %v6230, %v6232
        %vm6236 = vc.u32 %v6230, %v6232
        %v6237 = vadd.s32 %v6233, 1
        %v6238 = vsel %vm6236, %v6237, %v6233
        %v6239 = vadd.s32 %v6234, %v6238
        %v6240 = vadd.s32 %v6239, 536870912
        %v6241 = vshrl.u32 %v6240, 30
        %v6242 = vshll.u32 %v6241, 30
        %v6243 = vsub.s32 %v6239, %v6242
        %vm6244 = vcmp.lt.s32.totalorder %v6243, 0
        %v6245 = vsub.s32 0, %v6243
        %v6246 = vsel %vm6244, %v6245, %v6243
        %v6247 = vclz %v6246
        %v6248 = vsub.s32 %v6247, 2
        %vm6249 = vcmp.gt.s32.totalorder 0, %v6248
        %v6250 = vsel %vm6249, 0, %v6248
        %v6251 = vsub.s32 32, %v6250
        %v6252 = vshll.u32 %v6243, %v6250
        %v6253 = vshrl.u32 %v6235, %v6251
        %v6254 = vor.u32 %v6252, %v6253
        %v6255 = vsub.s32 4294967266, %v6250
        %v6256 = vadd.s32 %v6255, 127
        %v6257 = vshll.u32 %v6256, 23
        %v6258 = vor.u32 4788187, %v6257
        %v6259 = vand.u32 2147483647, %v6258
        %v6261 = vcvt.s32.f32 %v6254
        %v6262 = vmul.f32 %v6261, %v6259
        %v6263 = vxor.u32 %v6262, 2147483648
        %v6264 = vsel %vm6181, %v6263, %v6262
        %v6265 = vsub.s32 4, %v6241
        %v6266 = vsel %vm6181, %v6265, %v6241
        %v6267 = vsel %vm6180, %v212, %v6264
        %v6268 = vsel %vm6180, 0, %v6266
        %v6269 = vcosq.f32.pop %v6267
        %v6270 = vsinq.f32.pop %v6267
        %vm6271 = vweird.f32 %v212
        %v6272 = vadd.s32 %v6268, 3
        %v6273 = vand.u32 %v6272, 3
        %vm6274 = vcmp.lt.s32.totalorder %v6273, 2
        %vm6275 = vcmp.eq.s32.totalorder %v6273, 0
        %v6276 = vxor.u32 %v6270, 2147483648
        %v6277 = vsel %vm6275, %v6269, %v6276
        %vm6278 = vcmp.eq.s32.totalorder %v6273, 2
        %v6279 = vxor.u32 %v6269, 2147483648
        %v6280 = vsel %vm6278, %v6279, %v6270
        %v6281 = vsel %vm6274, %v6277, %v6280
        %v6282 = vsel %vm6271, nan, %v6281
        %v6283 = vand.u32 2147483647, %v213
        %vm6284 = vcmp.le.f32.partialorder %v6283, 0.7853982
        %vm6285 = vcmp.lt.s32.totalorder %v213, 0
        %v6286 = vand.u32 %v213, 2139095040
        %v6287 = vshrl.u32 %v6286, 23
        %v6288 = vsub.s32 %v6287, 127
        %v6289 = vand.u32 2147483647, %v213
        %v6290 = vand.u32 %v6289, 8388607
        %v6291 = vor.u32 %v6290, 8388608
        %v6292 = vsub.s32 0, %v6291
        %v6293 = vadd.s32 %v6288, 1
        %vm6294 = vcmp.gt.s32.totalorder %v6293, 0
        %v6295 = vsel %vm6294, %v6293, 0
        %v6296 = vshrl.u32 %v6295, 5
        %v6297 = vand.u32 %v6295, 31
        %v6298 = vsub.s32 32, %v6297
        %v6299 = vshrl.u32 683565275, %v6298
        %v6300 = vshll.u32 683565275, %v6297
        %v6301 = vshrl.u32 2475754826, %v6298
        %v6302 = vor.u32 %v6300, %v6301
        %v6303 = vshll.u32 2475754826, %v6297
        %v6304 = vshrl.u32 2131351028, %v6298
        %v6305 = vor.u32 %v6303, %v6304
        %v6306 = vshll.u32 2131351028, %v6297
        %v6307 = vshrl.u32 2102212464, %v6298
        %v6308 = vor.u32 %v6306, %v6307
        %v6309 = vshll.u32 2102212464, %v6297
        %v6310 = vshrl.u32 920167782, %v6298
        %v6311 = vor.u32 %v6309, %v6310
        %v6312 = vshll.u32 920167782, %v6297
        %v6313 = vshrl.u32 1326507024, %v6298
        %v6314 = vor.u32 %v6312, %v6313
        %vm6315 = vcmp.lt.s32.totalorder %v6296, 1
        %vm6316 = vcmp.lt.s32.totalorder %v6296, 2
        %vm6317 = vcmp.lt.s32.totalorder %v6296, 3
        %vm6318 = vcmp.lt.s32.totalorder %v6296, 4
        %v6319 = vsel %vm6315, %v6299, %v6302
        %v6320 = vsel %vm6318, %v6308, 2102212464
        %v6321 = vsel %vm6317, %v6305, %v6320
        %v6322 = vsel %vm6316, %v6319, %v6321
        %v6323 = vsel %vm6315, %v6302, %v6305
        %v6324 = vsel %vm6318, %v6311, 920167782
        %v6325 = vsel %vm6317, %v6308, %v6324
        %v6326 = vsel %vm6316, %v6323, %v6325
        %v6327 = vsel %vm6315, %v6305, %v6308
        %v6328 = vsel %vm6318, %v6314, 1326507024
        %v6329 = vsel %vm6317, %v6311, %v6328
        %v6330 = vsel %vm6316, %v6327, %v6329
        %v6331 = vshll.u32 %v6291, 8
        %v6332 = vmul.u32.u64.compose %v6331, %v6330
        %v6333 = vextract.low.u32 %v6332
        %v6334 = vextract.high.u32 %v6332
        %v6335 = vmul.u32.u64.compose %v6331, %v6326
        %v6336 = vextract.low.u32 %v6335
        %v6337 = vextract.high.u32 %v6335
        %v6338 = vmul.u32 %v6331, %v6322
        %v6339 = vadd.s32 %v6334, %v6336
        %vm6340 = vc.u32 %v6334, %v6336
        %v6341 = vadd.s32 %v6337, 1
        %v6342 = vsel %vm6340, %v6341, %v6337
        %v6343 = vadd.s32 %v6338, %v6342
        %v6344 = vadd.s32 %v6343, 536870912
        %v6345 = vshrl.u32 %v6344, 30
        %v6346 = vshll.u32 %v6345, 30
        %v6347 = vsub.s32 %v6343, %v6346
        %vm6348 = vcmp.lt.s32.totalorder %v6347, 0
        %v6349 = vsub.s32 0, %v6347
        %v6350 = vsel %vm6348, %v6349, %v6347
        %v6351 = vclz %v6350
        %v6352 = vsub.s32 %v6351, 2
        %vm6353 = vcmp.gt.s32.totalorder 0, %v6352
        %v6354 = vsel %vm6353, 0, %v6352
        %v6355 = vsub.s32 32, %v6354
        %v6356 = vshll.u32 %v6347, %v6354
        %v6357 = vshrl.u32 %v6339, %v6355
        %v6358 = vor.u32 %v6356, %v6357
        %v6359 = vsub.s32 4294967266, %v6354
        %v6360 = vadd.s32 %v6359, 127
        %v6361 = vshll.u32 %v6360, 23
        %v6362 = vor.u32 4788187, %v6361
        %v6363 = vand.u32 2147483647, %v6362
        %v6365 = vcvt.s32.f32 %v6358
        %v6366 = vmul.f32 %v6365, %v6363
        %v6367 = vxor.u32 %v6366, 2147483648
        %v6368 = vsel %vm6285, %v6367, %v6366
        %v6369 = vsub.s32 4, %v6345
        %v6370 = vsel %vm6285, %v6369, %v6345
        %v6371 = vsel %vm6284, %v213, %v6368
        %v6372 = vsel %vm6284, 0, %v6370
        %v6373 = vcosq.f32.pop %v6371
        %v6374 = vsinq.f32.pop %v6371
        %vm6375 = vweird.f32 %v213
        %v6376 = vadd.s32 %v6372, 3
        %v6377 = vand.u32 %v6376, 3
        %vm6378 = vcmp.lt.s32.totalorder %v6377, 2
        %vm6379 = vcmp.eq.s32.totalorder %v6377, 0
        %v6380 = vxor.u32 %v6374, 2147483648
        %v6381 = vsel %vm6379, %v6373, %v6380
        %vm6382 = vcmp.eq.s32.totalorder %v6377, 2
        %v6383 = vxor.u32 %v6373, 2147483648
        %v6384 = vsel %vm6382, %v6383, %v6374
        %v6385 = vsel %vm6378, %v6381, %v6384
        %v6386 = vsel %vm6375, nan, %v6385
        %v6387 = vand.u32 2147483647, %v214
        %vm6388 = vcmp.le.f32.partialorder %v6387, 0.7853982
        %vm6389 = vcmp.lt.s32.totalorder %v214, 0
        %v6390 = vand.u32 %v214, 2139095040
        %v6391 = vshrl.u32 %v6390, 23
        %v6392 = vsub.s32 %v6391, 127
        %v6393 = vand.u32 2147483647, %v214
        %v6394 = vand.u32 %v6393, 8388607
        %v6395 = vor.u32 %v6394, 8388608
        %v6396 = vsub.s32 0, %v6395
        %v6397 = vadd.s32 %v6392, 1
        %vm6398 = vcmp.gt.s32.totalorder %v6397, 0
        %v6399 = vsel %vm6398, %v6397, 0
        %v6400 = vshrl.u32 %v6399, 5
        %v6401 = vand.u32 %v6399, 31
        %v6402 = vsub.s32 32, %v6401
        %v6403 = vshrl.u32 683565275, %v6402
        %v6404 = vshll.u32 683565275, %v6401
        %v6405 = vshrl.u32 2475754826, %v6402
        %v6406 = vor.u32 %v6404, %v6405
        %v6407 = vshll.u32 2475754826, %v6401
        %v6408 = vshrl.u32 2131351028, %v6402
        %v6409 = vor.u32 %v6407, %v6408
        %v6410 = vshll.u32 2131351028, %v6401
        %v6411 = vshrl.u32 2102212464, %v6402
        %v6412 = vor.u32 %v6410, %v6411
        %v6413 = vshll.u32 2102212464, %v6401
        %v6414 = vshrl.u32 920167782, %v6402
        %v6415 = vor.u32 %v6413, %v6414
        %v6416 = vshll.u32 920167782, %v6401
        %v6417 = vshrl.u32 1326507024, %v6402
        %v6418 = vor.u32 %v6416, %v6417
        %vm6419 = vcmp.lt.s32.totalorder %v6400, 1
        %vm6420 = vcmp.lt.s32.totalorder %v6400, 2
        %vm6421 = vcmp.lt.s32.totalorder %v6400, 3
        %vm6422 = vcmp.lt.s32.totalorder %v6400, 4
        %v6423 = vsel %vm6419, %v6403, %v6406
        %v6424 = vsel %vm6422, %v6412, 2102212464
        %v6425 = vsel %vm6421, %v6409, %v6424
        %v6426 = vsel %vm6420, %v6423, %v6425
        %v6427 = vsel %vm6419, %v6406, %v6409
        %v6428 = vsel %vm6422, %v6415, 920167782
        %v6429 = vsel %vm6421, %v6412, %v6428
        %v6430 = vsel %vm6420, %v6427, %v6429
        %v6431 = vsel %vm6419, %v6409, %v6412
        %v6432 = vsel %vm6422, %v6418, 1326507024
        %v6433 = vsel %vm6421, %v6415, %v6432
        %v6434 = vsel %vm6420, %v6431, %v6433
        %v6435 = vshll.u32 %v6395, 8
        %v6436 = vmul.u32.u64.compose %v6435, %v6434
        %v6437 = vextract.low.u32 %v6436
        %v6438 = vextract.high.u32 %v6436
        %v6439 = vmul.u32.u64.compose %v6435, %v6430
        %v6440 = vextract.low.u32 %v6439
        %v6441 = vextract.high.u32 %v6439
        %v6442 = vmul.u32 %v6435, %v6426
        %v6443 = vadd.s32 %v6438, %v6440
        %vm6444 = vc.u32 %v6438, %v6440
        %v6445 = vadd.s32 %v6441, 1
        %v6446 = vsel %vm6444, %v6445, %v6441
        %v6447 = vadd.s32 %v6442, %v6446
        %v6448 = vadd.s32 %v6447, 536870912
        %v6449 = vshrl.u32 %v6448, 30
        %v6450 = vshll.u32 %v6449, 30
        %v6451 = vsub.s32 %v6447, %v6450
        %vm6452 = vcmp.lt.s32.totalorder %v6451, 0
        %v6453 = vsub.s32 0, %v6451
        %v6454 = vsel %vm6452, %v6453, %v6451
        %v6455 = vclz %v6454
        %v6456 = vsub.s32 %v6455, 2
        %vm6457 = vcmp.gt.s32.totalorder 0, %v6456
        %v6458 = vsel %vm6457, 0, %v6456
        %v6459 = vsub.s32 32, %v6458
        %v6460 = vshll.u32 %v6451, %v6458
        %v6461 = vshrl.u32 %v6443, %v6459
        %v6462 = vor.u32 %v6460, %v6461
        %v6463 = vsub.s32 4294967266, %v6458
        %v6464 = vadd.s32 %v6463, 127
        %v6465 = vshll.u32 %v6464, 23
        %v6466 = vor.u32 4788187, %v6465
        %v6467 = vand.u32 2147483647, %v6466
        %v6469 = vcvt.s32.f32 %v6462
        %v6470 = vmul.f32 %v6469, %v6467
        %v6471 = vxor.u32 %v6470, 2147483648
        %v6472 = vsel %vm6389, %v6471, %v6470
        %v6473 = vsub.s32 4, %v6449
        %v6474 = vsel %vm6389, %v6473, %v6449
        %v6475 = vsel %vm6388, %v214, %v6472
        %v6476 = vsel %vm6388, 0, %v6474
        %v6477 = vcosq.f32.pop %v6475
        %v6478 = vsinq.f32.pop %v6475
        %vm6479 = vweird.f32 %v214
        %v6480 = vadd.s32 %v6476, 3
        %v6481 = vand.u32 %v6480, 3
        %vm6482 = vcmp.lt.s32.totalorder %v6481, 2
        %vm6483 = vcmp.eq.s32.totalorder %v6481, 0
        %v6484 = vxor.u32 %v6478, 2147483648
        %v6485 = vsel %vm6483, %v6477, %v6484
        %vm6486 = vcmp.eq.s32.totalorder %v6481, 2
        %v6487 = vxor.u32 %v6477, 2147483648
        %v6488 = vsel %vm6486, %v6487, %v6478
        %v6489 = vsel %vm6482, %v6485, %v6488
        %v6490 = vsel %vm6479, nan, %v6489
        %v6491 = vand.u32 2147483647, %v215
        %vm6492 = vcmp.le.f32.partialorder %v6491, 0.7853982
        %vm6493 = vcmp.lt.s32.totalorder %v215, 0
        %v6494 = vand.u32 %v215, 2139095040
        %v6495 = vshrl.u32 %v6494, 23
        %v6496 = vsub.s32 %v6495, 127
        %v6497 = vand.u32 2147483647, %v215
        %v6498 = vand.u32 %v6497, 8388607
        %v6499 = vor.u32 %v6498, 8388608
        %v6500 = vsub.s32 0, %v6499
        %v6501 = vadd.s32 %v6496, 1
        %vm6502 = vcmp.gt.s32.totalorder %v6501, 0
        %v6503 = vsel %vm6502, %v6501, 0
        %v6504 = vshrl.u32 %v6503, 5
        %v6505 = vand.u32 %v6503, 31
        %v6506 = vsub.s32 32, %v6505
        %v6507 = vshrl.u32 683565275, %v6506
        %v6508 = vshll.u32 683565275, %v6505
        %v6509 = vshrl.u32 2475754826, %v6506
        %v6510 = vor.u32 %v6508, %v6509
        %v6511 = vshll.u32 2475754826, %v6505
        %v6512 = vshrl.u32 2131351028, %v6506
        %v6513 = vor.u32 %v6511, %v6512
        %v6514 = vshll.u32 2131351028, %v6505
        %v6515 = vshrl.u32 2102212464, %v6506
        %v6516 = vor.u32 %v6514, %v6515
        %v6517 = vshll.u32 2102212464, %v6505
        %v6518 = vshrl.u32 920167782, %v6506
        %v6519 = vor.u32 %v6517, %v6518
        %v6520 = vshll.u32 920167782, %v6505
        %v6521 = vshrl.u32 1326507024, %v6506
        %v6522 = vor.u32 %v6520, %v6521
        %vm6523 = vcmp.lt.s32.totalorder %v6504, 1
        %vm6524 = vcmp.lt.s32.totalorder %v6504, 2
        %vm6525 = vcmp.lt.s32.totalorder %v6504, 3
        %vm6526 = vcmp.lt.s32.totalorder %v6504, 4
        %v6527 = vsel %vm6523, %v6507, %v6510
        %v6528 = vsel %vm6526, %v6516, 2102212464
        %v6529 = vsel %vm6525, %v6513, %v6528
        %v6530 = vsel %vm6524, %v6527, %v6529
        %v6531 = vsel %vm6523, %v6510, %v6513
        %v6532 = vsel %vm6526, %v6519, 920167782
        %v6533 = vsel %vm6525, %v6516, %v6532
        %v6534 = vsel %vm6524, %v6531, %v6533
        %v6535 = vsel %vm6523, %v6513, %v6516
        %v6536 = vsel %vm6526, %v6522, 1326507024
        %v6537 = vsel %vm6525, %v6519, %v6536
        %v6538 = vsel %vm6524, %v6535, %v6537
        %v6539 = vshll.u32 %v6499, 8
        %v6540 = vmul.u32.u64.compose %v6539, %v6538
        %v6541 = vextract.low.u32 %v6540
        %v6542 = vextract.high.u32 %v6540
        %v6543 = vmul.u32.u64.compose %v6539, %v6534
        %v6544 = vextract.low.u32 %v6543
        %v6545 = vextract.high.u32 %v6543
        %v6546 = vmul.u32 %v6539, %v6530
        %v6547 = vadd.s32 %v6542, %v6544
        %vm6548 = vc.u32 %v6542, %v6544
        %v6549 = vadd.s32 %v6545, 1
        %v6550 = vsel %vm6548, %v6549, %v6545
        %v6551 = vadd.s32 %v6546, %v6550
        %v6552 = vadd.s32 %v6551, 536870912
        %v6553 = vshrl.u32 %v6552, 30
        %v6554 = vshll.u32 %v6553, 30
        %v6555 = vsub.s32 %v6551, %v6554
        %vm6556 = vcmp.lt.s32.totalorder %v6555, 0
        %v6557 = vsub.s32 0, %v6555
        %v6558 = vsel %vm6556, %v6557, %v6555
        %v6559 = vclz %v6558
        %v6560 = vsub.s32 %v6559, 2
        %vm6561 = vcmp.gt.s32.totalorder 0, %v6560
        %v6562 = vsel %vm6561, 0, %v6560
        %v6563 = vsub.s32 32, %v6562
        %v6564 = vshll.u32 %v6555, %v6562
        %v6565 = vshrl.u32 %v6547, %v6563
        %v6566 = vor.u32 %v6564, %v6565
        %v6567 = vsub.s32 4294967266, %v6562
        %v6568 = vadd.s32 %v6567, 127
        %v6569 = vshll.u32 %v6568, 23
        %v6570 = vor.u32 4788187, %v6569
        %v6571 = vand.u32 2147483647, %v6570
        %v6573 = vcvt.s32.f32 %v6566
        %v6574 = vmul.f32 %v6573, %v6571
        %v6575 = vxor.u32 %v6574, 2147483648
        %v6576 = vsel %vm6493, %v6575, %v6574
        %v6577 = vsub.s32 4, %v6553
        %v6578 = vsel %vm6493, %v6577, %v6553
        %v6579 = vsel %vm6492, %v215, %v6576
        %v6580 = vsel %vm6492, 0, %v6578
        %v6581 = vcosq.f32.pop %v6579
        %v6582 = vsinq.f32.pop %v6579
        %vm6583 = vweird.f32 %v215
        %v6584 = vadd.s32 %v6580, 3
        %v6585 = vand.u32 %v6584, 3
        %vm6586 = vcmp.lt.s32.totalorder %v6585, 2
        %vm6587 = vcmp.eq.s32.totalorder %v6585, 0
        %v6588 = vxor.u32 %v6582, 2147483648
        %v6589 = vsel %vm6587, %v6581, %v6588
        %vm6590 = vcmp.eq.s32.totalorder %v6585, 2
        %v6591 = vxor.u32 %v6581, 2147483648
        %v6592 = vsel %vm6590, %v6591, %v6582
        %v6593 = vsel %vm6586, %v6589, %v6592
        %v6594 = vsel %vm6583, nan, %v6593
        %v6595 = vand.u32 2147483647, %v216
        %vm6596 = vcmp.le.f32.partialorder %v6595, 0.7853982
        %vm6597 = vcmp.lt.s32.totalorder %v216, 0
        %v6598 = vand.u32 %v216, 2139095040
        %v6599 = vshrl.u32 %v6598, 23
        %v6600 = vsub.s32 %v6599, 127
        %v6601 = vand.u32 2147483647, %v216
        %v6602 = vand.u32 %v6601, 8388607
        %v6603 = vor.u32 %v6602, 8388608
        %v6604 = vsub.s32 0, %v6603
        %v6605 = vadd.s32 %v6600, 1
        %vm6606 = vcmp.gt.s32.totalorder %v6605, 0
        %v6607 = vsel %vm6606, %v6605, 0
        %v6608 = vshrl.u32 %v6607, 5
        %v6609 = vand.u32 %v6607, 31
        %v6610 = vsub.s32 32, %v6609
        %v6611 = vshrl.u32 683565275, %v6610
        %v6612 = vshll.u32 683565275, %v6609
        %v6613 = vshrl.u32 2475754826, %v6610
        %v6614 = vor.u32 %v6612, %v6613
        %v6615 = vshll.u32 2475754826, %v6609
        %v6616 = vshrl.u32 2131351028, %v6610
        %v6617 = vor.u32 %v6615, %v6616
        %v6618 = vshll.u32 2131351028, %v6609
        %v6619 = vshrl.u32 2102212464, %v6610
        %v6620 = vor.u32 %v6618, %v6619
        %v6621 = vshll.u32 2102212464, %v6609
        %v6622 = vshrl.u32 920167782, %v6610
        %v6623 = vor.u32 %v6621, %v6622
        %v6624 = vshll.u32 920167782, %v6609
        %v6625 = vshrl.u32 1326507024, %v6610
        %v6626 = vor.u32 %v6624, %v6625
        %vm6627 = vcmp.lt.s32.totalorder %v6608, 1
        %vm6628 = vcmp.lt.s32.totalorder %v6608, 2
        %vm6629 = vcmp.lt.s32.totalorder %v6608, 3
        %vm6630 = vcmp.lt.s32.totalorder %v6608, 4
        %v6631 = vsel %vm6627, %v6611, %v6614
        %v6632 = vsel %vm6630, %v6620, 2102212464
        %v6633 = vsel %vm6629, %v6617, %v6632
        %v6634 = vsel %vm6628, %v6631, %v6633
        %v6635 = vsel %vm6627, %v6614, %v6617
        %v6636 = vsel %vm6630, %v6623, 920167782
        %v6637 = vsel %vm6629, %v6620, %v6636
        %v6638 = vsel %vm6628, %v6635, %v6637
        %v6639 = vsel %vm6627, %v6617, %v6620
        %v6640 = vsel %vm6630, %v6626, 1326507024
        %v6641 = vsel %vm6629, %v6623, %v6640
        %v6642 = vsel %vm6628, %v6639, %v6641
        %v6643 = vshll.u32 %v6603, 8
        %v6644 = vmul.u32.u64.compose %v6643, %v6642
        %v6645 = vextract.low.u32 %v6644
        %v6646 = vextract.high.u32 %v6644
        %v6647 = vmul.u32.u64.compose %v6643, %v6638
        %v6648 = vextract.low.u32 %v6647
        %v6649 = vextract.high.u32 %v6647
        %v6650 = vmul.u32 %v6643, %v6634
        %v6651 = vadd.s32 %v6646, %v6648
        %vm6652 = vc.u32 %v6646, %v6648
        %v6653 = vadd.s32 %v6649, 1
        %v6654 = vsel %vm6652, %v6653, %v6649
        %v6655 = vadd.s32 %v6650, %v6654
        %v6656 = vadd.s32 %v6655, 536870912
        %v6657 = vshrl.u32 %v6656, 30
        %v6658 = vshll.u32 %v6657, 30
        %v6659 = vsub.s32 %v6655, %v6658
        %vm6660 = vcmp.lt.s32.totalorder %v6659, 0
        %v6661 = vsub.s32 0, %v6659
        %v6662 = vsel %vm6660, %v6661, %v6659
        %v6663 = vclz %v6662
        %v6664 = vsub.s32 %v6663, 2
        %vm6665 = vcmp.gt.s32.totalorder 0, %v6664
        %v6666 = vsel %vm6665, 0, %v6664
        %v6667 = vsub.s32 32, %v6666
        %v6668 = vshll.u32 %v6659, %v6666
        %v6669 = vshrl.u32 %v6651, %v6667
        %v6670 = vor.u32 %v6668, %v6669
        %v6671 = vsub.s32 4294967266, %v6666
        %v6672 = vadd.s32 %v6671, 127
        %v6673 = vshll.u32 %v6672, 23
        %v6674 = vor.u32 4788187, %v6673
        %v6675 = vand.u32 2147483647, %v6674
        %v6677 = vcvt.s32.f32 %v6670
        %v6678 = vmul.f32 %v6677, %v6675
        %v6679 = vxor.u32 %v6678, 2147483648
        %v6680 = vsel %vm6597, %v6679, %v6678
        %v6681 = vsub.s32 4, %v6657
        %v6682 = vsel %vm6597, %v6681, %v6657
        %v6683 = vsel %vm6596, %v216, %v6680
        %v6684 = vsel %vm6596, 0, %v6682
        %v6685 = vcosq.f32.pop %v6683
        %v6686 = vsinq.f32.pop %v6683
        %vm6687 = vweird.f32 %v216
        %v6688 = vadd.s32 %v6684, 3
        %v6689 = vand.u32 %v6688, 3
        %vm6690 = vcmp.lt.s32.totalorder %v6689, 2
        %vm6691 = vcmp.eq.s32.totalorder %v6689, 0
        %v6692 = vxor.u32 %v6686, 2147483648
        %v6693 = vsel %vm6691, %v6685, %v6692
        %vm6694 = vcmp.eq.s32.totalorder %v6689, 2
        %v6695 = vxor.u32 %v6685, 2147483648
        %v6696 = vsel %vm6694, %v6695, %v6686
        %v6697 = vsel %vm6690, %v6693, %v6696
        %v6698 = vsel %vm6687, nan, %v6697
        %v6699 = vand.u32 2147483647, %v217
        %vm6700 = vcmp.le.f32.partialorder %v6699, 0.7853982
        %vm6701 = vcmp.lt.s32.totalorder %v217, 0
        %v6702 = vand.u32 %v217, 2139095040
        %v6703 = vshrl.u32 %v6702, 23
        %v6704 = vsub.s32 %v6703, 127
        %v6705 = vand.u32 2147483647, %v217
        %v6706 = vand.u32 %v6705, 8388607
        %v6707 = vor.u32 %v6706, 8388608
        %v6708 = vsub.s32 0, %v6707
        %v6709 = vadd.s32 %v6704, 1
        %vm6710 = vcmp.gt.s32.totalorder %v6709, 0
        %v6711 = vsel %vm6710, %v6709, 0
        %v6712 = vshrl.u32 %v6711, 5
        %v6713 = vand.u32 %v6711, 31
        %v6714 = vsub.s32 32, %v6713
        %v6715 = vshrl.u32 683565275, %v6714
        %v6716 = vshll.u32 683565275, %v6713
        %v6717 = vshrl.u32 2475754826, %v6714
        %v6718 = vor.u32 %v6716, %v6717
        %v6719 = vshll.u32 2475754826, %v6713
        %v6720 = vshrl.u32 2131351028, %v6714
        %v6721 = vor.u32 %v6719, %v6720
        %v6722 = vshll.u32 2131351028, %v6713
        %v6723 = vshrl.u32 2102212464, %v6714
        %v6724 = vor.u32 %v6722, %v6723
        %v6725 = vshll.u32 2102212464, %v6713
        %v6726 = vshrl.u32 920167782, %v6714
        %v6727 = vor.u32 %v6725, %v6726
        %v6728 = vshll.u32 920167782, %v6713
        %v6729 = vshrl.u32 1326507024, %v6714
        %v6730 = vor.u32 %v6728, %v6729
        %vm6731 = vcmp.lt.s32.totalorder %v6712, 1
        %vm6732 = vcmp.lt.s32.totalorder %v6712, 2
        %vm6733 = vcmp.lt.s32.totalorder %v6712, 3
        %vm6734 = vcmp.lt.s32.totalorder %v6712, 4
        %v6735 = vsel %vm6731, %v6715, %v6718
        %v6736 = vsel %vm6734, %v6724, 2102212464
        %v6737 = vsel %vm6733, %v6721, %v6736
        %v6738 = vsel %vm6732, %v6735, %v6737
        %v6739 = vsel %vm6731, %v6718, %v6721
        %v6740 = vsel %vm6734, %v6727, 920167782
        %v6741 = vsel %vm6733, %v6724, %v6740
        %v6742 = vsel %vm6732, %v6739, %v6741
        %v6743 = vsel %vm6731, %v6721, %v6724
        %v6744 = vsel %vm6734, %v6730, 1326507024
        %v6745 = vsel %vm6733, %v6727, %v6744
        %v6746 = vsel %vm6732, %v6743, %v6745
        %v6747 = vshll.u32 %v6707, 8
        %v6748 = vmul.u32.u64.compose %v6747, %v6746
        %v6749 = vextract.low.u32 %v6748
        %v6750 = vextract.high.u32 %v6748
        %v6751 = vmul.u32.u64.compose %v6747, %v6742
        %v6752 = vextract.low.u32 %v6751
        %v6753 = vextract.high.u32 %v6751
        %v6754 = vmul.u32 %v6747, %v6738
        %v6755 = vadd.s32 %v6750, %v6752
        %vm6756 = vc.u32 %v6750, %v6752
        %v6757 = vadd.s32 %v6753, 1
        %v6758 = vsel %vm6756, %v6757, %v6753
        %v6759 = vadd.s32 %v6754, %v6758
        %v6760 = vadd.s32 %v6759, 536870912
        %v6761 = vshrl.u32 %v6760, 30
        %v6762 = vshll.u32 %v6761, 30
        %v6763 = vsub.s32 %v6759, %v6762
        %vm6764 = vcmp.lt.s32.totalorder %v6763, 0
        %v6765 = vsub.s32 0, %v6763
        %v6766 = vsel %vm6764, %v6765, %v6763
        %v6767 = vclz %v6766
        %v6768 = vsub.s32 %v6767, 2
        %vm6769 = vcmp.gt.s32.totalorder 0, %v6768
        %v6770 = vsel %vm6769, 0, %v6768
        %v6771 = vsub.s32 32, %v6770
        %v6772 = vshll.u32 %v6763, %v6770
        %v6773 = vshrl.u32 %v6755, %v6771
        %v6774 = vor.u32 %v6772, %v6773
        %v6775 = vsub.s32 4294967266, %v6770
        %v6776 = vadd.s32 %v6775, 127
        %v6777 = vshll.u32 %v6776, 23
        %v6778 = vor.u32 4788187, %v6777
        %v6779 = vand.u32 2147483647, %v6778
        %v6781 = vcvt.s32.f32 %v6774
        %v6782 = vmul.f32 %v6781, %v6779
        %v6783 = vxor.u32 %v6782, 2147483648
        %v6784 = vsel %vm6701, %v6783, %v6782
        %v6785 = vsub.s32 4, %v6761
        %v6786 = vsel %vm6701, %v6785, %v6761
        %v6787 = vsel %vm6700, %v217, %v6784
        %v6788 = vsel %vm6700, 0, %v6786
        %v6789 = vcosq.f32.pop %v6787
        %v6790 = vsinq.f32.pop %v6787
        %vm6791 = vweird.f32 %v217
        %v6792 = vadd.s32 %v6788, 3
        %v6793 = vand.u32 %v6792, 3
        %vm6794 = vcmp.lt.s32.totalorder %v6793, 2
        %vm6795 = vcmp.eq.s32.totalorder %v6793, 0
        %v6796 = vxor.u32 %v6790, 2147483648
        %v6797 = vsel %vm6795, %v6789, %v6796
        %vm6798 = vcmp.eq.s32.totalorder %v6793, 2
        %v6799 = vxor.u32 %v6789, 2147483648
        %v6800 = vsel %vm6798, %v6799, %v6790
        %v6801 = vsel %vm6794, %v6797, %v6800
        %v6802 = vsel %vm6791, nan, %v6801
        %v6803 = vand.u32 2147483647, %v218
        %vm6804 = vcmp.le.f32.partialorder %v6803, 0.7853982
        %vm6805 = vcmp.lt.s32.totalorder %v218, 0
        %v6806 = vand.u32 %v218, 2139095040
        %v6807 = vshrl.u32 %v6806, 23
        %v6808 = vsub.s32 %v6807, 127
        %v6809 = vand.u32 2147483647, %v218
        %v6810 = vand.u32 %v6809, 8388607
        %v6811 = vor.u32 %v6810, 8388608
        %v6812 = vsub.s32 0, %v6811
        %v6813 = vadd.s32 %v6808, 1
        %vm6814 = vcmp.gt.s32.totalorder %v6813, 0
        %v6815 = vsel %vm6814, %v6813, 0
        %v6816 = vshrl.u32 %v6815, 5
        %v6817 = vand.u32 %v6815, 31
        %v6818 = vsub.s32 32, %v6817
        %v6819 = vshrl.u32 683565275, %v6818
        %v6820 = vshll.u32 683565275, %v6817
        %v6821 = vshrl.u32 2475754826, %v6818
        %v6822 = vor.u32 %v6820, %v6821
        %v6823 = vshll.u32 2475754826, %v6817
        %v6824 = vshrl.u32 2131351028, %v6818
        %v6825 = vor.u32 %v6823, %v6824
        %v6826 = vshll.u32 2131351028, %v6817
        %v6827 = vshrl.u32 2102212464, %v6818
        %v6828 = vor.u32 %v6826, %v6827
        %v6829 = vshll.u32 2102212464, %v6817
        %v6830 = vshrl.u32 920167782, %v6818
        %v6831 = vor.u32 %v6829, %v6830
        %v6832 = vshll.u32 920167782, %v6817
        %v6833 = vshrl.u32 1326507024, %v6818
        %v6834 = vor.u32 %v6832, %v6833
        %vm6835 = vcmp.lt.s32.totalorder %v6816, 1
        %vm6836 = vcmp.lt.s32.totalorder %v6816, 2
        %vm6837 = vcmp.lt.s32.totalorder %v6816, 3
        %vm6838 = vcmp.lt.s32.totalorder %v6816, 4
        %v6839 = vsel %vm6835, %v6819, %v6822
        %v6840 = vsel %vm6838, %v6828, 2102212464
        %v6841 = vsel %vm6837, %v6825, %v6840
        %v6842 = vsel %vm6836, %v6839, %v6841
        %v6843 = vsel %vm6835, %v6822, %v6825
        %v6844 = vsel %vm6838, %v6831, 920167782
        %v6845 = vsel %vm6837, %v6828, %v6844
        %v6846 = vsel %vm6836, %v6843, %v6845
        %v6847 = vsel %vm6835, %v6825, %v6828
        %v6848 = vsel %vm6838, %v6834, 1326507024
        %v6849 = vsel %vm6837, %v6831, %v6848
        %v6850 = vsel %vm6836, %v6847, %v6849
        %v6851 = vshll.u32 %v6811, 8
        %v6852 = vmul.u32.u64.compose %v6851, %v6850
        %v6853 = vextract.low.u32 %v6852
        %v6854 = vextract.high.u32 %v6852
        %v6855 = vmul.u32.u64.compose %v6851, %v6846
        %v6856 = vextract.low.u32 %v6855
        %v6857 = vextract.high.u32 %v6855
        %v6858 = vmul.u32 %v6851, %v6842
        %v6859 = vadd.s32 %v6854, %v6856
        %vm6860 = vc.u32 %v6854, %v6856
        %v6861 = vadd.s32 %v6857, 1
        %v6862 = vsel %vm6860, %v6861, %v6857
        %v6863 = vadd.s32 %v6858, %v6862
        %v6864 = vadd.s32 %v6863, 536870912
        %v6865 = vshrl.u32 %v6864, 30
        %v6866 = vshll.u32 %v6865, 30
        %v6867 = vsub.s32 %v6863, %v6866
        %vm6868 = vcmp.lt.s32.totalorder %v6867, 0
        %v6869 = vsub.s32 0, %v6867
        %v6870 = vsel %vm6868, %v6869, %v6867
        %v6871 = vclz %v6870
        %v6872 = vsub.s32 %v6871, 2
        %vm6873 = vcmp.gt.s32.totalorder 0, %v6872
        %v6874 = vsel %vm6873, 0, %v6872
        %v6875 = vsub.s32 32, %v6874
        %v6876 = vshll.u32 %v6867, %v6874
        %v6877 = vshrl.u32 %v6859, %v6875
        %v6878 = vor.u32 %v6876, %v6877
        %v6879 = vsub.s32 4294967266, %v6874
        %v6880 = vadd.s32 %v6879, 127
        %v6881 = vshll.u32 %v6880, 23
        %v6882 = vor.u32 4788187, %v6881
        %v6883 = vand.u32 2147483647, %v6882
        %v6885 = vcvt.s32.f32 %v6878
        %v6886 = vmul.f32 %v6885, %v6883
        %v6887 = vxor.u32 %v6886, 2147483648
        %v6888 = vsel %vm6805, %v6887, %v6886
        %v6889 = vsub.s32 4, %v6865
        %v6890 = vsel %vm6805, %v6889, %v6865
        %v6891 = vsel %vm6804, %v218, %v6888
        %v6892 = vsel %vm6804, 0, %v6890
        %v6893 = vcosq.f32.pop %v6891
        %v6894 = vsinq.f32.pop %v6891
        %vm6895 = vweird.f32 %v218
        %v6896 = vadd.s32 %v6892, 3
        %v6897 = vand.u32 %v6896, 3
        %vm6898 = vcmp.lt.s32.totalorder %v6897, 2
        %vm6899 = vcmp.eq.s32.totalorder %v6897, 0
        %v6900 = vxor.u32 %v6894, 2147483648
        %v6901 = vsel %vm6899, %v6893, %v6900
        %vm6902 = vcmp.eq.s32.totalorder %v6897, 2
        %v6903 = vxor.u32 %v6893, 2147483648
        %v6904 = vsel %vm6902, %v6903, %v6894
        %v6905 = vsel %vm6898, %v6901, %v6904
        %v6906 = vsel %vm6895, nan, %v6905
        %v6907 = vand.u32 2147483647, %v219
        %vm6908 = vcmp.le.f32.partialorder %v6907, 0.7853982
        %vm6909 = vcmp.lt.s32.totalorder %v219, 0
        %v6910 = vand.u32 %v219, 2139095040
        %v6911 = vshrl.u32 %v6910, 23
        %v6912 = vsub.s32 %v6911, 127
        %v6913 = vand.u32 2147483647, %v219
        %v6914 = vand.u32 %v6913, 8388607
        %v6915 = vor.u32 %v6914, 8388608
        %v6916 = vsub.s32 0, %v6915
        %v6917 = vadd.s32 %v6912, 1
        %vm6918 = vcmp.gt.s32.totalorder %v6917, 0
        %v6919 = vsel %vm6918, %v6917, 0
        %v6920 = vshrl.u32 %v6919, 5
        %v6921 = vand.u32 %v6919, 31
        %v6922 = vsub.s32 32, %v6921
        %v6923 = vshrl.u32 683565275, %v6922
        %v6924 = vshll.u32 683565275, %v6921
        %v6925 = vshrl.u32 2475754826, %v6922
        %v6926 = vor.u32 %v6924, %v6925
        %v6927 = vshll.u32 2475754826, %v6921
        %v6928 = vshrl.u32 2131351028, %v6922
        %v6929 = vor.u32 %v6927, %v6928
        %v6930 = vshll.u32 2131351028, %v6921
        %v6931 = vshrl.u32 2102212464, %v6922
        %v6932 = vor.u32 %v6930, %v6931
        %v6933 = vshll.u32 2102212464, %v6921
        %v6934 = vshrl.u32 920167782, %v6922
        %v6935 = vor.u32 %v6933, %v6934
        %v6936 = vshll.u32 920167782, %v6921
        %v6937 = vshrl.u32 1326507024, %v6922
        %v6938 = vor.u32 %v6936, %v6937
        %vm6939 = vcmp.lt.s32.totalorder %v6920, 1
        %vm6940 = vcmp.lt.s32.totalorder %v6920, 2
        %vm6941 = vcmp.lt.s32.totalorder %v6920, 3
        %vm6942 = vcmp.lt.s32.totalorder %v6920, 4
        %v6943 = vsel %vm6939, %v6923, %v6926
        %v6944 = vsel %vm6942, %v6932, 2102212464
        %v6945 = vsel %vm6941, %v6929, %v6944
        %v6946 = vsel %vm6940, %v6943, %v6945
        %v6947 = vsel %vm6939, %v6926, %v6929
        %v6948 = vsel %vm6942, %v6935, 920167782
        %v6949 = vsel %vm6941, %v6932, %v6948
        %v6950 = vsel %vm6940, %v6947, %v6949
        %v6951 = vsel %vm6939, %v6929, %v6932
        %v6952 = vsel %vm6942, %v6938, 1326507024
        %v6953 = vsel %vm6941, %v6935, %v6952
        %v6954 = vsel %vm6940, %v6951, %v6953
        %v6955 = vshll.u32 %v6915, 8
        %v6956 = vmul.u32.u64.compose %v6955, %v6954
        %v6957 = vextract.low.u32 %v6956
        %v6958 = vextract.high.u32 %v6956
        %v6959 = vmul.u32.u64.compose %v6955, %v6950
        %v6960 = vextract.low.u32 %v6959
        %v6961 = vextract.high.u32 %v6959
        %v6962 = vmul.u32 %v6955, %v6946
        %v6963 = vadd.s32 %v6958, %v6960
        %vm6964 = vc.u32 %v6958, %v6960
        %v6965 = vadd.s32 %v6961, 1
        %v6966 = vsel %vm6964, %v6965, %v6961
        %v6967 = vadd.s32 %v6962, %v6966
        %v6968 = vadd.s32 %v6967, 536870912
        %v6969 = vshrl.u32 %v6968, 30
        %v6970 = vshll.u32 %v6969, 30
        %v6971 = vsub.s32 %v6967, %v6970
        %vm6972 = vcmp.lt.s32.totalorder %v6971, 0
        %v6973 = vsub.s32 0, %v6971
        %v6974 = vsel %vm6972, %v6973, %v6971
        %v6975 = vclz %v6974
        %v6976 = vsub.s32 %v6975, 2
        %vm6977 = vcmp.gt.s32.totalorder 0, %v6976
        %v6978 = vsel %vm6977, 0, %v6976
        %v6979 = vsub.s32 32, %v6978
        %v6980 = vshll.u32 %v6971, %v6978
        %v6981 = vshrl.u32 %v6963, %v6979
        %v6982 = vor.u32 %v6980, %v6981
        %v6983 = vsub.s32 4294967266, %v6978
        %v6984 = vadd.s32 %v6983, 127
        %v6985 = vshll.u32 %v6984, 23
        %v6986 = vor.u32 4788187, %v6985
        %v6987 = vand.u32 2147483647, %v6986
        %v6989 = vcvt.s32.f32 %v6982
        %v6990 = vmul.f32 %v6989, %v6987
        %v6991 = vxor.u32 %v6990, 2147483648
        %v6992 = vsel %vm6909, %v6991, %v6990
        %v6993 = vsub.s32 4, %v6969
        %v6994 = vsel %vm6909, %v6993, %v6969
        %v6995 = vsel %vm6908, %v219, %v6992
        %v6996 = vsel %vm6908, 0, %v6994
        %v6997 = vcosq.f32.pop %v6995
        %v6998 = vsinq.f32.pop %v6995
        %vm6999 = vweird.f32 %v219
        %v7000 = vadd.s32 %v6996, 3
        %v7001 = vand.u32 %v7000, 3
        %vm7002 = vcmp.lt.s32.totalorder %v7001, 2
        %vm7003 = vcmp.eq.s32.totalorder %v7001, 0
        %v7004 = vxor.u32 %v6998, 2147483648
        %v7005 = vsel %vm7003, %v6997, %v7004
        %vm7006 = vcmp.eq.s32.totalorder %v7001, 2
        %v7007 = vxor.u32 %v6997, 2147483648
        %v7008 = vsel %vm7006, %v7007, %v6998
        %v7009 = vsel %vm7002, %v7005, %v7008
        %v7010 = vsel %vm6999, nan, %v7009
        %v7011 = vand.u32 2147483647, %v220
        %vm7012 = vcmp.le.f32.partialorder %v7011, 0.7853982
        %vm7013 = vcmp.lt.s32.totalorder %v220, 0
        %v7014 = vand.u32 %v220, 2139095040
        %v7015 = vshrl.u32 %v7014, 23
        %v7016 = vsub.s32 %v7015, 127
        %v7017 = vand.u32 2147483647, %v220
        %v7018 = vand.u32 %v7017, 8388607
        %v7019 = vor.u32 %v7018, 8388608
        %v7020 = vsub.s32 0, %v7019
        %v7021 = vadd.s32 %v7016, 1
        %vm7022 = vcmp.gt.s32.totalorder %v7021, 0
        %v7023 = vsel %vm7022, %v7021, 0
        %v7024 = vshrl.u32 %v7023, 5
        %v7025 = vand.u32 %v7023, 31
        %v7026 = vsub.s32 32, %v7025
        %v7027 = vshrl.u32 683565275, %v7026
        %v7028 = vshll.u32 683565275, %v7025
        %v7029 = vshrl.u32 2475754826, %v7026
        %v7030 = vor.u32 %v7028, %v7029
        %v7031 = vshll.u32 2475754826, %v7025
        %v7032 = vshrl.u32 2131351028, %v7026
        %v7033 = vor.u32 %v7031, %v7032
        %v7034 = vshll.u32 2131351028, %v7025
        %v7035 = vshrl.u32 2102212464, %v7026
        %v7036 = vor.u32 %v7034, %v7035
        %v7037 = vshll.u32 2102212464, %v7025
        %v7038 = vshrl.u32 920167782, %v7026
        %v7039 = vor.u32 %v7037, %v7038
        %v7040 = vshll.u32 920167782, %v7025
        %v7041 = vshrl.u32 1326507024, %v7026
        %v7042 = vor.u32 %v7040, %v7041
        %vm7043 = vcmp.lt.s32.totalorder %v7024, 1
        %vm7044 = vcmp.lt.s32.totalorder %v7024, 2
        %vm7045 = vcmp.lt.s32.totalorder %v7024, 3
        %vm7046 = vcmp.lt.s32.totalorder %v7024, 4
        %v7047 = vsel %vm7043, %v7027, %v7030
        %v7048 = vsel %vm7046, %v7036, 2102212464
        %v7049 = vsel %vm7045, %v7033, %v7048
        %v7050 = vsel %vm7044, %v7047, %v7049
        %v7051 = vsel %vm7043, %v7030, %v7033
        %v7052 = vsel %vm7046, %v7039, 920167782
        %v7053 = vsel %vm7045, %v7036, %v7052
        %v7054 = vsel %vm7044, %v7051, %v7053
        %v7055 = vsel %vm7043, %v7033, %v7036
        %v7056 = vsel %vm7046, %v7042, 1326507024
        %v7057 = vsel %vm7045, %v7039, %v7056
        %v7058 = vsel %vm7044, %v7055, %v7057
        %v7059 = vshll.u32 %v7019, 8
        %v7060 = vmul.u32.u64.compose %v7059, %v7058
        %v7061 = vextract.low.u32 %v7060
        %v7062 = vextract.high.u32 %v7060
        %v7063 = vmul.u32.u64.compose %v7059, %v7054
        %v7064 = vextract.low.u32 %v7063
        %v7065 = vextract.high.u32 %v7063
        %v7066 = vmul.u32 %v7059, %v7050
        %v7067 = vadd.s32 %v7062, %v7064
        %vm7068 = vc.u32 %v7062, %v7064
        %v7069 = vadd.s32 %v7065, 1
        %v7070 = vsel %vm7068, %v7069, %v7065
        %v7071 = vadd.s32 %v7066, %v7070
        %v7072 = vadd.s32 %v7071, 536870912
        %v7073 = vshrl.u32 %v7072, 30
        %v7074 = vshll.u32 %v7073, 30
        %v7075 = vsub.s32 %v7071, %v7074
        %vm7076 = vcmp.lt.s32.totalorder %v7075, 0
        %v7077 = vsub.s32 0, %v7075
        %v7078 = vsel %vm7076, %v7077, %v7075
        %v7079 = vclz %v7078
        %v7080 = vsub.s32 %v7079, 2
        %vm7081 = vcmp.gt.s32.totalorder 0, %v7080
        %v7082 = vsel %vm7081, 0, %v7080
        %v7083 = vsub.s32 32, %v7082
        %v7084 = vshll.u32 %v7075, %v7082
        %v7085 = vshrl.u32 %v7067, %v7083
        %v7086 = vor.u32 %v7084, %v7085
        %v7087 = vsub.s32 4294967266, %v7082
        %v7088 = vadd.s32 %v7087, 127
        %v7089 = vshll.u32 %v7088, 23
        %v7090 = vor.u32 4788187, %v7089
        %v7091 = vand.u32 2147483647, %v7090
        %v7093 = vcvt.s32.f32 %v7086
        %v7094 = vmul.f32 %v7093, %v7091
        %v7095 = vxor.u32 %v7094, 2147483648
        %v7096 = vsel %vm7013, %v7095, %v7094
        %v7097 = vsub.s32 4, %v7073
        %v7098 = vsel %vm7013, %v7097, %v7073
        %v7099 = vsel %vm7012, %v220, %v7096
        %v7100 = vsel %vm7012, 0, %v7098
        %v7101 = vcosq.f32.pop %v7099
        %v7102 = vsinq.f32.pop %v7099
        %vm7103 = vweird.f32 %v220
        %v7104 = vadd.s32 %v7100, 3
        %v7105 = vand.u32 %v7104, 3
        %vm7106 = vcmp.lt.s32.totalorder %v7105, 2
        %vm7107 = vcmp.eq.s32.totalorder %v7105, 0
        %v7108 = vxor.u32 %v7102, 2147483648
        %v7109 = vsel %vm7107, %v7101, %v7108
        %vm7110 = vcmp.eq.s32.totalorder %v7105, 2
        %v7111 = vxor.u32 %v7101, 2147483648
        %v7112 = vsel %vm7110, %v7111, %v7102
        %v7113 = vsel %vm7106, %v7109, %v7112
        %v7114 = vsel %vm7103, nan, %v7113
        %v7115 = vand.u32 2147483647, %v221
        %vm7116 = vcmp.le.f32.partialorder %v7115, 0.7853982
        %vm7117 = vcmp.lt.s32.totalorder %v221, 0
        %v7118 = vand.u32 %v221, 2139095040
        %v7119 = vshrl.u32 %v7118, 23
        %v7120 = vsub.s32 %v7119, 127
        %v7121 = vand.u32 2147483647, %v221
        %v7122 = vand.u32 %v7121, 8388607
        %v7123 = vor.u32 %v7122, 8388608
        %v7124 = vsub.s32 0, %v7123
        %v7125 = vadd.s32 %v7120, 1
        %vm7126 = vcmp.gt.s32.totalorder %v7125, 0
        %v7127 = vsel %vm7126, %v7125, 0
        %v7128 = vshrl.u32 %v7127, 5
        %v7129 = vand.u32 %v7127, 31
        %v7130 = vsub.s32 32, %v7129
        %v7131 = vshrl.u32 683565275, %v7130
        %v7132 = vshll.u32 683565275, %v7129
        %v7133 = vshrl.u32 2475754826, %v7130
        %v7134 = vor.u32 %v7132, %v7133
        %v7135 = vshll.u32 2475754826, %v7129
        %v7136 = vshrl.u32 2131351028, %v7130
        %v7137 = vor.u32 %v7135, %v7136
        %v7138 = vshll.u32 2131351028, %v7129
        %v7139 = vshrl.u32 2102212464, %v7130
        %v7140 = vor.u32 %v7138, %v7139
        %v7141 = vshll.u32 2102212464, %v7129
        %v7142 = vshrl.u32 920167782, %v7130
        %v7143 = vor.u32 %v7141, %v7142
        %v7144 = vshll.u32 920167782, %v7129
        %v7145 = vshrl.u32 1326507024, %v7130
        %v7146 = vor.u32 %v7144, %v7145
        %vm7147 = vcmp.lt.s32.totalorder %v7128, 1
        %vm7148 = vcmp.lt.s32.totalorder %v7128, 2
        %vm7149 = vcmp.lt.s32.totalorder %v7128, 3
        %vm7150 = vcmp.lt.s32.totalorder %v7128, 4
        %v7151 = vsel %vm7147, %v7131, %v7134
        %v7152 = vsel %vm7150, %v7140, 2102212464
        %v7153 = vsel %vm7149, %v7137, %v7152
        %v7154 = vsel %vm7148, %v7151, %v7153
        %v7155 = vsel %vm7147, %v7134, %v7137
        %v7156 = vsel %vm7150, %v7143, 920167782
        %v7157 = vsel %vm7149, %v7140, %v7156
        %v7158 = vsel %vm7148, %v7155, %v7157
        %v7159 = vsel %vm7147, %v7137, %v7140
        %v7160 = vsel %vm7150, %v7146, 1326507024
        %v7161 = vsel %vm7149, %v7143, %v7160
        %v7162 = vsel %vm7148, %v7159, %v7161
        %v7163 = vshll.u32 %v7123, 8
        %v7164 = vmul.u32.u64.compose %v7163, %v7162
        %v7165 = vextract.low.u32 %v7164
        %v7166 = vextract.high.u32 %v7164
        %v7167 = vmul.u32.u64.compose %v7163, %v7158
        %v7168 = vextract.low.u32 %v7167
        %v7169 = vextract.high.u32 %v7167
        %v7170 = vmul.u32 %v7163, %v7154
        %v7171 = vadd.s32 %v7166, %v7168
        %vm7172 = vc.u32 %v7166, %v7168
        %v7173 = vadd.s32 %v7169, 1
        %v7174 = vsel %vm7172, %v7173, %v7169
        %v7175 = vadd.s32 %v7170, %v7174
        %v7176 = vadd.s32 %v7175, 536870912
        %v7177 = vshrl.u32 %v7176, 30
        %v7178 = vshll.u32 %v7177, 30
        %v7179 = vsub.s32 %v7175, %v7178
        %vm7180 = vcmp.lt.s32.totalorder %v7179, 0
        %v7181 = vsub.s32 0, %v7179
        %v7182 = vsel %vm7180, %v7181, %v7179
        %v7183 = vclz %v7182
        %v7184 = vsub.s32 %v7183, 2
        %vm7185 = vcmp.gt.s32.totalorder 0, %v7184
        %v7186 = vsel %vm7185, 0, %v7184
        %v7187 = vsub.s32 32, %v7186
        %v7188 = vshll.u32 %v7179, %v7186
        %v7189 = vshrl.u32 %v7171, %v7187
        %v7190 = vor.u32 %v7188, %v7189
        %v7191 = vsub.s32 4294967266, %v7186
        %v7192 = vadd.s32 %v7191, 127
        %v7193 = vshll.u32 %v7192, 23
        %v7194 = vor.u32 4788187, %v7193
        %v7195 = vand.u32 2147483647, %v7194
        %v7197 = vcvt.s32.f32 %v7190
        %v7198 = vmul.f32 %v7197, %v7195
        %v7199 = vxor.u32 %v7198, 2147483648
        %v7200 = vsel %vm7117, %v7199, %v7198
        %v7201 = vsub.s32 4, %v7177
        %v7202 = vsel %vm7117, %v7201, %v7177
        %v7203 = vsel %vm7116, %v221, %v7200
        %v7204 = vsel %vm7116, 0, %v7202
        %v7205 = vcosq.f32.pop %v7203
        %v7206 = vsinq.f32.pop %v7203
        %vm7207 = vweird.f32 %v221
        %v7208 = vadd.s32 %v7204, 3
        %v7209 = vand.u32 %v7208, 3
        %vm7210 = vcmp.lt.s32.totalorder %v7209, 2
        %vm7211 = vcmp.eq.s32.totalorder %v7209, 0
        %v7212 = vxor.u32 %v7206, 2147483648
        %v7213 = vsel %vm7211, %v7205, %v7212
        %vm7214 = vcmp.eq.s32.totalorder %v7209, 2
        %v7215 = vxor.u32 %v7205, 2147483648
        %v7216 = vsel %vm7214, %v7215, %v7206
        %v7217 = vsel %vm7210, %v7213, %v7216
        %v7218 = vsel %vm7207, nan, %v7217
        %v7219 = vand.u32 2147483647, %v222
        %vm7220 = vcmp.le.f32.partialorder %v7219, 0.7853982
        %vm7221 = vcmp.lt.s32.totalorder %v222, 0
        %v7222 = vand.u32 %v222, 2139095040
        %v7223 = vshrl.u32 %v7222, 23
        %v7224 = vsub.s32 %v7223, 127
        %v7225 = vand.u32 2147483647, %v222
        %v7226 = vand.u32 %v7225, 8388607
        %v7227 = vor.u32 %v7226, 8388608
        %v7228 = vsub.s32 0, %v7227
        %v7229 = vadd.s32 %v7224, 1
        %vm7230 = vcmp.gt.s32.totalorder %v7229, 0
        %v7231 = vsel %vm7230, %v7229, 0
        %v7232 = vshrl.u32 %v7231, 5
        %v7233 = vand.u32 %v7231, 31
        %v7234 = vsub.s32 32, %v7233
        %v7235 = vshrl.u32 683565275, %v7234
        %v7236 = vshll.u32 683565275, %v7233
        %v7237 = vshrl.u32 2475754826, %v7234
        %v7238 = vor.u32 %v7236, %v7237
        %v7239 = vshll.u32 2475754826, %v7233
        %v7240 = vshrl.u32 2131351028, %v7234
        %v7241 = vor.u32 %v7239, %v7240
        %v7242 = vshll.u32 2131351028, %v7233
        %v7243 = vshrl.u32 2102212464, %v7234
        %v7244 = vor.u32 %v7242, %v7243
        %v7245 = vshll.u32 2102212464, %v7233
        %v7246 = vshrl.u32 920167782, %v7234
        %v7247 = vor.u32 %v7245, %v7246
        %v7248 = vshll.u32 920167782, %v7233
        %v7249 = vshrl.u32 1326507024, %v7234
        %v7250 = vor.u32 %v7248, %v7249
        %vm7251 = vcmp.lt.s32.totalorder %v7232, 1
        %vm7252 = vcmp.lt.s32.totalorder %v7232, 2
        %vm7253 = vcmp.lt.s32.totalorder %v7232, 3
        %vm7254 = vcmp.lt.s32.totalorder %v7232, 4
        %v7255 = vsel %vm7251, %v7235, %v7238
        %v7256 = vsel %vm7254, %v7244, 2102212464
        %v7257 = vsel %vm7253, %v7241, %v7256
        %v7258 = vsel %vm7252, %v7255, %v7257
        %v7259 = vsel %vm7251, %v7238, %v7241
        %v7260 = vsel %vm7254, %v7247, 920167782
        %v7261 = vsel %vm7253, %v7244, %v7260
        %v7262 = vsel %vm7252, %v7259, %v7261
        %v7263 = vsel %vm7251, %v7241, %v7244
        %v7264 = vsel %vm7254, %v7250, 1326507024
        %v7265 = vsel %vm7253, %v7247, %v7264
        %v7266 = vsel %vm7252, %v7263, %v7265
        %v7267 = vshll.u32 %v7227, 8
        %v7268 = vmul.u32.u64.compose %v7267, %v7266
        %v7269 = vextract.low.u32 %v7268
        %v7270 = vextract.high.u32 %v7268
        %v7271 = vmul.u32.u64.compose %v7267, %v7262
        %v7272 = vextract.low.u32 %v7271
        %v7273 = vextract.high.u32 %v7271
        %v7274 = vmul.u32 %v7267, %v7258
        %v7275 = vadd.s32 %v7270, %v7272
        %vm7276 = vc.u32 %v7270, %v7272
        %v7277 = vadd.s32 %v7273, 1
        %v7278 = vsel %vm7276, %v7277, %v7273
        %v7279 = vadd.s32 %v7274, %v7278
        %v7280 = vadd.s32 %v7279, 536870912
        %v7281 = vshrl.u32 %v7280, 30
        %v7282 = vshll.u32 %v7281, 30
        %v7283 = vsub.s32 %v7279, %v7282
        %vm7284 = vcmp.lt.s32.totalorder %v7283, 0
        %v7285 = vsub.s32 0, %v7283
        %v7286 = vsel %vm7284, %v7285, %v7283
        %v7287 = vclz %v7286
        %v7288 = vsub.s32 %v7287, 2
        %vm7289 = vcmp.gt.s32.totalorder 0, %v7288
        %v7290 = vsel %vm7289, 0, %v7288
        %v7291 = vsub.s32 32, %v7290
        %v7292 = vshll.u32 %v7283, %v7290
        %v7293 = vshrl.u32 %v7275, %v7291
        %v7294 = vor.u32 %v7292, %v7293
        %v7295 = vsub.s32 4294967266, %v7290
        %v7296 = vadd.s32 %v7295, 127
        %v7297 = vshll.u32 %v7296, 23
        %v7298 = vor.u32 4788187, %v7297
        %v7299 = vand.u32 2147483647, %v7298
        %v7301 = vcvt.s32.f32 %v7294
        %v7302 = vmul.f32 %v7301, %v7299
        %v7303 = vxor.u32 %v7302, 2147483648
        %v7304 = vsel %vm7221, %v7303, %v7302
        %v7305 = vsub.s32 4, %v7281
        %v7306 = vsel %vm7221, %v7305, %v7281
        %v7307 = vsel %vm7220, %v222, %v7304
        %v7308 = vsel %vm7220, 0, %v7306
        %v7309 = vcosq.f32.pop %v7307
        %v7310 = vsinq.f32.pop %v7307
        %vm7311 = vweird.f32 %v222
        %v7312 = vadd.s32 %v7308, 3
        %v7313 = vand.u32 %v7312, 3
        %vm7314 = vcmp.lt.s32.totalorder %v7313, 2
        %vm7315 = vcmp.eq.s32.totalorder %v7313, 0
        %v7316 = vxor.u32 %v7310, 2147483648
        %v7317 = vsel %vm7315, %v7309, %v7316
        %vm7318 = vcmp.eq.s32.totalorder %v7313, 2
        %v7319 = vxor.u32 %v7309, 2147483648
        %v7320 = vsel %vm7318, %v7319, %v7310
        %v7321 = vsel %vm7314, %v7317, %v7320
        %v7322 = vsel %vm7311, nan, %v7321
        %v7323 = vand.u32 2147483647, %v223
        %vm7324 = vcmp.le.f32.partialorder %v7323, 0.7853982
        %vm7325 = vcmp.lt.s32.totalorder %v223, 0
        %v7326 = vand.u32 %v223, 2139095040
        %v7327 = vshrl.u32 %v7326, 23
        %v7328 = vsub.s32 %v7327, 127
        %v7329 = vand.u32 2147483647, %v223
        %v7330 = vand.u32 %v7329, 8388607
        %v7331 = vor.u32 %v7330, 8388608
        %v7332 = vsub.s32 0, %v7331
        %v7333 = vadd.s32 %v7328, 1
        %vm7334 = vcmp.gt.s32.totalorder %v7333, 0
        %v7335 = vsel %vm7334, %v7333, 0
        %v7336 = vshrl.u32 %v7335, 5
        %v7337 = vand.u32 %v7335, 31
        %v7338 = vsub.s32 32, %v7337
        %v7339 = vshrl.u32 683565275, %v7338
        %v7340 = vshll.u32 683565275, %v7337
        %v7341 = vshrl.u32 2475754826, %v7338
        %v7342 = vor.u32 %v7340, %v7341
        %v7343 = vshll.u32 2475754826, %v7337
        %v7344 = vshrl.u32 2131351028, %v7338
        %v7345 = vor.u32 %v7343, %v7344
        %v7346 = vshll.u32 2131351028, %v7337
        %v7347 = vshrl.u32 2102212464, %v7338
        %v7348 = vor.u32 %v7346, %v7347
        %v7349 = vshll.u32 2102212464, %v7337
        %v7350 = vshrl.u32 920167782, %v7338
        %v7351 = vor.u32 %v7349, %v7350
        %v7352 = vshll.u32 920167782, %v7337
        %v7353 = vshrl.u32 1326507024, %v7338
        %v7354 = vor.u32 %v7352, %v7353
        %vm7355 = vcmp.lt.s32.totalorder %v7336, 1
        %vm7356 = vcmp.lt.s32.totalorder %v7336, 2
        %vm7357 = vcmp.lt.s32.totalorder %v7336, 3
        %vm7358 = vcmp.lt.s32.totalorder %v7336, 4
        %v7359 = vsel %vm7355, %v7339, %v7342
        %v7360 = vsel %vm7358, %v7348, 2102212464
        %v7361 = vsel %vm7357, %v7345, %v7360
        %v7362 = vsel %vm7356, %v7359, %v7361
        %v7363 = vsel %vm7355, %v7342, %v7345
        %v7364 = vsel %vm7358, %v7351, 920167782
        %v7365 = vsel %vm7357, %v7348, %v7364
        %v7366 = vsel %vm7356, %v7363, %v7365
        %v7367 = vsel %vm7355, %v7345, %v7348
        %v7368 = vsel %vm7358, %v7354, 1326507024
        %v7369 = vsel %vm7357, %v7351, %v7368
        %v7370 = vsel %vm7356, %v7367, %v7369
        %v7371 = vshll.u32 %v7331, 8
        %v7372 = vmul.u32.u64.compose %v7371, %v7370
        %v7373 = vextract.low.u32 %v7372
        %v7374 = vextract.high.u32 %v7372
        %v7375 = vmul.u32.u64.compose %v7371, %v7366
        %v7376 = vextract.low.u32 %v7375
        %v7377 = vextract.high.u32 %v7375
        %v7378 = vmul.u32 %v7371, %v7362
        %v7379 = vadd.s32 %v7374, %v7376
        %vm7380 = vc.u32 %v7374, %v7376
        %v7381 = vadd.s32 %v7377, 1
        %v7382 = vsel %vm7380, %v7381, %v7377
        %v7383 = vadd.s32 %v7378, %v7382
        %v7384 = vadd.s32 %v7383, 536870912
        %v7385 = vshrl.u32 %v7384, 30
        %v7386 = vshll.u32 %v7385, 30
        %v7387 = vsub.s32 %v7383, %v7386
        %vm7388 = vcmp.lt.s32.totalorder %v7387, 0
        %v7389 = vsub.s32 0, %v7387
        %v7390 = vsel %vm7388, %v7389, %v7387
        %v7391 = vclz %v7390
        %v7392 = vsub.s32 %v7391, 2
        %vm7393 = vcmp.gt.s32.totalorder 0, %v7392
        %v7394 = vsel %vm7393, 0, %v7392
        %v7395 = vsub.s32 32, %v7394
        %v7396 = vshll.u32 %v7387, %v7394
        %v7397 = vshrl.u32 %v7379, %v7395
        %v7398 = vor.u32 %v7396, %v7397
        %v7399 = vsub.s32 4294967266, %v7394
        %v7400 = vadd.s32 %v7399, 127
        %v7401 = vshll.u32 %v7400, 23
        %v7402 = vor.u32 4788187, %v7401
        %v7403 = vand.u32 2147483647, %v7402
        %v7405 = vcvt.s32.f32 %v7398
        %v7406 = vmul.f32 %v7405, %v7403
        %v7407 = vxor.u32 %v7406, 2147483648
        %v7408 = vsel %vm7325, %v7407, %v7406
        %v7409 = vsub.s32 4, %v7385
        %v7410 = vsel %vm7325, %v7409, %v7385
        %v7411 = vsel %vm7324, %v223, %v7408
        %v7412 = vsel %vm7324, 0, %v7410
        %v7413 = vcosq.f32.pop %v7411
        %v7414 = vsinq.f32.pop %v7411
        %vm7415 = vweird.f32 %v223
        %v7416 = vadd.s32 %v7412, 3
        %v7417 = vand.u32 %v7416, 3
        %vm7418 = vcmp.lt.s32.totalorder %v7417, 2
        %vm7419 = vcmp.eq.s32.totalorder %v7417, 0
        %v7420 = vxor.u32 %v7414, 2147483648
        %v7421 = vsel %vm7419, %v7413, %v7420
        %vm7422 = vcmp.eq.s32.totalorder %v7417, 2
        %v7423 = vxor.u32 %v7413, 2147483648
        %v7424 = vsel %vm7422, %v7423, %v7414
        %v7425 = vsel %vm7418, %v7421, %v7424
        %v7426 = vsel %vm7415, nan, %v7425
        %v7427 = vand.u32 2147483647, %v224
        %vm7428 = vcmp.le.f32.partialorder %v7427, 0.7853982
        %vm7429 = vcmp.lt.s32.totalorder %v224, 0
        %v7430 = vand.u32 %v224, 2139095040
        %v7431 = vshrl.u32 %v7430, 23
        %v7432 = vsub.s32 %v7431, 127
        %v7433 = vand.u32 2147483647, %v224
        %v7434 = vand.u32 %v7433, 8388607
        %v7435 = vor.u32 %v7434, 8388608
        %v7436 = vsub.s32 0, %v7435
        %v7437 = vadd.s32 %v7432, 1
        %vm7438 = vcmp.gt.s32.totalorder %v7437, 0
        %v7439 = vsel %vm7438, %v7437, 0
        %v7440 = vshrl.u32 %v7439, 5
        %v7441 = vand.u32 %v7439, 31
        %v7442 = vsub.s32 32, %v7441
        %v7443 = vshrl.u32 683565275, %v7442
        %v7444 = vshll.u32 683565275, %v7441
        %v7445 = vshrl.u32 2475754826, %v7442
        %v7446 = vor.u32 %v7444, %v7445
        %v7447 = vshll.u32 2475754826, %v7441
        %v7448 = vshrl.u32 2131351028, %v7442
        %v7449 = vor.u32 %v7447, %v7448
        %v7450 = vshll.u32 2131351028, %v7441
        %v7451 = vshrl.u32 2102212464, %v7442
        %v7452 = vor.u32 %v7450, %v7451
        %v7453 = vshll.u32 2102212464, %v7441
        %v7454 = vshrl.u32 920167782, %v7442
        %v7455 = vor.u32 %v7453, %v7454
        %v7456 = vshll.u32 920167782, %v7441
        %v7457 = vshrl.u32 1326507024, %v7442
        %v7458 = vor.u32 %v7456, %v7457
        %vm7459 = vcmp.lt.s32.totalorder %v7440, 1
        %vm7460 = vcmp.lt.s32.totalorder %v7440, 2
        %vm7461 = vcmp.lt.s32.totalorder %v7440, 3
        %vm7462 = vcmp.lt.s32.totalorder %v7440, 4
        %v7463 = vsel %vm7459, %v7443, %v7446
        %v7464 = vsel %vm7462, %v7452, 2102212464
        %v7465 = vsel %vm7461, %v7449, %v7464
        %v7466 = vsel %vm7460, %v7463, %v7465
        %v7467 = vsel %vm7459, %v7446, %v7449
        %v7468 = vsel %vm7462, %v7455, 920167782
        %v7469 = vsel %vm7461, %v7452, %v7468
        %v7470 = vsel %vm7460, %v7467, %v7469
        %v7471 = vsel %vm7459, %v7449, %v7452
        %v7472 = vsel %vm7462, %v7458, 1326507024
        %v7473 = vsel %vm7461, %v7455, %v7472
        %v7474 = vsel %vm7460, %v7471, %v7473
        %v7475 = vshll.u32 %v7435, 8
        %v7476 = vmul.u32.u64.compose %v7475, %v7474
        %v7477 = vextract.low.u32 %v7476
        %v7478 = vextract.high.u32 %v7476
        %v7479 = vmul.u32.u64.compose %v7475, %v7470
        %v7480 = vextract.low.u32 %v7479
        %v7481 = vextract.high.u32 %v7479
        %v7482 = vmul.u32 %v7475, %v7466
        %v7483 = vadd.s32 %v7478, %v7480
        %vm7484 = vc.u32 %v7478, %v7480
        %v7485 = vadd.s32 %v7481, 1
        %v7486 = vsel %vm7484, %v7485, %v7481
        %v7487 = vadd.s32 %v7482, %v7486
        %v7488 = vadd.s32 %v7487, 536870912
        %v7489 = vshrl.u32 %v7488, 30
        %v7490 = vshll.u32 %v7489, 30
        %v7491 = vsub.s32 %v7487, %v7490
        %vm7492 = vcmp.lt.s32.totalorder %v7491, 0
        %v7493 = vsub.s32 0, %v7491
        %v7494 = vsel %vm7492, %v7493, %v7491
        %v7495 = vclz %v7494
        %v7496 = vsub.s32 %v7495, 2
        %vm7497 = vcmp.gt.s32.totalorder 0, %v7496
        %v7498 = vsel %vm7497, 0, %v7496
        %v7499 = vsub.s32 32, %v7498
        %v7500 = vshll.u32 %v7491, %v7498
        %v7501 = vshrl.u32 %v7483, %v7499
        %v7502 = vor.u32 %v7500, %v7501
        %v7503 = vsub.s32 4294967266, %v7498
        %v7504 = vadd.s32 %v7503, 127
        %v7505 = vshll.u32 %v7504, 23
        %v7506 = vor.u32 4788187, %v7505
        %v7507 = vand.u32 2147483647, %v7506
        %v7509 = vcvt.s32.f32 %v7502
        %v7510 = vmul.f32 %v7509, %v7507
        %v7511 = vxor.u32 %v7510, 2147483648
        %v7512 = vsel %vm7429, %v7511, %v7510
        %v7513 = vsub.s32 4, %v7489
        %v7514 = vsel %vm7429, %v7513, %v7489
        %v7515 = vsel %vm7428, %v224, %v7512
        %v7516 = vsel %vm7428, 0, %v7514
        %v7517 = vcosq.f32.pop %v7515
        %v7518 = vsinq.f32.pop %v7515
        %vm7519 = vweird.f32 %v224
        %v7520 = vadd.s32 %v7516, 3
        %v7521 = vand.u32 %v7520, 3
        %vm7522 = vcmp.lt.s32.totalorder %v7521, 2
        %vm7523 = vcmp.eq.s32.totalorder %v7521, 0
        %v7524 = vxor.u32 %v7518, 2147483648
        %v7525 = vsel %vm7523, %v7517, %v7524
        %vm7526 = vcmp.eq.s32.totalorder %v7521, 2
        %v7527 = vxor.u32 %v7517, 2147483648
        %v7528 = vsel %vm7526, %v7527, %v7518
        %v7529 = vsel %vm7522, %v7525, %v7528
        %v7530 = vsel %vm7519, nan, %v7529
        %v7531 = vand.u32 2147483647, %v225
        %vm7532 = vcmp.le.f32.partialorder %v7531, 0.7853982
        %vm7533 = vcmp.lt.s32.totalorder %v225, 0
        %v7534 = vand.u32 %v225, 2139095040
        %v7535 = vshrl.u32 %v7534, 23
        %v7536 = vsub.s32 %v7535, 127
        %v7537 = vand.u32 2147483647, %v225
        %v7538 = vand.u32 %v7537, 8388607
        %v7539 = vor.u32 %v7538, 8388608
        %v7540 = vsub.s32 0, %v7539
        %v7541 = vadd.s32 %v7536, 1
        %vm7542 = vcmp.gt.s32.totalorder %v7541, 0
        %v7543 = vsel %vm7542, %v7541, 0
        %v7544 = vshrl.u32 %v7543, 5
        %v7545 = vand.u32 %v7543, 31
        %v7546 = vsub.s32 32, %v7545
        %v7547 = vshrl.u32 683565275, %v7546
        %v7548 = vshll.u32 683565275, %v7545
        %v7549 = vshrl.u32 2475754826, %v7546
        %v7550 = vor.u32 %v7548, %v7549
        %v7551 = vshll.u32 2475754826, %v7545
        %v7552 = vshrl.u32 2131351028, %v7546
        %v7553 = vor.u32 %v7551, %v7552
        %v7554 = vshll.u32 2131351028, %v7545
        %v7555 = vshrl.u32 2102212464, %v7546
        %v7556 = vor.u32 %v7554, %v7555
        %v7557 = vshll.u32 2102212464, %v7545
        %v7558 = vshrl.u32 920167782, %v7546
        %v7559 = vor.u32 %v7557, %v7558
        %v7560 = vshll.u32 920167782, %v7545
        %v7561 = vshrl.u32 1326507024, %v7546
        %v7562 = vor.u32 %v7560, %v7561
        %vm7563 = vcmp.lt.s32.totalorder %v7544, 1
        %vm7564 = vcmp.lt.s32.totalorder %v7544, 2
        %vm7565 = vcmp.lt.s32.totalorder %v7544, 3
        %vm7566 = vcmp.lt.s32.totalorder %v7544, 4
        %v7567 = vsel %vm7563, %v7547, %v7550
        %v7568 = vsel %vm7566, %v7556, 2102212464
        %v7569 = vsel %vm7565, %v7553, %v7568
        %v7570 = vsel %vm7564, %v7567, %v7569
        %v7571 = vsel %vm7563, %v7550, %v7553
        %v7572 = vsel %vm7566, %v7559, 920167782
        %v7573 = vsel %vm7565, %v7556, %v7572
        %v7574 = vsel %vm7564, %v7571, %v7573
        %v7575 = vsel %vm7563, %v7553, %v7556
        %v7576 = vsel %vm7566, %v7562, 1326507024
        %v7577 = vsel %vm7565, %v7559, %v7576
        %v7578 = vsel %vm7564, %v7575, %v7577
        %v7579 = vshll.u32 %v7539, 8
        %v7580 = vmul.u32.u64.compose %v7579, %v7578
        %v7581 = vextract.low.u32 %v7580
        %v7582 = vextract.high.u32 %v7580
        %v7583 = vmul.u32.u64.compose %v7579, %v7574
        %v7584 = vextract.low.u32 %v7583
        %v7585 = vextract.high.u32 %v7583
        %v7586 = vmul.u32 %v7579, %v7570
        %v7587 = vadd.s32 %v7582, %v7584
        %vm7588 = vc.u32 %v7582, %v7584
        %v7589 = vadd.s32 %v7585, 1
        %v7590 = vsel %vm7588, %v7589, %v7585
        %v7591 = vadd.s32 %v7586, %v7590
        %v7592 = vadd.s32 %v7591, 536870912
        %v7593 = vshrl.u32 %v7592, 30
        %v7594 = vshll.u32 %v7593, 30
        %v7595 = vsub.s32 %v7591, %v7594
        %vm7596 = vcmp.lt.s32.totalorder %v7595, 0
        %v7597 = vsub.s32 0, %v7595
        %v7598 = vsel %vm7596, %v7597, %v7595
        %v7599 = vclz %v7598
        %v7600 = vsub.s32 %v7599, 2
        %vm7601 = vcmp.gt.s32.totalorder 0, %v7600
        %v7602 = vsel %vm7601, 0, %v7600
        %v7603 = vsub.s32 32, %v7602
        %v7604 = vshll.u32 %v7595, %v7602
        %v7605 = vshrl.u32 %v7587, %v7603
        %v7606 = vor.u32 %v7604, %v7605
        %v7607 = vsub.s32 4294967266, %v7602
        %v7608 = vadd.s32 %v7607, 127
        %v7609 = vshll.u32 %v7608, 23
        %v7610 = vor.u32 4788187, %v7609
        %v7611 = vand.u32 2147483647, %v7610
        %v7613 = vcvt.s32.f32 %v7606
        %v7614 = vmul.f32 %v7613, %v7611
        %v7615 = vxor.u32 %v7614, 2147483648
        %v7616 = vsel %vm7533, %v7615, %v7614
        %v7617 = vsub.s32 4, %v7593
        %v7618 = vsel %vm7533, %v7617, %v7593
        %v7619 = vsel %vm7532, %v225, %v7616
        %v7620 = vsel %vm7532, 0, %v7618
        %v7621 = vcosq.f32.pop %v7619
        %v7622 = vsinq.f32.pop %v7619
        %vm7623 = vweird.f32 %v225
        %v7624 = vadd.s32 %v7620, 3
        %v7625 = vand.u32 %v7624, 3
        %vm7626 = vcmp.lt.s32.totalorder %v7625, 2
        %vm7627 = vcmp.eq.s32.totalorder %v7625, 0
        %v7628 = vxor.u32 %v7622, 2147483648
        %v7629 = vsel %vm7627, %v7621, %v7628
        %vm7630 = vcmp.eq.s32.totalorder %v7625, 2
        %v7631 = vxor.u32 %v7621, 2147483648
        %v7632 = vsel %vm7630, %v7631, %v7622
        %v7633 = vsel %vm7626, %v7629, %v7632
        %v7634 = vsel %vm7623, nan, %v7633
        %v7635 = vand.u32 2147483647, %v226
        %vm7636 = vcmp.le.f32.partialorder %v7635, 0.7853982
        %vm7637 = vcmp.lt.s32.totalorder %v226, 0
        %v7638 = vand.u32 %v226, 2139095040
        %v7639 = vshrl.u32 %v7638, 23
        %v7640 = vsub.s32 %v7639, 127
        %v7641 = vand.u32 2147483647, %v226
        %v7642 = vand.u32 %v7641, 8388607
        %v7643 = vor.u32 %v7642, 8388608
        %v7644 = vsub.s32 0, %v7643
        %v7645 = vadd.s32 %v7640, 1
        %vm7646 = vcmp.gt.s32.totalorder %v7645, 0
        %v7647 = vsel %vm7646, %v7645, 0
        %v7648 = vshrl.u32 %v7647, 5
        %v7649 = vand.u32 %v7647, 31
        %v7650 = vsub.s32 32, %v7649
        %v7651 = vshrl.u32 683565275, %v7650
        %v7652 = vshll.u32 683565275, %v7649
        %v7653 = vshrl.u32 2475754826, %v7650
        %v7654 = vor.u32 %v7652, %v7653
        %v7655 = vshll.u32 2475754826, %v7649
        %v7656 = vshrl.u32 2131351028, %v7650
        %v7657 = vor.u32 %v7655, %v7656
        %v7658 = vshll.u32 2131351028, %v7649
        %v7659 = vshrl.u32 2102212464, %v7650
        %v7660 = vor.u32 %v7658, %v7659
        %v7661 = vshll.u32 2102212464, %v7649
        %v7662 = vshrl.u32 920167782, %v7650
        %v7663 = vor.u32 %v7661, %v7662
        %v7664 = vshll.u32 920167782, %v7649
        %v7665 = vshrl.u32 1326507024, %v7650
        %v7666 = vor.u32 %v7664, %v7665
        %vm7667 = vcmp.lt.s32.totalorder %v7648, 1
        %vm7668 = vcmp.lt.s32.totalorder %v7648, 2
        %vm7669 = vcmp.lt.s32.totalorder %v7648, 3
        %vm7670 = vcmp.lt.s32.totalorder %v7648, 4
        %v7671 = vsel %vm7667, %v7651, %v7654
        %v7672 = vsel %vm7670, %v7660, 2102212464
        %v7673 = vsel %vm7669, %v7657, %v7672
        %v7674 = vsel %vm7668, %v7671, %v7673
        %v7675 = vsel %vm7667, %v7654, %v7657
        %v7676 = vsel %vm7670, %v7663, 920167782
        %v7677 = vsel %vm7669, %v7660, %v7676
        %v7678 = vsel %vm7668, %v7675, %v7677
        %v7679 = vsel %vm7667, %v7657, %v7660
        %v7680 = vsel %vm7670, %v7666, 1326507024
        %v7681 = vsel %vm7669, %v7663, %v7680
        %v7682 = vsel %vm7668, %v7679, %v7681
        %v7683 = vshll.u32 %v7643, 8
        %v7684 = vmul.u32.u64.compose %v7683, %v7682
        %v7685 = vextract.low.u32 %v7684
        %v7686 = vextract.high.u32 %v7684
        %v7687 = vmul.u32.u64.compose %v7683, %v7678
        %v7688 = vextract.low.u32 %v7687
        %v7689 = vextract.high.u32 %v7687
        %v7690 = vmul.u32 %v7683, %v7674
        %v7691 = vadd.s32 %v7686, %v7688
        %vm7692 = vc.u32 %v7686, %v7688
        %v7693 = vadd.s32 %v7689, 1
        %v7694 = vsel %vm7692, %v7693, %v7689
        %v7695 = vadd.s32 %v7690, %v7694
        %v7696 = vadd.s32 %v7695, 536870912
        %v7697 = vshrl.u32 %v7696, 30
        %v7698 = vshll.u32 %v7697, 30
        %v7699 = vsub.s32 %v7695, %v7698
        %vm7700 = vcmp.lt.s32.totalorder %v7699, 0
        %v7701 = vsub.s32 0, %v7699
        %v7702 = vsel %vm7700, %v7701, %v7699
        %v7703 = vclz %v7702
        %v7704 = vsub.s32 %v7703, 2
        %vm7705 = vcmp.gt.s32.totalorder 0, %v7704
        %v7706 = vsel %vm7705, 0, %v7704
        %v7707 = vsub.s32 32, %v7706
        %v7708 = vshll.u32 %v7699, %v7706
        %v7709 = vshrl.u32 %v7691, %v7707
        %v7710 = vor.u32 %v7708, %v7709
        %v7711 = vsub.s32 4294967266, %v7706
        %v7712 = vadd.s32 %v7711, 127
        %v7713 = vshll.u32 %v7712, 23
        %v7714 = vor.u32 4788187, %v7713
        %v7715 = vand.u32 2147483647, %v7714
        %v7717 = vcvt.s32.f32 %v7710
        %v7718 = vmul.f32 %v7717, %v7715
        %v7719 = vxor.u32 %v7718, 2147483648
        %v7720 = vsel %vm7637, %v7719, %v7718
        %v7721 = vsub.s32 4, %v7697
        %v7722 = vsel %vm7637, %v7721, %v7697
        %v7723 = vsel %vm7636, %v226, %v7720
        %v7724 = vsel %vm7636, 0, %v7722
        %v7725 = vcosq.f32.pop %v7723
        %v7726 = vsinq.f32.pop %v7723
        %vm7727 = vweird.f32 %v226
        %v7728 = vadd.s32 %v7724, 3
        %v7729 = vand.u32 %v7728, 3
        %vm7730 = vcmp.lt.s32.totalorder %v7729, 2
        %vm7731 = vcmp.eq.s32.totalorder %v7729, 0
        %v7732 = vxor.u32 %v7726, 2147483648
        %v7733 = vsel %vm7731, %v7725, %v7732
        %vm7734 = vcmp.eq.s32.totalorder %v7729, 2
        %v7735 = vxor.u32 %v7725, 2147483648
        %v7736 = vsel %vm7734, %v7735, %v7726
        %v7737 = vsel %vm7730, %v7733, %v7736
        %v7738 = vsel %vm7727, nan, %v7737
        %v7739 = vand.u32 2147483647, %v227
        %vm7740 = vcmp.le.f32.partialorder %v7739, 0.7853982
        %vm7741 = vcmp.lt.s32.totalorder %v227, 0
        %v7742 = vand.u32 %v227, 2139095040
        %v7743 = vshrl.u32 %v7742, 23
        %v7744 = vsub.s32 %v7743, 127
        %v7745 = vand.u32 2147483647, %v227
        %v7746 = vand.u32 %v7745, 8388607
        %v7747 = vor.u32 %v7746, 8388608
        %v7748 = vsub.s32 0, %v7747
        %v7749 = vadd.s32 %v7744, 1
        %vm7750 = vcmp.gt.s32.totalorder %v7749, 0
        %v7751 = vsel %vm7750, %v7749, 0
        %v7752 = vshrl.u32 %v7751, 5
        %v7753 = vand.u32 %v7751, 31
        %v7754 = vsub.s32 32, %v7753
        %v7755 = vshrl.u32 683565275, %v7754
        %v7756 = vshll.u32 683565275, %v7753
        %v7757 = vshrl.u32 2475754826, %v7754
        %v7758 = vor.u32 %v7756, %v7757
        %v7759 = vshll.u32 2475754826, %v7753
        %v7760 = vshrl.u32 2131351028, %v7754
        %v7761 = vor.u32 %v7759, %v7760
        %v7762 = vshll.u32 2131351028, %v7753
        %v7763 = vshrl.u32 2102212464, %v7754
        %v7764 = vor.u32 %v7762, %v7763
        %v7765 = vshll.u32 2102212464, %v7753
        %v7766 = vshrl.u32 920167782, %v7754
        %v7767 = vor.u32 %v7765, %v7766
        %v7768 = vshll.u32 920167782, %v7753
        %v7769 = vshrl.u32 1326507024, %v7754
        %v7770 = vor.u32 %v7768, %v7769
        %vm7771 = vcmp.lt.s32.totalorder %v7752, 1
        %vm7772 = vcmp.lt.s32.totalorder %v7752, 2
        %vm7773 = vcmp.lt.s32.totalorder %v7752, 3
        %vm7774 = vcmp.lt.s32.totalorder %v7752, 4
        %v7775 = vsel %vm7771, %v7755, %v7758
        %v7776 = vsel %vm7774, %v7764, 2102212464
        %v7777 = vsel %vm7773, %v7761, %v7776
        %v7778 = vsel %vm7772, %v7775, %v7777
        %v7779 = vsel %vm7771, %v7758, %v7761
        %v7780 = vsel %vm7774, %v7767, 920167782
        %v7781 = vsel %vm7773, %v7764, %v7780
        %v7782 = vsel %vm7772, %v7779, %v7781
        %v7783 = vsel %vm7771, %v7761, %v7764
        %v7784 = vsel %vm7774, %v7770, 1326507024
        %v7785 = vsel %vm7773, %v7767, %v7784
        %v7786 = vsel %vm7772, %v7783, %v7785
        %v7787 = vshll.u32 %v7747, 8
        %v7788 = vmul.u32.u64.compose %v7787, %v7786
        %v7789 = vextract.low.u32 %v7788
        %v7790 = vextract.high.u32 %v7788
        %v7791 = vmul.u32.u64.compose %v7787, %v7782
        %v7792 = vextract.low.u32 %v7791
        %v7793 = vextract.high.u32 %v7791
        %v7794 = vmul.u32 %v7787, %v7778
        %v7795 = vadd.s32 %v7790, %v7792
        %vm7796 = vc.u32 %v7790, %v7792
        %v7797 = vadd.s32 %v7793, 1
        %v7798 = vsel %vm7796, %v7797, %v7793
        %v7799 = vadd.s32 %v7794, %v7798
        %v7800 = vadd.s32 %v7799, 536870912
        %v7801 = vshrl.u32 %v7800, 30
        %v7802 = vshll.u32 %v7801, 30
        %v7803 = vsub.s32 %v7799, %v7802
        %vm7804 = vcmp.lt.s32.totalorder %v7803, 0
        %v7805 = vsub.s32 0, %v7803
        %v7806 = vsel %vm7804, %v7805, %v7803
        %v7807 = vclz %v7806
        %v7808 = vsub.s32 %v7807, 2
        %vm7809 = vcmp.gt.s32.totalorder 0, %v7808
        %v7810 = vsel %vm7809, 0, %v7808
        %v7811 = vsub.s32 32, %v7810
        %v7812 = vshll.u32 %v7803, %v7810
        %v7813 = vshrl.u32 %v7795, %v7811
        %v7814 = vor.u32 %v7812, %v7813
        %v7815 = vsub.s32 4294967266, %v7810
        %v7816 = vadd.s32 %v7815, 127
        %v7817 = vshll.u32 %v7816, 23
        %v7818 = vor.u32 4788187, %v7817
        %v7819 = vand.u32 2147483647, %v7818
        %v7821 = vcvt.s32.f32 %v7814
        %v7822 = vmul.f32 %v7821, %v7819
        %v7823 = vxor.u32 %v7822, 2147483648
        %v7824 = vsel %vm7741, %v7823, %v7822
        %v7825 = vsub.s32 4, %v7801
        %v7826 = vsel %vm7741, %v7825, %v7801
        %v7827 = vsel %vm7740, %v227, %v7824
        %v7828 = vsel %vm7740, 0, %v7826
        %v7829 = vcosq.f32.pop %v7827
        %v7830 = vsinq.f32.pop %v7827
        %vm7831 = vweird.f32 %v227
        %v7832 = vadd.s32 %v7828, 3
        %v7833 = vand.u32 %v7832, 3
        %vm7834 = vcmp.lt.s32.totalorder %v7833, 2
        %vm7835 = vcmp.eq.s32.totalorder %v7833, 0
        %v7836 = vxor.u32 %v7830, 2147483648
        %v7837 = vsel %vm7835, %v7829, %v7836
        %vm7838 = vcmp.eq.s32.totalorder %v7833, 2
        %v7839 = vxor.u32 %v7829, 2147483648
        %v7840 = vsel %vm7838, %v7839, %v7830
        %v7841 = vsel %vm7834, %v7837, %v7840
        %v7842 = vsel %vm7831, nan, %v7841
        %v7843 = vand.u32 2147483647, %v228
        %vm7844 = vcmp.le.f32.partialorder %v7843, 0.7853982
        %vm7845 = vcmp.lt.s32.totalorder %v228, 0
        %v7846 = vand.u32 %v228, 2139095040
        %v7847 = vshrl.u32 %v7846, 23
        %v7848 = vsub.s32 %v7847, 127
        %v7849 = vand.u32 2147483647, %v228
        %v7850 = vand.u32 %v7849, 8388607
        %v7851 = vor.u32 %v7850, 8388608
        %v7852 = vsub.s32 0, %v7851
        %v7853 = vadd.s32 %v7848, 1
        %vm7854 = vcmp.gt.s32.totalorder %v7853, 0
        %v7855 = vsel %vm7854, %v7853, 0
        %v7856 = vshrl.u32 %v7855, 5
        %v7857 = vand.u32 %v7855, 31
        %v7858 = vsub.s32 32, %v7857
        %v7859 = vshrl.u32 683565275, %v7858
        %v7860 = vshll.u32 683565275, %v7857
        %v7861 = vshrl.u32 2475754826, %v7858
        %v7862 = vor.u32 %v7860, %v7861
        %v7863 = vshll.u32 2475754826, %v7857
        %v7864 = vshrl.u32 2131351028, %v7858
        %v7865 = vor.u32 %v7863, %v7864
        %v7866 = vshll.u32 2131351028, %v7857
        %v7867 = vshrl.u32 2102212464, %v7858
        %v7868 = vor.u32 %v7866, %v7867
        %v7869 = vshll.u32 2102212464, %v7857
        %v7870 = vshrl.u32 920167782, %v7858
        %v7871 = vor.u32 %v7869, %v7870
        %v7872 = vshll.u32 920167782, %v7857
        %v7873 = vshrl.u32 1326507024, %v7858
        %v7874 = vor.u32 %v7872, %v7873
        %vm7875 = vcmp.lt.s32.totalorder %v7856, 1
        %vm7876 = vcmp.lt.s32.totalorder %v7856, 2
        %vm7877 = vcmp.lt.s32.totalorder %v7856, 3
        %vm7878 = vcmp.lt.s32.totalorder %v7856, 4
        %v7879 = vsel %vm7875, %v7859, %v7862
        %v7880 = vsel %vm7878, %v7868, 2102212464
        %v7881 = vsel %vm7877, %v7865, %v7880
        %v7882 = vsel %vm7876, %v7879, %v7881
        %v7883 = vsel %vm7875, %v7862, %v7865
        %v7884 = vsel %vm7878, %v7871, 920167782
        %v7885 = vsel %vm7877, %v7868, %v7884
        %v7886 = vsel %vm7876, %v7883, %v7885
        %v7887 = vsel %vm7875, %v7865, %v7868
        %v7888 = vsel %vm7878, %v7874, 1326507024
        %v7889 = vsel %vm7877, %v7871, %v7888
        %v7890 = vsel %vm7876, %v7887, %v7889
        %v7891 = vshll.u32 %v7851, 8
        %v7892 = vmul.u32.u64.compose %v7891, %v7890
        %v7893 = vextract.low.u32 %v7892
        %v7894 = vextract.high.u32 %v7892
        %v7895 = vmul.u32.u64.compose %v7891, %v7886
        %v7896 = vextract.low.u32 %v7895
        %v7897 = vextract.high.u32 %v7895
        %v7898 = vmul.u32 %v7891, %v7882
        %v7899 = vadd.s32 %v7894, %v7896
        %vm7900 = vc.u32 %v7894, %v7896
        %v7901 = vadd.s32 %v7897, 1
        %v7902 = vsel %vm7900, %v7901, %v7897
        %v7903 = vadd.s32 %v7898, %v7902
        %v7904 = vadd.s32 %v7903, 536870912
        %v7905 = vshrl.u32 %v7904, 30
        %v7906 = vshll.u32 %v7905, 30
        %v7907 = vsub.s32 %v7903, %v7906
        %vm7908 = vcmp.lt.s32.totalorder %v7907, 0
        %v7909 = vsub.s32 0, %v7907
        %v7910 = vsel %vm7908, %v7909, %v7907
        %v7911 = vclz %v7910
        %v7912 = vsub.s32 %v7911, 2
        %vm7913 = vcmp.gt.s32.totalorder 0, %v7912
        %v7914 = vsel %vm7913, 0, %v7912
        %v7915 = vsub.s32 32, %v7914
        %v7916 = vshll.u32 %v7907, %v7914
        %v7917 = vshrl.u32 %v7899, %v7915
        %v7918 = vor.u32 %v7916, %v7917
        %v7919 = vsub.s32 4294967266, %v7914
        %v7920 = vadd.s32 %v7919, 127
        %v7921 = vshll.u32 %v7920, 23
        %v7922 = vor.u32 4788187, %v7921
        %v7923 = vand.u32 2147483647, %v7922
        %v7925 = vcvt.s32.f32 %v7918
        %v7926 = vmul.f32 %v7925, %v7923
        %v7927 = vxor.u32 %v7926, 2147483648
        %v7928 = vsel %vm7845, %v7927, %v7926
        %v7929 = vsub.s32 4, %v7905
        %v7930 = vsel %vm7845, %v7929, %v7905
        %v7931 = vsel %vm7844, %v228, %v7928
        %v7932 = vsel %vm7844, 0, %v7930
        %v7933 = vcosq.f32.pop %v7931
        %v7934 = vsinq.f32.pop %v7931
        %vm7935 = vweird.f32 %v228
        %v7936 = vadd.s32 %v7932, 3
        %v7937 = vand.u32 %v7936, 3
        %vm7938 = vcmp.lt.s32.totalorder %v7937, 2
        %vm7939 = vcmp.eq.s32.totalorder %v7937, 0
        %v7940 = vxor.u32 %v7934, 2147483648
        %v7941 = vsel %vm7939, %v7933, %v7940
        %vm7942 = vcmp.eq.s32.totalorder %v7937, 2
        %v7943 = vxor.u32 %v7933, 2147483648
        %v7944 = vsel %vm7942, %v7943, %v7934
        %v7945 = vsel %vm7938, %v7941, %v7944
        %v7946 = vsel %vm7935, nan, %v7945
        %v7947 = vand.u32 2147483647, %v229
        %vm7948 = vcmp.le.f32.partialorder %v7947, 0.7853982
        %vm7949 = vcmp.lt.s32.totalorder %v229, 0
        %v7950 = vand.u32 %v229, 2139095040
        %v7951 = vshrl.u32 %v7950, 23
        %v7952 = vsub.s32 %v7951, 127
        %v7953 = vand.u32 2147483647, %v229
        %v7954 = vand.u32 %v7953, 8388607
        %v7955 = vor.u32 %v7954, 8388608
        %v7956 = vsub.s32 0, %v7955
        %v7957 = vadd.s32 %v7952, 1
        %vm7958 = vcmp.gt.s32.totalorder %v7957, 0
        %v7959 = vsel %vm7958, %v7957, 0
        %v7960 = vshrl.u32 %v7959, 5
        %v7961 = vand.u32 %v7959, 31
        %v7962 = vsub.s32 32, %v7961
        %v7963 = vshrl.u32 683565275, %v7962
        %v7964 = vshll.u32 683565275, %v7961
        %v7965 = vshrl.u32 2475754826, %v7962
        %v7966 = vor.u32 %v7964, %v7965
        %v7967 = vshll.u32 2475754826, %v7961
        %v7968 = vshrl.u32 2131351028, %v7962
        %v7969 = vor.u32 %v7967, %v7968
        %v7970 = vshll.u32 2131351028, %v7961
        %v7971 = vshrl.u32 2102212464, %v7962
        %v7972 = vor.u32 %v7970, %v7971
        %v7973 = vshll.u32 2102212464, %v7961
        %v7974 = vshrl.u32 920167782, %v7962
        %v7975 = vor.u32 %v7973, %v7974
        %v7976 = vshll.u32 920167782, %v7961
        %v7977 = vshrl.u32 1326507024, %v7962
        %v7978 = vor.u32 %v7976, %v7977
        %vm7979 = vcmp.lt.s32.totalorder %v7960, 1
        %vm7980 = vcmp.lt.s32.totalorder %v7960, 2
        %vm7981 = vcmp.lt.s32.totalorder %v7960, 3
        %vm7982 = vcmp.lt.s32.totalorder %v7960, 4
        %v7983 = vsel %vm7979, %v7963, %v7966
        %v7984 = vsel %vm7982, %v7972, 2102212464
        %v7985 = vsel %vm7981, %v7969, %v7984
        %v7986 = vsel %vm7980, %v7983, %v7985
        %v7987 = vsel %vm7979, %v7966, %v7969
        %v7988 = vsel %vm7982, %v7975, 920167782
        %v7989 = vsel %vm7981, %v7972, %v7988
        %v7990 = vsel %vm7980, %v7987, %v7989
        %v7991 = vsel %vm7979, %v7969, %v7972
        %v7992 = vsel %vm7982, %v7978, 1326507024
        %v7993 = vsel %vm7981, %v7975, %v7992
        %v7994 = vsel %vm7980, %v7991, %v7993
        %v7995 = vshll.u32 %v7955, 8
        %v7996 = vmul.u32.u64.compose %v7995, %v7994
        %v7997 = vextract.low.u32 %v7996
        %v7998 = vextract.high.u32 %v7996
        %v7999 = vmul.u32.u64.compose %v7995, %v7990
        %v8000 = vextract.low.u32 %v7999
        %v8001 = vextract.high.u32 %v7999
        %v8002 = vmul.u32 %v7995, %v7986
        %v8003 = vadd.s32 %v7998, %v8000
        %vm8004 = vc.u32 %v7998, %v8000
        %v8005 = vadd.s32 %v8001, 1
        %v8006 = vsel %vm8004, %v8005, %v8001
        %v8007 = vadd.s32 %v8002, %v8006
        %v8008 = vadd.s32 %v8007, 536870912
        %v8009 = vshrl.u32 %v8008, 30
        %v8010 = vshll.u32 %v8009, 30
        %v8011 = vsub.s32 %v8007, %v8010
        %vm8012 = vcmp.lt.s32.totalorder %v8011, 0
        %v8013 = vsub.s32 0, %v8011
        %v8014 = vsel %vm8012, %v8013, %v8011
        %v8015 = vclz %v8014
        %v8016 = vsub.s32 %v8015, 2
        %vm8017 = vcmp.gt.s32.totalorder 0, %v8016
        %v8018 = vsel %vm8017, 0, %v8016
        %v8019 = vsub.s32 32, %v8018
        %v8020 = vshll.u32 %v8011, %v8018
        %v8021 = vshrl.u32 %v8003, %v8019
        %v8022 = vor.u32 %v8020, %v8021
        %v8023 = vsub.s32 4294967266, %v8018
        %v8024 = vadd.s32 %v8023, 127
        %v8025 = vshll.u32 %v8024, 23
        %v8026 = vor.u32 4788187, %v8025
        %v8027 = vand.u32 2147483647, %v8026
        %v8029 = vcvt.s32.f32 %v8022
        %v8030 = vmul.f32 %v8029, %v8027
        %v8031 = vxor.u32 %v8030, 2147483648
        %v8032 = vsel %vm7949, %v8031, %v8030
        %v8033 = vsub.s32 4, %v8009
        %v8034 = vsel %vm7949, %v8033, %v8009
        %v8035 = vsel %vm7948, %v229, %v8032
        %v8036 = vsel %vm7948, 0, %v8034
        %v8037 = vcosq.f32.pop %v8035
        %v8038 = vsinq.f32.pop %v8035
        %vm8039 = vweird.f32 %v229
        %v8040 = vadd.s32 %v8036, 3
        %v8041 = vand.u32 %v8040, 3
        %vm8042 = vcmp.lt.s32.totalorder %v8041, 2
        %vm8043 = vcmp.eq.s32.totalorder %v8041, 0
        %v8044 = vxor.u32 %v8038, 2147483648
        %v8045 = vsel %vm8043, %v8037, %v8044
        %vm8046 = vcmp.eq.s32.totalorder %v8041, 2
        %v8047 = vxor.u32 %v8037, 2147483648
        %v8048 = vsel %vm8046, %v8047, %v8038
        %v8049 = vsel %vm8042, %v8045, %v8048
        %v8050 = vsel %vm8039, nan, %v8049
        %v8051 = vand.u32 2147483647, %v230
        %vm8052 = vcmp.le.f32.partialorder %v8051, 0.7853982
        %vm8053 = vcmp.lt.s32.totalorder %v230, 0
        %v8054 = vand.u32 %v230, 2139095040
        %v8055 = vshrl.u32 %v8054, 23
        %v8056 = vsub.s32 %v8055, 127
        %v8057 = vand.u32 2147483647, %v230
        %v8058 = vand.u32 %v8057, 8388607
        %v8059 = vor.u32 %v8058, 8388608
        %v8060 = vsub.s32 0, %v8059
        %v8061 = vadd.s32 %v8056, 1
        %vm8062 = vcmp.gt.s32.totalorder %v8061, 0
        %v8063 = vsel %vm8062, %v8061, 0
        %v8064 = vshrl.u32 %v8063, 5
        %v8065 = vand.u32 %v8063, 31
        %v8066 = vsub.s32 32, %v8065
        %v8067 = vshrl.u32 683565275, %v8066
        %v8068 = vshll.u32 683565275, %v8065
        %v8069 = vshrl.u32 2475754826, %v8066
        %v8070 = vor.u32 %v8068, %v8069
        %v8071 = vshll.u32 2475754826, %v8065
        %v8072 = vshrl.u32 2131351028, %v8066
        %v8073 = vor.u32 %v8071, %v8072
        %v8074 = vshll.u32 2131351028, %v8065
        %v8075 = vshrl.u32 2102212464, %v8066
        %v8076 = vor.u32 %v8074, %v8075
        %v8077 = vshll.u32 2102212464, %v8065
        %v8078 = vshrl.u32 920167782, %v8066
        %v8079 = vor.u32 %v8077, %v8078
        %v8080 = vshll.u32 920167782, %v8065
        %v8081 = vshrl.u32 1326507024, %v8066
        %v8082 = vor.u32 %v8080, %v8081
        %vm8083 = vcmp.lt.s32.totalorder %v8064, 1
        %vm8084 = vcmp.lt.s32.totalorder %v8064, 2
        %vm8085 = vcmp.lt.s32.totalorder %v8064, 3
        %vm8086 = vcmp.lt.s32.totalorder %v8064, 4
        %v8087 = vsel %vm8083, %v8067, %v8070
        %v8088 = vsel %vm8086, %v8076, 2102212464
        %v8089 = vsel %vm8085, %v8073, %v8088
        %v8090 = vsel %vm8084, %v8087, %v8089
        %v8091 = vsel %vm8083, %v8070, %v8073
        %v8092 = vsel %vm8086, %v8079, 920167782
        %v8093 = vsel %vm8085, %v8076, %v8092
        %v8094 = vsel %vm8084, %v8091, %v8093
        %v8095 = vsel %vm8083, %v8073, %v8076
        %v8096 = vsel %vm8086, %v8082, 1326507024
        %v8097 = vsel %vm8085, %v8079, %v8096
        %v8098 = vsel %vm8084, %v8095, %v8097
        %v8099 = vshll.u32 %v8059, 8
        %v8100 = vmul.u32.u64.compose %v8099, %v8098
        %v8101 = vextract.low.u32 %v8100
        %v8102 = vextract.high.u32 %v8100
        %v8103 = vmul.u32.u64.compose %v8099, %v8094
        %v8104 = vextract.low.u32 %v8103
        %v8105 = vextract.high.u32 %v8103
        %v8106 = vmul.u32 %v8099, %v8090
        %v8107 = vadd.s32 %v8102, %v8104
        %vm8108 = vc.u32 %v8102, %v8104
        %v8109 = vadd.s32 %v8105, 1
        %v8110 = vsel %vm8108, %v8109, %v8105
        %v8111 = vadd.s32 %v8106, %v8110
        %v8112 = vadd.s32 %v8111, 536870912
        %v8113 = vshrl.u32 %v8112, 30
        %v8114 = vshll.u32 %v8113, 30
        %v8115 = vsub.s32 %v8111, %v8114
        %vm8116 = vcmp.lt.s32.totalorder %v8115, 0
        %v8117 = vsub.s32 0, %v8115
        %v8118 = vsel %vm8116, %v8117, %v8115
        %v8119 = vclz %v8118
        %v8120 = vsub.s32 %v8119, 2
        %vm8121 = vcmp.gt.s32.totalorder 0, %v8120
        %v8122 = vsel %vm8121, 0, %v8120
        %v8123 = vsub.s32 32, %v8122
        %v8124 = vshll.u32 %v8115, %v8122
        %v8125 = vshrl.u32 %v8107, %v8123
        %v8126 = vor.u32 %v8124, %v8125
        %v8127 = vsub.s32 4294967266, %v8122
        %v8128 = vadd.s32 %v8127, 127
        %v8129 = vshll.u32 %v8128, 23
        %v8130 = vor.u32 4788187, %v8129
        %v8131 = vand.u32 2147483647, %v8130
        %v8133 = vcvt.s32.f32 %v8126
        %v8134 = vmul.f32 %v8133, %v8131
        %v8135 = vxor.u32 %v8134, 2147483648
        %v8136 = vsel %vm8053, %v8135, %v8134
        %v8137 = vsub.s32 4, %v8113
        %v8138 = vsel %vm8053, %v8137, %v8113
        %v8139 = vsel %vm8052, %v230, %v8136
        %v8140 = vsel %vm8052, 0, %v8138
        %v8141 = vcosq.f32.pop %v8139
        %v8142 = vsinq.f32.pop %v8139
        %vm8143 = vweird.f32 %v230
        %v8144 = vadd.s32 %v8140, 3
        %v8145 = vand.u32 %v8144, 3
        %vm8146 = vcmp.lt.s32.totalorder %v8145, 2
        %vm8147 = vcmp.eq.s32.totalorder %v8145, 0
        %v8148 = vxor.u32 %v8142, 2147483648
        %v8149 = vsel %vm8147, %v8141, %v8148
        %vm8150 = vcmp.eq.s32.totalorder %v8145, 2
        %v8151 = vxor.u32 %v8141, 2147483648
        %v8152 = vsel %vm8150, %v8151, %v8142
        %v8153 = vsel %vm8146, %v8149, %v8152
        %v8154 = vsel %vm8143, nan, %v8153
        %v8155 = vand.u32 2147483647, %v231
        %vm8156 = vcmp.le.f32.partialorder %v8155, 0.7853982
        %vm8157 = vcmp.lt.s32.totalorder %v231, 0
        %v8158 = vand.u32 %v231, 2139095040
        %v8159 = vshrl.u32 %v8158, 23
        %v8160 = vsub.s32 %v8159, 127
        %v8161 = vand.u32 2147483647, %v231
        %v8162 = vand.u32 %v8161, 8388607
        %v8163 = vor.u32 %v8162, 8388608
        %v8164 = vsub.s32 0, %v8163
        %v8165 = vadd.s32 %v8160, 1
        %vm8166 = vcmp.gt.s32.totalorder %v8165, 0
        %v8167 = vsel %vm8166, %v8165, 0
        %v8168 = vshrl.u32 %v8167, 5
        %v8169 = vand.u32 %v8167, 31
        %v8170 = vsub.s32 32, %v8169
        %v8171 = vshrl.u32 683565275, %v8170
        %v8172 = vshll.u32 683565275, %v8169
        %v8173 = vshrl.u32 2475754826, %v8170
        %v8174 = vor.u32 %v8172, %v8173
        %v8175 = vshll.u32 2475754826, %v8169
        %v8176 = vshrl.u32 2131351028, %v8170
        %v8177 = vor.u32 %v8175, %v8176
        %v8178 = vshll.u32 2131351028, %v8169
        %v8179 = vshrl.u32 2102212464, %v8170
        %v8180 = vor.u32 %v8178, %v8179
        %v8181 = vshll.u32 2102212464, %v8169
        %v8182 = vshrl.u32 920167782, %v8170
        %v8183 = vor.u32 %v8181, %v8182
        %v8184 = vshll.u32 920167782, %v8169
        %v8185 = vshrl.u32 1326507024, %v8170
        %v8186 = vor.u32 %v8184, %v8185
        %vm8187 = vcmp.lt.s32.totalorder %v8168, 1
        %vm8188 = vcmp.lt.s32.totalorder %v8168, 2
        %vm8189 = vcmp.lt.s32.totalorder %v8168, 3
        %vm8190 = vcmp.lt.s32.totalorder %v8168, 4
        %v8191 = vsel %vm8187, %v8171, %v8174
        %v8192 = vsel %vm8190, %v8180, 2102212464
        %v8193 = vsel %vm8189, %v8177, %v8192
        %v8194 = vsel %vm8188, %v8191, %v8193
        %v8195 = vsel %vm8187, %v8174, %v8177
        %v8196 = vsel %vm8190, %v8183, 920167782
        %v8197 = vsel %vm8189, %v8180, %v8196
        %v8198 = vsel %vm8188, %v8195, %v8197
        %v8199 = vsel %vm8187, %v8177, %v8180
        %v8200 = vsel %vm8190, %v8186, 1326507024
        %v8201 = vsel %vm8189, %v8183, %v8200
        %v8202 = vsel %vm8188, %v8199, %v8201
        %v8203 = vshll.u32 %v8163, 8
        %v8204 = vmul.u32.u64.compose %v8203, %v8202
        %v8205 = vextract.low.u32 %v8204
        %v8206 = vextract.high.u32 %v8204
        %v8207 = vmul.u32.u64.compose %v8203, %v8198
        %v8208 = vextract.low.u32 %v8207
        %v8209 = vextract.high.u32 %v8207
        %v8210 = vmul.u32 %v8203, %v8194
        %v8211 = vadd.s32 %v8206, %v8208
        %vm8212 = vc.u32 %v8206, %v8208
        %v8213 = vadd.s32 %v8209, 1
        %v8214 = vsel %vm8212, %v8213, %v8209
        %v8215 = vadd.s32 %v8210, %v8214
        %v8216 = vadd.s32 %v8215, 536870912
        %v8217 = vshrl.u32 %v8216, 30
        %v8218 = vshll.u32 %v8217, 30
        %v8219 = vsub.s32 %v8215, %v8218
        %vm8220 = vcmp.lt.s32.totalorder %v8219, 0
        %v8221 = vsub.s32 0, %v8219
        %v8222 = vsel %vm8220, %v8221, %v8219
        %v8223 = vclz %v8222
        %v8224 = vsub.s32 %v8223, 2
        %vm8225 = vcmp.gt.s32.totalorder 0, %v8224
        %v8226 = vsel %vm8225, 0, %v8224
        %v8227 = vsub.s32 32, %v8226
        %v8228 = vshll.u32 %v8219, %v8226
        %v8229 = vshrl.u32 %v8211, %v8227
        %v8230 = vor.u32 %v8228, %v8229
        %v8231 = vsub.s32 4294967266, %v8226
        %v8232 = vadd.s32 %v8231, 127
        %v8233 = vshll.u32 %v8232, 23
        %v8234 = vor.u32 4788187, %v8233
        %v8235 = vand.u32 2147483647, %v8234
        %v8237 = vcvt.s32.f32 %v8230
        %v8238 = vmul.f32 %v8237, %v8235
        %v8239 = vxor.u32 %v8238, 2147483648
        %v8240 = vsel %vm8157, %v8239, %v8238
        %v8241 = vsub.s32 4, %v8217
        %v8242 = vsel %vm8157, %v8241, %v8217
        %v8243 = vsel %vm8156, %v231, %v8240
        %v8244 = vsel %vm8156, 0, %v8242
        %v8245 = vcosq.f32.pop %v8243
        %v8246 = vsinq.f32.pop %v8243
        %vm8247 = vweird.f32 %v231
        %v8248 = vadd.s32 %v8244, 3
        %v8249 = vand.u32 %v8248, 3
        %vm8250 = vcmp.lt.s32.totalorder %v8249, 2
        %vm8251 = vcmp.eq.s32.totalorder %v8249, 0
        %v8252 = vxor.u32 %v8246, 2147483648
        %v8253 = vsel %vm8251, %v8245, %v8252
        %vm8254 = vcmp.eq.s32.totalorder %v8249, 2
        %v8255 = vxor.u32 %v8245, 2147483648
        %v8256 = vsel %vm8254, %v8255, %v8246
        %v8257 = vsel %vm8250, %v8253, %v8256
        %v8258 = vsel %vm8247, nan, %v8257
        %v8259 = vand.u32 2147483647, %v232
        %vm8260 = vcmp.le.f32.partialorder %v8259, 0.7853982
        %vm8261 = vcmp.lt.s32.totalorder %v232, 0
        %v8262 = vand.u32 %v232, 2139095040
        %v8263 = vshrl.u32 %v8262, 23
        %v8264 = vsub.s32 %v8263, 127
        %v8265 = vand.u32 2147483647, %v232
        %v8266 = vand.u32 %v8265, 8388607
        %v8267 = vor.u32 %v8266, 8388608
        %v8268 = vsub.s32 0, %v8267
        %v8269 = vadd.s32 %v8264, 1
        %vm8270 = vcmp.gt.s32.totalorder %v8269, 0
        %v8271 = vsel %vm8270, %v8269, 0
        %v8272 = vshrl.u32 %v8271, 5
        %v8273 = vand.u32 %v8271, 31
        %v8274 = vsub.s32 32, %v8273
        %v8275 = vshrl.u32 683565275, %v8274
        %v8276 = vshll.u32 683565275, %v8273
        %v8277 = vshrl.u32 2475754826, %v8274
        %v8278 = vor.u32 %v8276, %v8277
        %v8279 = vshll.u32 2475754826, %v8273
        %v8280 = vshrl.u32 2131351028, %v8274
        %v8281 = vor.u32 %v8279, %v8280
        %v8282 = vshll.u32 2131351028, %v8273
        %v8283 = vshrl.u32 2102212464, %v8274
        %v8284 = vor.u32 %v8282, %v8283
        %v8285 = vshll.u32 2102212464, %v8273
        %v8286 = vshrl.u32 920167782, %v8274
        %v8287 = vor.u32 %v8285, %v8286
        %v8288 = vshll.u32 920167782, %v8273
        %v8289 = vshrl.u32 1326507024, %v8274
        %v8290 = vor.u32 %v8288, %v8289
        %vm8291 = vcmp.lt.s32.totalorder %v8272, 1
        %vm8292 = vcmp.lt.s32.totalorder %v8272, 2
        %vm8293 = vcmp.lt.s32.totalorder %v8272, 3
        %vm8294 = vcmp.lt.s32.totalorder %v8272, 4
        %v8295 = vsel %vm8291, %v8275, %v8278
        %v8296 = vsel %vm8294, %v8284, 2102212464
        %v8297 = vsel %vm8293, %v8281, %v8296
        %v8298 = vsel %vm8292, %v8295, %v8297
        %v8299 = vsel %vm8291, %v8278, %v8281
        %v8300 = vsel %vm8294, %v8287, 920167782
        %v8301 = vsel %vm8293, %v8284, %v8300
        %v8302 = vsel %vm8292, %v8299, %v8301
        %v8303 = vsel %vm8291, %v8281, %v8284
        %v8304 = vsel %vm8294, %v8290, 1326507024
        %v8305 = vsel %vm8293, %v8287, %v8304
        %v8306 = vsel %vm8292, %v8303, %v8305
        %v8307 = vshll.u32 %v8267, 8
        %v8308 = vmul.u32.u64.compose %v8307, %v8306
        %v8309 = vextract.low.u32 %v8308
        %v8310 = vextract.high.u32 %v8308
        %v8311 = vmul.u32.u64.compose %v8307, %v8302
        %v8312 = vextract.low.u32 %v8311
        %v8313 = vextract.high.u32 %v8311
        %v8314 = vmul.u32 %v8307, %v8298
        %v8315 = vadd.s32 %v8310, %v8312
        %vm8316 = vc.u32 %v8310, %v8312
        %v8317 = vadd.s32 %v8313, 1
        %v8318 = vsel %vm8316, %v8317, %v8313
        %v8319 = vadd.s32 %v8314, %v8318
        %v8320 = vadd.s32 %v8319, 536870912
        %v8321 = vshrl.u32 %v8320, 30
        %v8322 = vshll.u32 %v8321, 30
        %v8323 = vsub.s32 %v8319, %v8322
        %vm8324 = vcmp.lt.s32.totalorder %v8323, 0
        %v8325 = vsub.s32 0, %v8323
        %v8326 = vsel %vm8324, %v8325, %v8323
        %v8327 = vclz %v8326
        %v8328 = vsub.s32 %v8327, 2
        %vm8329 = vcmp.gt.s32.totalorder 0, %v8328
        %v8330 = vsel %vm8329, 0, %v8328
        %v8331 = vsub.s32 32, %v8330
        %v8332 = vshll.u32 %v8323, %v8330
        %v8333 = vshrl.u32 %v8315, %v8331
        %v8334 = vor.u32 %v8332, %v8333
        %v8335 = vsub.s32 4294967266, %v8330
        %v8336 = vadd.s32 %v8335, 127
        %v8337 = vshll.u32 %v8336, 23
        %v8338 = vor.u32 4788187, %v8337
        %v8339 = vand.u32 2147483647, %v8338
        %v8341 = vcvt.s32.f32 %v8334
        %v8342 = vmul.f32 %v8341, %v8339
        %v8343 = vxor.u32 %v8342, 2147483648
        %v8344 = vsel %vm8261, %v8343, %v8342
        %v8345 = vsub.s32 4, %v8321
        %v8346 = vsel %vm8261, %v8345, %v8321
        %v8347 = vsel %vm8260, %v232, %v8344
        %v8348 = vsel %vm8260, 0, %v8346
        %v8349 = vcosq.f32.pop %v8347
        %v8350 = vsinq.f32.pop %v8347
        %vm8351 = vweird.f32 %v232
        %v8352 = vadd.s32 %v8348, 3
        %v8353 = vand.u32 %v8352, 3
        %vm8354 = vcmp.lt.s32.totalorder %v8353, 2
        %vm8355 = vcmp.eq.s32.totalorder %v8353, 0
        %v8356 = vxor.u32 %v8350, 2147483648
        %v8357 = vsel %vm8355, %v8349, %v8356
        %vm8358 = vcmp.eq.s32.totalorder %v8353, 2
        %v8359 = vxor.u32 %v8349, 2147483648
        %v8360 = vsel %vm8358, %v8359, %v8350
        %v8361 = vsel %vm8354, %v8357, %v8360
        %v8362 = vsel %vm8351, nan, %v8361
        %v8363 = vand.u32 2147483647, %v233
        %vm8364 = vcmp.le.f32.partialorder %v8363, 0.7853982
        %vm8365 = vcmp.lt.s32.totalorder %v233, 0
        %v8366 = vand.u32 %v233, 2139095040
        %v8367 = vshrl.u32 %v8366, 23
        %v8368 = vsub.s32 %v8367, 127
        %v8369 = vand.u32 2147483647, %v233
        %v8370 = vand.u32 %v8369, 8388607
        %v8371 = vor.u32 %v8370, 8388608
        %v8372 = vsub.s32 0, %v8371
        %v8373 = vadd.s32 %v8368, 1
        %vm8374 = vcmp.gt.s32.totalorder %v8373, 0
        %v8375 = vsel %vm8374, %v8373, 0
        %v8376 = vshrl.u32 %v8375, 5
        %v8377 = vand.u32 %v8375, 31
        %v8378 = vsub.s32 32, %v8377
        %v8379 = vshrl.u32 683565275, %v8378
        %v8380 = vshll.u32 683565275, %v8377
        %v8381 = vshrl.u32 2475754826, %v8378
        %v8382 = vor.u32 %v8380, %v8381
        %v8383 = vshll.u32 2475754826, %v8377
        %v8384 = vshrl.u32 2131351028, %v8378
        %v8385 = vor.u32 %v8383, %v8384
        %v8386 = vshll.u32 2131351028, %v8377
        %v8387 = vshrl.u32 2102212464, %v8378
        %v8388 = vor.u32 %v8386, %v8387
        %v8389 = vshll.u32 2102212464, %v8377
        %v8390 = vshrl.u32 920167782, %v8378
        %v8391 = vor.u32 %v8389, %v8390
        %v8392 = vshll.u32 920167782, %v8377
        %v8393 = vshrl.u32 1326507024, %v8378
        %v8394 = vor.u32 %v8392, %v8393
        %vm8395 = vcmp.lt.s32.totalorder %v8376, 1
        %vm8396 = vcmp.lt.s32.totalorder %v8376, 2
        %vm8397 = vcmp.lt.s32.totalorder %v8376, 3
        %vm8398 = vcmp.lt.s32.totalorder %v8376, 4
        %v8399 = vsel %vm8395, %v8379, %v8382
        %v8400 = vsel %vm8398, %v8388, 2102212464
        %v8401 = vsel %vm8397, %v8385, %v8400
        %v8402 = vsel %vm8396, %v8399, %v8401
        %v8403 = vsel %vm8395, %v8382, %v8385
        %v8404 = vsel %vm8398, %v8391, 920167782
        %v8405 = vsel %vm8397, %v8388, %v8404
        %v8406 = vsel %vm8396, %v8403, %v8405
        %v8407 = vsel %vm8395, %v8385, %v8388
        %v8408 = vsel %vm8398, %v8394, 1326507024
        %v8409 = vsel %vm8397, %v8391, %v8408
        %v8410 = vsel %vm8396, %v8407, %v8409
        %v8411 = vshll.u32 %v8371, 8
        %v8412 = vmul.u32.u64.compose %v8411, %v8410
        %v8413 = vextract.low.u32 %v8412
        %v8414 = vextract.high.u32 %v8412
        %v8415 = vmul.u32.u64.compose %v8411, %v8406
        %v8416 = vextract.low.u32 %v8415
        %v8417 = vextract.high.u32 %v8415
        %v8418 = vmul.u32 %v8411, %v8402
        %v8419 = vadd.s32 %v8414, %v8416
        %vm8420 = vc.u32 %v8414, %v8416
        %v8421 = vadd.s32 %v8417, 1
        %v8422 = vsel %vm8420, %v8421, %v8417
        %v8423 = vadd.s32 %v8418, %v8422
        %v8424 = vadd.s32 %v8423, 536870912
        %v8425 = vshrl.u32 %v8424, 30
        %v8426 = vshll.u32 %v8425, 30
        %v8427 = vsub.s32 %v8423, %v8426
        %vm8428 = vcmp.lt.s32.totalorder %v8427, 0
        %v8429 = vsub.s32 0, %v8427
        %v8430 = vsel %vm8428, %v8429, %v8427
        %v8431 = vclz %v8430
        %v8432 = vsub.s32 %v8431, 2
        %vm8433 = vcmp.gt.s32.totalorder 0, %v8432
        %v8434 = vsel %vm8433, 0, %v8432
        %v8435 = vsub.s32 32, %v8434
        %v8436 = vshll.u32 %v8427, %v8434
        %v8437 = vshrl.u32 %v8419, %v8435
        %v8438 = vor.u32 %v8436, %v8437
        %v8439 = vsub.s32 4294967266, %v8434
        %v8440 = vadd.s32 %v8439, 127
        %v8441 = vshll.u32 %v8440, 23
        %v8442 = vor.u32 4788187, %v8441
        %v8443 = vand.u32 2147483647, %v8442
        %v8445 = vcvt.s32.f32 %v8438
        %v8446 = vmul.f32 %v8445, %v8443
        %v8447 = vxor.u32 %v8446, 2147483648
        %v8448 = vsel %vm8365, %v8447, %v8446
        %v8449 = vsub.s32 4, %v8425
        %v8450 = vsel %vm8365, %v8449, %v8425
        %v8451 = vsel %vm8364, %v233, %v8448
        %v8452 = vsel %vm8364, 0, %v8450
        %v8453 = vcosq.f32.pop %v8451
        %v8454 = vsinq.f32.pop %v8451
        %vm8455 = vweird.f32 %v233
        %v8456 = vadd.s32 %v8452, 3
        %v8457 = vand.u32 %v8456, 3
        %vm8458 = vcmp.lt.s32.totalorder %v8457, 2
        %vm8459 = vcmp.eq.s32.totalorder %v8457, 0
        %v8460 = vxor.u32 %v8454, 2147483648
        %v8461 = vsel %vm8459, %v8453, %v8460
        %vm8462 = vcmp.eq.s32.totalorder %v8457, 2
        %v8463 = vxor.u32 %v8453, 2147483648
        %v8464 = vsel %vm8462, %v8463, %v8454
        %v8465 = vsel %vm8458, %v8461, %v8464
        %v8466 = vsel %vm8455, nan, %v8465
        %v8467 = vand.u32 2147483647, %v234
        %vm8468 = vcmp.le.f32.partialorder %v8467, 0.7853982
        %vm8469 = vcmp.lt.s32.totalorder %v234, 0
        %v8470 = vand.u32 %v234, 2139095040
        %v8471 = vshrl.u32 %v8470, 23
        %v8472 = vsub.s32 %v8471, 127
        %v8473 = vand.u32 2147483647, %v234
        %v8474 = vand.u32 %v8473, 8388607
        %v8475 = vor.u32 %v8474, 8388608
        %v8476 = vsub.s32 0, %v8475
        %v8477 = vadd.s32 %v8472, 1
        %vm8478 = vcmp.gt.s32.totalorder %v8477, 0
        %v8479 = vsel %vm8478, %v8477, 0
        %v8480 = vshrl.u32 %v8479, 5
        %v8481 = vand.u32 %v8479, 31
        %v8482 = vsub.s32 32, %v8481
        %v8483 = vshrl.u32 683565275, %v8482
        %v8484 = vshll.u32 683565275, %v8481
        %v8485 = vshrl.u32 2475754826, %v8482
        %v8486 = vor.u32 %v8484, %v8485
        %v8487 = vshll.u32 2475754826, %v8481
        %v8488 = vshrl.u32 2131351028, %v8482
        %v8489 = vor.u32 %v8487, %v8488
        %v8490 = vshll.u32 2131351028, %v8481
        %v8491 = vshrl.u32 2102212464, %v8482
        %v8492 = vor.u32 %v8490, %v8491
        %v8493 = vshll.u32 2102212464, %v8481
        %v8494 = vshrl.u32 920167782, %v8482
        %v8495 = vor.u32 %v8493, %v8494
        %v8496 = vshll.u32 920167782, %v8481
        %v8497 = vshrl.u32 1326507024, %v8482
        %v8498 = vor.u32 %v8496, %v8497
        %vm8499 = vcmp.lt.s32.totalorder %v8480, 1
        %vm8500 = vcmp.lt.s32.totalorder %v8480, 2
        %vm8501 = vcmp.lt.s32.totalorder %v8480, 3
        %vm8502 = vcmp.lt.s32.totalorder %v8480, 4
        %v8503 = vsel %vm8499, %v8483, %v8486
        %v8504 = vsel %vm8502, %v8492, 2102212464
        %v8505 = vsel %vm8501, %v8489, %v8504
        %v8506 = vsel %vm8500, %v8503, %v8505
        %v8507 = vsel %vm8499, %v8486, %v8489
        %v8508 = vsel %vm8502, %v8495, 920167782
        %v8509 = vsel %vm8501, %v8492, %v8508
        %v8510 = vsel %vm8500, %v8507, %v8509
        %v8511 = vsel %vm8499, %v8489, %v8492
        %v8512 = vsel %vm8502, %v8498, 1326507024
        %v8513 = vsel %vm8501, %v8495, %v8512
        %v8514 = vsel %vm8500, %v8511, %v8513
        %v8515 = vshll.u32 %v8475, 8
        %v8516 = vmul.u32.u64.compose %v8515, %v8514
        %v8517 = vextract.low.u32 %v8516
        %v8518 = vextract.high.u32 %v8516
        %v8519 = vmul.u32.u64.compose %v8515, %v8510
        %v8520 = vextract.low.u32 %v8519
        %v8521 = vextract.high.u32 %v8519
        %v8522 = vmul.u32 %v8515, %v8506
        %v8523 = vadd.s32 %v8518, %v8520
        %vm8524 = vc.u32 %v8518, %v8520
        %v8525 = vadd.s32 %v8521, 1
        %v8526 = vsel %vm8524, %v8525, %v8521
        %v8527 = vadd.s32 %v8522, %v8526
        %v8528 = vadd.s32 %v8527, 536870912
        %v8529 = vshrl.u32 %v8528, 30
        %v8530 = vshll.u32 %v8529, 30
        %v8531 = vsub.s32 %v8527, %v8530
        %vm8532 = vcmp.lt.s32.totalorder %v8531, 0
        %v8533 = vsub.s32 0, %v8531
        %v8534 = vsel %vm8532, %v8533, %v8531
        %v8535 = vclz %v8534
        %v8536 = vsub.s32 %v8535, 2
        %vm8537 = vcmp.gt.s32.totalorder 0, %v8536
        %v8538 = vsel %vm8537, 0, %v8536
        %v8539 = vsub.s32 32, %v8538
        %v8540 = vshll.u32 %v8531, %v8538
        %v8541 = vshrl.u32 %v8523, %v8539
        %v8542 = vor.u32 %v8540, %v8541
        %v8543 = vsub.s32 4294967266, %v8538
        %v8544 = vadd.s32 %v8543, 127
        %v8545 = vshll.u32 %v8544, 23
        %v8546 = vor.u32 4788187, %v8545
        %v8547 = vand.u32 2147483647, %v8546
        %v8549 = vcvt.s32.f32 %v8542
        %v8550 = vmul.f32 %v8549, %v8547
        %v8551 = vxor.u32 %v8550, 2147483648
        %v8552 = vsel %vm8469, %v8551, %v8550
        %v8553 = vsub.s32 4, %v8529
        %v8554 = vsel %vm8469, %v8553, %v8529
        %v8555 = vsel %vm8468, %v234, %v8552
        %v8556 = vsel %vm8468, 0, %v8554
        %v8557 = vcosq.f32.pop %v8555
        %v8558 = vsinq.f32.pop %v8555
        %vm8559 = vweird.f32 %v234
        %v8560 = vadd.s32 %v8556, 3
        %v8561 = vand.u32 %v8560, 3
        %vm8562 = vcmp.lt.s32.totalorder %v8561, 2
        %vm8563 = vcmp.eq.s32.totalorder %v8561, 0
        %v8564 = vxor.u32 %v8558, 2147483648
        %v8565 = vsel %vm8563, %v8557, %v8564
        %vm8566 = vcmp.eq.s32.totalorder %v8561, 2
        %v8567 = vxor.u32 %v8557, 2147483648
        %v8568 = vsel %vm8566, %v8567, %v8558
        %v8569 = vsel %vm8562, %v8565, %v8568
        %v8570 = vsel %vm8559, nan, %v8569
        %v8571 = vand.u32 2147483647, %v235
        %vm8572 = vcmp.le.f32.partialorder %v8571, 0.7853982
        %vm8573 = vcmp.lt.s32.totalorder %v235, 0
        %v8574 = vand.u32 %v235, 2139095040
        %v8575 = vshrl.u32 %v8574, 23
        %v8576 = vsub.s32 %v8575, 127
        %v8577 = vand.u32 2147483647, %v235
        %v8578 = vand.u32 %v8577, 8388607
        %v8579 = vor.u32 %v8578, 8388608
        %v8580 = vsub.s32 0, %v8579
        %v8581 = vadd.s32 %v8576, 1
        %vm8582 = vcmp.gt.s32.totalorder %v8581, 0
        %v8583 = vsel %vm8582, %v8581, 0
        %v8584 = vshrl.u32 %v8583, 5
        %v8585 = vand.u32 %v8583, 31
        %v8586 = vsub.s32 32, %v8585
        %v8587 = vshrl.u32 683565275, %v8586
        %v8588 = vshll.u32 683565275, %v8585
        %v8589 = vshrl.u32 2475754826, %v8586
        %v8590 = vor.u32 %v8588, %v8589
        %v8591 = vshll.u32 2475754826, %v8585
        %v8592 = vshrl.u32 2131351028, %v8586
        %v8593 = vor.u32 %v8591, %v8592
        %v8594 = vshll.u32 2131351028, %v8585
        %v8595 = vshrl.u32 2102212464, %v8586
        %v8596 = vor.u32 %v8594, %v8595
        %v8597 = vshll.u32 2102212464, %v8585
        %v8598 = vshrl.u32 920167782, %v8586
        %v8599 = vor.u32 %v8597, %v8598
        %v8600 = vshll.u32 920167782, %v8585
        %v8601 = vshrl.u32 1326507024, %v8586
        %v8602 = vor.u32 %v8600, %v8601
        %vm8603 = vcmp.lt.s32.totalorder %v8584, 1
        %vm8604 = vcmp.lt.s32.totalorder %v8584, 2
        %vm8605 = vcmp.lt.s32.totalorder %v8584, 3
        %vm8606 = vcmp.lt.s32.totalorder %v8584, 4
        %v8607 = vsel %vm8603, %v8587, %v8590
        %v8608 = vsel %vm8606, %v8596, 2102212464
        %v8609 = vsel %vm8605, %v8593, %v8608
        %v8610 = vsel %vm8604, %v8607, %v8609
        %v8611 = vsel %vm8603, %v8590, %v8593
        %v8612 = vsel %vm8606, %v8599, 920167782
        %v8613 = vsel %vm8605, %v8596, %v8612
        %v8614 = vsel %vm8604, %v8611, %v8613
        %v8615 = vsel %vm8603, %v8593, %v8596
        %v8616 = vsel %vm8606, %v8602, 1326507024
        %v8617 = vsel %vm8605, %v8599, %v8616
        %v8618 = vsel %vm8604, %v8615, %v8617
        %v8619 = vshll.u32 %v8579, 8
        %v8620 = vmul.u32.u64.compose %v8619, %v8618
        %v8621 = vextract.low.u32 %v8620
        %v8622 = vextract.high.u32 %v8620
        %v8623 = vmul.u32.u64.compose %v8619, %v8614
        %v8624 = vextract.low.u32 %v8623
        %v8625 = vextract.high.u32 %v8623
        %v8626 = vmul.u32 %v8619, %v8610
        %v8627 = vadd.s32 %v8622, %v8624
        %vm8628 = vc.u32 %v8622, %v8624
        %v8629 = vadd.s32 %v8625, 1
        %v8630 = vsel %vm8628, %v8629, %v8625
        %v8631 = vadd.s32 %v8626, %v8630
        %v8632 = vadd.s32 %v8631, 536870912
        %v8633 = vshrl.u32 %v8632, 30
        %v8634 = vshll.u32 %v8633, 30
        %v8635 = vsub.s32 %v8631, %v8634
        %vm8636 = vcmp.lt.s32.totalorder %v8635, 0
        %v8637 = vsub.s32 0, %v8635
        %v8638 = vsel %vm8636, %v8637, %v8635
        %v8639 = vclz %v8638
        %v8640 = vsub.s32 %v8639, 2
        %vm8641 = vcmp.gt.s32.totalorder 0, %v8640
        %v8642 = vsel %vm8641, 0, %v8640
        %v8643 = vsub.s32 32, %v8642
        %v8644 = vshll.u32 %v8635, %v8642
        %v8645 = vshrl.u32 %v8627, %v8643
        %v8646 = vor.u32 %v8644, %v8645
        %v8647 = vsub.s32 4294967266, %v8642
        %v8648 = vadd.s32 %v8647, 127
        %v8649 = vshll.u32 %v8648, 23
        %v8650 = vor.u32 4788187, %v8649
        %v8651 = vand.u32 2147483647, %v8650
        %v8653 = vcvt.s32.f32 %v8646
        %v8654 = vmul.f32 %v8653, %v8651
        %v8655 = vxor.u32 %v8654, 2147483648
        %v8656 = vsel %vm8573, %v8655, %v8654
        %v8657 = vsub.s32 4, %v8633
        %v8658 = vsel %vm8573, %v8657, %v8633
        %v8659 = vsel %vm8572, %v235, %v8656
        %v8660 = vsel %vm8572, 0, %v8658
        %v8661 = vcosq.f32.pop %v8659
        %v8662 = vsinq.f32.pop %v8659
        %vm8663 = vweird.f32 %v235
        %v8664 = vadd.s32 %v8660, 3
        %v8665 = vand.u32 %v8664, 3
        %vm8666 = vcmp.lt.s32.totalorder %v8665, 2
        %vm8667 = vcmp.eq.s32.totalorder %v8665, 0
        %v8668 = vxor.u32 %v8662, 2147483648
        %v8669 = vsel %vm8667, %v8661, %v8668
        %vm8670 = vcmp.eq.s32.totalorder %v8665, 2
        %v8671 = vxor.u32 %v8661, 2147483648
        %v8672 = vsel %vm8670, %v8671, %v8662
        %v8673 = vsel %vm8666, %v8669, %v8672
        %v8674 = vsel %vm8663, nan, %v8673
        %v8675 = vand.u32 2147483647, %v236
        %vm8676 = vcmp.le.f32.partialorder %v8675, 0.7853982
        %vm8677 = vcmp.lt.s32.totalorder %v236, 0
        %v8678 = vand.u32 %v236, 2139095040
        %v8679 = vshrl.u32 %v8678, 23
        %v8680 = vsub.s32 %v8679, 127
        %v8681 = vand.u32 2147483647, %v236
        %v8682 = vand.u32 %v8681, 8388607
        %v8683 = vor.u32 %v8682, 8388608
        %v8684 = vsub.s32 0, %v8683
        %v8685 = vadd.s32 %v8680, 1
        %vm8686 = vcmp.gt.s32.totalorder %v8685, 0
        %v8687 = vsel %vm8686, %v8685, 0
        %v8688 = vshrl.u32 %v8687, 5
        %v8689 = vand.u32 %v8687, 31
        %v8690 = vsub.s32 32, %v8689
        %v8691 = vshrl.u32 683565275, %v8690
        %v8692 = vshll.u32 683565275, %v8689
        %v8693 = vshrl.u32 2475754826, %v8690
        %v8694 = vor.u32 %v8692, %v8693
        %v8695 = vshll.u32 2475754826, %v8689
        %v8696 = vshrl.u32 2131351028, %v8690
        %v8697 = vor.u32 %v8695, %v8696
        %v8698 = vshll.u32 2131351028, %v8689
        %v8699 = vshrl.u32 2102212464, %v8690
        %v8700 = vor.u32 %v8698, %v8699
        %v8701 = vshll.u32 2102212464, %v8689
        %v8702 = vshrl.u32 920167782, %v8690
        %v8703 = vor.u32 %v8701, %v8702
        %v8704 = vshll.u32 920167782, %v8689
        %v8705 = vshrl.u32 1326507024, %v8690
        %v8706 = vor.u32 %v8704, %v8705
        %vm8707 = vcmp.lt.s32.totalorder %v8688, 1
        %vm8708 = vcmp.lt.s32.totalorder %v8688, 2
        %vm8709 = vcmp.lt.s32.totalorder %v8688, 3
        %vm8710 = vcmp.lt.s32.totalorder %v8688, 4
        %v8711 = vsel %vm8707, %v8691, %v8694
        %v8712 = vsel %vm8710, %v8700, 2102212464
        %v8713 = vsel %vm8709, %v8697, %v8712
        %v8714 = vsel %vm8708, %v8711, %v8713
        %v8715 = vsel %vm8707, %v8694, %v8697
        %v8716 = vsel %vm8710, %v8703, 920167782
        %v8717 = vsel %vm8709, %v8700, %v8716
        %v8718 = vsel %vm8708, %v8715, %v8717
        %v8719 = vsel %vm8707, %v8697, %v8700
        %v8720 = vsel %vm8710, %v8706, 1326507024
        %v8721 = vsel %vm8709, %v8703, %v8720
        %v8722 = vsel %vm8708, %v8719, %v8721
        %v8723 = vshll.u32 %v8683, 8
        %v8724 = vmul.u32.u64.compose %v8723, %v8722
        %v8725 = vextract.low.u32 %v8724
        %v8726 = vextract.high.u32 %v8724
        %v8727 = vmul.u32.u64.compose %v8723, %v8718
        %v8728 = vextract.low.u32 %v8727
        %v8729 = vextract.high.u32 %v8727
        %v8730 = vmul.u32 %v8723, %v8714
        %v8731 = vadd.s32 %v8726, %v8728
        %vm8732 = vc.u32 %v8726, %v8728
        %v8733 = vadd.s32 %v8729, 1
        %v8734 = vsel %vm8732, %v8733, %v8729
        %v8735 = vadd.s32 %v8730, %v8734
        %v8736 = vadd.s32 %v8735, 536870912
        %v8737 = vshrl.u32 %v8736, 30
        %v8738 = vshll.u32 %v8737, 30
        %v8739 = vsub.s32 %v8735, %v8738
        %vm8740 = vcmp.lt.s32.totalorder %v8739, 0
        %v8741 = vsub.s32 0, %v8739
        %v8742 = vsel %vm8740, %v8741, %v8739
        %v8743 = vclz %v8742
        %v8744 = vsub.s32 %v8743, 2
        %vm8745 = vcmp.gt.s32.totalorder 0, %v8744
        %v8746 = vsel %vm8745, 0, %v8744
        %v8747 = vsub.s32 32, %v8746
        %v8748 = vshll.u32 %v8739, %v8746
        %v8749 = vshrl.u32 %v8731, %v8747
        %v8750 = vor.u32 %v8748, %v8749
        %v8751 = vsub.s32 4294967266, %v8746
        %v8752 = vadd.s32 %v8751, 127
        %v8753 = vshll.u32 %v8752, 23
        %v8754 = vor.u32 4788187, %v8753
        %v8755 = vand.u32 2147483647, %v8754
        %v8757 = vcvt.s32.f32 %v8750
        %v8758 = vmul.f32 %v8757, %v8755
        %v8759 = vxor.u32 %v8758, 2147483648
        %v8760 = vsel %vm8677, %v8759, %v8758
        %v8761 = vsub.s32 4, %v8737
        %v8762 = vsel %vm8677, %v8761, %v8737
        %v8763 = vsel %vm8676, %v236, %v8760
        %v8764 = vsel %vm8676, 0, %v8762
        %v8765 = vcosq.f32.pop %v8763
        %v8766 = vsinq.f32.pop %v8763
        %vm8767 = vweird.f32 %v236
        %v8768 = vadd.s32 %v8764, 3
        %v8769 = vand.u32 %v8768, 3
        %vm8770 = vcmp.lt.s32.totalorder %v8769, 2
        %vm8771 = vcmp.eq.s32.totalorder %v8769, 0
        %v8772 = vxor.u32 %v8766, 2147483648
        %v8773 = vsel %vm8771, %v8765, %v8772
        %vm8774 = vcmp.eq.s32.totalorder %v8769, 2
        %v8775 = vxor.u32 %v8765, 2147483648
        %v8776 = vsel %vm8774, %v8775, %v8766
        %v8777 = vsel %vm8770, %v8773, %v8776
        %v8778 = vsel %vm8767, nan, %v8777
        %v8779 = vand.u32 2147483647, %v237
        %vm8780 = vcmp.le.f32.partialorder %v8779, 0.7853982
        %vm8781 = vcmp.lt.s32.totalorder %v237, 0
        %v8782 = vand.u32 %v237, 2139095040
        %v8783 = vshrl.u32 %v8782, 23
        %v8784 = vsub.s32 %v8783, 127
        %v8785 = vand.u32 2147483647, %v237
        %v8786 = vand.u32 %v8785, 8388607
        %v8787 = vor.u32 %v8786, 8388608
        %v8788 = vsub.s32 0, %v8787
        %v8789 = vadd.s32 %v8784, 1
        %vm8790 = vcmp.gt.s32.totalorder %v8789, 0
        %v8791 = vsel %vm8790, %v8789, 0
        %v8792 = vshrl.u32 %v8791, 5
        %v8793 = vand.u32 %v8791, 31
        %v8794 = vsub.s32 32, %v8793
        %v8795 = vshrl.u32 683565275, %v8794
        %v8796 = vshll.u32 683565275, %v8793
        %v8797 = vshrl.u32 2475754826, %v8794
        %v8798 = vor.u32 %v8796, %v8797
        %v8799 = vshll.u32 2475754826, %v8793
        %v8800 = vshrl.u32 2131351028, %v8794
        %v8801 = vor.u32 %v8799, %v8800
        %v8802 = vshll.u32 2131351028, %v8793
        %v8803 = vshrl.u32 2102212464, %v8794
        %v8804 = vor.u32 %v8802, %v8803
        %v8805 = vshll.u32 2102212464, %v8793
        %v8806 = vshrl.u32 920167782, %v8794
        %v8807 = vor.u32 %v8805, %v8806
        %v8808 = vshll.u32 920167782, %v8793
        %v8809 = vshrl.u32 1326507024, %v8794
        %v8810 = vor.u32 %v8808, %v8809
        %vm8811 = vcmp.lt.s32.totalorder %v8792, 1
        %vm8812 = vcmp.lt.s32.totalorder %v8792, 2
        %vm8813 = vcmp.lt.s32.totalorder %v8792, 3
        %vm8814 = vcmp.lt.s32.totalorder %v8792, 4
        %v8815 = vsel %vm8811, %v8795, %v8798
        %v8816 = vsel %vm8814, %v8804, 2102212464
        %v8817 = vsel %vm8813, %v8801, %v8816
        %v8818 = vsel %vm8812, %v8815, %v8817
        %v8819 = vsel %vm8811, %v8798, %v8801
        %v8820 = vsel %vm8814, %v8807, 920167782
        %v8821 = vsel %vm8813, %v8804, %v8820
        %v8822 = vsel %vm8812, %v8819, %v8821
        %v8823 = vsel %vm8811, %v8801, %v8804
        %v8824 = vsel %vm8814, %v8810, 1326507024
        %v8825 = vsel %vm8813, %v8807, %v8824
        %v8826 = vsel %vm8812, %v8823, %v8825
        %v8827 = vshll.u32 %v8787, 8
        %v8828 = vmul.u32.u64.compose %v8827, %v8826
        %v8829 = vextract.low.u32 %v8828
        %v8830 = vextract.high.u32 %v8828
        %v8831 = vmul.u32.u64.compose %v8827, %v8822
        %v8832 = vextract.low.u32 %v8831
        %v8833 = vextract.high.u32 %v8831
        %v8834 = vmul.u32 %v8827, %v8818
        %v8835 = vadd.s32 %v8830, %v8832
        %vm8836 = vc.u32 %v8830, %v8832
        %v8837 = vadd.s32 %v8833, 1
        %v8838 = vsel %vm8836, %v8837, %v8833
        %v8839 = vadd.s32 %v8834, %v8838
        %v8840 = vadd.s32 %v8839, 536870912
        %v8841 = vshrl.u32 %v8840, 30
        %v8842 = vshll.u32 %v8841, 30
        %v8843 = vsub.s32 %v8839, %v8842
        %vm8844 = vcmp.lt.s32.totalorder %v8843, 0
        %v8845 = vsub.s32 0, %v8843
        %v8846 = vsel %vm8844, %v8845, %v8843
        %v8847 = vclz %v8846
        %v8848 = vsub.s32 %v8847, 2
        %vm8849 = vcmp.gt.s32.totalorder 0, %v8848
        %v8850 = vsel %vm8849, 0, %v8848
        %v8851 = vsub.s32 32, %v8850
        %v8852 = vshll.u32 %v8843, %v8850
        %v8853 = vshrl.u32 %v8835, %v8851
        %v8854 = vor.u32 %v8852, %v8853
        %v8855 = vsub.s32 4294967266, %v8850
        %v8856 = vadd.s32 %v8855, 127
        %v8857 = vshll.u32 %v8856, 23
        %v8858 = vor.u32 4788187, %v8857
        %v8859 = vand.u32 2147483647, %v8858
        %v8861 = vcvt.s32.f32 %v8854
        %v8862 = vmul.f32 %v8861, %v8859
        %v8863 = vxor.u32 %v8862, 2147483648
        %v8864 = vsel %vm8781, %v8863, %v8862
        %v8865 = vsub.s32 4, %v8841
        %v8866 = vsel %vm8781, %v8865, %v8841
        %v8867 = vsel %vm8780, %v237, %v8864
        %v8868 = vsel %vm8780, 0, %v8866
        %v8869 = vcosq.f32.pop %v8867
        %v8870 = vsinq.f32.pop %v8867
        %vm8871 = vweird.f32 %v237
        %v8872 = vadd.s32 %v8868, 3
        %v8873 = vand.u32 %v8872, 3
        %vm8874 = vcmp.lt.s32.totalorder %v8873, 2
        %vm8875 = vcmp.eq.s32.totalorder %v8873, 0
        %v8876 = vxor.u32 %v8870, 2147483648
        %v8877 = vsel %vm8875, %v8869, %v8876
        %vm8878 = vcmp.eq.s32.totalorder %v8873, 2
        %v8879 = vxor.u32 %v8869, 2147483648
        %v8880 = vsel %vm8878, %v8879, %v8870
        %v8881 = vsel %vm8874, %v8877, %v8880
        %v8882 = vsel %vm8871, nan, %v8881
        %v8883 = vand.u32 2147483647, %v238
        %vm8884 = vcmp.le.f32.partialorder %v8883, 0.7853982
        %vm8885 = vcmp.lt.s32.totalorder %v238, 0
        %v8886 = vand.u32 %v238, 2139095040
        %v8887 = vshrl.u32 %v8886, 23
        %v8888 = vsub.s32 %v8887, 127
        %v8889 = vand.u32 2147483647, %v238
        %v8890 = vand.u32 %v8889, 8388607
        %v8891 = vor.u32 %v8890, 8388608
        %v8892 = vsub.s32 0, %v8891
        %v8893 = vadd.s32 %v8888, 1
        %vm8894 = vcmp.gt.s32.totalorder %v8893, 0
        %v8895 = vsel %vm8894, %v8893, 0
        %v8896 = vshrl.u32 %v8895, 5
        %v8897 = vand.u32 %v8895, 31
        %v8898 = vsub.s32 32, %v8897
        %v8899 = vshrl.u32 683565275, %v8898
        %v8900 = vshll.u32 683565275, %v8897
        %v8901 = vshrl.u32 2475754826, %v8898
        %v8902 = vor.u32 %v8900, %v8901
        %v8903 = vshll.u32 2475754826, %v8897
        %v8904 = vshrl.u32 2131351028, %v8898
        %v8905 = vor.u32 %v8903, %v8904
        %v8906 = vshll.u32 2131351028, %v8897
        %v8907 = vshrl.u32 2102212464, %v8898
        %v8908 = vor.u32 %v8906, %v8907
        %v8909 = vshll.u32 2102212464, %v8897
        %v8910 = vshrl.u32 920167782, %v8898
        %v8911 = vor.u32 %v8909, %v8910
        %v8912 = vshll.u32 920167782, %v8897
        %v8913 = vshrl.u32 1326507024, %v8898
        %v8914 = vor.u32 %v8912, %v8913
        %vm8915 = vcmp.lt.s32.totalorder %v8896, 1
        %vm8916 = vcmp.lt.s32.totalorder %v8896, 2
        %vm8917 = vcmp.lt.s32.totalorder %v8896, 3
        %vm8918 = vcmp.lt.s32.totalorder %v8896, 4
        %v8919 = vsel %vm8915, %v8899, %v8902
        %v8920 = vsel %vm8918, %v8908, 2102212464
        %v8921 = vsel %vm8917, %v8905, %v8920
        %v8922 = vsel %vm8916, %v8919, %v8921
        %v8923 = vsel %vm8915, %v8902, %v8905
        %v8924 = vsel %vm8918, %v8911, 920167782
        %v8925 = vsel %vm8917, %v8908, %v8924
        %v8926 = vsel %vm8916, %v8923, %v8925
        %v8927 = vsel %vm8915, %v8905, %v8908
        %v8928 = vsel %vm8918, %v8914, 1326507024
        %v8929 = vsel %vm8917, %v8911, %v8928
        %v8930 = vsel %vm8916, %v8927, %v8929
        %v8931 = vshll.u32 %v8891, 8
        %v8932 = vmul.u32.u64.compose %v8931, %v8930
        %v8933 = vextract.low.u32 %v8932
        %v8934 = vextract.high.u32 %v8932
        %v8935 = vmul.u32.u64.compose %v8931, %v8926
        %v8936 = vextract.low.u32 %v8935
        %v8937 = vextract.high.u32 %v8935
        %v8938 = vmul.u32 %v8931, %v8922
        %v8939 = vadd.s32 %v8934, %v8936
        %vm8940 = vc.u32 %v8934, %v8936
        %v8941 = vadd.s32 %v8937, 1
        %v8942 = vsel %vm8940, %v8941, %v8937
        %v8943 = vadd.s32 %v8938, %v8942
        %v8944 = vadd.s32 %v8943, 536870912
        %v8945 = vshrl.u32 %v8944, 30
        %v8946 = vshll.u32 %v8945, 30
        %v8947 = vsub.s32 %v8943, %v8946
        %vm8948 = vcmp.lt.s32.totalorder %v8947, 0
        %v8949 = vsub.s32 0, %v8947
        %v8950 = vsel %vm8948, %v8949, %v8947
        %v8951 = vclz %v8950
        %v8952 = vsub.s32 %v8951, 2
        %vm8953 = vcmp.gt.s32.totalorder 0, %v8952
        %v8954 = vsel %vm8953, 0, %v8952
        %v8955 = vsub.s32 32, %v8954
        %v8956 = vshll.u32 %v8947, %v8954
        %v8957 = vshrl.u32 %v8939, %v8955
        %v8958 = vor.u32 %v8956, %v8957
        %v8959 = vsub.s32 4294967266, %v8954
        %v8960 = vadd.s32 %v8959, 127
        %v8961 = vshll.u32 %v8960, 23
        %v8962 = vor.u32 4788187, %v8961
        %v8963 = vand.u32 2147483647, %v8962
        %v8965 = vcvt.s32.f32 %v8958
        %v8966 = vmul.f32 %v8965, %v8963
        %v8967 = vxor.u32 %v8966, 2147483648
        %v8968 = vsel %vm8885, %v8967, %v8966
        %v8969 = vsub.s32 4, %v8945
        %v8970 = vsel %vm8885, %v8969, %v8945
        %v8971 = vsel %vm8884, %v238, %v8968
        %v8972 = vsel %vm8884, 0, %v8970
        %v8973 = vcosq.f32.pop %v8971
        %v8974 = vsinq.f32.pop %v8971
        %vm8975 = vweird.f32 %v238
        %v8976 = vadd.s32 %v8972, 3
        %v8977 = vand.u32 %v8976, 3
        %vm8978 = vcmp.lt.s32.totalorder %v8977, 2
        %vm8979 = vcmp.eq.s32.totalorder %v8977, 0
        %v8980 = vxor.u32 %v8974, 2147483648
        %v8981 = vsel %vm8979, %v8973, %v8980
        %vm8982 = vcmp.eq.s32.totalorder %v8977, 2
        %v8983 = vxor.u32 %v8973, 2147483648
        %v8984 = vsel %vm8982, %v8983, %v8974
        %v8985 = vsel %vm8978, %v8981, %v8984
        %v8986 = vsel %vm8975, nan, %v8985
        %v8987 = vand.u32 2147483647, %v239
        %vm8988 = vcmp.le.f32.partialorder %v8987, 0.7853982
        %vm8989 = vcmp.lt.s32.totalorder %v239, 0
        %v8990 = vand.u32 %v239, 2139095040
        %v8991 = vshrl.u32 %v8990, 23
        %v8992 = vsub.s32 %v8991, 127
        %v8993 = vand.u32 2147483647, %v239
        %v8994 = vand.u32 %v8993, 8388607
        %v8995 = vor.u32 %v8994, 8388608
        %v8996 = vsub.s32 0, %v8995
        %v8997 = vadd.s32 %v8992, 1
        %vm8998 = vcmp.gt.s32.totalorder %v8997, 0
        %v8999 = vsel %vm8998, %v8997, 0
        %v9000 = vshrl.u32 %v8999, 5
        %v9001 = vand.u32 %v8999, 31
        %v9002 = vsub.s32 32, %v9001
        %v9003 = vshrl.u32 683565275, %v9002
        %v9004 = vshll.u32 683565275, %v9001
        %v9005 = vshrl.u32 2475754826, %v9002
        %v9006 = vor.u32 %v9004, %v9005
        %v9007 = vshll.u32 2475754826, %v9001
        %v9008 = vshrl.u32 2131351028, %v9002
        %v9009 = vor.u32 %v9007, %v9008
        %v9010 = vshll.u32 2131351028, %v9001
        %v9011 = vshrl.u32 2102212464, %v9002
        %v9012 = vor.u32 %v9010, %v9011
        %v9013 = vshll.u32 2102212464, %v9001
        %v9014 = vshrl.u32 920167782, %v9002
        %v9015 = vor.u32 %v9013, %v9014
        %v9016 = vshll.u32 920167782, %v9001
        %v9017 = vshrl.u32 1326507024, %v9002
        %v9018 = vor.u32 %v9016, %v9017
        %vm9019 = vcmp.lt.s32.totalorder %v9000, 1
        %vm9020 = vcmp.lt.s32.totalorder %v9000, 2
        %vm9021 = vcmp.lt.s32.totalorder %v9000, 3
        %vm9022 = vcmp.lt.s32.totalorder %v9000, 4
        %v9023 = vsel %vm9019, %v9003, %v9006
        %v9024 = vsel %vm9022, %v9012, 2102212464
        %v9025 = vsel %vm9021, %v9009, %v9024
        %v9026 = vsel %vm9020, %v9023, %v9025
        %v9027 = vsel %vm9019, %v9006, %v9009
        %v9028 = vsel %vm9022, %v9015, 920167782
        %v9029 = vsel %vm9021, %v9012, %v9028
        %v9030 = vsel %vm9020, %v9027, %v9029
        %v9031 = vsel %vm9019, %v9009, %v9012
        %v9032 = vsel %vm9022, %v9018, 1326507024
        %v9033 = vsel %vm9021, %v9015, %v9032
        %v9034 = vsel %vm9020, %v9031, %v9033
        %v9035 = vshll.u32 %v8995, 8
        %v9036 = vmul.u32.u64.compose %v9035, %v9034
        %v9037 = vextract.low.u32 %v9036
        %v9038 = vextract.high.u32 %v9036
        %v9039 = vmul.u32.u64.compose %v9035, %v9030
        %v9040 = vextract.low.u32 %v9039
        %v9041 = vextract.high.u32 %v9039
        %v9042 = vmul.u32 %v9035, %v9026
        %v9043 = vadd.s32 %v9038, %v9040
        %vm9044 = vc.u32 %v9038, %v9040
        %v9045 = vadd.s32 %v9041, 1
        %v9046 = vsel %vm9044, %v9045, %v9041
        %v9047 = vadd.s32 %v9042, %v9046
        %v9048 = vadd.s32 %v9047, 536870912
        %v9049 = vshrl.u32 %v9048, 30
        %v9050 = vshll.u32 %v9049, 30
        %v9051 = vsub.s32 %v9047, %v9050
        %vm9052 = vcmp.lt.s32.totalorder %v9051, 0
        %v9053 = vsub.s32 0, %v9051
        %v9054 = vsel %vm9052, %v9053, %v9051
        %v9055 = vclz %v9054
        %v9056 = vsub.s32 %v9055, 2
        %vm9057 = vcmp.gt.s32.totalorder 0, %v9056
        %v9058 = vsel %vm9057, 0, %v9056
        %v9059 = vsub.s32 32, %v9058
        %v9060 = vshll.u32 %v9051, %v9058
        %v9061 = vshrl.u32 %v9043, %v9059
        %v9062 = vor.u32 %v9060, %v9061
        %v9063 = vsub.s32 4294967266, %v9058
        %v9064 = vadd.s32 %v9063, 127
        %v9065 = vshll.u32 %v9064, 23
        %v9066 = vor.u32 4788187, %v9065
        %v9067 = vand.u32 2147483647, %v9066
        %v9069 = vcvt.s32.f32 %v9062
        %v9070 = vmul.f32 %v9069, %v9067
        %v9071 = vxor.u32 %v9070, 2147483648
        %v9072 = vsel %vm8989, %v9071, %v9070
        %v9073 = vsub.s32 4, %v9049
        %v9074 = vsel %vm8989, %v9073, %v9049
        %v9075 = vsel %vm8988, %v239, %v9072
        %v9076 = vsel %vm8988, 0, %v9074
        %v9077 = vcosq.f32.pop %v9075
        %v9078 = vsinq.f32.pop %v9075
        %vm9079 = vweird.f32 %v239
        %v9080 = vadd.s32 %v9076, 3
        %v9081 = vand.u32 %v9080, 3
        %vm9082 = vcmp.lt.s32.totalorder %v9081, 2
        %vm9083 = vcmp.eq.s32.totalorder %v9081, 0
        %v9084 = vxor.u32 %v9078, 2147483648
        %v9085 = vsel %vm9083, %v9077, %v9084
        %vm9086 = vcmp.eq.s32.totalorder %v9081, 2
        %v9087 = vxor.u32 %v9077, 2147483648
        %v9088 = vsel %vm9086, %v9087, %v9078
        %v9089 = vsel %vm9082, %v9085, %v9088
        %v9090 = vsel %vm9079, nan, %v9089
        %v9091 = vand.u32 2147483647, %v240
        %vm9092 = vcmp.le.f32.partialorder %v9091, 0.7853982
        %vm9093 = vcmp.lt.s32.totalorder %v240, 0
        %v9094 = vand.u32 %v240, 2139095040
        %v9095 = vshrl.u32 %v9094, 23
        %v9096 = vsub.s32 %v9095, 127
        %v9097 = vand.u32 2147483647, %v240
        %v9098 = vand.u32 %v9097, 8388607
        %v9099 = vor.u32 %v9098, 8388608
        %v9100 = vsub.s32 0, %v9099
        %v9101 = vadd.s32 %v9096, 1
        %vm9102 = vcmp.gt.s32.totalorder %v9101, 0
        %v9103 = vsel %vm9102, %v9101, 0
        %v9104 = vshrl.u32 %v9103, 5
        %v9105 = vand.u32 %v9103, 31
        %v9106 = vsub.s32 32, %v9105
        %v9107 = vshrl.u32 683565275, %v9106
        %v9108 = vshll.u32 683565275, %v9105
        %v9109 = vshrl.u32 2475754826, %v9106
        %v9110 = vor.u32 %v9108, %v9109
        %v9111 = vshll.u32 2475754826, %v9105
        %v9112 = vshrl.u32 2131351028, %v9106
        %v9113 = vor.u32 %v9111, %v9112
        %v9114 = vshll.u32 2131351028, %v9105
        %v9115 = vshrl.u32 2102212464, %v9106
        %v9116 = vor.u32 %v9114, %v9115
        %v9117 = vshll.u32 2102212464, %v9105
        %v9118 = vshrl.u32 920167782, %v9106
        %v9119 = vor.u32 %v9117, %v9118
        %v9120 = vshll.u32 920167782, %v9105
        %v9121 = vshrl.u32 1326507024, %v9106
        %v9122 = vor.u32 %v9120, %v9121
        %vm9123 = vcmp.lt.s32.totalorder %v9104, 1
        %vm9124 = vcmp.lt.s32.totalorder %v9104, 2
        %vm9125 = vcmp.lt.s32.totalorder %v9104, 3
        %vm9126 = vcmp.lt.s32.totalorder %v9104, 4
        %v9127 = vsel %vm9123, %v9107, %v9110
        %v9128 = vsel %vm9126, %v9116, 2102212464
        %v9129 = vsel %vm9125, %v9113, %v9128
        %v9130 = vsel %vm9124, %v9127, %v9129
        %v9131 = vsel %vm9123, %v9110, %v9113
        %v9132 = vsel %vm9126, %v9119, 920167782
        %v9133 = vsel %vm9125, %v9116, %v9132
        %v9134 = vsel %vm9124, %v9131, %v9133
        %v9135 = vsel %vm9123, %v9113, %v9116
        %v9136 = vsel %vm9126, %v9122, 1326507024
        %v9137 = vsel %vm9125, %v9119, %v9136
        %v9138 = vsel %vm9124, %v9135, %v9137
        %v9139 = vshll.u32 %v9099, 8
        %v9140 = vmul.u32.u64.compose %v9139, %v9138
        %v9141 = vextract.low.u32 %v9140
        %v9142 = vextract.high.u32 %v9140
        %v9143 = vmul.u32.u64.compose %v9139, %v9134
        %v9144 = vextract.low.u32 %v9143
        %v9145 = vextract.high.u32 %v9143
        %v9146 = vmul.u32 %v9139, %v9130
        %v9147 = vadd.s32 %v9142, %v9144
        %vm9148 = vc.u32 %v9142, %v9144
        %v9149 = vadd.s32 %v9145, 1
        %v9150 = vsel %vm9148, %v9149, %v9145
        %v9151 = vadd.s32 %v9146, %v9150
        %v9152 = vadd.s32 %v9151, 536870912
        %v9153 = vshrl.u32 %v9152, 30
        %v9154 = vshll.u32 %v9153, 30
        %v9155 = vsub.s32 %v9151, %v9154
        %vm9156 = vcmp.lt.s32.totalorder %v9155, 0
        %v9157 = vsub.s32 0, %v9155
        %v9158 = vsel %vm9156, %v9157, %v9155
        %v9159 = vclz %v9158
        %v9160 = vsub.s32 %v9159, 2
        %vm9161 = vcmp.gt.s32.totalorder 0, %v9160
        %v9162 = vsel %vm9161, 0, %v9160
        %v9163 = vsub.s32 32, %v9162
        %v9164 = vshll.u32 %v9155, %v9162
        %v9165 = vshrl.u32 %v9147, %v9163
        %v9166 = vor.u32 %v9164, %v9165
        %v9167 = vsub.s32 4294967266, %v9162
        %v9168 = vadd.s32 %v9167, 127
        %v9169 = vshll.u32 %v9168, 23
        %v9170 = vor.u32 4788187, %v9169
        %v9171 = vand.u32 2147483647, %v9170
        %v9173 = vcvt.s32.f32 %v9166
        %v9174 = vmul.f32 %v9173, %v9171
        %v9175 = vxor.u32 %v9174, 2147483648
        %v9176 = vsel %vm9093, %v9175, %v9174
        %v9177 = vsub.s32 4, %v9153
        %v9178 = vsel %vm9093, %v9177, %v9153
        %v9179 = vsel %vm9092, %v240, %v9176
        %v9180 = vsel %vm9092, 0, %v9178
        %v9181 = vcosq.f32.pop %v9179
        %v9182 = vsinq.f32.pop %v9179
        %vm9183 = vweird.f32 %v240
        %v9184 = vadd.s32 %v9180, 3
        %v9185 = vand.u32 %v9184, 3
        %vm9186 = vcmp.lt.s32.totalorder %v9185, 2
        %vm9187 = vcmp.eq.s32.totalorder %v9185, 0
        %v9188 = vxor.u32 %v9182, 2147483648
        %v9189 = vsel %vm9187, %v9181, %v9188
        %vm9190 = vcmp.eq.s32.totalorder %v9185, 2
        %v9191 = vxor.u32 %v9181, 2147483648
        %v9192 = vsel %vm9190, %v9191, %v9182
        %v9193 = vsel %vm9186, %v9189, %v9192
        %v9194 = vsel %vm9183, nan, %v9193
        %v9195 = vand.u32 2147483647, %v241
        %vm9196 = vcmp.le.f32.partialorder %v9195, 0.7853982
        %vm9197 = vcmp.lt.s32.totalorder %v241, 0
        %v9198 = vand.u32 %v241, 2139095040
        %v9199 = vshrl.u32 %v9198, 23
        %v9200 = vsub.s32 %v9199, 127
        %v9201 = vand.u32 2147483647, %v241
        %v9202 = vand.u32 %v9201, 8388607
        %v9203 = vor.u32 %v9202, 8388608
        %v9204 = vsub.s32 0, %v9203
        %v9205 = vadd.s32 %v9200, 1
        %vm9206 = vcmp.gt.s32.totalorder %v9205, 0
        %v9207 = vsel %vm9206, %v9205, 0
        %v9208 = vshrl.u32 %v9207, 5
        %v9209 = vand.u32 %v9207, 31
        %v9210 = vsub.s32 32, %v9209
        %v9211 = vshrl.u32 683565275, %v9210
        %v9212 = vshll.u32 683565275, %v9209
        %v9213 = vshrl.u32 2475754826, %v9210
        %v9214 = vor.u32 %v9212, %v9213
        %v9215 = vshll.u32 2475754826, %v9209
        %v9216 = vshrl.u32 2131351028, %v9210
        %v9217 = vor.u32 %v9215, %v9216
        %v9218 = vshll.u32 2131351028, %v9209
        %v9219 = vshrl.u32 2102212464, %v9210
        %v9220 = vor.u32 %v9218, %v9219
        %v9221 = vshll.u32 2102212464, %v9209
        %v9222 = vshrl.u32 920167782, %v9210
        %v9223 = vor.u32 %v9221, %v9222
        %v9224 = vshll.u32 920167782, %v9209
        %v9225 = vshrl.u32 1326507024, %v9210
        %v9226 = vor.u32 %v9224, %v9225
        %vm9227 = vcmp.lt.s32.totalorder %v9208, 1
        %vm9228 = vcmp.lt.s32.totalorder %v9208, 2
        %vm9229 = vcmp.lt.s32.totalorder %v9208, 3
        %vm9230 = vcmp.lt.s32.totalorder %v9208, 4
        %v9231 = vsel %vm9227, %v9211, %v9214
        %v9232 = vsel %vm9230, %v9220, 2102212464
        %v9233 = vsel %vm9229, %v9217, %v9232
        %v9234 = vsel %vm9228, %v9231, %v9233
        %v9235 = vsel %vm9227, %v9214, %v9217
        %v9236 = vsel %vm9230, %v9223, 920167782
        %v9237 = vsel %vm9229, %v9220, %v9236
        %v9238 = vsel %vm9228, %v9235, %v9237
        %v9239 = vsel %vm9227, %v9217, %v9220
        %v9240 = vsel %vm9230, %v9226, 1326507024
        %v9241 = vsel %vm9229, %v9223, %v9240
        %v9242 = vsel %vm9228, %v9239, %v9241
        %v9243 = vshll.u32 %v9203, 8
        %v9244 = vmul.u32.u64.compose %v9243, %v9242
        %v9245 = vextract.low.u32 %v9244
        %v9246 = vextract.high.u32 %v9244
        %v9247 = vmul.u32.u64.compose %v9243, %v9238
        %v9248 = vextract.low.u32 %v9247
        %v9249 = vextract.high.u32 %v9247
        %v9250 = vmul.u32 %v9243, %v9234
        %v9251 = vadd.s32 %v9246, %v9248
        %vm9252 = vc.u32 %v9246, %v9248
        %v9253 = vadd.s32 %v9249, 1
        %v9254 = vsel %vm9252, %v9253, %v9249
        %v9255 = vadd.s32 %v9250, %v9254
        %v9256 = vadd.s32 %v9255, 536870912
        %v9257 = vshrl.u32 %v9256, 30
        %v9258 = vshll.u32 %v9257, 30
        %v9259 = vsub.s32 %v9255, %v9258
        %vm9260 = vcmp.lt.s32.totalorder %v9259, 0
        %v9261 = vsub.s32 0, %v9259
        %v9262 = vsel %vm9260, %v9261, %v9259
        %v9263 = vclz %v9262
        %v9264 = vsub.s32 %v9263, 2
        %vm9265 = vcmp.gt.s32.totalorder 0, %v9264
        %v9266 = vsel %vm9265, 0, %v9264
        %v9267 = vsub.s32 32, %v9266
        %v9268 = vshll.u32 %v9259, %v9266
        %v9269 = vshrl.u32 %v9251, %v9267
        %v9270 = vor.u32 %v9268, %v9269
        %v9271 = vsub.s32 4294967266, %v9266
        %v9272 = vadd.s32 %v9271, 127
        %v9273 = vshll.u32 %v9272, 23
        %v9274 = vor.u32 4788187, %v9273
        %v9275 = vand.u32 2147483647, %v9274
        %v9277 = vcvt.s32.f32 %v9270
        %v9278 = vmul.f32 %v9277, %v9275
        %v9279 = vxor.u32 %v9278, 2147483648
        %v9280 = vsel %vm9197, %v9279, %v9278
        %v9281 = vsub.s32 4, %v9257
        %v9282 = vsel %vm9197, %v9281, %v9257
        %v9283 = vsel %vm9196, %v241, %v9280
        %v9284 = vsel %vm9196, 0, %v9282
        %v9285 = vcosq.f32.pop %v9283
        %v9286 = vsinq.f32.pop %v9283
        %vm9287 = vweird.f32 %v241
        %v9288 = vadd.s32 %v9284, 3
        %v9289 = vand.u32 %v9288, 3
        %vm9290 = vcmp.lt.s32.totalorder %v9289, 2
        %vm9291 = vcmp.eq.s32.totalorder %v9289, 0
        %v9292 = vxor.u32 %v9286, 2147483648
        %v9293 = vsel %vm9291, %v9285, %v9292
        %vm9294 = vcmp.eq.s32.totalorder %v9289, 2
        %v9295 = vxor.u32 %v9285, 2147483648
        %v9296 = vsel %vm9294, %v9295, %v9286
        %v9297 = vsel %vm9290, %v9293, %v9296
        %v9298 = vsel %vm9287, nan, %v9297
        %v9299 = vand.u32 2147483647, %v242
        %vm9300 = vcmp.le.f32.partialorder %v9299, 0.7853982
        %vm9301 = vcmp.lt.s32.totalorder %v242, 0
        %v9302 = vand.u32 %v242, 2139095040
        %v9303 = vshrl.u32 %v9302, 23
        %v9304 = vsub.s32 %v9303, 127
        %v9305 = vand.u32 2147483647, %v242
        %v9306 = vand.u32 %v9305, 8388607
        %v9307 = vor.u32 %v9306, 8388608
        %v9308 = vsub.s32 0, %v9307
        %v9309 = vadd.s32 %v9304, 1
        %vm9310 = vcmp.gt.s32.totalorder %v9309, 0
        %v9311 = vsel %vm9310, %v9309, 0
        %v9312 = vshrl.u32 %v9311, 5
        %v9313 = vand.u32 %v9311, 31
        %v9314 = vsub.s32 32, %v9313
        %v9315 = vshrl.u32 683565275, %v9314
        %v9316 = vshll.u32 683565275, %v9313
        %v9317 = vshrl.u32 2475754826, %v9314
        %v9318 = vor.u32 %v9316, %v9317
        %v9319 = vshll.u32 2475754826, %v9313
        %v9320 = vshrl.u32 2131351028, %v9314
        %v9321 = vor.u32 %v9319, %v9320
        %v9322 = vshll.u32 2131351028, %v9313
        %v9323 = vshrl.u32 2102212464, %v9314
        %v9324 = vor.u32 %v9322, %v9323
        %v9325 = vshll.u32 2102212464, %v9313
        %v9326 = vshrl.u32 920167782, %v9314
        %v9327 = vor.u32 %v9325, %v9326
        %v9328 = vshll.u32 920167782, %v9313
        %v9329 = vshrl.u32 1326507024, %v9314
        %v9330 = vor.u32 %v9328, %v9329
        %vm9331 = vcmp.lt.s32.totalorder %v9312, 1
        %vm9332 = vcmp.lt.s32.totalorder %v9312, 2
        %vm9333 = vcmp.lt.s32.totalorder %v9312, 3
        %vm9334 = vcmp.lt.s32.totalorder %v9312, 4
        %v9335 = vsel %vm9331, %v9315, %v9318
        %v9336 = vsel %vm9334, %v9324, 2102212464
        %v9337 = vsel %vm9333, %v9321, %v9336
        %v9338 = vsel %vm9332, %v9335, %v9337
        %v9339 = vsel %vm9331, %v9318, %v9321
        %v9340 = vsel %vm9334, %v9327, 920167782
        %v9341 = vsel %vm9333, %v9324, %v9340
        %v9342 = vsel %vm9332, %v9339, %v9341
        %v9343 = vsel %vm9331, %v9321, %v9324
        %v9344 = vsel %vm9334, %v9330, 1326507024
        %v9345 = vsel %vm9333, %v9327, %v9344
        %v9346 = vsel %vm9332, %v9343, %v9345
        %v9347 = vshll.u32 %v9307, 8
        %v9348 = vmul.u32.u64.compose %v9347, %v9346
        %v9349 = vextract.low.u32 %v9348
        %v9350 = vextract.high.u32 %v9348
        %v9351 = vmul.u32.u64.compose %v9347, %v9342
        %v9352 = vextract.low.u32 %v9351
        %v9353 = vextract.high.u32 %v9351
        %v9354 = vmul.u32 %v9347, %v9338
        %v9355 = vadd.s32 %v9350, %v9352
        %vm9356 = vc.u32 %v9350, %v9352
        %v9357 = vadd.s32 %v9353, 1
        %v9358 = vsel %vm9356, %v9357, %v9353
        %v9359 = vadd.s32 %v9354, %v9358
        %v9360 = vadd.s32 %v9359, 536870912
        %v9361 = vshrl.u32 %v9360, 30
        %v9362 = vshll.u32 %v9361, 30
        %v9363 = vsub.s32 %v9359, %v9362
        %vm9364 = vcmp.lt.s32.totalorder %v9363, 0
        %v9365 = vsub.s32 0, %v9363
        %v9366 = vsel %vm9364, %v9365, %v9363
        %v9367 = vclz %v9366
        %v9368 = vsub.s32 %v9367, 2
        %vm9369 = vcmp.gt.s32.totalorder 0, %v9368
        %v9370 = vsel %vm9369, 0, %v9368
        %v9371 = vsub.s32 32, %v9370
        %v9372 = vshll.u32 %v9363, %v9370
        %v9373 = vshrl.u32 %v9355, %v9371
        %v9374 = vor.u32 %v9372, %v9373
        %v9375 = vsub.s32 4294967266, %v9370
        %v9376 = vadd.s32 %v9375, 127
        %v9377 = vshll.u32 %v9376, 23
        %v9378 = vor.u32 4788187, %v9377
        %v9379 = vand.u32 2147483647, %v9378
        %v9381 = vcvt.s32.f32 %v9374
        %v9382 = vmul.f32 %v9381, %v9379
        %v9383 = vxor.u32 %v9382, 2147483648
        %v9384 = vsel %vm9301, %v9383, %v9382
        %v9385 = vsub.s32 4, %v9361
        %v9386 = vsel %vm9301, %v9385, %v9361
        %v9387 = vsel %vm9300, %v242, %v9384
        %v9388 = vsel %vm9300, 0, %v9386
        %v9389 = vcosq.f32.pop %v9387
        %v9390 = vsinq.f32.pop %v9387
        %vm9391 = vweird.f32 %v242
        %v9392 = vadd.s32 %v9388, 3
        %v9393 = vand.u32 %v9392, 3
        %vm9394 = vcmp.lt.s32.totalorder %v9393, 2
        %vm9395 = vcmp.eq.s32.totalorder %v9393, 0
        %v9396 = vxor.u32 %v9390, 2147483648
        %v9397 = vsel %vm9395, %v9389, %v9396
        %vm9398 = vcmp.eq.s32.totalorder %v9393, 2
        %v9399 = vxor.u32 %v9389, 2147483648
        %v9400 = vsel %vm9398, %v9399, %v9390
        %v9401 = vsel %vm9394, %v9397, %v9400
        %v9402 = vsel %vm9391, nan, %v9401
        %v9403 = vand.u32 2147483647, %v243
        %vm9404 = vcmp.le.f32.partialorder %v9403, 0.7853982
        %vm9405 = vcmp.lt.s32.totalorder %v243, 0
        %v9406 = vand.u32 %v243, 2139095040
        %v9407 = vshrl.u32 %v9406, 23
        %v9408 = vsub.s32 %v9407, 127
        %v9409 = vand.u32 2147483647, %v243
        %v9410 = vand.u32 %v9409, 8388607
        %v9411 = vor.u32 %v9410, 8388608
        %v9412 = vsub.s32 0, %v9411
        %v9413 = vadd.s32 %v9408, 1
        %vm9414 = vcmp.gt.s32.totalorder %v9413, 0
        %v9415 = vsel %vm9414, %v9413, 0
        %v9416 = vshrl.u32 %v9415, 5
        %v9417 = vand.u32 %v9415, 31
        %v9418 = vsub.s32 32, %v9417
        %v9419 = vshrl.u32 683565275, %v9418
        %v9420 = vshll.u32 683565275, %v9417
        %v9421 = vshrl.u32 2475754826, %v9418
        %v9422 = vor.u32 %v9420, %v9421
        %v9423 = vshll.u32 2475754826, %v9417
        %v9424 = vshrl.u32 2131351028, %v9418
        %v9425 = vor.u32 %v9423, %v9424
        %v9426 = vshll.u32 2131351028, %v9417
        %v9427 = vshrl.u32 2102212464, %v9418
        %v9428 = vor.u32 %v9426, %v9427
        %v9429 = vshll.u32 2102212464, %v9417
        %v9430 = vshrl.u32 920167782, %v9418
        %v9431 = vor.u32 %v9429, %v9430
        %v9432 = vshll.u32 920167782, %v9417
        %v9433 = vshrl.u32 1326507024, %v9418
        %v9434 = vor.u32 %v9432, %v9433
        %vm9435 = vcmp.lt.s32.totalorder %v9416, 1
        %vm9436 = vcmp.lt.s32.totalorder %v9416, 2
        %vm9437 = vcmp.lt.s32.totalorder %v9416, 3
        %vm9438 = vcmp.lt.s32.totalorder %v9416, 4
        %v9439 = vsel %vm9435, %v9419, %v9422
        %v9440 = vsel %vm9438, %v9428, 2102212464
        %v9441 = vsel %vm9437, %v9425, %v9440
        %v9442 = vsel %vm9436, %v9439, %v9441
        %v9443 = vsel %vm9435, %v9422, %v9425
        %v9444 = vsel %vm9438, %v9431, 920167782
        %v9445 = vsel %vm9437, %v9428, %v9444
        %v9446 = vsel %vm9436, %v9443, %v9445
        %v9447 = vsel %vm9435, %v9425, %v9428
        %v9448 = vsel %vm9438, %v9434, 1326507024
        %v9449 = vsel %vm9437, %v9431, %v9448
        %v9450 = vsel %vm9436, %v9447, %v9449
        %v9451 = vshll.u32 %v9411, 8
        %v9452 = vmul.u32.u64.compose %v9451, %v9450
        %v9453 = vextract.low.u32 %v9452
        %v9454 = vextract.high.u32 %v9452
        %v9455 = vmul.u32.u64.compose %v9451, %v9446
        %v9456 = vextract.low.u32 %v9455
        %v9457 = vextract.high.u32 %v9455
        %v9458 = vmul.u32 %v9451, %v9442
        %v9459 = vadd.s32 %v9454, %v9456
        %vm9460 = vc.u32 %v9454, %v9456
        %v9461 = vadd.s32 %v9457, 1
        %v9462 = vsel %vm9460, %v9461, %v9457
        %v9463 = vadd.s32 %v9458, %v9462
        %v9464 = vadd.s32 %v9463, 536870912
        %v9465 = vshrl.u32 %v9464, 30
        %v9466 = vshll.u32 %v9465, 30
        %v9467 = vsub.s32 %v9463, %v9466
        %vm9468 = vcmp.lt.s32.totalorder %v9467, 0
        %v9469 = vsub.s32 0, %v9467
        %v9470 = vsel %vm9468, %v9469, %v9467
        %v9471 = vclz %v9470
        %v9472 = vsub.s32 %v9471, 2
        %vm9473 = vcmp.gt.s32.totalorder 0, %v9472
        %v9474 = vsel %vm9473, 0, %v9472
        %v9475 = vsub.s32 32, %v9474
        %v9476 = vshll.u32 %v9467, %v9474
        %v9477 = vshrl.u32 %v9459, %v9475
        %v9478 = vor.u32 %v9476, %v9477
        %v9479 = vsub.s32 4294967266, %v9474
        %v9480 = vadd.s32 %v9479, 127
        %v9481 = vshll.u32 %v9480, 23
        %v9482 = vor.u32 4788187, %v9481
        %v9483 = vand.u32 2147483647, %v9482
        %v9485 = vcvt.s32.f32 %v9478
        %v9486 = vmul.f32 %v9485, %v9483
        %v9487 = vxor.u32 %v9486, 2147483648
        %v9488 = vsel %vm9405, %v9487, %v9486
        %v9489 = vsub.s32 4, %v9465
        %v9490 = vsel %vm9405, %v9489, %v9465
        %v9491 = vsel %vm9404, %v243, %v9488
        %v9492 = vsel %vm9404, 0, %v9490
        %v9493 = vcosq.f32.pop %v9491
        %v9494 = vsinq.f32.pop %v9491
        %vm9495 = vweird.f32 %v243
        %v9496 = vadd.s32 %v9492, 3
        %v9497 = vand.u32 %v9496, 3
        %vm9498 = vcmp.lt.s32.totalorder %v9497, 2
        %vm9499 = vcmp.eq.s32.totalorder %v9497, 0
        %v9500 = vxor.u32 %v9494, 2147483648
        %v9501 = vsel %vm9499, %v9493, %v9500
        %vm9502 = vcmp.eq.s32.totalorder %v9497, 2
        %v9503 = vxor.u32 %v9493, 2147483648
        %v9504 = vsel %vm9502, %v9503, %v9494
        %v9505 = vsel %vm9498, %v9501, %v9504
        %v9506 = vsel %vm9495, nan, %v9505
        %v9507 = vand.u32 2147483647, %v244
        %vm9508 = vcmp.le.f32.partialorder %v9507, 0.7853982
        %vm9509 = vcmp.lt.s32.totalorder %v244, 0
        %v9510 = vand.u32 %v244, 2139095040
        %v9511 = vshrl.u32 %v9510, 23
        %v9512 = vsub.s32 %v9511, 127
        %v9513 = vand.u32 2147483647, %v244
        %v9514 = vand.u32 %v9513, 8388607
        %v9515 = vor.u32 %v9514, 8388608
        %v9516 = vsub.s32 0, %v9515
        %v9517 = vadd.s32 %v9512, 1
        %vm9518 = vcmp.gt.s32.totalorder %v9517, 0
        %v9519 = vsel %vm9518, %v9517, 0
        %v9520 = vshrl.u32 %v9519, 5
        %v9521 = vand.u32 %v9519, 31
        %v9522 = vsub.s32 32, %v9521
        %v9523 = vshrl.u32 683565275, %v9522
        %v9524 = vshll.u32 683565275, %v9521
        %v9525 = vshrl.u32 2475754826, %v9522
        %v9526 = vor.u32 %v9524, %v9525
        %v9527 = vshll.u32 2475754826, %v9521
        %v9528 = vshrl.u32 2131351028, %v9522
        %v9529 = vor.u32 %v9527, %v9528
        %v9530 = vshll.u32 2131351028, %v9521
        %v9531 = vshrl.u32 2102212464, %v9522
        %v9532 = vor.u32 %v9530, %v9531
        %v9533 = vshll.u32 2102212464, %v9521
        %v9534 = vshrl.u32 920167782, %v9522
        %v9535 = vor.u32 %v9533, %v9534
        %v9536 = vshll.u32 920167782, %v9521
        %v9537 = vshrl.u32 1326507024, %v9522
        %v9538 = vor.u32 %v9536, %v9537
        %vm9539 = vcmp.lt.s32.totalorder %v9520, 1
        %vm9540 = vcmp.lt.s32.totalorder %v9520, 2
        %vm9541 = vcmp.lt.s32.totalorder %v9520, 3
        %vm9542 = vcmp.lt.s32.totalorder %v9520, 4
        %v9543 = vsel %vm9539, %v9523, %v9526
        %v9544 = vsel %vm9542, %v9532, 2102212464
        %v9545 = vsel %vm9541, %v9529, %v9544
        %v9546 = vsel %vm9540, %v9543, %v9545
        %v9547 = vsel %vm9539, %v9526, %v9529
        %v9548 = vsel %vm9542, %v9535, 920167782
        %v9549 = vsel %vm9541, %v9532, %v9548
        %v9550 = vsel %vm9540, %v9547, %v9549
        %v9551 = vsel %vm9539, %v9529, %v9532
        %v9552 = vsel %vm9542, %v9538, 1326507024
        %v9553 = vsel %vm9541, %v9535, %v9552
        %v9554 = vsel %vm9540, %v9551, %v9553
        %v9555 = vshll.u32 %v9515, 8
        %v9556 = vmul.u32.u64.compose %v9555, %v9554
        %v9557 = vextract.low.u32 %v9556
        %v9558 = vextract.high.u32 %v9556
        %v9559 = vmul.u32.u64.compose %v9555, %v9550
        %v9560 = vextract.low.u32 %v9559
        %v9561 = vextract.high.u32 %v9559
        %v9562 = vmul.u32 %v9555, %v9546
        %v9563 = vadd.s32 %v9558, %v9560
        %vm9564 = vc.u32 %v9558, %v9560
        %v9565 = vadd.s32 %v9561, 1
        %v9566 = vsel %vm9564, %v9565, %v9561
        %v9567 = vadd.s32 %v9562, %v9566
        %v9568 = vadd.s32 %v9567, 536870912
        %v9569 = vshrl.u32 %v9568, 30
        %v9570 = vshll.u32 %v9569, 30
        %v9571 = vsub.s32 %v9567, %v9570
        %vm9572 = vcmp.lt.s32.totalorder %v9571, 0
        %v9573 = vsub.s32 0, %v9571
        %v9574 = vsel %vm9572, %v9573, %v9571
        %v9575 = vclz %v9574
        %v9576 = vsub.s32 %v9575, 2
        %vm9577 = vcmp.gt.s32.totalorder 0, %v9576
        %v9578 = vsel %vm9577, 0, %v9576
        %v9579 = vsub.s32 32, %v9578
        %v9580 = vshll.u32 %v9571, %v9578
        %v9581 = vshrl.u32 %v9563, %v9579
        %v9582 = vor.u32 %v9580, %v9581
        %v9583 = vsub.s32 4294967266, %v9578
        %v9584 = vadd.s32 %v9583, 127
        %v9585 = vshll.u32 %v9584, 23
        %v9586 = vor.u32 4788187, %v9585
        %v9587 = vand.u32 2147483647, %v9586
        %v9589 = vcvt.s32.f32 %v9582
        %v9590 = vmul.f32 %v9589, %v9587
        %v9591 = vxor.u32 %v9590, 2147483648
        %v9592 = vsel %vm9509, %v9591, %v9590
        %v9593 = vsub.s32 4, %v9569
        %v9594 = vsel %vm9509, %v9593, %v9569
        %v9595 = vsel %vm9508, %v244, %v9592
        %v9596 = vsel %vm9508, 0, %v9594
        %v9597 = vcosq.f32.pop %v9595
        %v9598 = vsinq.f32.pop %v9595
        %vm9599 = vweird.f32 %v244
        %v9600 = vadd.s32 %v9596, 3
        %v9601 = vand.u32 %v9600, 3
        %vm9602 = vcmp.lt.s32.totalorder %v9601, 2
        %vm9603 = vcmp.eq.s32.totalorder %v9601, 0
        %v9604 = vxor.u32 %v9598, 2147483648
        %v9605 = vsel %vm9603, %v9597, %v9604
        %vm9606 = vcmp.eq.s32.totalorder %v9601, 2
        %v9607 = vxor.u32 %v9597, 2147483648
        %v9608 = vsel %vm9606, %v9607, %v9598
        %v9609 = vsel %vm9602, %v9605, %v9608
        %v9610 = vsel %vm9599, nan, %v9609
        %v9611 = vand.u32 2147483647, %v245
        %vm9612 = vcmp.le.f32.partialorder %v9611, 0.7853982
        %vm9613 = vcmp.lt.s32.totalorder %v245, 0
        %v9614 = vand.u32 %v245, 2139095040
        %v9615 = vshrl.u32 %v9614, 23
        %v9616 = vsub.s32 %v9615, 127
        %v9617 = vand.u32 2147483647, %v245
        %v9618 = vand.u32 %v9617, 8388607
        %v9619 = vor.u32 %v9618, 8388608
        %v9620 = vsub.s32 0, %v9619
        %v9621 = vadd.s32 %v9616, 1
        %vm9622 = vcmp.gt.s32.totalorder %v9621, 0
        %v9623 = vsel %vm9622, %v9621, 0
        %v9624 = vshrl.u32 %v9623, 5
        %v9625 = vand.u32 %v9623, 31
        %v9626 = vsub.s32 32, %v9625
        %v9627 = vshrl.u32 683565275, %v9626
        %v9628 = vshll.u32 683565275, %v9625
        %v9629 = vshrl.u32 2475754826, %v9626
        %v9630 = vor.u32 %v9628, %v9629
        %v9631 = vshll.u32 2475754826, %v9625
        %v9632 = vshrl.u32 2131351028, %v9626
        %v9633 = vor.u32 %v9631, %v9632
        %v9634 = vshll.u32 2131351028, %v9625
        %v9635 = vshrl.u32 2102212464, %v9626
        %v9636 = vor.u32 %v9634, %v9635
        %v9637 = vshll.u32 2102212464, %v9625
        %v9638 = vshrl.u32 920167782, %v9626
        %v9639 = vor.u32 %v9637, %v9638
        %v9640 = vshll.u32 920167782, %v9625
        %v9641 = vshrl.u32 1326507024, %v9626
        %v9642 = vor.u32 %v9640, %v9641
        %vm9643 = vcmp.lt.s32.totalorder %v9624, 1
        %vm9644 = vcmp.lt.s32.totalorder %v9624, 2
        %vm9645 = vcmp.lt.s32.totalorder %v9624, 3
        %vm9646 = vcmp.lt.s32.totalorder %v9624, 4
        %v9647 = vsel %vm9643, %v9627, %v9630
        %v9648 = vsel %vm9646, %v9636, 2102212464
        %v9649 = vsel %vm9645, %v9633, %v9648
        %v9650 = vsel %vm9644, %v9647, %v9649
        %v9651 = vsel %vm9643, %v9630, %v9633
        %v9652 = vsel %vm9646, %v9639, 920167782
        %v9653 = vsel %vm9645, %v9636, %v9652
        %v9654 = vsel %vm9644, %v9651, %v9653
        %v9655 = vsel %vm9643, %v9633, %v9636
        %v9656 = vsel %vm9646, %v9642, 1326507024
        %v9657 = vsel %vm9645, %v9639, %v9656
        %v9658 = vsel %vm9644, %v9655, %v9657
        %v9659 = vshll.u32 %v9619, 8
        %v9660 = vmul.u32.u64.compose %v9659, %v9658
        %v9661 = vextract.low.u32 %v9660
        %v9662 = vextract.high.u32 %v9660
        %v9663 = vmul.u32.u64.compose %v9659, %v9654
        %v9664 = vextract.low.u32 %v9663
        %v9665 = vextract.high.u32 %v9663
        %v9666 = vmul.u32 %v9659, %v9650
        %v9667 = vadd.s32 %v9662, %v9664
        %vm9668 = vc.u32 %v9662, %v9664
        %v9669 = vadd.s32 %v9665, 1
        %v9670 = vsel %vm9668, %v9669, %v9665
        %v9671 = vadd.s32 %v9666, %v9670
        %v9672 = vadd.s32 %v9671, 536870912
        %v9673 = vshrl.u32 %v9672, 30
        %v9674 = vshll.u32 %v9673, 30
        %v9675 = vsub.s32 %v9671, %v9674
        %vm9676 = vcmp.lt.s32.totalorder %v9675, 0
        %v9677 = vsub.s32 0, %v9675
        %v9678 = vsel %vm9676, %v9677, %v9675
        %v9679 = vclz %v9678
        %v9680 = vsub.s32 %v9679, 2
        %vm9681 = vcmp.gt.s32.totalorder 0, %v9680
        %v9682 = vsel %vm9681, 0, %v9680
        %v9683 = vsub.s32 32, %v9682
        %v9684 = vshll.u32 %v9675, %v9682
        %v9685 = vshrl.u32 %v9667, %v9683
        %v9686 = vor.u32 %v9684, %v9685
        %v9687 = vsub.s32 4294967266, %v9682
        %v9688 = vadd.s32 %v9687, 127
        %v9689 = vshll.u32 %v9688, 23
        %v9690 = vor.u32 4788187, %v9689
        %v9691 = vand.u32 2147483647, %v9690
        %v9693 = vcvt.s32.f32 %v9686
        %v9694 = vmul.f32 %v9693, %v9691
        %v9695 = vxor.u32 %v9694, 2147483648
        %v9696 = vsel %vm9613, %v9695, %v9694
        %v9697 = vsub.s32 4, %v9673
        %v9698 = vsel %vm9613, %v9697, %v9673
        %v9699 = vsel %vm9612, %v245, %v9696
        %v9700 = vsel %vm9612, 0, %v9698
        %v9701 = vcosq.f32.pop %v9699
        %v9702 = vsinq.f32.pop %v9699
        %vm9703 = vweird.f32 %v245
        %v9704 = vadd.s32 %v9700, 3
        %v9705 = vand.u32 %v9704, 3
        %vm9706 = vcmp.lt.s32.totalorder %v9705, 2
        %vm9707 = vcmp.eq.s32.totalorder %v9705, 0
        %v9708 = vxor.u32 %v9702, 2147483648
        %v9709 = vsel %vm9707, %v9701, %v9708
        %vm9710 = vcmp.eq.s32.totalorder %v9705, 2
        %v9711 = vxor.u32 %v9701, 2147483648
        %v9712 = vsel %vm9710, %v9711, %v9702
        %v9713 = vsel %vm9706, %v9709, %v9712
        %v9714 = vsel %vm9703, nan, %v9713
        %v9715 = vand.u32 2147483647, %v246
        %vm9716 = vcmp.le.f32.partialorder %v9715, 0.7853982
        %vm9717 = vcmp.lt.s32.totalorder %v246, 0
        %v9718 = vand.u32 %v246, 2139095040
        %v9719 = vshrl.u32 %v9718, 23
        %v9720 = vsub.s32 %v9719, 127
        %v9721 = vand.u32 2147483647, %v246
        %v9722 = vand.u32 %v9721, 8388607
        %v9723 = vor.u32 %v9722, 8388608
        %v9724 = vsub.s32 0, %v9723
        %v9725 = vadd.s32 %v9720, 1
        %vm9726 = vcmp.gt.s32.totalorder %v9725, 0
        %v9727 = vsel %vm9726, %v9725, 0
        %v9728 = vshrl.u32 %v9727, 5
        %v9729 = vand.u32 %v9727, 31
        %v9730 = vsub.s32 32, %v9729
        %v9731 = vshrl.u32 683565275, %v9730
        %v9732 = vshll.u32 683565275, %v9729
        %v9733 = vshrl.u32 2475754826, %v9730
        %v9734 = vor.u32 %v9732, %v9733
        %v9735 = vshll.u32 2475754826, %v9729
        %v9736 = vshrl.u32 2131351028, %v9730
        %v9737 = vor.u32 %v9735, %v9736
        %v9738 = vshll.u32 2131351028, %v9729
        %v9739 = vshrl.u32 2102212464, %v9730
        %v9740 = vor.u32 %v9738, %v9739
        %v9741 = vshll.u32 2102212464, %v9729
        %v9742 = vshrl.u32 920167782, %v9730
        %v9743 = vor.u32 %v9741, %v9742
        %v9744 = vshll.u32 920167782, %v9729
        %v9745 = vshrl.u32 1326507024, %v9730
        %v9746 = vor.u32 %v9744, %v9745
        %vm9747 = vcmp.lt.s32.totalorder %v9728, 1
        %vm9748 = vcmp.lt.s32.totalorder %v9728, 2
        %vm9749 = vcmp.lt.s32.totalorder %v9728, 3
        %vm9750 = vcmp.lt.s32.totalorder %v9728, 4
        %v9751 = vsel %vm9747, %v9731, %v9734
        %v9752 = vsel %vm9750, %v9740, 2102212464
        %v9753 = vsel %vm9749, %v9737, %v9752
        %v9754 = vsel %vm9748, %v9751, %v9753
        %v9755 = vsel %vm9747, %v9734, %v9737
        %v9756 = vsel %vm9750, %v9743, 920167782
        %v9757 = vsel %vm9749, %v9740, %v9756
        %v9758 = vsel %vm9748, %v9755, %v9757
        %v9759 = vsel %vm9747, %v9737, %v9740
        %v9760 = vsel %vm9750, %v9746, 1326507024
        %v9761 = vsel %vm9749, %v9743, %v9760
        %v9762 = vsel %vm9748, %v9759, %v9761
        %v9763 = vshll.u32 %v9723, 8
        %v9764 = vmul.u32.u64.compose %v9763, %v9762
        %v9765 = vextract.low.u32 %v9764
        %v9766 = vextract.high.u32 %v9764
        %v9767 = vmul.u32.u64.compose %v9763, %v9758
        %v9768 = vextract.low.u32 %v9767
        %v9769 = vextract.high.u32 %v9767
        %v9770 = vmul.u32 %v9763, %v9754
        %v9771 = vadd.s32 %v9766, %v9768
        %vm9772 = vc.u32 %v9766, %v9768
        %v9773 = vadd.s32 %v9769, 1
        %v9774 = vsel %vm9772, %v9773, %v9769
        %v9775 = vadd.s32 %v9770, %v9774
        %v9776 = vadd.s32 %v9775, 536870912
        %v9777 = vshrl.u32 %v9776, 30
        %v9778 = vshll.u32 %v9777, 30
        %v9779 = vsub.s32 %v9775, %v9778
        %vm9780 = vcmp.lt.s32.totalorder %v9779, 0
        %v9781 = vsub.s32 0, %v9779
        %v9782 = vsel %vm9780, %v9781, %v9779
        %v9783 = vclz %v9782
        %v9784 = vsub.s32 %v9783, 2
        %vm9785 = vcmp.gt.s32.totalorder 0, %v9784
        %v9786 = vsel %vm9785, 0, %v9784
        %v9787 = vsub.s32 32, %v9786
        %v9788 = vshll.u32 %v9779, %v9786
        %v9789 = vshrl.u32 %v9771, %v9787
        %v9790 = vor.u32 %v9788, %v9789
        %v9791 = vsub.s32 4294967266, %v9786
        %v9792 = vadd.s32 %v9791, 127
        %v9793 = vshll.u32 %v9792, 23
        %v9794 = vor.u32 4788187, %v9793
        %v9795 = vand.u32 2147483647, %v9794
        %v9797 = vcvt.s32.f32 %v9790
        %v9798 = vmul.f32 %v9797, %v9795
        %v9799 = vxor.u32 %v9798, 2147483648
        %v9800 = vsel %vm9717, %v9799, %v9798
        %v9801 = vsub.s32 4, %v9777
        %v9802 = vsel %vm9717, %v9801, %v9777
        %v9803 = vsel %vm9716, %v246, %v9800
        %v9804 = vsel %vm9716, 0, %v9802
        %v9805 = vcosq.f32.pop %v9803
        %v9806 = vsinq.f32.pop %v9803
        %vm9807 = vweird.f32 %v246
        %v9808 = vadd.s32 %v9804, 3
        %v9809 = vand.u32 %v9808, 3
        %vm9810 = vcmp.lt.s32.totalorder %v9809, 2
        %vm9811 = vcmp.eq.s32.totalorder %v9809, 0
        %v9812 = vxor.u32 %v9806, 2147483648
        %v9813 = vsel %vm9811, %v9805, %v9812
        %vm9814 = vcmp.eq.s32.totalorder %v9809, 2
        %v9815 = vxor.u32 %v9805, 2147483648
        %v9816 = vsel %vm9814, %v9815, %v9806
        %v9817 = vsel %vm9810, %v9813, %v9816
        %v9818 = vsel %vm9807, nan, %v9817
        %v9819 = vand.u32 2147483647, %v247
        %vm9820 = vcmp.le.f32.partialorder %v9819, 0.7853982
        %vm9821 = vcmp.lt.s32.totalorder %v247, 0
        %v9822 = vand.u32 %v247, 2139095040
        %v9823 = vshrl.u32 %v9822, 23
        %v9824 = vsub.s32 %v9823, 127
        %v9825 = vand.u32 2147483647, %v247
        %v9826 = vand.u32 %v9825, 8388607
        %v9827 = vor.u32 %v9826, 8388608
        %v9828 = vsub.s32 0, %v9827
        %v9829 = vadd.s32 %v9824, 1
        %vm9830 = vcmp.gt.s32.totalorder %v9829, 0
        %v9831 = vsel %vm9830, %v9829, 0
        %v9832 = vshrl.u32 %v9831, 5
        %v9833 = vand.u32 %v9831, 31
        %v9834 = vsub.s32 32, %v9833
        %v9835 = vshrl.u32 683565275, %v9834
        %v9836 = vshll.u32 683565275, %v9833
        %v9837 = vshrl.u32 2475754826, %v9834
        %v9838 = vor.u32 %v9836, %v9837
        %v9839 = vshll.u32 2475754826, %v9833
        %v9840 = vshrl.u32 2131351028, %v9834
        %v9841 = vor.u32 %v9839, %v9840
        %v9842 = vshll.u32 2131351028, %v9833
        %v9843 = vshrl.u32 2102212464, %v9834
        %v9844 = vor.u32 %v9842, %v9843
        %v9845 = vshll.u32 2102212464, %v9833
        %v9846 = vshrl.u32 920167782, %v9834
        %v9847 = vor.u32 %v9845, %v9846
        %v9848 = vshll.u32 920167782, %v9833
        %v9849 = vshrl.u32 1326507024, %v9834
        %v9850 = vor.u32 %v9848, %v9849
        %vm9851 = vcmp.lt.s32.totalorder %v9832, 1
        %vm9852 = vcmp.lt.s32.totalorder %v9832, 2
        %vm9853 = vcmp.lt.s32.totalorder %v9832, 3
        %vm9854 = vcmp.lt.s32.totalorder %v9832, 4
        %v9855 = vsel %vm9851, %v9835, %v9838
        %v9856 = vsel %vm9854, %v9844, 2102212464
        %v9857 = vsel %vm9853, %v9841, %v9856
        %v9858 = vsel %vm9852, %v9855, %v9857
        %v9859 = vsel %vm9851, %v9838, %v9841
        %v9860 = vsel %vm9854, %v9847, 920167782
        %v9861 = vsel %vm9853, %v9844, %v9860
        %v9862 = vsel %vm9852, %v9859, %v9861
        %v9863 = vsel %vm9851, %v9841, %v9844
        %v9864 = vsel %vm9854, %v9850, 1326507024
        %v9865 = vsel %vm9853, %v9847, %v9864
        %v9866 = vsel %vm9852, %v9863, %v9865
        %v9867 = vshll.u32 %v9827, 8
        %v9868 = vmul.u32.u64.compose %v9867, %v9866
        %v9869 = vextract.low.u32 %v9868
        %v9870 = vextract.high.u32 %v9868
        %v9871 = vmul.u32.u64.compose %v9867, %v9862
        %v9872 = vextract.low.u32 %v9871
        %v9873 = vextract.high.u32 %v9871
        %v9874 = vmul.u32 %v9867, %v9858
        %v9875 = vadd.s32 %v9870, %v9872
        %vm9876 = vc.u32 %v9870, %v9872
        %v9877 = vadd.s32 %v9873, 1
        %v9878 = vsel %vm9876, %v9877, %v9873
        %v9879 = vadd.s32 %v9874, %v9878
        %v9880 = vadd.s32 %v9879, 536870912
        %v9881 = vshrl.u32 %v9880, 30
        %v9882 = vshll.u32 %v9881, 30
        %v9883 = vsub.s32 %v9879, %v9882
        %vm9884 = vcmp.lt.s32.totalorder %v9883, 0
        %v9885 = vsub.s32 0, %v9883
        %v9886 = vsel %vm9884, %v9885, %v9883
        %v9887 = vclz %v9886
        %v9888 = vsub.s32 %v9887, 2
        %vm9889 = vcmp.gt.s32.totalorder 0, %v9888
        %v9890 = vsel %vm9889, 0, %v9888
        %v9891 = vsub.s32 32, %v9890
        %v9892 = vshll.u32 %v9883, %v9890
        %v9893 = vshrl.u32 %v9875, %v9891
        %v9894 = vor.u32 %v9892, %v9893
        %v9895 = vsub.s32 4294967266, %v9890
        %v9896 = vadd.s32 %v9895, 127
        %v9897 = vshll.u32 %v9896, 23
        %v9898 = vor.u32 4788187, %v9897
        %v9899 = vand.u32 2147483647, %v9898
        %v9901 = vcvt.s32.f32 %v9894
        %v9902 = vmul.f32 %v9901, %v9899
        %v9903 = vxor.u32 %v9902, 2147483648
        %v9904 = vsel %vm9821, %v9903, %v9902
        %v9905 = vsub.s32 4, %v9881
        %v9906 = vsel %vm9821, %v9905, %v9881
        %v9907 = vsel %vm9820, %v247, %v9904
        %v9908 = vsel %vm9820, 0, %v9906
        %v9909 = vcosq.f32.pop %v9907
        %v9910 = vsinq.f32.pop %v9907
        %vm9911 = vweird.f32 %v247
        %v9912 = vadd.s32 %v9908, 3
        %v9913 = vand.u32 %v9912, 3
        %vm9914 = vcmp.lt.s32.totalorder %v9913, 2
        %vm9915 = vcmp.eq.s32.totalorder %v9913, 0
        %v9916 = vxor.u32 %v9910, 2147483648
        %v9917 = vsel %vm9915, %v9909, %v9916
        %vm9918 = vcmp.eq.s32.totalorder %v9913, 2
        %v9919 = vxor.u32 %v9909, 2147483648
        %v9920 = vsel %vm9918, %v9919, %v9910
        %v9921 = vsel %vm9914, %v9917, %v9920
        %v9922 = vsel %vm9911, nan, %v9921
        %v9923 = vand.u32 2147483647, %v248
        %vm9924 = vcmp.le.f32.partialorder %v9923, 0.7853982
        %vm9925 = vcmp.lt.s32.totalorder %v248, 0
        %v9926 = vand.u32 %v248, 2139095040
        %v9927 = vshrl.u32 %v9926, 23
        %v9928 = vsub.s32 %v9927, 127
        %v9929 = vand.u32 2147483647, %v248
        %v9930 = vand.u32 %v9929, 8388607
        %v9931 = vor.u32 %v9930, 8388608
        %v9932 = vsub.s32 0, %v9931
        %v9933 = vadd.s32 %v9928, 1
        %vm9934 = vcmp.gt.s32.totalorder %v9933, 0
        %v9935 = vsel %vm9934, %v9933, 0
        %v9936 = vshrl.u32 %v9935, 5
        %v9937 = vand.u32 %v9935, 31
        %v9938 = vsub.s32 32, %v9937
        %v9939 = vshrl.u32 683565275, %v9938
        %v9940 = vshll.u32 683565275, %v9937
        %v9941 = vshrl.u32 2475754826, %v9938
        %v9942 = vor.u32 %v9940, %v9941
        %v9943 = vshll.u32 2475754826, %v9937
        %v9944 = vshrl.u32 2131351028, %v9938
        %v9945 = vor.u32 %v9943, %v9944
        %v9946 = vshll.u32 2131351028, %v9937
        %v9947 = vshrl.u32 2102212464, %v9938
        %v9948 = vor.u32 %v9946, %v9947
        %v9949 = vshll.u32 2102212464, %v9937
        %v9950 = vshrl.u32 920167782, %v9938
        %v9951 = vor.u32 %v9949, %v9950
        %v9952 = vshll.u32 920167782, %v9937
        %v9953 = vshrl.u32 1326507024, %v9938
        %v9954 = vor.u32 %v9952, %v9953
        %vm9955 = vcmp.lt.s32.totalorder %v9936, 1
        %vm9956 = vcmp.lt.s32.totalorder %v9936, 2
        %vm9957 = vcmp.lt.s32.totalorder %v9936, 3
        %vm9958 = vcmp.lt.s32.totalorder %v9936, 4
        %v9959 = vsel %vm9955, %v9939, %v9942
        %v9960 = vsel %vm9958, %v9948, 2102212464
        %v9961 = vsel %vm9957, %v9945, %v9960
        %v9962 = vsel %vm9956, %v9959, %v9961
        %v9963 = vsel %vm9955, %v9942, %v9945
        %v9964 = vsel %vm9958, %v9951, 920167782
        %v9965 = vsel %vm9957, %v9948, %v9964
        %v9966 = vsel %vm9956, %v9963, %v9965
        %v9967 = vsel %vm9955, %v9945, %v9948
        %v9968 = vsel %vm9958, %v9954, 1326507024
        %v9969 = vsel %vm9957, %v9951, %v9968
        %v9970 = vsel %vm9956, %v9967, %v9969
        %v9971 = vshll.u32 %v9931, 8
        %v9972 = vmul.u32.u64.compose %v9971, %v9970
        %v9973 = vextract.low.u32 %v9972
        %v9974 = vextract.high.u32 %v9972
        %v9975 = vmul.u32.u64.compose %v9971, %v9966
        %v9976 = vextract.low.u32 %v9975
        %v9977 = vextract.high.u32 %v9975
        %v9978 = vmul.u32 %v9971, %v9962
        %v9979 = vadd.s32 %v9974, %v9976
        %vm9980 = vc.u32 %v9974, %v9976
        %v9981 = vadd.s32 %v9977, 1
        %v9982 = vsel %vm9980, %v9981, %v9977
        %v9983 = vadd.s32 %v9978, %v9982
        %v9984 = vadd.s32 %v9983, 536870912
        %v9985 = vshrl.u32 %v9984, 30
        %v9986 = vshll.u32 %v9985, 30
        %v9987 = vsub.s32 %v9983, %v9986
        %vm9988 = vcmp.lt.s32.totalorder %v9987, 0
        %v9989 = vsub.s32 0, %v9987
        %v9990 = vsel %vm9988, %v9989, %v9987
        %v9991 = vclz %v9990
        %v9992 = vsub.s32 %v9991, 2
        %vm9993 = vcmp.gt.s32.totalorder 0, %v9992
        %v9994 = vsel %vm9993, 0, %v9992
        %v9995 = vsub.s32 32, %v9994
        %v9996 = vshll.u32 %v9987, %v9994
        %v9997 = vshrl.u32 %v9979, %v9995
        %v9998 = vor.u32 %v9996, %v9997
        %v9999 = vsub.s32 4294967266, %v9994
        %v10000 = vadd.s32 %v9999, 127
        %v10001 = vshll.u32 %v10000, 23
        %v10002 = vor.u32 4788187, %v10001
        %v10003 = vand.u32 2147483647, %v10002
        %v10005 = vcvt.s32.f32 %v9998
        %v10006 = vmul.f32 %v10005, %v10003
        %v10007 = vxor.u32 %v10006, 2147483648
        %v10008 = vsel %vm9925, %v10007, %v10006
        %v10009 = vsub.s32 4, %v9985
        %v10010 = vsel %vm9925, %v10009, %v9985
        %v10011 = vsel %vm9924, %v248, %v10008
        %v10012 = vsel %vm9924, 0, %v10010
        %v10013 = vcosq.f32.pop %v10011
        %v10014 = vsinq.f32.pop %v10011
        %vm10015 = vweird.f32 %v248
        %v10016 = vadd.s32 %v10012, 3
        %v10017 = vand.u32 %v10016, 3
        %vm10018 = vcmp.lt.s32.totalorder %v10017, 2
        %vm10019 = vcmp.eq.s32.totalorder %v10017, 0
        %v10020 = vxor.u32 %v10014, 2147483648
        %v10021 = vsel %vm10019, %v10013, %v10020
        %vm10022 = vcmp.eq.s32.totalorder %v10017, 2
        %v10023 = vxor.u32 %v10013, 2147483648
        %v10024 = vsel %vm10022, %v10023, %v10014
        %v10025 = vsel %vm10018, %v10021, %v10024
        %v10026 = vsel %vm10015, nan, %v10025
        %v10027 = vand.u32 2147483647, %v249
        %vm10028 = vcmp.le.f32.partialorder %v10027, 0.7853982
        %vm10029 = vcmp.lt.s32.totalorder %v249, 0
        %v10030 = vand.u32 %v249, 2139095040
        %v10031 = vshrl.u32 %v10030, 23
        %v10032 = vsub.s32 %v10031, 127
        %v10033 = vand.u32 2147483647, %v249
        %v10034 = vand.u32 %v10033, 8388607
        %v10035 = vor.u32 %v10034, 8388608
        %v10036 = vsub.s32 0, %v10035
        %v10037 = vadd.s32 %v10032, 1
        %vm10038 = vcmp.gt.s32.totalorder %v10037, 0
        %v10039 = vsel %vm10038, %v10037, 0
        %v10040 = vshrl.u32 %v10039, 5
        %v10041 = vand.u32 %v10039, 31
        %v10042 = vsub.s32 32, %v10041
        %v10043 = vshrl.u32 683565275, %v10042
        %v10044 = vshll.u32 683565275, %v10041
        %v10045 = vshrl.u32 2475754826, %v10042
        %v10046 = vor.u32 %v10044, %v10045
        %v10047 = vshll.u32 2475754826, %v10041
        %v10048 = vshrl.u32 2131351028, %v10042
        %v10049 = vor.u32 %v10047, %v10048
        %v10050 = vshll.u32 2131351028, %v10041
        %v10051 = vshrl.u32 2102212464, %v10042
        %v10052 = vor.u32 %v10050, %v10051
        %v10053 = vshll.u32 2102212464, %v10041
        %v10054 = vshrl.u32 920167782, %v10042
        %v10055 = vor.u32 %v10053, %v10054
        %v10056 = vshll.u32 920167782, %v10041
        %v10057 = vshrl.u32 1326507024, %v10042
        %v10058 = vor.u32 %v10056, %v10057
        %vm10059 = vcmp.lt.s32.totalorder %v10040, 1
        %vm10060 = vcmp.lt.s32.totalorder %v10040, 2
        %vm10061 = vcmp.lt.s32.totalorder %v10040, 3
        %vm10062 = vcmp.lt.s32.totalorder %v10040, 4
        %v10063 = vsel %vm10059, %v10043, %v10046
        %v10064 = vsel %vm10062, %v10052, 2102212464
        %v10065 = vsel %vm10061, %v10049, %v10064
        %v10066 = vsel %vm10060, %v10063, %v10065
        %v10067 = vsel %vm10059, %v10046, %v10049
        %v10068 = vsel %vm10062, %v10055, 920167782
        %v10069 = vsel %vm10061, %v10052, %v10068
        %v10070 = vsel %vm10060, %v10067, %v10069
        %v10071 = vsel %vm10059, %v10049, %v10052
        %v10072 = vsel %vm10062, %v10058, 1326507024
        %v10073 = vsel %vm10061, %v10055, %v10072
        %v10074 = vsel %vm10060, %v10071, %v10073
        %v10075 = vshll.u32 %v10035, 8
        %v10076 = vmul.u32.u64.compose %v10075, %v10074
        %v10077 = vextract.low.u32 %v10076
        %v10078 = vextract.high.u32 %v10076
        %v10079 = vmul.u32.u64.compose %v10075, %v10070
        %v10080 = vextract.low.u32 %v10079
        %v10081 = vextract.high.u32 %v10079
        %v10082 = vmul.u32 %v10075, %v10066
        %v10083 = vadd.s32 %v10078, %v10080
        %vm10084 = vc.u32 %v10078, %v10080
        %v10085 = vadd.s32 %v10081, 1
        %v10086 = vsel %vm10084, %v10085, %v10081
        %v10087 = vadd.s32 %v10082, %v10086
        %v10088 = vadd.s32 %v10087, 536870912
        %v10089 = vshrl.u32 %v10088, 30
        %v10090 = vshll.u32 %v10089, 30
        %v10091 = vsub.s32 %v10087, %v10090
        %vm10092 = vcmp.lt.s32.totalorder %v10091, 0
        %v10093 = vsub.s32 0, %v10091
        %v10094 = vsel %vm10092, %v10093, %v10091
        %v10095 = vclz %v10094
        %v10096 = vsub.s32 %v10095, 2
        %vm10097 = vcmp.gt.s32.totalorder 0, %v10096
        %v10098 = vsel %vm10097, 0, %v10096
        %v10099 = vsub.s32 32, %v10098
        %v10100 = vshll.u32 %v10091, %v10098
        %v10101 = vshrl.u32 %v10083, %v10099
        %v10102 = vor.u32 %v10100, %v10101
        %v10103 = vsub.s32 4294967266, %v10098
        %v10104 = vadd.s32 %v10103, 127
        %v10105 = vshll.u32 %v10104, 23
        %v10106 = vor.u32 4788187, %v10105
        %v10107 = vand.u32 2147483647, %v10106
        %v10109 = vcvt.s32.f32 %v10102
        %v10110 = vmul.f32 %v10109, %v10107
        %v10111 = vxor.u32 %v10110, 2147483648
        %v10112 = vsel %vm10029, %v10111, %v10110
        %v10113 = vsub.s32 4, %v10089
        %v10114 = vsel %vm10029, %v10113, %v10089
        %v10115 = vsel %vm10028, %v249, %v10112
        %v10116 = vsel %vm10028, 0, %v10114
        %v10117 = vcosq.f32.pop %v10115
        %v10118 = vsinq.f32.pop %v10115
        %vm10119 = vweird.f32 %v249
        %v10120 = vadd.s32 %v10116, 3
        %v10121 = vand.u32 %v10120, 3
        %vm10122 = vcmp.lt.s32.totalorder %v10121, 2
        %vm10123 = vcmp.eq.s32.totalorder %v10121, 0
        %v10124 = vxor.u32 %v10118, 2147483648
        %v10125 = vsel %vm10123, %v10117, %v10124
        %vm10126 = vcmp.eq.s32.totalorder %v10121, 2
        %v10127 = vxor.u32 %v10117, 2147483648
        %v10128 = vsel %vm10126, %v10127, %v10118
        %v10129 = vsel %vm10122, %v10125, %v10128
        %v10130 = vsel %vm10119, nan, %v10129
        %v10131 = vand.u32 2147483647, %v250
        %vm10132 = vcmp.le.f32.partialorder %v10131, 0.7853982
        %vm10133 = vcmp.lt.s32.totalorder %v250, 0
        %v10134 = vand.u32 %v250, 2139095040
        %v10135 = vshrl.u32 %v10134, 23
        %v10136 = vsub.s32 %v10135, 127
        %v10137 = vand.u32 2147483647, %v250
        %v10138 = vand.u32 %v10137, 8388607
        %v10139 = vor.u32 %v10138, 8388608
        %v10140 = vsub.s32 0, %v10139
        %v10141 = vadd.s32 %v10136, 1
        %vm10142 = vcmp.gt.s32.totalorder %v10141, 0
        %v10143 = vsel %vm10142, %v10141, 0
        %v10144 = vshrl.u32 %v10143, 5
        %v10145 = vand.u32 %v10143, 31
        %v10146 = vsub.s32 32, %v10145
        %v10147 = vshrl.u32 683565275, %v10146
        %v10148 = vshll.u32 683565275, %v10145
        %v10149 = vshrl.u32 2475754826, %v10146
        %v10150 = vor.u32 %v10148, %v10149
        %v10151 = vshll.u32 2475754826, %v10145
        %v10152 = vshrl.u32 2131351028, %v10146
        %v10153 = vor.u32 %v10151, %v10152
        %v10154 = vshll.u32 2131351028, %v10145
        %v10155 = vshrl.u32 2102212464, %v10146
        %v10156 = vor.u32 %v10154, %v10155
        %v10157 = vshll.u32 2102212464, %v10145
        %v10158 = vshrl.u32 920167782, %v10146
        %v10159 = vor.u32 %v10157, %v10158
        %v10160 = vshll.u32 920167782, %v10145
        %v10161 = vshrl.u32 1326507024, %v10146
        %v10162 = vor.u32 %v10160, %v10161
        %vm10163 = vcmp.lt.s32.totalorder %v10144, 1
        %vm10164 = vcmp.lt.s32.totalorder %v10144, 2
        %vm10165 = vcmp.lt.s32.totalorder %v10144, 3
        %vm10166 = vcmp.lt.s32.totalorder %v10144, 4
        %v10167 = vsel %vm10163, %v10147, %v10150
        %v10168 = vsel %vm10166, %v10156, 2102212464
        %v10169 = vsel %vm10165, %v10153, %v10168
        %v10170 = vsel %vm10164, %v10167, %v10169
        %v10171 = vsel %vm10163, %v10150, %v10153
        %v10172 = vsel %vm10166, %v10159, 920167782
        %v10173 = vsel %vm10165, %v10156, %v10172
        %v10174 = vsel %vm10164, %v10171, %v10173
        %v10175 = vsel %vm10163, %v10153, %v10156
        %v10176 = vsel %vm10166, %v10162, 1326507024
        %v10177 = vsel %vm10165, %v10159, %v10176
        %v10178 = vsel %vm10164, %v10175, %v10177
        %v10179 = vshll.u32 %v10139, 8
        %v10180 = vmul.u32.u64.compose %v10179, %v10178
        %v10181 = vextract.low.u32 %v10180
        %v10182 = vextract.high.u32 %v10180
        %v10183 = vmul.u32.u64.compose %v10179, %v10174
        %v10184 = vextract.low.u32 %v10183
        %v10185 = vextract.high.u32 %v10183
        %v10186 = vmul.u32 %v10179, %v10170
        %v10187 = vadd.s32 %v10182, %v10184
        %vm10188 = vc.u32 %v10182, %v10184
        %v10189 = vadd.s32 %v10185, 1
        %v10190 = vsel %vm10188, %v10189, %v10185
        %v10191 = vadd.s32 %v10186, %v10190
        %v10192 = vadd.s32 %v10191, 536870912
        %v10193 = vshrl.u32 %v10192, 30
        %v10194 = vshll.u32 %v10193, 30
        %v10195 = vsub.s32 %v10191, %v10194
        %vm10196 = vcmp.lt.s32.totalorder %v10195, 0
        %v10197 = vsub.s32 0, %v10195
        %v10198 = vsel %vm10196, %v10197, %v10195
        %v10199 = vclz %v10198
        %v10200 = vsub.s32 %v10199, 2
        %vm10201 = vcmp.gt.s32.totalorder 0, %v10200
        %v10202 = vsel %vm10201, 0, %v10200
        %v10203 = vsub.s32 32, %v10202
        %v10204 = vshll.u32 %v10195, %v10202
        %v10205 = vshrl.u32 %v10187, %v10203
        %v10206 = vor.u32 %v10204, %v10205
        %v10207 = vsub.s32 4294967266, %v10202
        %v10208 = vadd.s32 %v10207, 127
        %v10209 = vshll.u32 %v10208, 23
        %v10210 = vor.u32 4788187, %v10209
        %v10211 = vand.u32 2147483647, %v10210
        %v10213 = vcvt.s32.f32 %v10206
        %v10214 = vmul.f32 %v10213, %v10211
        %v10215 = vxor.u32 %v10214, 2147483648
        %v10216 = vsel %vm10133, %v10215, %v10214
        %v10217 = vsub.s32 4, %v10193
        %v10218 = vsel %vm10133, %v10217, %v10193
        %v10219 = vsel %vm10132, %v250, %v10216
        %v10220 = vsel %vm10132, 0, %v10218
        %v10221 = vcosq.f32.pop %v10219
        %v10222 = vsinq.f32.pop %v10219
        %vm10223 = vweird.f32 %v250
        %v10224 = vadd.s32 %v10220, 3
        %v10225 = vand.u32 %v10224, 3
        %vm10226 = vcmp.lt.s32.totalorder %v10225, 2
        %vm10227 = vcmp.eq.s32.totalorder %v10225, 0
        %v10228 = vxor.u32 %v10222, 2147483648
        %v10229 = vsel %vm10227, %v10221, %v10228
        %vm10230 = vcmp.eq.s32.totalorder %v10225, 2
        %v10231 = vxor.u32 %v10221, 2147483648
        %v10232 = vsel %vm10230, %v10231, %v10222
        %v10233 = vsel %vm10226, %v10229, %v10232
        %v10234 = vsel %vm10223, nan, %v10233
        %10235 = vst [vmem:[%s142] sm:$0xff] %v354
        %10236 = vst [vmem:[%s142 + $0x8] sm:$0xff] %v458
        %10237 = vst [vmem:[%s142 + $0x10] sm:$0xff] %v562
        %10238 = vst [vmem:[%s142 + $0x18] sm:$0xff] %v666
        %10239 = vst [vmem:[%s142 + $0x20] sm:$0xff] %v770
        %10240 = vst [vmem:[%s142 + $0x28] sm:$0xff] %v874
        %10241 = vst [vmem:[%s142 + $0x30] sm:$0xff] %v978
        %10242 = vst [vmem:[%s142 + $0x38] sm:$0xff] %v1082
        %10243 = vst [vmem:[%s142 + $0x40] sm:$0xff] %v1186
        %10244 = vst [vmem:[%s142 + $0x48] sm:$0xff] %v1290
        %10245 = vst [vmem:[%s142 + $0x50] sm:$0xff] %v1394
        %10246 = vst [vmem:[%s142 + $0x58] sm:$0xff] %v1498
        %10247 = vst [vmem:[%s142 + $0x60] sm:$0xff] %v1602
        %10248 = vst [vmem:[%s142 + $0x68] sm:$0xff] %v1706
        %10249 = vst [vmem:[%s142 + $0x70] sm:$0xff] %v1810
        %10250 = vst [vmem:[%s142 + $0x78] sm:$0xff] %v1914
        %10251 = vst [vmem:[%s142 + $0x80] sm:$0xff] %v2018
        %10252 = vst [vmem:[%s142 + $0x88] sm:$0xff] %v2122
        %10253 = vst [vmem:[%s142 + $0x90] sm:$0xff] %v2226
        %10254 = vst [vmem:[%s142 + $0x98] sm:$0xff] %v2330
        %10255 = vst [vmem:[%s142 + $0xa0] sm:$0xff] %v2434
        %10256 = vst [vmem:[%s142 + $0xa8] sm:$0xff] %v2538
        %10257 = vst [vmem:[%s142 + $0xb0] sm:$0xff] %v2642
        %10258 = vst [vmem:[%s142 + $0xb8] sm:$0xff] %v2746
        %10259 = vst [vmem:[%s142 + $0xc0] sm:$0xff] %v2850
        %10260 = vst [vmem:[%s142 + $0xc8] sm:$0xff] %v2954
        %10261 = vst [vmem:[%s142 + $0xd0] sm:$0xff] %v3058
        %10262 = vst [vmem:[%s142 + $0xd8] sm:$0xff] %v3162
        %10263 = vst [vmem:[%s142 + $0xe0] sm:$0xff] %v3266
        %10264 = vst [vmem:[%s142 + $0xe8] sm:$0xff] %v3370
        %10265 = vst [vmem:[%s142 + $0xf0] sm:$0xff] %v3474
        %10266 = vst [vmem:[%s142 + $0xf8] sm:$0xff] %v3578
        %10267 = vst [vmem:[%s142 + $0x100] sm:$0xff] %v3682
        %10268 = vst [vmem:[%s142 + $0x108] sm:$0xff] %v3786
        %10269 = vst [vmem:[%s142 + $0x110] sm:$0xff] %v3890
        %10270 = vst [vmem:[%s142 + $0x118] sm:$0xff] %v3994
        %10271 = vst [vmem:[%s142 + $0x120] sm:$0xff] %v4098
        %10272 = vst [vmem:[%s142 + $0x128] sm:$0xff] %v4202
        %10273 = vst [vmem:[%s142 + $0x130] sm:$0xff] %v4306
        %10274 = vst [vmem:[%s142 + $0x138] sm:$0xff] %v4410
        %10275 = vst [vmem:[%s142 + $0x140] sm:$0xff] %v4514
        %10276 = vst [vmem:[%s142 + $0x148] sm:$0xff] %v4618
        %10277 = vst [vmem:[%s142 + $0x150] sm:$0xff] %v4722
        %10278 = vst [vmem:[%s142 + $0x158] sm:$0xff] %v4826
        %10279 = vst [vmem:[%s142 + $0x160] sm:$0xff] %v4930
        %10280 = vst [vmem:[%s142 + $0x168] sm:$0xff] %v5034
        %10281 = vst [vmem:[%s142 + $0x170] sm:$0xff] %v5138
        %10282 = vst [vmem:[%s142 + $0x178] sm:$0xff] %v5242
        %10283 = vst [vmem:[%s142 + $0x180] sm:$0xff] %v5346
        %10284 = vst [vmem:[%s142 + $0x188] sm:$0xff] %v5450
        %10285 = vst [vmem:[%s142 + $0x190] sm:$0xff] %v5554
        %10286 = vst [vmem:[%s142 + $0x198] sm:$0xff] %v5658
        %10287 = vst [vmem:[%s142 + $0x1a0] sm:$0xff] %v5762
        %10288 = vst [vmem:[%s142 + $0x1a8] sm:$0xff] %v5866
        %10289 = vst [vmem:[%s142 + $0x1b0] sm:$0xff] %v5970
        %10290 = vst [vmem:[%s142 + $0x1b8] sm:$0xff] %v6074
        %10291 = vst [vmem:[%s142 + $0x1c0] sm:$0xff] %v6178
        %10292 = vst [vmem:[%s142 + $0x1c8] sm:$0xff] %v6282
        %10293 = vst [vmem:[%s142 + $0x1d0] sm:$0xff] %v6386
        %10294 = vst [vmem:[%s142 + $0x1d8] sm:$0xff] %v6490
        %10295 = vst [vmem:[%s142 + $0x1e0] sm:$0xff] %v6594
        %10296 = vst [vmem:[%s142 + $0x1e8] sm:$0xff] %v6698
        %10297 = vst [vmem:[%s142 + $0x1f0] sm:$0xff] %v6802
        %10298 = vst [vmem:[%s142 + $0x1f8] sm:$0xff] %v6906
        %10299 = vst [vmem:[%s142 + $0x200] sm:$0xff] %v7010
        %10300 = vst [vmem:[%s142 + $0x208] sm:$0xff] %v7114
        %10301 = vst [vmem:[%s142 + $0x210] sm:$0xff] %v7218
        %10302 = vst [vmem:[%s142 + $0x218] sm:$0xff] %v7322
        %10303 = vst [vmem:[%s142 + $0x220] sm:$0xff] %v7426
        %10304 = vst [vmem:[%s142 + $0x228] sm:$0xff] %v7530
        %10305 = vst [vmem:[%s142 + $0x230] sm:$0xff] %v7634
        %10306 = vst [vmem:[%s142 + $0x238] sm:$0xff] %v7738
        %10307 = vst [vmem:[%s142 + $0x240] sm:$0xff] %v7842
        %10308 = vst [vmem:[%s142 + $0x248] sm:$0xff] %v7946
        %10309 = vst [vmem:[%s142 + $0x250] sm:$0xff] %v8050
        %10310 = vst [vmem:[%s142 + $0x258] sm:$0xff] %v8154
        %10311 = vst [vmem:[%s142 + $0x260] sm:$0xff] %v8258
        %10312 = vst [vmem:[%s142 + $0x268] sm:$0xff] %v8362
        %10313 = vst [vmem:[%s142 + $0x270] sm:$0xff] %v8466
        %10314 = vst [vmem:[%s142 + $0x278] sm:$0xff] %v8570
        %10315 = vst [vmem:[%s142 + $0x280] sm:$0xff] %v8674
        %10316 = vst [vmem:[%s142 + $0x288] sm:$0xff] %v8778
        %10317 = vst [vmem:[%s142 + $0x290] sm:$0xff] %v8882
        %10318 = vst [vmem:[%s142 + $0x298] sm:$0xff] %v8986
        %10319 = vst [vmem:[%s142 + $0x2a0] sm:$0xff] %v9090
        %10320 = vst [vmem:[%s142 + $0x2a8] sm:$0xff] %v9194
        %10321 = vst [vmem:[%s142 + $0x2b0] sm:$0xff] %v9298
        %10322 = vst [vmem:[%s142 + $0x2b8] sm:$0xff] %v9402
        %10323 = vst [vmem:[%s142 + $0x2c0] sm:$0xff] %v9506
        %10324 = vst [vmem:[%s142 + $0x2c8] sm:$0xff] %v9610
        %10325 = vst [vmem:[%s142 + $0x2d0] sm:$0xff] %v9714
        %10326 = vst [vmem:[%s142 + $0x2d8] sm:$0xff] %v9818
        %10327 = vst [vmem:[%s142 + $0x2e0] sm:$0xff] %v9922
        %10328 = vst [vmem:[%s142 + $0x2e8] sm:$0xff] %v10026
        %10329 = vst [vmem:[%s142 + $0x2f0] sm:$0xff] %v10130
        %10330 = vst [vmem:[%s142 + $0x2f8] sm:$0xff] %v10234
        %s10331 = sand.u32 %s52, 1
        %s10332 = scalar_lea.sflag [#allocation4], %s10331
        %s10333 = sand.u32 %s52, 1
        %s10334 = smul.addr %s10333, 768
        %s10335 = scalar_lea.vmem [#allocation5], %s10334
        // Predicated region
        $region29: #{tpu_custom_call.1} parent=23 // pred_check
          %p10336 = pneg %p62
        $region30: #{tpu_custom_call.1} parent=23 // pred_check_branch
          %10338 = sbr.rel (%p10336) target = $region32
        $region31: #{tpu_custom_call.1} parent=23 // pred_region
          %s10339 = smul.u32 12, %s18
          %s10340 = ssub.s32 80, %s10339
          %p10341 = scmp.lt.s32.totalorder %s10340, 12
          %s10342 = scalar_select %p10341, %s10340, 12
          %s10343 = smul.u32 128, %s10342
          %s10344 = smul.u32 %s10343, 8
          %s10346 = ssub.s32 12288, %s10344
          %10347 = vsyncadd %s10332, %s10346
          %p10348 = scmp.ne.s32.totalorder 0, %s10344
          %s10349 = smul.addr %s10339, 8
          %s10350 = smul.addr %s10349, 128
          %s10351 = scalar_lea.hbm %s1, %s10350
          %s10352 = smul.u32 64, %s10342
          %s10353 = sshll.u32 %s10335, 4
          %s10354 = int_to_ptr.vmem [resolvable:$true] %s10353
          %s10355 = sshll.u32 %s10352, 4
          %10359 = dma.vmem_to_hbm [thread:$0]  (%p10348), %s10354, %s10355, %s10351, %s10332, 1024, 1024, 64
        $region32: #{tpu_custom_call.1} parent=23 // pred_fallthru
          _
      $region24: #{tpu_custom_call.1} parent=5 // pred_fallthru
        _
      %p10360 = scmp.le.s32.totalorder 2, %s13
      // Predicated region
      $region33: #{tpu_custom_call.1} parent=5 // pred_check
        %p10361 = pneg %p10360
      $region34: #{tpu_custom_call.1} parent=5 // pred_check_branch
        %10363 = sbr.rel (%p10361) target = $region36
      $region35: #{tpu_custom_call.1} parent=5 // pred_region
        %s10364 = ssub.s32 %s13, 2
        // Predicated region
        $region37: #{tpu_custom_call.1} parent=35 // pred_check
          %p10365 = pneg %p68
        $region38: #{tpu_custom_call.1} parent=35 // pred_check_branch
          %10367 = sbr.rel (%p10365) target = $region40
        $region39: #{tpu_custom_call.1} parent=35 // pred_region
          %s10368 = sand.u32 %s53, 1
          %s10369 = scalar_lea.sflag [#allocation4], %s10368
          %s10370 = sand.u32 %s53, 1
          %s10371 = smul.addr %s10370, 768
          %s10372 = scalar_lea.vmem [#allocation5], %s10371
          %10373 = dma.done %s10369, 12288
        $region40: #{tpu_custom_call.1} parent=35 // pred_fallthru
          _
      $region36: #{tpu_custom_call.1} parent=5 // pred_fallthru
        _
    $region6: #{tpu_custom_call.1} parent=1 // loop_footer
      %s17 = sadd.s32 1, %s13
    $region7: #{tpu_custom_call.1} parent=1 // loop_footer_branch
      %12 = sbr.rel target = $region3
    $region8: #{tpu_custom_call.1} parent=1 // loop_exit
      _
    %10374 = vsyncpa [#allocation3], 1
    %s10375 = scalar_lea.sflag [#allocation3], 1
    %10376 = vsyncpa %s10375, 1
    %10377 = vsyncpa [#allocation4], 1
    %s10378 = scalar_lea.sflag [#allocation4], 1
    %10379 = vsyncpa %s10378, 1

</llo_original>
